<compile_context>
chip_gen: v5e
topology: v5e:2x2
jax: 0.10.0
libtpu: 0.0.40
codegen_flags: <defaults>
</compile_context>

<pallas_src>
import functools

import jax
import jax.numpy as jnp
from jax.experimental import pallas as pl
from jax.experimental.pallas import tpu as pltpu


CFG = dict(vocab=128, max_pos=16, hidden=128, heads=4, layers=2, ffn=256, seq=8)


# ----------------------------- Pallas kernel --------------------------------

def _ln(x, g, b, eps):
    """f32 layernorm over the last axis (VPU/EUP only, no MXU)."""
    mean = jnp.mean(x, axis=-1, keepdims=True)
    var = jnp.mean(jnp.square(x - mean), axis=-1, keepdims=True)
    return (x - mean) * jax.lax.rsqrt(var + eps) * g + b


def _encoder_kernel(*refs, B, S, num_layers, num_heads, eps, with_sim):
    """Whole-batch fused RoBERTa-style encoder (+ optional similarity head).

    Activations live as one (B*S, H) slab so every projection / FFN matmul
    feeds B*S rows into the MXU.  Only the score / context dots are per
    sequence & head.  Output is pooled (B, H), or, when `with_sim`, the fused
    similarity scores c_emb @ pooled^T of shape (Nc, B).
    """
    if with_sim:
        c_emb_ref, refs = refs[0], refs[1:]
    (x_ref, pos_ref, emb_g_ref, emb_b_ref,
     wqkv_ref, bqkv_ref, wo_ref, bo_ref,
     ln1_g_ref, ln1_b_ref, w1_ref, b1_ref, w2_ref, b2_ref,
     ln2_g_ref, ln2_b_ref, pool_w_ref, pool_b_ref, out_ref) = refs

    BS, H = x_ref.shape
    dH = H // num_heads
    scale = 1.0 / (dH ** 0.5)
    bf16 = jnp.bfloat16

    # Embedding add + LN (f32).  Positions tiled across the batch in-kernel.
    pos = jnp.concatenate([pos_ref[...]] * B, axis=0)            # (B*S, H)
    x = x_ref[...] + pos
    x = _ln(x, emb_g_ref[...], emb_b_ref[...], eps)

    for l in range(num_layers):                    # static unroll (L small)
        # ---- fused QKV projection over ALL batch rows: (B*S,H) @ (H,3H) ----
        qkv = jnp.dot(x.astype(bf16), wqkv_ref[l],
                      preferred_element_type=jnp.float32) + bqkv_ref[l]
        qkv16 = qkv.astype(bf16)                   # cast once, slice per head

        # ---- per-sequence / per-head attention; contexts packed into one
        #      (B*S, H) buffer so the out-proj is a single full-K matmul ----
        ctx_rows = []
        for b in range(B):
            r0 = b * S
            head_ctx = []
            for h in range(num_heads):
                qh = qkv16[r0:r0 + S, h * dH:(h + 1) * dH]
                kh = qkv16[r0:r0 + S, H + h * dH:H + (h + 1) * dH]
                vh = qkv16[r0:r0 + S, 2 * H + h * dH:2 * H + (h + 1) * dH]
                # scores = qh @ kh^T (contract last dims, no transpose)
                s = jax.lax.dot_general(
                    qh, kh, dimension_numbers=(((1,), (1,)), ((), ())),
                    preferred_element_type=jnp.float32) * scale
                s = s - jnp.max(s, axis=-1, keepdims=True)
                p = jnp.exp(s)
                p = p * pl.reciprocal(jnp.sum(p, axis=-1, keepdims=True),
                                      approx=True)
                head_ctx.append(jnp.dot(p.astype(bf16), vh,
                                        preferred_element_type=jnp.float32))
            ctx_rows.append(jnp.concatenate(head_ctx, axis=-1))   # (S, H)
        ctx = jnp.concatenate(ctx_rows, axis=0).astype(bf16)      # (B*S, H)

        # ---- single output projection: (B*S,H) @ (H,H), K = H ----
        attn = jnp.dot(ctx, wo_ref[l],
                       preferred_element_type=jnp.float32) + bo_ref[l]

        # ---- residual + LN1 (post-LN, RoBERTa) ----
        x = _ln(x + attn, ln1_g_ref[l], ln1_b_ref[l], eps)

        # ---- feed-forward over all batch rows ----
        f = jnp.dot(x.astype(bf16), w1_ref[l],
                    preferred_element_type=jnp.float32) + b1_ref[l]
        f = jax.nn.gelu(f)
        f = jnp.dot(f.astype(bf16), w2_ref[l],
                    preferred_element_type=jnp.float32) + b2_ref[l]

        # ---- residual + LN2 ----
        x = _ln(x + f, ln2_g_ref[l], ln2_b_ref[l], eps)

    # ---- pooler: tanh(dense(hidden[:, 0])), CLS rows gathered to (B, H) ----
    cls = jnp.concatenate([x[b * S:b * S + 1, :] for b in range(B)], axis=0)
    pooled = jnp.tanh(
        jnp.dot(cls.astype(bf16), pool_w_ref[...],
                preferred_element_type=jnp.float32) + pool_b_ref[...])

    if with_sim:
        # Fused similarity head: sim = C @ pooled^T (contract last dims).
        out_ref[...] = jax.lax.dot_general(
            c_emb_ref[...].astype(bf16), pooled.astype(bf16),
            dimension_numbers=(((1,), (1,)), ((), ())),
            preferred_element_type=jnp.float32).astype(out_ref.dtype)
    else:
        out_ref[...] = pooled.astype(out_ref.dtype)


# ------------------------------- wrappers ------------------------------------

def encode(params, tokens, cfg, c_emb=None):
    """Fused Pallas encoder.  Returns pooler_output (B, H); when `c_emb` is
    given, returns the fused similarity scores c_emb @ pooled^T (Nc, B)."""
    B, S = tokens.shape
    H, L, nH, F = cfg["hidden"], cfg["layers"], cfg["heads"], cfg["ffn"]
    BS = B * S
    with_sim = c_emb is not None

    # Token-embedding gather is data-dependent glue; done in plain JAX.
    tok = jnp.take(params["tok_emb"], tokens.reshape(-1), axis=0)  # (B*S, H)
    pos = params["pos_emb"][:S]                                    # (S, H)

    kernel = functools.partial(_encoder_kernel, B=B, S=S, num_layers=L,
                               num_heads=nH, eps=1e-5, with_sim=with_sim)

    def full(shape):
        # Whole array as one block; constant block index over the 1-step grid.
        return pl.BlockSpec(shape, lambda i, n=len(shape): (0,) * n)

    in_specs = [
        full((BS, H)), full((S, H)),                       # tokens, positions
        full((1, H)), full((1, H)),                        # embedding LN
        full((L, H, 3 * H)), full((L, 1, 3 * H)),          # fused QKV proj
        full((L, H, H)), full((L, 1, H)),                  # attn out-proj
        full((L, 1, H)), full((L, 1, H)),                  # LN1
        full((L, H, F)), full((L, 1, F)),                  # FFN W1
        full((L, F, H)), full((L, 1, H)),                  # FFN W2
        full((L, 1, H)), full((L, 1, H)),                  # LN2
        full((H, H)), full((1, H)),                        # pooler
    ]
    operands = [tok, pos,
                params["emb_ln_g"], params["emb_ln_b"],
                params["wqkv"], params["bqkv"], params["wo"], params["bo"],
                params["ln1_g"], params["ln1_b"], params["w1"], params["b1"],
                params["w2"], params["b2"], params["ln2_g"], params["ln2_b"],
                params["pool_w"], params["pool_b"]]

    if with_sim:
        Nc = c_emb.shape[0]
        in_specs = [full((Nc, H))] + in_specs
        operands = [c_emb] + operands
        out_spec = full((Nc, B))
        out_shape = jax.ShapeDtypeStruct((Nc, B), jnp.float32)
    else:
        out_spec = full((B, H))
        out_shape = jax.ShapeDtypeStruct((B, H), jnp.float32)

    return pl.pallas_call(
        kernel,
        grid=(1,),                 # whole batch folded into one grid step
        in_specs=in_specs,
        out_specs=out_spec,
        out_shape=out_shape,
        compiler_params=pltpu.CompilerParams(
            dimension_semantics=("arbitrary",),
            vmem_limit_bytes=48 * 1024 * 1024),
    )(*operands)


def sentence_similarity_forward(c_params, s_params, claims, sents, cfg):
    c_embeddings = encode(c_params, claims, cfg)               # (Nc, H) pooled
    # Sentence encoder with the similarity head fused in: (Nc, Ns).
    return encode(s_params, sents, cfg, c_emb=c_embeddings)


# --------------------------------- params ------------------------------------

def init_encoder_params(key, cfg):
    H, F, L = cfg["hidden"], cfg["ffn"], cfg["layers"]
    keys = iter(jax.random.split(key, 32))

    def wbf16(shape):     # MXU weights stored in bf16 (halves HBM traffic)
        return (0.02 * jax.random.normal(next(keys), shape)).astype(jnp.bfloat16)

    def wf32(shape):
        return (0.02 * jax.random.normal(next(keys), shape)).astype(jnp.float32)

    return {
        "tok_emb": wf32((cfg["vocab"], H)),
        "pos_emb": wf32((cfg["max_pos"], H)),
        "emb_ln_g": jnp.ones((1, H), jnp.float32),
        "emb_ln_b": jnp.zeros((1, H), jnp.float32),
        "wqkv": jnp.stack([wbf16((H, 3 * H)) for _ in range(L)]),
        "bqkv": jnp.zeros((L, 1, 3 * H), jnp.float32),
        "wo": jnp.stack([wbf16((H, H)) for _ in range(L)]),
        "bo": jnp.zeros((L, 1, H), jnp.float32),
        "ln1_g": jnp.ones((L, 1, H), jnp.float32),
        "ln1_b": jnp.zeros((L, 1, H), jnp.float32),
        "w1": jnp.stack([wbf16((H, F)) for _ in range(L)]),
        "b1": jnp.zeros((L, 1, F), jnp.float32),
        "w2": jnp.stack([wbf16((F, H)) for _ in range(L)]),
        "b2": jnp.zeros((L, 1, H), jnp.float32),
        "ln2_g": jnp.ones((L, 1, H), jnp.float32),
        "ln2_b": jnp.zeros((L, 1, H), jnp.float32),
        "pool_w": wbf16((H, H)),
        "pool_b": jnp.zeros((1, H), jnp.float32),
    }


# ---------------------------------- main --------------------------------------

if __name__ == "__main__":
    key = jax.random.PRNGKey(0)
    k_c, k_s, k_claims, k_sents = jax.random.split(key, 4)

    cfg = CFG
    c_params = init_encoder_params(k_c, cfg)   # claim encoder
    s_params = init_encoder_params(k_s, cfg)   # sentence encoder

    n_claims, n_sents = 2, 3
    claims = jax.random.randint(k_claims, (n_claims, cfg["seq"]), 0,
                                cfg["vocab"], dtype=jnp.int32)
    sents = jax.random.randint(k_sents, (n_sents, cfg["seq"]), 0,
                               cfg["vocab"], dtype=jnp.int32)

    @jax.jit
    def fwd(c_p, s_p, c_tok, s_tok):
        return sentence_similarity_forward(c_p, s_p, c_tok, s_tok, cfg)

    sim_scores = fwd(c_params, s_params, claims, sents)
    sim_scores = jax.block_until_ready(sim_scores)

    assert sim_scores.shape == (n_claims, n_sents)
    assert sim_scores.dtype == jnp.float32
    assert bool(jnp.all(jnp.isfinite(sim_scores)))
    print("KERNEL_OK")
</pallas_src>

<mosaic_0001>
module attributes {stable_mosaic.version = 11 : i64} {
  func.func @_encoder_kernel(%arg0: i32, %arg1: memref<16x128xf32, #tpu.memory_space<vmem>>, %arg2: memref<8x128xf32, #tpu.memory_space<vmem>>, %arg3: memref<1x128xf32, #tpu.memory_space<vmem>>, %arg4: memref<1x128xf32, #tpu.memory_space<vmem>>, %arg5: memref<2x128x384xbf16, #tpu.memory_space<vmem>>, %arg6: memref<2x1x384xf32, #tpu.memory_space<vmem>>, %arg7: memref<2x128x128xbf16, #tpu.memory_space<vmem>>, %arg8: memref<2x1x128xf32, #tpu.memory_space<vmem>>, %arg9: memref<2x1x128xf32, #tpu.memory_space<vmem>>, %arg10: memref<2x1x128xf32, #tpu.memory_space<vmem>>, %arg11: memref<2x128x256xbf16, #tpu.memory_space<vmem>>, %arg12: memref<2x1x256xf32, #tpu.memory_space<vmem>>, %arg13: memref<2x256x128xbf16, #tpu.memory_space<vmem>>, %arg14: memref<2x1x128xf32, #tpu.memory_space<vmem>>, %arg15: memref<2x1x128xf32, #tpu.memory_space<vmem>>, %arg16: memref<2x1x128xf32, #tpu.memory_space<vmem>>, %arg17: memref<128x128xbf16, #tpu.memory_space<vmem>>, %arg18: memref<1x128xf32, #tpu.memory_space<vmem>>, %arg19: memref<2x128xf32, #tpu.memory_space<vmem>>) attributes {dimension_semantics = [#tpu.dimension_semantics<arbitrary>], iteration_bounds = array<i64: 1>, scalar_prefetch = 0 : i64, scratch_operands = 0 : i64, tpu.core_type = #tpu.core_type<tc>, window_params = [{pipeline_mode = #tpu.pipeline_mode<synchronous>, transform_indices = @transform_0, window_bounds = array<i64: 16, 128>}, {pipeline_mode = #tpu.pipeline_mode<synchronous>, transform_indices = @transform_1, window_bounds = array<i64: 8, 128>}, {pipeline_mode = #tpu.pipeline_mode<synchronous>, transform_indices = @transform_2, window_bounds = array<i64: 1, 128>}, {pipeline_mode = #tpu.pipeline_mode<synchronous>, transform_indices = @transform_3, window_bounds = array<i64: 1, 128>}, {pipeline_mode = #tpu.pipeline_mode<synchronous>, transform_indices = @transform_4, window_bounds = array<i64: 2, 128, 384>}, {pipeline_mode = #tpu.pipeline_mode<synchronous>, transform_indices = @transform_5, window_bounds = array<i64: 2, 1, 384>}, {pipeline_mode = #tpu.pipeline_mode<synchronous>, transform_indices = @transform_6, window_bounds = array<i64: 2, 128, 128>}, {pipeline_mode = #tpu.pipeline_mode<synchronous>, transform_indices = @transform_7, window_bounds = array<i64: 2, 1, 128>}, {pipeline_mode = #tpu.pipeline_mode<synchronous>, transform_indices = @transform_8, window_bounds = array<i64: 2, 1, 128>}, {pipeline_mode = #tpu.pipeline_mode<synchronous>, transform_indices = @transform_9, window_bounds = array<i64: 2, 1, 128>}, {pipeline_mode = #tpu.pipeline_mode<synchronous>, transform_indices = @transform_10, window_bounds = array<i64: 2, 128, 256>}, {pipeline_mode = #tpu.pipeline_mode<synchronous>, transform_indices = @transform_11, window_bounds = array<i64: 2, 1, 256>}, {pipeline_mode = #tpu.pipeline_mode<synchronous>, transform_indices = @transform_12, window_bounds = array<i64: 2, 256, 128>}, {pipeline_mode = #tpu.pipeline_mode<synchronous>, transform_indices = @transform_13, window_bounds = array<i64: 2, 1, 128>}, {pipeline_mode = #tpu.pipeline_mode<synchronous>, transform_indices = @transform_14, window_bounds = array<i64: 2, 1, 128>}, {pipeline_mode = #tpu.pipeline_mode<synchronous>, transform_indices = @transform_15, window_bounds = array<i64: 2, 1, 128>}, {pipeline_mode = #tpu.pipeline_mode<synchronous>, transform_indices = @transform_16, window_bounds = array<i64: 128, 128>}, {pipeline_mode = #tpu.pipeline_mode<synchronous>, transform_indices = @transform_17, window_bounds = array<i64: 1, 128>}, {pipeline_mode = #tpu.pipeline_mode<synchronous>, transform_indices = @transform_18, window_bounds = array<i64: 2, 128>}]} {
    %c0 = arith.constant 0 : index
    %c0_0 = arith.constant 0 : index
    %0 = vector.load %arg2[%c0, %c0_0] : memref<8x128xf32, #tpu.memory_space<vmem>>, vector<8x128xf32>
    %1 = tpu.concatenate %0, %0 in 0 : vector<8x128xf32>, vector<8x128xf32> -> vector<16x128xf32>
    %c0_1 = arith.constant 0 : index
    %c0_2 = arith.constant 0 : index
    %2 = vector.load %arg1[%c0_1, %c0_2] : memref<16x128xf32, #tpu.memory_space<vmem>>, vector<16x128xf32>
    %3 = arith.addf %2, %1 : vector<16x128xf32>
    %c0_3 = arith.constant 0 : index
    %c0_4 = arith.constant 0 : index
    %4 = vector.load %arg3[%c0_3, %c0_4] : memref<1x128xf32, #tpu.memory_space<vmem>>, vector<1x128xf32>
    %c0_5 = arith.constant 0 : index
    %c0_6 = arith.constant 0 : index
    %5 = vector.load %arg4[%c0_5, %c0_6] : memref<1x128xf32, #tpu.memory_space<vmem>>, vector<1x128xf32>
    %cst = arith.constant dense<0.000000e+00> : vector<16xf32>
    %6 = vector.multi_reduction <add>, %3, %cst [1] : vector<16x128xf32> to vector<16xf32>
    %7 = vector.shape_cast %6 : vector<16xf32> to vector<16x1xf32>
    %cst_7 = arith.constant 1.280000e+02 : f32
    %8 = vector.broadcast %cst_7 : f32 to vector<16x1xf32>
    %9 = arith.divf %7, %8 : vector<16x1xf32>
    %10 = vector.broadcast %9 : vector<16x1xf32> to vector<16x128xf32>
    %11 = arith.subf %3, %10 : vector<16x128xf32>
    %12 = arith.mulf %11, %11 : vector<16x128xf32>
    %cst_8 = arith.constant dense<0.000000e+00> : vector<16xf32>
    %13 = vector.multi_reduction <add>, %12, %cst_8 [1] : vector<16x128xf32> to vector<16xf32>
    %14 = vector.shape_cast %13 : vector<16xf32> to vector<16x1xf32>
    %cst_9 = arith.constant 1.280000e+02 : f32
    %15 = vector.broadcast %cst_9 : f32 to vector<16x1xf32>
    %16 = arith.divf %14, %15 : vector<16x1xf32>
    %17 = vector.broadcast %9 : vector<16x1xf32> to vector<16x128xf32>
    %18 = arith.subf %3, %17 : vector<16x128xf32>
    %cst_10 = arith.constant 9.99999974E-6 : f32
    %19 = vector.broadcast %cst_10 : f32 to vector<16x1xf32>
    %20 = arith.addf %16, %19 : vector<16x1xf32>
    %21 = math.rsqrt %20 : vector<16x1xf32>
    %22 = vector.broadcast %21 : vector<16x1xf32> to vector<16x128xf32>
    %23 = arith.mulf %18, %22 : vector<16x128xf32>
    %24 = vector.broadcast %4 : vector<1x128xf32> to vector<16x128xf32>
    %25 = arith.mulf %23, %24 : vector<16x128xf32>
    %26 = vector.broadcast %5 : vector<1x128xf32> to vector<16x128xf32>
    %27 = arith.addf %25, %26 : vector<16x128xf32>
    %28 = arith.truncf %27 : vector<16x128xf32> to vector<16x128xbf16>
    %c0_11 = arith.constant 0 : index
    %c0_12 = arith.constant 0 : index
    %c0_13 = arith.constant 0 : index
    %29 = vector.load %arg5[%c0_11, %c0_12, %c0_13] : memref<2x128x384xbf16, #tpu.memory_space<vmem>>, vector<1x128x384xbf16>
    %30 = vector.shape_cast %29 : vector<1x128x384xbf16> to vector<128x384xbf16>
    %cst_14 = arith.constant dense<0.000000e+00> : vector<16x384xf32>
    %31 = tpu.matmul %28, %30, %cst_14 {dimension_numbers = #tpu.dot_dimension_numbers<[1], [0], [0], [1], [0, 0, 1, 1], [], []>} : vector<16x128xbf16>, vector<128x384xbf16>, vector<16x384xf32> -> vector<16x384xf32>
    %c0_15 = arith.constant 0 : index
    %c0_16 = arith.constant 0 : index
    %c0_17 = arith.constant 0 : index
    %32 = vector.load %arg6[%c0_15, %c0_16, %c0_17] : memref<2x1x384xf32, #tpu.memory_space<vmem>>, vector<1x1x384xf32>
    %33 = vector.shape_cast %32 : vector<1x1x384xf32> to vector<1x384xf32>
    %34 = vector.broadcast %33 : vector<1x384xf32> to vector<16x384xf32>
    %35 = arith.addf %31, %34 : vector<16x384xf32>
    %36 = arith.truncf %35 : vector<16x384xf32> to vector<16x384xbf16>
    %37 = vector.extract_strided_slice %36 {offsets = [0, 0], sizes = [8, 32], strides = [1, 1]} : vector<16x384xbf16> to vector<8x32xbf16>
    %38 = vector.extract_strided_slice %36 {offsets = [0, 128], sizes = [8, 32], strides = [1, 1]} : vector<16x384xbf16> to vector<8x32xbf16>
    %39 = vector.extract_strided_slice %36 {offsets = [0, 256], sizes = [8, 32], strides = [1, 1]} : vector<16x384xbf16> to vector<8x32xbf16>
    %cst_18 = arith.constant dense<0.000000e+00> : vector<8x8xf32>
    %40 = tpu.matmul %37, %38, %cst_18 {dimension_numbers = #tpu.dot_dimension_numbers<[1], [1], [0], [0], [0, 0, 1, 0], [], []>} : vector<8x32xbf16>, vector<8x32xbf16>, vector<8x8xf32> -> vector<8x8xf32>
    %cst_19 = arith.constant 0.176776692 : f32
    %41 = vector.broadcast %cst_19 : f32 to vector<8x8xf32>
    %42 = arith.mulf %40, %41 : vector<8x8xf32>
    %cst_20 = arith.constant dense<0xFF800000> : vector<8xf32>
    %43 = vector.multi_reduction <maximumf>, %42, %cst_20 [1] : vector<8x8xf32> to vector<8xf32>
    %44 = vector.shape_cast %43 : vector<8xf32> to vector<8x1xf32>
    %45 = vector.broadcast %44 : vector<8x1xf32> to vector<8x8xf32>
    %46 = arith.subf %42, %45 : vector<8x8xf32>
    %47 = math.exp %46 : vector<8x8xf32>
    %cst_21 = arith.constant dense<0.000000e+00> : vector<8xf32>
    %48 = vector.multi_reduction <add>, %47, %cst_21 [1] : vector<8x8xf32> to vector<8xf32>
    %49 = vector.shape_cast %48 : vector<8xf32> to vector<8x1xf32>
    %50 = tpu.reciprocal %49 {approx = true} : vector<8x1xf32> -> vector<8x1xf32>
    %51 = vector.broadcast %50 : vector<8x1xf32> to vector<8x8xf32>
    %52 = arith.mulf %47, %51 : vector<8x8xf32>
    %53 = arith.truncf %52 : vector<8x8xf32> to vector<8x8xbf16>
    %cst_22 = arith.constant dense<0.000000e+00> : vector<8x32xf32>
    %54 = tpu.matmul %53, %39, %cst_22 {dimension_numbers = #tpu.dot_dimension_numbers<[1], [0], [0], [1], [0, 0, 1, 1], [], []>} : vector<8x8xbf16>, vector<8x32xbf16>, vector<8x32xf32> -> vector<8x32xf32>
    %55 = vector.extract_strided_slice %36 {offsets = [0, 32], sizes = [8, 32], strides = [1, 1]} : vector<16x384xbf16> to vector<8x32xbf16>
    %56 = vector.extract_strided_slice %36 {offsets = [0, 160], sizes = [8, 32], strides = [1, 1]} : vector<16x384xbf16> to vector<8x32xbf16>
    %57 = vector.extract_strided_slice %36 {offsets = [0, 288], sizes = [8, 32], strides = [1, 1]} : vector<16x384xbf16> to vector<8x32xbf16>
    %cst_23 = arith.constant dense<0.000000e+00> : vector<8x8xf32>
    %58 = tpu.matmul %55, %56, %cst_23 {dimension_numbers = #tpu.dot_dimension_numbers<[1], [1], [0], [0], [0, 0, 1, 0], [], []>} : vector<8x32xbf16>, vector<8x32xbf16>, vector<8x8xf32> -> vector<8x8xf32>
    %cst_24 = arith.constant 0.176776692 : f32
    %59 = vector.broadcast %cst_24 : f32 to vector<8x8xf32>
    %60 = arith.mulf %58, %59 : vector<8x8xf32>
    %cst_25 = arith.constant dense<0xFF800000> : vector<8xf32>
    %61 = vector.multi_reduction <maximumf>, %60, %cst_25 [1] : vector<8x8xf32> to vector<8xf32>
    %62 = vector.shape_cast %61 : vector<8xf32> to vector<8x1xf32>
    %63 = vector.broadcast %62 : vector<8x1xf32> to vector<8x8xf32>
    %64 = arith.subf %60, %63 : vector<8x8xf32>
    %65 = math.exp %64 : vector<8x8xf32>
    %cst_26 = arith.constant dense<0.000000e+00> : vector<8xf32>
    %66 = vector.multi_reduction <add>, %65, %cst_26 [1] : vector<8x8xf32> to vector<8xf32>
    %67 = vector.shape_cast %66 : vector<8xf32> to vector<8x1xf32>
    %68 = tpu.reciprocal %67 {approx = true} : vector<8x1xf32> -> vector<8x1xf32>
    %69 = vector.broadcast %68 : vector<8x1xf32> to vector<8x8xf32>
    %70 = arith.mulf %65, %69 : vector<8x8xf32>
    %71 = arith.truncf %70 : vector<8x8xf32> to vector<8x8xbf16>
    %cst_27 = arith.constant dense<0.000000e+00> : vector<8x32xf32>
    %72 = tpu.matmul %71, %57, %cst_27 {dimension_numbers = #tpu.dot_dimension_numbers<[1], [0], [0], [1], [0, 0, 1, 1], [], []>} : vector<8x8xbf16>, vector<8x32xbf16>, vector<8x32xf32> -> vector<8x32xf32>
    %73 = vector.extract_strided_slice %36 {offsets = [0, 64], sizes = [8, 32], strides = [1, 1]} : vector<16x384xbf16> to vector<8x32xbf16>
    %74 = vector.extract_strided_slice %36 {offsets = [0, 192], sizes = [8, 32], strides = [1, 1]} : vector<16x384xbf16> to vector<8x32xbf16>
    %75 = vector.extract_strided_slice %36 {offsets = [0, 320], sizes = [8, 32], strides = [1, 1]} : vector<16x384xbf16> to vector<8x32xbf16>
    %cst_28 = arith.constant dense<0.000000e+00> : vector<8x8xf32>
    %76 = tpu.matmul %73, %74, %cst_28 {dimension_numbers = #tpu.dot_dimension_numbers<[1], [1], [0], [0], [0, 0, 1, 0], [], []>} : vector<8x32xbf16>, vector<8x32xbf16>, vector<8x8xf32> -> vector<8x8xf32>
    %cst_29 = arith.constant 0.176776692 : f32
    %77 = vector.broadcast %cst_29 : f32 to vector<8x8xf32>
    %78 = arith.mulf %76, %77 : vector<8x8xf32>
    %cst_30 = arith.constant dense<0xFF800000> : vector<8xf32>
    %79 = vector.multi_reduction <maximumf>, %78, %cst_30 [1] : vector<8x8xf32> to vector<8xf32>
    %80 = vector.shape_cast %79 : vector<8xf32> to vector<8x1xf32>
    %81 = vector.broadcast %80 : vector<8x1xf32> to vector<8x8xf32>
    %82 = arith.subf %78, %81 : vector<8x8xf32>
    %83 = math.exp %82 : vector<8x8xf32>
    %cst_31 = arith.constant dense<0.000000e+00> : vector<8xf32>
    %84 = vector.multi_reduction <add>, %83, %cst_31 [1] : vector<8x8xf32> to vector<8xf32>
    %85 = vector.shape_cast %84 : vector<8xf32> to vector<8x1xf32>
    %86 = tpu.reciprocal %85 {approx = true} : vector<8x1xf32> -> vector<8x1xf32>
    %87 = vector.broadcast %86 : vector<8x1xf32> to vector<8x8xf32>
    %88 = arith.mulf %83, %87 : vector<8x8xf32>
    %89 = arith.truncf %88 : vector<8x8xf32> to vector<8x8xbf16>
    %cst_32 = arith.constant dense<0.000000e+00> : vector<8x32xf32>
    %90 = tpu.matmul %89, %75, %cst_32 {dimension_numbers = #tpu.dot_dimension_numbers<[1], [0], [0], [1], [0, 0, 1, 1], [], []>} : vector<8x8xbf16>, vector<8x32xbf16>, vector<8x32xf32> -> vector<8x32xf32>
    %91 = vector.extract_strided_slice %36 {offsets = [0, 96], sizes = [8, 32], strides = [1, 1]} : vector<16x384xbf16> to vector<8x32xbf16>
    %92 = vector.extract_strided_slice %36 {offsets = [0, 224], sizes = [8, 32], strides = [1, 1]} : vector<16x384xbf16> to vector<8x32xbf16>
    %93 = vector.extract_strided_slice %36 {offsets = [0, 352], sizes = [8, 32], strides = [1, 1]} : vector<16x384xbf16> to vector<8x32xbf16>
    %cst_33 = arith.constant dense<0.000000e+00> : vector<8x8xf32>
    %94 = tpu.matmul %91, %92, %cst_33 {dimension_numbers = #tpu.dot_dimension_numbers<[1], [1], [0], [0], [0, 0, 1, 0], [], []>} : vector<8x32xbf16>, vector<8x32xbf16>, vector<8x8xf32> -> vector<8x8xf32>
    %cst_34 = arith.constant 0.176776692 : f32
    %95 = vector.broadcast %cst_34 : f32 to vector<8x8xf32>
    %96 = arith.mulf %94, %95 : vector<8x8xf32>
    %cst_35 = arith.constant dense<0xFF800000> : vector<8xf32>
    %97 = vector.multi_reduction <maximumf>, %96, %cst_35 [1] : vector<8x8xf32> to vector<8xf32>
    %98 = vector.shape_cast %97 : vector<8xf32> to vector<8x1xf32>
    %99 = vector.broadcast %98 : vector<8x1xf32> to vector<8x8xf32>
    %100 = arith.subf %96, %99 : vector<8x8xf32>
    %101 = math.exp %100 : vector<8x8xf32>
    %cst_36 = arith.constant dense<0.000000e+00> : vector<8xf32>
    %102 = vector.multi_reduction <add>, %101, %cst_36 [1] : vector<8x8xf32> to vector<8xf32>
    %103 = vector.shape_cast %102 : vector<8xf32> to vector<8x1xf32>
    %104 = tpu.reciprocal %103 {approx = true} : vector<8x1xf32> -> vector<8x1xf32>
    %105 = vector.broadcast %104 : vector<8x1xf32> to vector<8x8xf32>
    %106 = arith.mulf %101, %105 : vector<8x8xf32>
    %107 = arith.truncf %106 : vector<8x8xf32> to vector<8x8xbf16>
    %cst_37 = arith.constant dense<0.000000e+00> : vector<8x32xf32>
    %108 = tpu.matmul %107, %93, %cst_37 {dimension_numbers = #tpu.dot_dimension_numbers<[1], [0], [0], [1], [0, 0, 1, 1], [], []>} : vector<8x8xbf16>, vector<8x32xbf16>, vector<8x32xf32> -> vector<8x32xf32>
    %109 = tpu.concatenate %54, %72, %90, %108 in 1 : vector<8x32xf32>, vector<8x32xf32>, vector<8x32xf32>, vector<8x32xf32> -> vector<8x128xf32>
    %110 = vector.extract_strided_slice %36 {offsets = [8, 0], sizes = [8, 32], strides = [1, 1]} : vector<16x384xbf16> to vector<8x32xbf16>
    %111 = vector.extract_strided_slice %36 {offsets = [8, 128], sizes = [8, 32], strides = [1, 1]} : vector<16x384xbf16> to vector<8x32xbf16>
    %112 = vector.extract_strided_slice %36 {offsets = [8, 256], sizes = [8, 32], strides = [1, 1]} : vector<16x384xbf16> to vector<8x32xbf16>
    %cst_38 = arith.constant dense<0.000000e+00> : vector<8x8xf32>
    %113 = tpu.matmul %110, %111, %cst_38 {dimension_numbers = #tpu.dot_dimension_numbers<[1], [1], [0], [0], [0, 0, 1, 0], [], []>} : vector<8x32xbf16>, vector<8x32xbf16>, vector<8x8xf32> -> vector<8x8xf32>
    %cst_39 = arith.constant 0.176776692 : f32
    %114 = vector.broadcast %cst_39 : f32 to vector<8x8xf32>
    %115 = arith.mulf %113, %114 : vector<8x8xf32>
    %cst_40 = arith.constant dense<0xFF800000> : vector<8xf32>
    %116 = vector.multi_reduction <maximumf>, %115, %cst_40 [1] : vector<8x8xf32> to vector<8xf32>
    %117 = vector.shape_cast %116 : vector<8xf32> to vector<8x1xf32>
    %118 = vector.broadcast %117 : vector<8x1xf32> to vector<8x8xf32>
    %119 = arith.subf %115, %118 : vector<8x8xf32>
    %120 = math.exp %119 : vector<8x8xf32>
    %cst_41 = arith.constant dense<0.000000e+00> : vector<8xf32>
    %121 = vector.multi_reduction <add>, %120, %cst_41 [1] : vector<8x8xf32> to vector<8xf32>
    %122 = vector.shape_cast %121 : vector<8xf32> to vector<8x1xf32>
    %123 = tpu.reciprocal %122 {approx = true} : vector<8x1xf32> -> vector<8x1xf32>
    %124 = vector.broadcast %123 : vector<8x1xf32> to vector<8x8xf32>
    %125 = arith.mulf %120, %124 : vector<8x8xf32>
    %126 = arith.truncf %125 : vector<8x8xf32> to vector<8x8xbf16>
    %cst_42 = arith.constant dense<0.000000e+00> : vector<8x32xf32>
    %127 = tpu.matmul %126, %112, %cst_42 {dimension_numbers = #tpu.dot_dimension_numbers<[1], [0], [0], [1], [0, 0, 1, 1], [], []>} : vector<8x8xbf16>, vector<8x32xbf16>, vector<8x32xf32> -> vector<8x32xf32>
    %128 = vector.extract_strided_slice %36 {offsets = [8, 32], sizes = [8, 32], strides = [1, 1]} : vector<16x384xbf16> to vector<8x32xbf16>
    %129 = vector.extract_strided_slice %36 {offsets = [8, 160], sizes = [8, 32], strides = [1, 1]} : vector<16x384xbf16> to vector<8x32xbf16>
    %130 = vector.extract_strided_slice %36 {offsets = [8, 288], sizes = [8, 32], strides = [1, 1]} : vector<16x384xbf16> to vector<8x32xbf16>
    %cst_43 = arith.constant dense<0.000000e+00> : vector<8x8xf32>
    %131 = tpu.matmul %128, %129, %cst_43 {dimension_numbers = #tpu.dot_dimension_numbers<[1], [1], [0], [0], [0, 0, 1, 0], [], []>} : vector<8x32xbf16>, vector<8x32xbf16>, vector<8x8xf32> -> vector<8x8xf32>
    %cst_44 = arith.constant 0.176776692 : f32
    %132 = vector.broadcast %cst_44 : f32 to vector<8x8xf32>
    %133 = arith.mulf %131, %132 : vector<8x8xf32>
    %cst_45 = arith.constant dense<0xFF800000> : vector<8xf32>
    %134 = vector.multi_reduction <maximumf>, %133, %cst_45 [1] : vector<8x8xf32> to vector<8xf32>
    %135 = vector.shape_cast %134 : vector<8xf32> to vector<8x1xf32>
    %136 = vector.broadcast %135 : vector<8x1xf32> to vector<8x8xf32>
    %137 = arith.subf %133, %136 : vector<8x8xf32>
    %138 = math.exp %137 : vector<8x8xf32>
    %cst_46 = arith.constant dense<0.000000e+00> : vector<8xf32>
    %139 = vector.multi_reduction <add>, %138, %cst_46 [1] : vector<8x8xf32> to vector<8xf32>
    %140 = vector.shape_cast %139 : vector<8xf32> to vector<8x1xf32>
    %141 = tpu.reciprocal %140 {approx = true} : vector<8x1xf32> -> vector<8x1xf32>
    %142 = vector.broadcast %141 : vector<8x1xf32> to vector<8x8xf32>
    %143 = arith.mulf %138, %142 : vector<8x8xf32>
    %144 = arith.truncf %143 : vector<8x8xf32> to vector<8x8xbf16>
    %cst_47 = arith.constant dense<0.000000e+00> : vector<8x32xf32>
    %145 = tpu.matmul %144, %130, %cst_47 {dimension_numbers = #tpu.dot_dimension_numbers<[1], [0], [0], [1], [0, 0, 1, 1], [], []>} : vector<8x8xbf16>, vector<8x32xbf16>, vector<8x32xf32> -> vector<8x32xf32>
    %146 = vector.extract_strided_slice %36 {offsets = [8, 64], sizes = [8, 32], strides = [1, 1]} : vector<16x384xbf16> to vector<8x32xbf16>
    %147 = vector.extract_strided_slice %36 {offsets = [8, 192], sizes = [8, 32], strides = [1, 1]} : vector<16x384xbf16> to vector<8x32xbf16>
    %148 = vector.extract_strided_slice %36 {offsets = [8, 320], sizes = [8, 32], strides = [1, 1]} : vector<16x384xbf16> to vector<8x32xbf16>
    %cst_48 = arith.constant dense<0.000000e+00> : vector<8x8xf32>
    %149 = tpu.matmul %146, %147, %cst_48 {dimension_numbers = #tpu.dot_dimension_numbers<[1], [1], [0], [0], [0, 0, 1, 0], [], []>} : vector<8x32xbf16>, vector<8x32xbf16>, vector<8x8xf32> -> vector<8x8xf32>
    %cst_49 = arith.constant 0.176776692 : f32
    %150 = vector.broadcast %cst_49 : f32 to vector<8x8xf32>
    %151 = arith.mulf %149, %150 : vector<8x8xf32>
    %cst_50 = arith.constant dense<0xFF800000> : vector<8xf32>
    %152 = vector.multi_reduction <maximumf>, %151, %cst_50 [1] : vector<8x8xf32> to vector<8xf32>
    %153 = vector.shape_cast %152 : vector<8xf32> to vector<8x1xf32>
    %154 = vector.broadcast %153 : vector<8x1xf32> to vector<8x8xf32>
    %155 = arith.subf %151, %154 : vector<8x8xf32>
    %156 = math.exp %155 : vector<8x8xf32>
    %cst_51 = arith.constant dense<0.000000e+00> : vector<8xf32>
    %157 = vector.multi_reduction <add>, %156, %cst_51 [1] : vector<8x8xf32> to vector<8xf32>
    %158 = vector.shape_cast %157 : vector<8xf32> to vector<8x1xf32>
    %159 = tpu.reciprocal %158 {approx = true} : vector<8x1xf32> -> vector<8x1xf32>
    %160 = vector.broadcast %159 : vector<8x1xf32> to vector<8x8xf32>
    %161 = arith.mulf %156, %160 : vector<8x8xf32>
    %162 = arith.truncf %161 : vector<8x8xf32> to vector<8x8xbf16>
    %cst_52 = arith.constant dense<0.000000e+00> : vector<8x32xf32>
    %163 = tpu.matmul %162, %148, %cst_52 {dimension_numbers = #tpu.dot_dimension_numbers<[1], [0], [0], [1], [0, 0, 1, 1], [], []>} : vector<8x8xbf16>, vector<8x32xbf16>, vector<8x32xf32> -> vector<8x32xf32>
    %164 = vector.extract_strided_slice %36 {offsets = [8, 96], sizes = [8, 32], strides = [1, 1]} : vector<16x384xbf16> to vector<8x32xbf16>
    %165 = vector.extract_strided_slice %36 {offsets = [8, 224], sizes = [8, 32], strides = [1, 1]} : vector<16x384xbf16> to vector<8x32xbf16>
    %166 = vector.extract_strided_slice %36 {offsets = [8, 352], sizes = [8, 32], strides = [1, 1]} : vector<16x384xbf16> to vector<8x32xbf16>
    %cst_53 = arith.constant dense<0.000000e+00> : vector<8x8xf32>
    %167 = tpu.matmul %164, %165, %cst_53 {dimension_numbers = #tpu.dot_dimension_numbers<[1], [1], [0], [0], [0, 0, 1, 0], [], []>} : vector<8x32xbf16>, vector<8x32xbf16>, vector<8x8xf32> -> vector<8x8xf32>
    %cst_54 = arith.constant 0.176776692 : f32
    %168 = vector.broadcast %cst_54 : f32 to vector<8x8xf32>
    %169 = arith.mulf %167, %168 : vector<8x8xf32>
    %cst_55 = arith.constant dense<0xFF800000> : vector<8xf32>
    %170 = vector.multi_reduction <maximumf>, %169, %cst_55 [1] : vector<8x8xf32> to vector<8xf32>
    %171 = vector.shape_cast %170 : vector<8xf32> to vector<8x1xf32>
    %172 = vector.broadcast %171 : vector<8x1xf32> to vector<8x8xf32>
    %173 = arith.subf %169, %172 : vector<8x8xf32>
    %174 = math.exp %173 : vector<8x8xf32>
    %cst_56 = arith.constant dense<0.000000e+00> : vector<8xf32>
    %175 = vector.multi_reduction <add>, %174, %cst_56 [1] : vector<8x8xf32> to vector<8xf32>
    %176 = vector.shape_cast %175 : vector<8xf32> to vector<8x1xf32>
    %177 = tpu.reciprocal %176 {approx = true} : vector<8x1xf32> -> vector<8x1xf32>
    %178 = vector.broadcast %177 : vector<8x1xf32> to vector<8x8xf32>
    %179 = arith.mulf %174, %178 : vector<8x8xf32>
    %180 = arith.truncf %179 : vector<8x8xf32> to vector<8x8xbf16>
    %cst_57 = arith.constant dense<0.000000e+00> : vector<8x32xf32>
    %181 = tpu.matmul %180, %166, %cst_57 {dimension_numbers = #tpu.dot_dimension_numbers<[1], [0], [0], [1], [0, 0, 1, 1], [], []>} : vector<8x8xbf16>, vector<8x32xbf16>, vector<8x32xf32> -> vector<8x32xf32>
    %182 = tpu.concatenate %127, %145, %163, %181 in 1 : vector<8x32xf32>, vector<8x32xf32>, vector<8x32xf32>, vector<8x32xf32> -> vector<8x128xf32>
    %183 = tpu.concatenate %109, %182 in 0 : vector<8x128xf32>, vector<8x128xf32> -> vector<16x128xf32>
    %184 = arith.truncf %183 : vector<16x128xf32> to vector<16x128xbf16>
    %c0_58 = arith.constant 0 : index
    %c0_59 = arith.constant 0 : index
    %c0_60 = arith.constant 0 : index
    %185 = vector.load %arg7[%c0_58, %c0_59, %c0_60] : memref<2x128x128xbf16, #tpu.memory_space<vmem>>, vector<1x128x128xbf16>
    %186 = vector.shape_cast %185 : vector<1x128x128xbf16> to vector<128x128xbf16>
    %cst_61 = arith.constant dense<0.000000e+00> : vector<16x128xf32>
    %187 = tpu.matmul %184, %186, %cst_61 {dimension_numbers = #tpu.dot_dimension_numbers<[1], [0], [0], [1], [0, 0, 1, 1], [], []>} : vector<16x128xbf16>, vector<128x128xbf16>, vector<16x128xf32> -> vector<16x128xf32>
    %c0_62 = arith.constant 0 : index
    %c0_63 = arith.constant 0 : index
    %c0_64 = arith.constant 0 : index
    %188 = vector.load %arg8[%c0_62, %c0_63, %c0_64] : memref<2x1x128xf32, #tpu.memory_space<vmem>>, vector<1x1x128xf32>
    %189 = vector.shape_cast %188 : vector<1x1x128xf32> to vector<1x128xf32>
    %190 = vector.broadcast %189 : vector<1x128xf32> to vector<16x128xf32>
    %191 = arith.addf %187, %190 : vector<16x128xf32>
    %192 = arith.addf %27, %191 : vector<16x128xf32>
    %c0_65 = arith.constant 0 : index
    %c0_66 = arith.constant 0 : index
    %c0_67 = arith.constant 0 : index
    %193 = vector.load %arg9[%c0_65, %c0_66, %c0_67] : memref<2x1x128xf32, #tpu.memory_space<vmem>>, vector<1x1x128xf32>
    %194 = vector.shape_cast %193 : vector<1x1x128xf32> to vector<1x128xf32>
    %c0_68 = arith.constant 0 : index
    %c0_69 = arith.constant 0 : index
    %c0_70 = arith.constant 0 : index
    %195 = vector.load %arg10[%c0_68, %c0_69, %c0_70] : memref<2x1x128xf32, #tpu.memory_space<vmem>>, vector<1x1x128xf32>
    %196 = vector.shape_cast %195 : vector<1x1x128xf32> to vector<1x128xf32>
    %cst_71 = arith.constant dense<0.000000e+00> : vector<16xf32>
    %197 = vector.multi_reduction <add>, %192, %cst_71 [1] : vector<16x128xf32> to vector<16xf32>
    %198 = vector.shape_cast %197 : vector<16xf32> to vector<16x1xf32>
    %cst_72 = arith.constant 1.280000e+02 : f32
    %199 = vector.broadcast %cst_72 : f32 to vector<16x1xf32>
    %200 = arith.divf %198, %199 : vector<16x1xf32>
    %201 = vector.broadcast %200 : vector<16x1xf32> to vector<16x128xf32>
    %202 = arith.subf %192, %201 : vector<16x128xf32>
    %203 = arith.mulf %202, %202 : vector<16x128xf32>
    %cst_73 = arith.constant dense<0.000000e+00> : vector<16xf32>
    %204 = vector.multi_reduction <add>, %203, %cst_73 [1] : vector<16x128xf32> to vector<16xf32>
    %205 = vector.shape_cast %204 : vector<16xf32> to vector<16x1xf32>
    %cst_74 = arith.constant 1.280000e+02 : f32
    %206 = vector.broadcast %cst_74 : f32 to vector<16x1xf32>
    %207 = arith.divf %205, %206 : vector<16x1xf32>
    %208 = vector.broadcast %200 : vector<16x1xf32> to vector<16x128xf32>
    %209 = arith.subf %192, %208 : vector<16x128xf32>
    %cst_75 = arith.constant 9.99999974E-6 : f32
    %210 = vector.broadcast %cst_75 : f32 to vector<16x1xf32>
    %211 = arith.addf %207, %210 : vector<16x1xf32>
    %212 = math.rsqrt %211 : vector<16x1xf32>
    %213 = vector.broadcast %212 : vector<16x1xf32> to vector<16x128xf32>
    %214 = arith.mulf %209, %213 : vector<16x128xf32>
    %215 = vector.broadcast %194 : vector<1x128xf32> to vector<16x128xf32>
    %216 = arith.mulf %214, %215 : vector<16x128xf32>
    %217 = vector.broadcast %196 : vector<1x128xf32> to vector<16x128xf32>
    %218 = arith.addf %216, %217 : vector<16x128xf32>
    %219 = arith.truncf %218 : vector<16x128xf32> to vector<16x128xbf16>
    %c0_76 = arith.constant 0 : index
    %c0_77 = arith.constant 0 : index
    %c0_78 = arith.constant 0 : index
    %220 = vector.load %arg11[%c0_76, %c0_77, %c0_78] : memref<2x128x256xbf16, #tpu.memory_space<vmem>>, vector<1x128x256xbf16>
    %221 = vector.shape_cast %220 : vector<1x128x256xbf16> to vector<128x256xbf16>
    %cst_79 = arith.constant dense<0.000000e+00> : vector<16x256xf32>
    %222 = tpu.matmul %219, %221, %cst_79 {dimension_numbers = #tpu.dot_dimension_numbers<[1], [0], [0], [1], [0, 0, 1, 1], [], []>} : vector<16x128xbf16>, vector<128x256xbf16>, vector<16x256xf32> -> vector<16x256xf32>
    %c0_80 = arith.constant 0 : index
    %c0_81 = arith.constant 0 : index
    %c0_82 = arith.constant 0 : index
    %223 = vector.load %arg12[%c0_80, %c0_81, %c0_82] : memref<2x1x256xf32, #tpu.memory_space<vmem>>, vector<1x1x256xf32>
    %224 = vector.shape_cast %223 : vector<1x1x256xf32> to vector<1x256xf32>
    %225 = vector.broadcast %224 : vector<1x256xf32> to vector<16x256xf32>
    %226 = arith.addf %222, %225 : vector<16x256xf32>
    %227 = arith.mulf %226, %226 : vector<16x256xf32>
    %228 = arith.mulf %226, %227 : vector<16x256xf32>
    %cst_83 = arith.constant 4.471500e-02 : f32
    %229 = vector.broadcast %cst_83 : f32 to vector<16x256xf32>
    %230 = arith.mulf %229, %228 : vector<16x256xf32>
    %231 = arith.addf %226, %230 : vector<16x256xf32>
    %cst_84 = arith.constant 0.797884583 : f32
    %232 = vector.broadcast %cst_84 : f32 to vector<16x256xf32>
    %233 = arith.mulf %232, %231 : vector<16x256xf32>
    %234 = math.tanh %233 : vector<16x256xf32>
    %cst_85 = arith.constant 1.000000e+00 : f32
    %235 = vector.broadcast %cst_85 : f32 to vector<16x256xf32>
    %236 = arith.addf %235, %234 : vector<16x256xf32>
    %cst_86 = arith.constant 5.000000e-01 : f32
    %237 = vector.broadcast %cst_86 : f32 to vector<16x256xf32>
    %238 = arith.mulf %237, %236 : vector<16x256xf32>
    %239 = arith.mulf %226, %238 : vector<16x256xf32>
    %240 = arith.truncf %239 : vector<16x256xf32> to vector<16x256xbf16>
    %c0_87 = arith.constant 0 : index
    %c0_88 = arith.constant 0 : index
    %c0_89 = arith.constant 0 : index
    %241 = vector.load %arg13[%c0_87, %c0_88, %c0_89] : memref<2x256x128xbf16, #tpu.memory_space<vmem>>, vector<1x256x128xbf16>
    %242 = vector.shape_cast %241 : vector<1x256x128xbf16> to vector<256x128xbf16>
    %cst_90 = arith.constant dense<0.000000e+00> : vector<16x128xf32>
    %243 = tpu.matmul %240, %242, %cst_90 {dimension_numbers = #tpu.dot_dimension_numbers<[1], [0], [0], [1], [0, 0, 1, 1], [], []>} : vector<16x256xbf16>, vector<256x128xbf16>, vector<16x128xf32> -> vector<16x128xf32>
    %c0_91 = arith.constant 0 : index
    %c0_92 = arith.constant 0 : index
    %c0_93 = arith.constant 0 : index
    %244 = vector.load %arg14[%c0_91, %c0_92, %c0_93] : memref<2x1x128xf32, #tpu.memory_space<vmem>>, vector<1x1x128xf32>
    %245 = vector.shape_cast %244 : vector<1x1x128xf32> to vector<1x128xf32>
    %246 = vector.broadcast %245 : vector<1x128xf32> to vector<16x128xf32>
    %247 = arith.addf %243, %246 : vector<16x128xf32>
    %248 = arith.addf %218, %247 : vector<16x128xf32>
    %c0_94 = arith.constant 0 : index
    %c0_95 = arith.constant 0 : index
    %c0_96 = arith.constant 0 : index
    %249 = vector.load %arg15[%c0_94, %c0_95, %c0_96] : memref<2x1x128xf32, #tpu.memory_space<vmem>>, vector<1x1x128xf32>
    %250 = vector.shape_cast %249 : vector<1x1x128xf32> to vector<1x128xf32>
    %c0_97 = arith.constant 0 : index
    %c0_98 = arith.constant 0 : index
    %c0_99 = arith.constant 0 : index
    %251 = vector.load %arg16[%c0_97, %c0_98, %c0_99] : memref<2x1x128xf32, #tpu.memory_space<vmem>>, vector<1x1x128xf32>
    %252 = vector.shape_cast %251 : vector<1x1x128xf32> to vector<1x128xf32>
    %cst_100 = arith.constant dense<0.000000e+00> : vector<16xf32>
    %253 = vector.multi_reduction <add>, %248, %cst_100 [1] : vector<16x128xf32> to vector<16xf32>
    %254 = vector.shape_cast %253 : vector<16xf32> to vector<16x1xf32>
    %cst_101 = arith.constant 1.280000e+02 : f32
    %255 = vector.broadcast %cst_101 : f32 to vector<16x1xf32>
    %256 = arith.divf %254, %255 : vector<16x1xf32>
    %257 = vector.broadcast %256 : vector<16x1xf32> to vector<16x128xf32>
    %258 = arith.subf %248, %257 : vector<16x128xf32>
    %259 = arith.mulf %258, %258 : vector<16x128xf32>
    %cst_102 = arith.constant dense<0.000000e+00> : vector<16xf32>
    %260 = vector.multi_reduction <add>, %259, %cst_102 [1] : vector<16x128xf32> to vector<16xf32>
    %261 = vector.shape_cast %260 : vector<16xf32> to vector<16x1xf32>
    %cst_103 = arith.constant 1.280000e+02 : f32
    %262 = vector.broadcast %cst_103 : f32 to vector<16x1xf32>
    %263 = arith.divf %261, %262 : vector<16x1xf32>
    %264 = vector.broadcast %256 : vector<16x1xf32> to vector<16x128xf32>
    %265 = arith.subf %248, %264 : vector<16x128xf32>
    %cst_104 = arith.constant 9.99999974E-6 : f32
    %266 = vector.broadcast %cst_104 : f32 to vector<16x1xf32>
    %267 = arith.addf %263, %266 : vector<16x1xf32>
    %268 = math.rsqrt %267 : vector<16x1xf32>
    %269 = vector.broadcast %268 : vector<16x1xf32> to vector<16x128xf32>
    %270 = arith.mulf %265, %269 : vector<16x128xf32>
    %271 = vector.broadcast %250 : vector<1x128xf32> to vector<16x128xf32>
    %272 = arith.mulf %270, %271 : vector<16x128xf32>
    %273 = vector.broadcast %252 : vector<1x128xf32> to vector<16x128xf32>
    %274 = arith.addf %272, %273 : vector<16x128xf32>
    %275 = arith.truncf %274 : vector<16x128xf32> to vector<16x128xbf16>
    %c1 = arith.constant 1 : index
    %c0_105 = arith.constant 0 : index
    %c0_106 = arith.constant 0 : index
    %276 = vector.load %arg5[%c1, %c0_105, %c0_106] : memref<2x128x384xbf16, #tpu.memory_space<vmem>>, vector<1x128x384xbf16>
    %277 = vector.shape_cast %276 : vector<1x128x384xbf16> to vector<128x384xbf16>
    %cst_107 = arith.constant dense<0.000000e+00> : vector<16x384xf32>
    %278 = tpu.matmul %275, %277, %cst_107 {dimension_numbers = #tpu.dot_dimension_numbers<[1], [0], [0], [1], [0, 0, 1, 1], [], []>} : vector<16x128xbf16>, vector<128x384xbf16>, vector<16x384xf32> -> vector<16x384xf32>
    %c1_108 = arith.constant 1 : index
    %c0_109 = arith.constant 0 : index
    %c0_110 = arith.constant 0 : index
    %279 = vector.load %arg6[%c1_108, %c0_109, %c0_110] : memref<2x1x384xf32, #tpu.memory_space<vmem>>, vector<1x1x384xf32>
    %280 = vector.shape_cast %279 : vector<1x1x384xf32> to vector<1x384xf32>
    %281 = vector.broadcast %280 : vector<1x384xf32> to vector<16x384xf32>
    %282 = arith.addf %278, %281 : vector<16x384xf32>
    %283 = arith.truncf %282 : vector<16x384xf32> to vector<16x384xbf16>
    %284 = vector.extract_strided_slice %283 {offsets = [0, 0], sizes = [8, 32], strides = [1, 1]} : vector<16x384xbf16> to vector<8x32xbf16>
    %285 = vector.extract_strided_slice %283 {offsets = [0, 128], sizes = [8, 32], strides = [1, 1]} : vector<16x384xbf16> to vector<8x32xbf16>
    %286 = vector.extract_strided_slice %283 {offsets = [0, 256], sizes = [8, 32], strides = [1, 1]} : vector<16x384xbf16> to vector<8x32xbf16>
    %cst_111 = arith.constant dense<0.000000e+00> : vector<8x8xf32>
    %287 = tpu.matmul %284, %285, %cst_111 {dimension_numbers = #tpu.dot_dimension_numbers<[1], [1], [0], [0], [0, 0, 1, 0], [], []>} : vector<8x32xbf16>, vector<8x32xbf16>, vector<8x8xf32> -> vector<8x8xf32>
    %cst_112 = arith.constant 0.176776692 : f32
    %288 = vector.broadcast %cst_112 : f32 to vector<8x8xf32>
    %289 = arith.mulf %287, %288 : vector<8x8xf32>
    %cst_113 = arith.constant dense<0xFF800000> : vector<8xf32>
    %290 = vector.multi_reduction <maximumf>, %289, %cst_113 [1] : vector<8x8xf32> to vector<8xf32>
    %291 = vector.shape_cast %290 : vector<8xf32> to vector<8x1xf32>
    %292 = vector.broadcast %291 : vector<8x1xf32> to vector<8x8xf32>
    %293 = arith.subf %289, %292 : vector<8x8xf32>
    %294 = math.exp %293 : vector<8x8xf32>
    %cst_114 = arith.constant dense<0.000000e+00> : vector<8xf32>
    %295 = vector.multi_reduction <add>, %294, %cst_114 [1] : vector<8x8xf32> to vector<8xf32>
    %296 = vector.shape_cast %295 : vector<8xf32> to vector<8x1xf32>
    %297 = tpu.reciprocal %296 {approx = true} : vector<8x1xf32> -> vector<8x1xf32>
    %298 = vector.broadcast %297 : vector<8x1xf32> to vector<8x8xf32>
    %299 = arith.mulf %294, %298 : vector<8x8xf32>
    %300 = arith.truncf %299 : vector<8x8xf32> to vector<8x8xbf16>
    %cst_115 = arith.constant dense<0.000000e+00> : vector<8x32xf32>
    %301 = tpu.matmul %300, %286, %cst_115 {dimension_numbers = #tpu.dot_dimension_numbers<[1], [0], [0], [1], [0, 0, 1, 1], [], []>} : vector<8x8xbf16>, vector<8x32xbf16>, vector<8x32xf32> -> vector<8x32xf32>
    %302 = vector.extract_strided_slice %283 {offsets = [0, 32], sizes = [8, 32], strides = [1, 1]} : vector<16x384xbf16> to vector<8x32xbf16>
    %303 = vector.extract_strided_slice %283 {offsets = [0, 160], sizes = [8, 32], strides = [1, 1]} : vector<16x384xbf16> to vector<8x32xbf16>
    %304 = vector.extract_strided_slice %283 {offsets = [0, 288], sizes = [8, 32], strides = [1, 1]} : vector<16x384xbf16> to vector<8x32xbf16>
    %cst_116 = arith.constant dense<0.000000e+00> : vector<8x8xf32>
    %305 = tpu.matmul %302, %303, %cst_116 {dimension_numbers = #tpu.dot_dimension_numbers<[1], [1], [0], [0], [0, 0, 1, 0], [], []>} : vector<8x32xbf16>, vector<8x32xbf16>, vector<8x8xf32> -> vector<8x8xf32>
    %cst_117 = arith.constant 0.176776692 : f32
    %306 = vector.broadcast %cst_117 : f32 to vector<8x8xf32>
    %307 = arith.mulf %305, %306 : vector<8x8xf32>
    %cst_118 = arith.constant dense<0xFF800000> : vector<8xf32>
    %308 = vector.multi_reduction <maximumf>, %307, %cst_118 [1] : vector<8x8xf32> to vector<8xf32>
    %309 = vector.shape_cast %308 : vector<8xf32> to vector<8x1xf32>
    %310 = vector.broadcast %309 : vector<8x1xf32> to vector<8x8xf32>
    %311 = arith.subf %307, %310 : vector<8x8xf32>
    %312 = math.exp %311 : vector<8x8xf32>
    %cst_119 = arith.constant dense<0.000000e+00> : vector<8xf32>
    %313 = vector.multi_reduction <add>, %312, %cst_119 [1] : vector<8x8xf32> to vector<8xf32>
    %314 = vector.shape_cast %313 : vector<8xf32> to vector<8x1xf32>
    %315 = tpu.reciprocal %314 {approx = true} : vector<8x1xf32> -> vector<8x1xf32>
    %316 = vector.broadcast %315 : vector<8x1xf32> to vector<8x8xf32>
    %317 = arith.mulf %312, %316 : vector<8x8xf32>
    %318 = arith.truncf %317 : vector<8x8xf32> to vector<8x8xbf16>
    %cst_120 = arith.constant dense<0.000000e+00> : vector<8x32xf32>
    %319 = tpu.matmul %318, %304, %cst_120 {dimension_numbers = #tpu.dot_dimension_numbers<[1], [0], [0], [1], [0, 0, 1, 1], [], []>} : vector<8x8xbf16>, vector<8x32xbf16>, vector<8x32xf32> -> vector<8x32xf32>
    %320 = vector.extract_strided_slice %283 {offsets = [0, 64], sizes = [8, 32], strides = [1, 1]} : vector<16x384xbf16> to vector<8x32xbf16>
    %321 = vector.extract_strided_slice %283 {offsets = [0, 192], sizes = [8, 32], strides = [1, 1]} : vector<16x384xbf16> to vector<8x32xbf16>
    %322 = vector.extract_strided_slice %283 {offsets = [0, 320], sizes = [8, 32], strides = [1, 1]} : vector<16x384xbf16> to vector<8x32xbf16>
    %cst_121 = arith.constant dense<0.000000e+00> : vector<8x8xf32>
    %323 = tpu.matmul %320, %321, %cst_121 {dimension_numbers = #tpu.dot_dimension_numbers<[1], [1], [0], [0], [0, 0, 1, 0], [], []>} : vector<8x32xbf16>, vector<8x32xbf16>, vector<8x8xf32> -> vector<8x8xf32>
    %cst_122 = arith.constant 0.176776692 : f32
    %324 = vector.broadcast %cst_122 : f32 to vector<8x8xf32>
    %325 = arith.mulf %323, %324 : vector<8x8xf32>
    %cst_123 = arith.constant dense<0xFF800000> : vector<8xf32>
    %326 = vector.multi_reduction <maximumf>, %325, %cst_123 [1] : vector<8x8xf32> to vector<8xf32>
    %327 = vector.shape_cast %326 : vector<8xf32> to vector<8x1xf32>
    %328 = vector.broadcast %327 : vector<8x1xf32> to vector<8x8xf32>
    %329 = arith.subf %325, %328 : vector<8x8xf32>
    %330 = math.exp %329 : vector<8x8xf32>
    %cst_124 = arith.constant dense<0.000000e+00> : vector<8xf32>
    %331 = vector.multi_reduction <add>, %330, %cst_124 [1] : vector<8x8xf32> to vector<8xf32>
    %332 = vector.shape_cast %331 : vector<8xf32> to vector<8x1xf32>
    %333 = tpu.reciprocal %332 {approx = true} : vector<8x1xf32> -> vector<8x1xf32>
    %334 = vector.broadcast %333 : vector<8x1xf32> to vector<8x8xf32>
    %335 = arith.mulf %330, %334 : vector<8x8xf32>
    %336 = arith.truncf %335 : vector<8x8xf32> to vector<8x8xbf16>
    %cst_125 = arith.constant dense<0.000000e+00> : vector<8x32xf32>
    %337 = tpu.matmul %336, %322, %cst_125 {dimension_numbers = #tpu.dot_dimension_numbers<[1], [0], [0], [1], [0, 0, 1, 1], [], []>} : vector<8x8xbf16>, vector<8x32xbf16>, vector<8x32xf32> -> vector<8x32xf32>
    %338 = vector.extract_strided_slice %283 {offsets = [0, 96], sizes = [8, 32], strides = [1, 1]} : vector<16x384xbf16> to vector<8x32xbf16>
    %339 = vector.extract_strided_slice %283 {offsets = [0, 224], sizes = [8, 32], strides = [1, 1]} : vector<16x384xbf16> to vector<8x32xbf16>
    %340 = vector.extract_strided_slice %283 {offsets = [0, 352], sizes = [8, 32], strides = [1, 1]} : vector<16x384xbf16> to vector<8x32xbf16>
    %cst_126 = arith.constant dense<0.000000e+00> : vector<8x8xf32>
    %341 = tpu.matmul %338, %339, %cst_126 {dimension_numbers = #tpu.dot_dimension_numbers<[1], [1], [0], [0], [0, 0, 1, 0], [], []>} : vector<8x32xbf16>, vector<8x32xbf16>, vector<8x8xf32> -> vector<8x8xf32>
    %cst_127 = arith.constant 0.176776692 : f32
    %342 = vector.broadcast %cst_127 : f32 to vector<8x8xf32>
    %343 = arith.mulf %341, %342 : vector<8x8xf32>
    %cst_128 = arith.constant dense<0xFF800000> : vector<8xf32>
    %344 = vector.multi_reduction <maximumf>, %343, %cst_128 [1] : vector<8x8xf32> to vector<8xf32>
    %345 = vector.shape_cast %344 : vector<8xf32> to vector<8x1xf32>
    %346 = vector.broadcast %345 : vector<8x1xf32> to vector<8x8xf32>
    %347 = arith.subf %343, %346 : vector<8x8xf32>
    %348 = math.exp %347 : vector<8x8xf32>
    %cst_129 = arith.constant dense<0.000000e+00> : vector<8xf32>
    %349 = vector.multi_reduction <add>, %348, %cst_129 [1] : vector<8x8xf32> to vector<8xf32>
    %350 = vector.shape_cast %349 : vector<8xf32> to vector<8x1xf32>
    %351 = tpu.reciprocal %350 {approx = true} : vector<8x1xf32> -> vector<8x1xf32>
    %352 = vector.broadcast %351 : vector<8x1xf32> to vector<8x8xf32>
    %353 = arith.mulf %348, %352 : vector<8x8xf32>
    %354 = arith.truncf %353 : vector<8x8xf32> to vector<8x8xbf16>
    %cst_130 = arith.constant dense<0.000000e+00> : vector<8x32xf32>
    %355 = tpu.matmul %354, %340, %cst_130 {dimension_numbers = #tpu.dot_dimension_numbers<[1], [0], [0], [1], [0, 0, 1, 1], [], []>} : vector<8x8xbf16>, vector<8x32xbf16>, vector<8x32xf32> -> vector<8x32xf32>
    %356 = tpu.concatenate %301, %319, %337, %355 in 1 : vector<8x32xf32>, vector<8x32xf32>, vector<8x32xf32>, vector<8x32xf32> -> vector<8x128xf32>
    %357 = vector.extract_strided_slice %283 {offsets = [8, 0], sizes = [8, 32], strides = [1, 1]} : vector<16x384xbf16> to vector<8x32xbf16>
    %358 = vector.extract_strided_slice %283 {offsets = [8, 128], sizes = [8, 32], strides = [1, 1]} : vector<16x384xbf16> to vector<8x32xbf16>
    %359 = vector.extract_strided_slice %283 {offsets = [8, 256], sizes = [8, 32], strides = [1, 1]} : vector<16x384xbf16> to vector<8x32xbf16>
    %cst_131 = arith.constant dense<0.000000e+00> : vector<8x8xf32>
    %360 = tpu.matmul %357, %358, %cst_131 {dimension_numbers = #tpu.dot_dimension_numbers<[1], [1], [0], [0], [0, 0, 1, 0], [], []>} : vector<8x32xbf16>, vector<8x32xbf16>, vector<8x8xf32> -> vector<8x8xf32>
    %cst_132 = arith.constant 0.176776692 : f32
    %361 = vector.broadcast %cst_132 : f32 to vector<8x8xf32>
    %362 = arith.mulf %360, %361 : vector<8x8xf32>
    %cst_133 = arith.constant dense<0xFF800000> : vector<8xf32>
    %363 = vector.multi_reduction <maximumf>, %362, %cst_133 [1] : vector<8x8xf32> to vector<8xf32>
    %364 = vector.shape_cast %363 : vector<8xf32> to vector<8x1xf32>
    %365 = vector.broadcast %364 : vector<8x1xf32> to vector<8x8xf32>
    %366 = arith.subf %362, %365 : vector<8x8xf32>
    %367 = math.exp %366 : vector<8x8xf32>
    %cst_134 = arith.constant dense<0.000000e+00> : vector<8xf32>
    %368 = vector.multi_reduction <add>, %367, %cst_134 [1] : vector<8x8xf32> to vector<8xf32>
    %369 = vector.shape_cast %368 : vector<8xf32> to vector<8x1xf32>
    %370 = tpu.reciprocal %369 {approx = true} : vector<8x1xf32> -> vector<8x1xf32>
    %371 = vector.broadcast %370 : vector<8x1xf32> to vector<8x8xf32>
    %372 = arith.mulf %367, %371 : vector<8x8xf32>
    %373 = arith.truncf %372 : vector<8x8xf32> to vector<8x8xbf16>
    %cst_135 = arith.constant dense<0.000000e+00> : vector<8x32xf32>
    %374 = tpu.matmul %373, %359, %cst_135 {dimension_numbers = #tpu.dot_dimension_numbers<[1], [0], [0], [1], [0, 0, 1, 1], [], []>} : vector<8x8xbf16>, vector<8x32xbf16>, vector<8x32xf32> -> vector<8x32xf32>
    %375 = vector.extract_strided_slice %283 {offsets = [8, 32], sizes = [8, 32], strides = [1, 1]} : vector<16x384xbf16> to vector<8x32xbf16>
    %376 = vector.extract_strided_slice %283 {offsets = [8, 160], sizes = [8, 32], strides = [1, 1]} : vector<16x384xbf16> to vector<8x32xbf16>
    %377 = vector.extract_strided_slice %283 {offsets = [8, 288], sizes = [8, 32], strides = [1, 1]} : vector<16x384xbf16> to vector<8x32xbf16>
    %cst_136 = arith.constant dense<0.000000e+00> : vector<8x8xf32>
    %378 = tpu.matmul %375, %376, %cst_136 {dimension_numbers = #tpu.dot_dimension_numbers<[1], [1], [0], [0], [0, 0, 1, 0], [], []>} : vector<8x32xbf16>, vector<8x32xbf16>, vector<8x8xf32> -> vector<8x8xf32>
    %cst_137 = arith.constant 0.176776692 : f32
    %379 = vector.broadcast %cst_137 : f32 to vector<8x8xf32>
    %380 = arith.mulf %378, %379 : vector<8x8xf32>
    %cst_138 = arith.constant dense<0xFF800000> : vector<8xf32>
    %381 = vector.multi_reduction <maximumf>, %380, %cst_138 [1] : vector<8x8xf32> to vector<8xf32>
    %382 = vector.shape_cast %381 : vector<8xf32> to vector<8x1xf32>
    %383 = vector.broadcast %382 : vector<8x1xf32> to vector<8x8xf32>
    %384 = arith.subf %380, %383 : vector<8x8xf32>
    %385 = math.exp %384 : vector<8x8xf32>
    %cst_139 = arith.constant dense<0.000000e+00> : vector<8xf32>
    %386 = vector.multi_reduction <add>, %385, %cst_139 [1] : vector<8x8xf32> to vector<8xf32>
    %387 = vector.shape_cast %386 : vector<8xf32> to vector<8x1xf32>
    %388 = tpu.reciprocal %387 {approx = true} : vector<8x1xf32> -> vector<8x1xf32>
    %389 = vector.broadcast %388 : vector<8x1xf32> to vector<8x8xf32>
    %390 = arith.mulf %385, %389 : vector<8x8xf32>
    %391 = arith.truncf %390 : vector<8x8xf32> to vector<8x8xbf16>
    %cst_140 = arith.constant dense<0.000000e+00> : vector<8x32xf32>
    %392 = tpu.matmul %391, %377, %cst_140 {dimension_numbers = #tpu.dot_dimension_numbers<[1], [0], [0], [1], [0, 0, 1, 1], [], []>} : vector<8x8xbf16>, vector<8x32xbf16>, vector<8x32xf32> -> vector<8x32xf32>
    %393 = vector.extract_strided_slice %283 {offsets = [8, 64], sizes = [8, 32], strides = [1, 1]} : vector<16x384xbf16> to vector<8x32xbf16>
    %394 = vector.extract_strided_slice %283 {offsets = [8, 192], sizes = [8, 32], strides = [1, 1]} : vector<16x384xbf16> to vector<8x32xbf16>
    %395 = vector.extract_strided_slice %283 {offsets = [8, 320], sizes = [8, 32], strides = [1, 1]} : vector<16x384xbf16> to vector<8x32xbf16>
    %cst_141 = arith.constant dense<0.000000e+00> : vector<8x8xf32>
    %396 = tpu.matmul %393, %394, %cst_141 {dimension_numbers = #tpu.dot_dimension_numbers<[1], [1], [0], [0], [0, 0, 1, 0], [], []>} : vector<8x32xbf16>, vector<8x32xbf16>, vector<8x8xf32> -> vector<8x8xf32>
    %cst_142 = arith.constant 0.176776692 : f32
    %397 = vector.broadcast %cst_142 : f32 to vector<8x8xf32>
    %398 = arith.mulf %396, %397 : vector<8x8xf32>
    %cst_143 = arith.constant dense<0xFF800000> : vector<8xf32>
    %399 = vector.multi_reduction <maximumf>, %398, %cst_143 [1] : vector<8x8xf32> to vector<8xf32>
    %400 = vector.shape_cast %399 : vector<8xf32> to vector<8x1xf32>
    %401 = vector.broadcast %400 : vector<8x1xf32> to vector<8x8xf32>
    %402 = arith.subf %398, %401 : vector<8x8xf32>
    %403 = math.exp %402 : vector<8x8xf32>
    %cst_144 = arith.constant dense<0.000000e+00> : vector<8xf32>
    %404 = vector.multi_reduction <add>, %403, %cst_144 [1] : vector<8x8xf32> to vector<8xf32>
    %405 = vector.shape_cast %404 : vector<8xf32> to vector<8x1xf32>
    %406 = tpu.reciprocal %405 {approx = true} : vector<8x1xf32> -> vector<8x1xf32>
    %407 = vector.broadcast %406 : vector<8x1xf32> to vector<8x8xf32>
    %408 = arith.mulf %403, %407 : vector<8x8xf32>
    %409 = arith.truncf %408 : vector<8x8xf32> to vector<8x8xbf16>
    %cst_145 = arith.constant dense<0.000000e+00> : vector<8x32xf32>
    %410 = tpu.matmul %409, %395, %cst_145 {dimension_numbers = #tpu.dot_dimension_numbers<[1], [0], [0], [1], [0, 0, 1, 1], [], []>} : vector<8x8xbf16>, vector<8x32xbf16>, vector<8x32xf32> -> vector<8x32xf32>
    %411 = vector.extract_strided_slice %283 {offsets = [8, 96], sizes = [8, 32], strides = [1, 1]} : vector<16x384xbf16> to vector<8x32xbf16>
    %412 = vector.extract_strided_slice %283 {offsets = [8, 224], sizes = [8, 32], strides = [1, 1]} : vector<16x384xbf16> to vector<8x32xbf16>
    %413 = vector.extract_strided_slice %283 {offsets = [8, 352], sizes = [8, 32], strides = [1, 1]} : vector<16x384xbf16> to vector<8x32xbf16>
    %cst_146 = arith.constant dense<0.000000e+00> : vector<8x8xf32>
    %414 = tpu.matmul %411, %412, %cst_146 {dimension_numbers = #tpu.dot_dimension_numbers<[1], [1], [0], [0], [0, 0, 1, 0], [], []>} : vector<8x32xbf16>, vector<8x32xbf16>, vector<8x8xf32> -> vector<8x8xf32>
    %cst_147 = arith.constant 0.176776692 : f32
    %415 = vector.broadcast %cst_147 : f32 to vector<8x8xf32>
    %416 = arith.mulf %414, %415 : vector<8x8xf32>
    %cst_148 = arith.constant dense<0xFF800000> : vector<8xf32>
    %417 = vector.multi_reduction <maximumf>, %416, %cst_148 [1] : vector<8x8xf32> to vector<8xf32>
    %418 = vector.shape_cast %417 : vector<8xf32> to vector<8x1xf32>
    %419 = vector.broadcast %418 : vector<8x1xf32> to vector<8x8xf32>
    %420 = arith.subf %416, %419 : vector<8x8xf32>
    %421 = math.exp %420 : vector<8x8xf32>
    %cst_149 = arith.constant dense<0.000000e+00> : vector<8xf32>
    %422 = vector.multi_reduction <add>, %421, %cst_149 [1] : vector<8x8xf32> to vector<8xf32>
    %423 = vector.shape_cast %422 : vector<8xf32> to vector<8x1xf32>
    %424 = tpu.reciprocal %423 {approx = true} : vector<8x1xf32> -> vector<8x1xf32>
    %425 = vector.broadcast %424 : vector<8x1xf32> to vector<8x8xf32>
    %426 = arith.mulf %421, %425 : vector<8x8xf32>
    %427 = arith.truncf %426 : vector<8x8xf32> to vector<8x8xbf16>
    %cst_150 = arith.constant dense<0.000000e+00> : vector<8x32xf32>
    %428 = tpu.matmul %427, %413, %cst_150 {dimension_numbers = #tpu.dot_dimension_numbers<[1], [0], [0], [1], [0, 0, 1, 1], [], []>} : vector<8x8xbf16>, vector<8x32xbf16>, vector<8x32xf32> -> vector<8x32xf32>
    %429 = tpu.concatenate %374, %392, %410, %428 in 1 : vector<8x32xf32>, vector<8x32xf32>, vector<8x32xf32>, vector<8x32xf32> -> vector<8x128xf32>
    %430 = tpu.concatenate %356, %429 in 0 : vector<8x128xf32>, vector<8x128xf32> -> vector<16x128xf32>
    %431 = arith.truncf %430 : vector<16x128xf32> to vector<16x128xbf16>
    %c1_151 = arith.constant 1 : index
    %c0_152 = arith.constant 0 : index
    %c0_153 = arith.constant 0 : index
    %432 = vector.load %arg7[%c1_151, %c0_152, %c0_153] : memref<2x128x128xbf16, #tpu.memory_space<vmem>>, vector<1x128x128xbf16>
    %433 = vector.shape_cast %432 : vector<1x128x128xbf16> to vector<128x128xbf16>
    %cst_154 = arith.constant dense<0.000000e+00> : vector<16x128xf32>
    %434 = tpu.matmul %431, %433, %cst_154 {dimension_numbers = #tpu.dot_dimension_numbers<[1], [0], [0], [1], [0, 0, 1, 1], [], []>} : vector<16x128xbf16>, vector<128x128xbf16>, vector<16x128xf32> -> vector<16x128xf32>
    %c1_155 = arith.constant 1 : index
    %c0_156 = arith.constant 0 : index
    %c0_157 = arith.constant 0 : index
    %435 = vector.load %arg8[%c1_155, %c0_156, %c0_157] : memref<2x1x128xf32, #tpu.memory_space<vmem>>, vector<1x1x128xf32>
    %436 = vector.shape_cast %435 : vector<1x1x128xf32> to vector<1x128xf32>
    %437 = vector.broadcast %436 : vector<1x128xf32> to vector<16x128xf32>
    %438 = arith.addf %434, %437 : vector<16x128xf32>
    %439 = arith.addf %274, %438 : vector<16x128xf32>
    %c1_158 = arith.constant 1 : index
    %c0_159 = arith.constant 0 : index
    %c0_160 = arith.constant 0 : index
    %440 = vector.load %arg9[%c1_158, %c0_159, %c0_160] : memref<2x1x128xf32, #tpu.memory_space<vmem>>, vector<1x1x128xf32>
    %441 = vector.shape_cast %440 : vector<1x1x128xf32> to vector<1x128xf32>
    %c1_161 = arith.constant 1 : index
    %c0_162 = arith.constant 0 : index
    %c0_163 = arith.constant 0 : index
    %442 = vector.load %arg10[%c1_161, %c0_162, %c0_163] : memref<2x1x128xf32, #tpu.memory_space<vmem>>, vector<1x1x128xf32>
    %443 = vector.shape_cast %442 : vector<1x1x128xf32> to vector<1x128xf32>
    %cst_164 = arith.constant dense<0.000000e+00> : vector<16xf32>
    %444 = vector.multi_reduction <add>, %439, %cst_164 [1] : vector<16x128xf32> to vector<16xf32>
    %445 = vector.shape_cast %444 : vector<16xf32> to vector<16x1xf32>
    %cst_165 = arith.constant 1.280000e+02 : f32
    %446 = vector.broadcast %cst_165 : f32 to vector<16x1xf32>
    %447 = arith.divf %445, %446 : vector<16x1xf32>
    %448 = vector.broadcast %447 : vector<16x1xf32> to vector<16x128xf32>
    %449 = arith.subf %439, %448 : vector<16x128xf32>
    %450 = arith.mulf %449, %449 : vector<16x128xf32>
    %cst_166 = arith.constant dense<0.000000e+00> : vector<16xf32>
    %451 = vector.multi_reduction <add>, %450, %cst_166 [1] : vector<16x128xf32> to vector<16xf32>
    %452 = vector.shape_cast %451 : vector<16xf32> to vector<16x1xf32>
    %cst_167 = arith.constant 1.280000e+02 : f32
    %453 = vector.broadcast %cst_167 : f32 to vector<16x1xf32>
    %454 = arith.divf %452, %453 : vector<16x1xf32>
    %455 = vector.broadcast %447 : vector<16x1xf32> to vector<16x128xf32>
    %456 = arith.subf %439, %455 : vector<16x128xf32>
    %cst_168 = arith.constant 9.99999974E-6 : f32
    %457 = vector.broadcast %cst_168 : f32 to vector<16x1xf32>
    %458 = arith.addf %454, %457 : vector<16x1xf32>
    %459 = math.rsqrt %458 : vector<16x1xf32>
    %460 = vector.broadcast %459 : vector<16x1xf32> to vector<16x128xf32>
    %461 = arith.mulf %456, %460 : vector<16x128xf32>
    %462 = vector.broadcast %441 : vector<1x128xf32> to vector<16x128xf32>
    %463 = arith.mulf %461, %462 : vector<16x128xf32>
    %464 = vector.broadcast %443 : vector<1x128xf32> to vector<16x128xf32>
    %465 = arith.addf %463, %464 : vector<16x128xf32>
    %466 = arith.truncf %465 : vector<16x128xf32> to vector<16x128xbf16>
    %c1_169 = arith.constant 1 : index
    %c0_170 = arith.constant 0 : index
    %c0_171 = arith.constant 0 : index
    %467 = vector.load %arg11[%c1_169, %c0_170, %c0_171] : memref<2x128x256xbf16, #tpu.memory_space<vmem>>, vector<1x128x256xbf16>
    %468 = vector.shape_cast %467 : vector<1x128x256xbf16> to vector<128x256xbf16>
    %cst_172 = arith.constant dense<0.000000e+00> : vector<16x256xf32>
    %469 = tpu.matmul %466, %468, %cst_172 {dimension_numbers = #tpu.dot_dimension_numbers<[1], [0], [0], [1], [0, 0, 1, 1], [], []>} : vector<16x128xbf16>, vector<128x256xbf16>, vector<16x256xf32> -> vector<16x256xf32>
    %c1_173 = arith.constant 1 : index
    %c0_174 = arith.constant 0 : index
    %c0_175 = arith.constant 0 : index
    %470 = vector.load %arg12[%c1_173, %c0_174, %c0_175] : memref<2x1x256xf32, #tpu.memory_space<vmem>>, vector<1x1x256xf32>
    %471 = vector.shape_cast %470 : vector<1x1x256xf32> to vector<1x256xf32>
    %472 = vector.broadcast %471 : vector<1x256xf32> to vector<16x256xf32>
    %473 = arith.addf %469, %472 : vector<16x256xf32>
    %474 = arith.mulf %473, %473 : vector<16x256xf32>
    %475 = arith.mulf %473, %474 : vector<16x256xf32>
    %cst_176 = arith.constant 4.471500e-02 : f32
    %476 = vector.broadcast %cst_176 : f32 to vector<16x256xf32>
    %477 = arith.mulf %476, %475 : vector<16x256xf32>
    %478 = arith.addf %473, %477 : vector<16x256xf32>
    %cst_177 = arith.constant 0.797884583 : f32
    %479 = vector.broadcast %cst_177 : f32 to vector<16x256xf32>
    %480 = arith.mulf %479, %478 : vector<16x256xf32>
    %481 = math.tanh %480 : vector<16x256xf32>
    %cst_178 = arith.constant 1.000000e+00 : f32
    %482 = vector.broadcast %cst_178 : f32 to vector<16x256xf32>
    %483 = arith.addf %482, %481 : vector<16x256xf32>
    %cst_179 = arith.constant 5.000000e-01 : f32
    %484 = vector.broadcast %cst_179 : f32 to vector<16x256xf32>
    %485 = arith.mulf %484, %483 : vector<16x256xf32>
    %486 = arith.mulf %473, %485 : vector<16x256xf32>
    %487 = arith.truncf %486 : vector<16x256xf32> to vector<16x256xbf16>
    %c1_180 = arith.constant 1 : index
    %c0_181 = arith.constant 0 : index
    %c0_182 = arith.constant 0 : index
    %488 = vector.load %arg13[%c1_180, %c0_181, %c0_182] : memref<2x256x128xbf16, #tpu.memory_space<vmem>>, vector<1x256x128xbf16>
    %489 = vector.shape_cast %488 : vector<1x256x128xbf16> to vector<256x128xbf16>
    %cst_183 = arith.constant dense<0.000000e+00> : vector<16x128xf32>
    %490 = tpu.matmul %487, %489, %cst_183 {dimension_numbers = #tpu.dot_dimension_numbers<[1], [0], [0], [1], [0, 0, 1, 1], [], []>} : vector<16x256xbf16>, vector<256x128xbf16>, vector<16x128xf32> -> vector<16x128xf32>
    %c1_184 = arith.constant 1 : index
    %c0_185 = arith.constant 0 : index
    %c0_186 = arith.constant 0 : index
    %491 = vector.load %arg14[%c1_184, %c0_185, %c0_186] : memref<2x1x128xf32, #tpu.memory_space<vmem>>, vector<1x1x128xf32>
    %492 = vector.shape_cast %491 : vector<1x1x128xf32> to vector<1x128xf32>
    %493 = vector.broadcast %492 : vector<1x128xf32> to vector<16x128xf32>
    %494 = arith.addf %490, %493 : vector<16x128xf32>
    %495 = arith.addf %465, %494 : vector<16x128xf32>
    %c1_187 = arith.constant 1 : index
    %c0_188 = arith.constant 0 : index
    %c0_189 = arith.constant 0 : index
    %496 = vector.load %arg15[%c1_187, %c0_188, %c0_189] : memref<2x1x128xf32, #tpu.memory_space<vmem>>, vector<1x1x128xf32>
    %497 = vector.shape_cast %496 : vector<1x1x128xf32> to vector<1x128xf32>
    %c1_190 = arith.constant 1 : index
    %c0_191 = arith.constant 0 : index
    %c0_192 = arith.constant 0 : index
    %498 = vector.load %arg16[%c1_190, %c0_191, %c0_192] : memref<2x1x128xf32, #tpu.memory_space<vmem>>, vector<1x1x128xf32>
    %499 = vector.shape_cast %498 : vector<1x1x128xf32> to vector<1x128xf32>
    %cst_193 = arith.constant dense<0.000000e+00> : vector<16xf32>
    %500 = vector.multi_reduction <add>, %495, %cst_193 [1] : vector<16x128xf32> to vector<16xf32>
    %501 = vector.shape_cast %500 : vector<16xf32> to vector<16x1xf32>
    %cst_194 = arith.constant 1.280000e+02 : f32
    %502 = vector.broadcast %cst_194 : f32 to vector<16x1xf32>
    %503 = arith.divf %501, %502 : vector<16x1xf32>
    %504 = vector.broadcast %503 : vector<16x1xf32> to vector<16x128xf32>
    %505 = arith.subf %495, %504 : vector<16x128xf32>
    %506 = arith.mulf %505, %505 : vector<16x128xf32>
    %cst_195 = arith.constant dense<0.000000e+00> : vector<16xf32>
    %507 = vector.multi_reduction <add>, %506, %cst_195 [1] : vector<16x128xf32> to vector<16xf32>
    %508 = vector.shape_cast %507 : vector<16xf32> to vector<16x1xf32>
    %cst_196 = arith.constant 1.280000e+02 : f32
    %509 = vector.broadcast %cst_196 : f32 to vector<16x1xf32>
    %510 = arith.divf %508, %509 : vector<16x1xf32>
    %511 = vector.broadcast %503 : vector<16x1xf32> to vector<16x128xf32>
    %512 = arith.subf %495, %511 : vector<16x128xf32>
    %cst_197 = arith.constant 9.99999974E-6 : f32
    %513 = vector.broadcast %cst_197 : f32 to vector<16x1xf32>
    %514 = arith.addf %510, %513 : vector<16x1xf32>
    %515 = math.rsqrt %514 : vector<16x1xf32>
    %516 = vector.broadcast %515 : vector<16x1xf32> to vector<16x128xf32>
    %517 = arith.mulf %512, %516 : vector<16x128xf32>
    %518 = vector.broadcast %497 : vector<1x128xf32> to vector<16x128xf32>
    %519 = arith.mulf %517, %518 : vector<16x128xf32>
    %520 = vector.broadcast %499 : vector<1x128xf32> to vector<16x128xf32>
    %521 = arith.addf %519, %520 : vector<16x128xf32>
    %522 = vector.extract_strided_slice %521 {offsets = [0, 0], sizes = [1, 128], strides = [1, 1]} : vector<16x128xf32> to vector<1x128xf32>
    %523 = vector.extract_strided_slice %521 {offsets = [8, 0], sizes = [1, 128], strides = [1, 1]} : vector<16x128xf32> to vector<1x128xf32>
    %524 = tpu.concatenate %522, %523 in 0 : vector<1x128xf32>, vector<1x128xf32> -> vector<2x128xf32>
    %525 = arith.truncf %524 : vector<2x128xf32> to vector<2x128xbf16>
    %c0_198 = arith.constant 0 : index
    %c0_199 = arith.constant 0 : index
    %526 = vector.load %arg17[%c0_198, %c0_199] : memref<128x128xbf16, #tpu.memory_space<vmem>>, vector<128x128xbf16>
    %cst_200 = arith.constant dense<0.000000e+00> : vector<2x128xf32>
    %527 = tpu.matmul %525, %526, %cst_200 {dimension_numbers = #tpu.dot_dimension_numbers<[1], [0], [0], [1], [0, 0, 1, 1], [], []>} : vector<2x128xbf16>, vector<128x128xbf16>, vector<2x128xf32> -> vector<2x128xf32>
    %c0_201 = arith.constant 0 : index
    %c0_202 = arith.constant 0 : index
    %528 = vector.load %arg18[%c0_201, %c0_202] : memref<1x128xf32, #tpu.memory_space<vmem>>, vector<1x128xf32>
    %529 = vector.broadcast %528 : vector<1x128xf32> to vector<2x128xf32>
    %530 = arith.addf %527, %529 : vector<2x128xf32>
    %531 = math.tanh %530 : vector<2x128xf32>
    %c0_203 = arith.constant 0 : index
    %c0_204 = arith.constant 0 : index
    %532 = vector.load %arg19[%c0_203, %c0_204] : memref<2x128xf32, #tpu.memory_space<vmem>>, vector<2x128xf32>
    tpu.vector_store %arg19[%c0_203, %c0_204], %531 {strides = array<i32>} : memref<2x128xf32, #tpu.memory_space<vmem>>, vector<2x128xf32>,
    return
  }
  func.func @transform_0(%arg0: i32) -> (i32, i32) {
    %c0_i32 = arith.constant 0 : i32
    %c0_i32_0 = arith.constant 0 : i32
    %c0_i32_1 = arith.constant 0 : i32
    return %c0_i32, %c0_i32_0 : i32, i32
  }
  func.func @transform_1(%arg0: i32) -> (i32, i32) {
    %c0_i32 = arith.constant 0 : i32
    %c0_i32_0 = arith.constant 0 : i32
    %c0_i32_1 = arith.constant 0 : i32
    return %c0_i32, %c0_i32_0 : i32, i32
  }
  func.func @transform_2(%arg0: i32) -> (i32, i32) {
    %c0_i32 = arith.constant 0 : i32
    %c0_i32_0 = arith.constant 0 : i32
    %c0_i32_1 = arith.constant 0 : i32
    return %c0_i32, %c0_i32_0 : i32, i32
  }
  func.func @transform_3(%arg0: i32) -> (i32, i32) {
    %c0_i32 = arith.constant 0 : i32
    %c0_i32_0 = arith.constant 0 : i32
    %c0_i32_1 = arith.constant 0 : i32
    return %c0_i32, %c0_i32_0 : i32, i32
  }
  func.func @transform_4(%arg0: i32) -> (i32, i32, i32) {
    %c0_i32 = arith.constant 0 : i32
    %c0_i32_0 = arith.constant 0 : i32
    %c0_i32_1 = arith.constant 0 : i32
    %c0_i32_2 = arith.constant 0 : i32
    return %c0_i32, %c0_i32_0, %c0_i32_1 : i32, i32, i32
  }
  func.func @transform_5(%arg0: i32) -> (i32, i32, i32) {
    %c0_i32 = arith.constant 0 : i32
    %c0_i32_0 = arith.constant 0 : i32
    %c0_i32_1 = arith.constant 0 : i32
    %c0_i32_2 = arith.constant 0 : i32
    return %c0_i32, %c0_i32_0, %c0_i32_1 : i32, i32, i32
  }
  func.func @transform_6(%arg0: i32) -> (i32, i32, i32) {
    %c0_i32 = arith.constant 0 : i32
    %c0_i32_0 = arith.constant 0 : i32
    %c0_i32_1 = arith.constant 0 : i32
    %c0_i32_2 = arith.constant 0 : i32
    return %c0_i32, %c0_i32_0, %c0_i32_1 : i32, i32, i32
  }
  func.func @transform_7(%arg0: i32) -> (i32, i32, i32) {
    %c0_i32 = arith.constant 0 : i32
    %c0_i32_0 = arith.constant 0 : i32
    %c0_i32_1 = arith.constant 0 : i32
    %c0_i32_2 = arith.constant 0 : i32
    return %c0_i32, %c0_i32_0, %c0_i32_1 : i32, i32, i32
  }
  func.func @transform_8(%arg0: i32) -> (i32, i32, i32) {
    %c0_i32 = arith.constant 0 : i32
    %c0_i32_0 = arith.constant 0 : i32
    %c0_i32_1 = arith.constant 0 : i32
    %c0_i32_2 = arith.constant 0 : i32
    return %c0_i32, %c0_i32_0, %c0_i32_1 : i32, i32, i32
  }
  func.func @transform_9(%arg0: i32) -> (i32, i32, i32) {
    %c0_i32 = arith.constant 0 : i32
    %c0_i32_0 = arith.constant 0 : i32
    %c0_i32_1 = arith.constant 0 : i32
    %c0_i32_2 = arith.constant 0 : i32
    return %c0_i32, %c0_i32_0, %c0_i32_1 : i32, i32, i32
  }
  func.func @transform_10(%arg0: i32) -> (i32, i32, i32) {
    %c0_i32 = arith.constant 0 : i32
    %c0_i32_0 = arith.constant 0 : i32
    %c0_i32_1 = arith.constant 0 : i32
    %c0_i32_2 = arith.constant 0 : i32
    return %c0_i32, %c0_i32_0, %c0_i32_1 : i32, i32, i32
  }
  func.func @transform_11(%arg0: i32) -> (i32, i32, i32) {
    %c0_i32 = arith.constant 0 : i32
    %c0_i32_0 = arith.constant 0 : i32
    %c0_i32_1 = arith.constant 0 : i32
    %c0_i32_2 = arith.constant 0 : i32
    return %c0_i32, %c0_i32_0, %c0_i32_1 : i32, i32, i32
  }
  func.func @transform_12(%arg0: i32) -> (i32, i32, i32) {
    %c0_i32 = arith.constant 0 : i32
    %c0_i32_0 = arith.constant 0 : i32
    %c0_i32_1 = arith.constant 0 : i32
    %c0_i32_2 = arith.constant 0 : i32
    return %c0_i32, %c0_i32_0, %c0_i32_1 : i32, i32, i32
  }
  func.func @transform_13(%arg0: i32) -> (i32, i32, i32) {
    %c0_i32 = arith.constant 0 : i32
    %c0_i32_0 = arith.constant 0 : i32
    %c0_i32_1 = arith.constant 0 : i32
    %c0_i32_2 = arith.constant 0 : i32
    return %c0_i32, %c0_i32_0, %c0_i32_1 : i32, i32, i32
  }
  func.func @transform_14(%arg0: i32) -> (i32, i32, i32) {
    %c0_i32 = arith.constant 0 : i32
    %c0_i32_0 = arith.constant 0 : i32
    %c0_i32_1 = arith.constant 0 : i32
    %c0_i32_2 = arith.constant 0 : i32
    return %c0_i32, %c0_i32_0, %c0_i32_1 : i32, i32, i32
  }
  func.func @transform_15(%arg0: i32) -> (i32, i32, i32) {
    %c0_i32 = arith.constant 0 : i32
    %c0_i32_0 = arith.constant 0 : i32
    %c0_i32_1 = arith.constant 0 : i32
    %c0_i32_2 = arith.constant 0 : i32
    return %c0_i32, %c0_i32_0, %c0_i32_1 : i32, i32, i32
  }
  func.func @transform_16(%arg0: i32) -> (i32, i32) {
    %c0_i32 = arith.constant 0 : i32
    %c0_i32_0 = arith.constant 0 : i32
    %c0_i32_1 = arith.constant 0 : i32
    return %c0_i32, %c0_i32_0 : i32, i32
  }
  func.func @transform_17(%arg0: i32) -> (i32, i32) {
    %c0_i32 = arith.constant 0 : i32
    %c0_i32_0 = arith.constant 0 : i32
    %c0_i32_1 = arith.constant 0 : i32
    return %c0_i32, %c0_i32_0 : i32, i32
  }
  func.func @transform_18(%arg0: i32) -> (i32, i32) {
    %c0_i32 = arith.constant 0 : i32
    %c0_i32_0 = arith.constant 0 : i32
    %c0_i32_1 = arith.constant 0 : i32
    return %c0_i32, %c0_i32_0 : i32, i32
  }
}

module attributes {stable_mosaic.version = 11 : i64} {
  func.func @_encoder_kernel(%arg0: i32, %arg1: memref<2x128xf32, #tpu.memory_space<vmem>>, %arg2: memref<24x128xf32, #tpu.memory_space<vmem>>, %arg3: memref<8x128xf32, #tpu.memory_space<vmem>>, %arg4: memref<1x128xf32, #tpu.memory_space<vmem>>, %arg5: memref<1x128xf32, #tpu.memory_space<vmem>>, %arg6: memref<2x128x384xbf16, #tpu.memory_space<vmem>>, %arg7: memref<2x1x384xf32, #tpu.memory_space<vmem>>, %arg8: memref<2x128x128xbf16, #tpu.memory_space<vmem>>, %arg9: memref<2x1x128xf32, #tpu.memory_space<vmem>>, %arg10: memref<2x1x128xf32, #tpu.memory_space<vmem>>, %arg11: memref<2x1x128xf32, #tpu.memory_space<vmem>>, %arg12: memref<2x128x256xbf16, #tpu.memory_space<vmem>>, %arg13: memref<2x1x256xf32, #tpu.memory_space<vmem>>, %arg14: memref<2x256x128xbf16, #tpu.memory_space<vmem>>, %arg15: memref<2x1x128xf32, #tpu.memory_space<vmem>>, %arg16: memref<2x1x128xf32, #tpu.memory_space<vmem>>, %arg17: memref<2x1x128xf32, #tpu.memory_space<vmem>>, %arg18: memref<128x128xbf16, #tpu.memory_space<vmem>>, %arg19: memref<1x128xf32, #tpu.memory_space<vmem>>, %arg20: memref<2x3xf32, #tpu.memory_space<vmem>>) attributes {dimension_semantics = [#tpu.dimension_semantics<arbitrary>], iteration_bounds = array<i64: 1>, scalar_prefetch = 0 : i64, scratch_operands = 0 : i64, tpu.core_type = #tpu.core_type<tc>, window_params = [{pipeline_mode = #tpu.pipeline_mode<synchronous>, transform_indices = @transform_0, window_bounds = array<i64: 2, 128>}, {pipeline_mode = #tpu.pipeline_mode<synchronous>, transform_indices = @transform_1, window_bounds = array<i64: 24, 128>}, {pipeline_mode = #tpu.pipeline_mode<synchronous>, transform_indices = @transform_2, window_bounds = array<i64: 8, 128>}, {pipeline_mode = #tpu.pipeline_mode<synchronous>, transform_indices = @transform_3, window_bounds = array<i64: 1, 128>}, {pipeline_mode = #tpu.pipeline_mode<synchronous>, transform_indices = @transform_4, window_bounds = array<i64: 1, 128>}, {pipeline_mode = #tpu.pipeline_mode<synchronous>, transform_indices = @transform_5, window_bounds = array<i64: 2, 128, 384>}, {pipeline_mode = #tpu.pipeline_mode<synchronous>, transform_indices = @transform_6, window_bounds = array<i64: 2, 1, 384>}, {pipeline_mode = #tpu.pipeline_mode<synchronous>, transform_indices = @transform_7, window_bounds = array<i64: 2, 128, 128>}, {pipeline_mode = #tpu.pipeline_mode<synchronous>, transform_indices = @transform_8, window_bounds = array<i64: 2, 1, 128>}, {pipeline_mode = #tpu.pipeline_mode<synchronous>, transform_indices = @transform_9, window_bounds = array<i64: 2, 1, 128>}, {pipeline_mode = #tpu.pipeline_mode<synchronous>, transform_indices = @transform_10, window_bounds = array<i64: 2, 1, 128>}, {pipeline_mode = #tpu.pipeline_mode<synchronous>, transform_indices = @transform_11, window_bounds = array<i64: 2, 128, 256>}, {pipeline_mode = #tpu.pipeline_mode<synchronous>, transform_indices = @transform_12, window_bounds = array<i64: 2, 1, 256>}, {pipeline_mode = #tpu.pipeline_mode<synchronous>, transform_indices = @transform_13, window_bounds = array<i64: 2, 256, 128>}, {pipeline_mode = #tpu.pipeline_mode<synchronous>, transform_indices = @transform_14, window_bounds = array<i64: 2, 1, 128>}, {pipeline_mode = #tpu.pipeline_mode<synchronous>, transform_indices = @transform_15, window_bounds = array<i64: 2, 1, 128>}, {pipeline_mode = #tpu.pipeline_mode<synchronous>, transform_indices = @transform_16, window_bounds = array<i64: 2, 1, 128>}, {pipeline_mode = #tpu.pipeline_mode<synchronous>, transform_indices = @transform_17, window_bounds = array<i64: 128, 128>}, {pipeline_mode = #tpu.pipeline_mode<synchronous>, transform_indices = @transform_18, window_bounds = array<i64: 1, 128>}, {pipeline_mode = #tpu.pipeline_mode<synchronous>, transform_indices = @transform_19, window_bounds = array<i64: 2, 3>}]} {
    %c0 = arith.constant 0 : index
    %c0_0 = arith.constant 0 : index
    %0 = vector.load %arg3[%c0, %c0_0] : memref<8x128xf32, #tpu.memory_space<vmem>>, vector<8x128xf32>
    %1 = tpu.concatenate %0, %0, %0 in 0 : vector<8x128xf32>, vector<8x128xf32>, vector<8x128xf32> -> vector<24x128xf32>
    %c0_1 = arith.constant 0 : index
    %c0_2 = arith.constant 0 : index
    %2 = vector.load %arg2[%c0_1, %c0_2] : memref<24x128xf32, #tpu.memory_space<vmem>>, vector<24x128xf32>
    %3 = arith.addf %2, %1 : vector<24x128xf32>
    %c0_3 = arith.constant 0 : index
    %c0_4 = arith.constant 0 : index
    %4 = vector.load %arg4[%c0_3, %c0_4] : memref<1x128xf32, #tpu.memory_space<vmem>>, vector<1x128xf32>
    %c0_5 = arith.constant 0 : index
    %c0_6 = arith.constant 0 : index
    %5 = vector.load %arg5[%c0_5, %c0_6] : memref<1x128xf32, #tpu.memory_space<vmem>>, vector<1x128xf32>
    %cst = arith.constant dense<0.000000e+00> : vector<24xf32>
    %6 = vector.multi_reduction <add>, %3, %cst [1] : vector<24x128xf32> to vector<24xf32>
    %7 = vector.shape_cast %6 : vector<24xf32> to vector<24x1xf32>
    %cst_7 = arith.constant 1.280000e+02 : f32
    %8 = vector.broadcast %cst_7 : f32 to vector<24x1xf32>
    %9 = arith.divf %7, %8 : vector<24x1xf32>
    %10 = vector.broadcast %9 : vector<24x1xf32> to vector<24x128xf32>
    %11 = arith.subf %3, %10 : vector<24x128xf32>
    %12 = arith.mulf %11, %11 : vector<24x128xf32>
    %cst_8 = arith.constant dense<0.000000e+00> : vector<24xf32>
    %13 = vector.multi_reduction <add>, %12, %cst_8 [1] : vector<24x128xf32> to vector<24xf32>
    %14 = vector.shape_cast %13 : vector<24xf32> to vector<24x1xf32>
    %cst_9 = arith.constant 1.280000e+02 : f32
    %15 = vector.broadcast %cst_9 : f32 to vector<24x1xf32>
    %16 = arith.divf %14, %15 : vector<24x1xf32>
    %17 = vector.broadcast %9 : vector<24x1xf32> to vector<24x128xf32>
    %18 = arith.subf %3, %17 : vector<24x128xf32>
    %cst_10 = arith.constant 9.99999974E-6 : f32
    %19 = vector.broadcast %cst_10 : f32 to vector<24x1xf32>
    %20 = arith.addf %16, %19 : vector<24x1xf32>
    %21 = math.rsqrt %20 : vector<24x1xf32>
    %22 = vector.broadcast %21 : vector<24x1xf32> to vector<24x128xf32>
    %23 = arith.mulf %18, %22 : vector<24x128xf32>
    %24 = vector.broadcast %4 : vector<1x128xf32> to vector<24x128xf32>
    %25 = arith.mulf %23, %24 : vector<24x128xf32>
    %26 = vector.broadcast %5 : vector<1x128xf32> to vector<24x128xf32>
    %27 = arith.addf %25, %26 : vector<24x128xf32>
    %28 = arith.truncf %27 : vector<24x128xf32> to vector<24x128xbf16>
    %c0_11 = arith.constant 0 : index
    %c0_12 = arith.constant 0 : index
    %c0_13 = arith.constant 0 : index
    %29 = vector.load %arg6[%c0_11, %c0_12, %c0_13] : memref<2x128x384xbf16, #tpu.memory_space<vmem>>, vector<1x128x384xbf16>
    %30 = vector.shape_cast %29 : vector<1x128x384xbf16> to vector<128x384xbf16>
    %cst_14 = arith.constant dense<0.000000e+00> : vector<24x384xf32>
    %31 = tpu.matmul %28, %30, %cst_14 {dimension_numbers = #tpu.dot_dimension_numbers<[1], [0], [0], [1], [0, 0, 1, 1], [], []>} : vector<24x128xbf16>, vector<128x384xbf16>, vector<24x384xf32> -> vector<24x384xf32>
    %c0_15 = arith.constant 0 : index
    %c0_16 = arith.constant 0 : index
    %c0_17 = arith.constant 0 : index
    %32 = vector.load %arg7[%c0_15, %c0_16, %c0_17] : memref<2x1x384xf32, #tpu.memory_space<vmem>>, vector<1x1x384xf32>
    %33 = vector.shape_cast %32 : vector<1x1x384xf32> to vector<1x384xf32>
    %34 = vector.broadcast %33 : vector<1x384xf32> to vector<24x384xf32>
    %35 = arith.addf %31, %34 : vector<24x384xf32>
    %36 = arith.truncf %35 : vector<24x384xf32> to vector<24x384xbf16>
    %37 = vector.extract_strided_slice %36 {offsets = [0, 0], sizes = [8, 32], strides = [1, 1]} : vector<24x384xbf16> to vector<8x32xbf16>
    %38 = vector.extract_strided_slice %36 {offsets = [0, 128], sizes = [8, 32], strides = [1, 1]} : vector<24x384xbf16> to vector<8x32xbf16>
    %39 = vector.extract_strided_slice %36 {offsets = [0, 256], sizes = [8, 32], strides = [1, 1]} : vector<24x384xbf16> to vector<8x32xbf16>
    %cst_18 = arith.constant dense<0.000000e+00> : vector<8x8xf32>
    %40 = tpu.matmul %37, %38, %cst_18 {dimension_numbers = #tpu.dot_dimension_numbers<[1], [1], [0], [0], [0, 0, 1, 0], [], []>} : vector<8x32xbf16>, vector<8x32xbf16>, vector<8x8xf32> -> vector<8x8xf32>
    %cst_19 = arith.constant 0.176776692 : f32
    %41 = vector.broadcast %cst_19 : f32 to vector<8x8xf32>
    %42 = arith.mulf %40, %41 : vector<8x8xf32>
    %cst_20 = arith.constant dense<0xFF800000> : vector<8xf32>
    %43 = vector.multi_reduction <maximumf>, %42, %cst_20 [1] : vector<8x8xf32> to vector<8xf32>
    %44 = vector.shape_cast %43 : vector<8xf32> to vector<8x1xf32>
    %45 = vector.broadcast %44 : vector<8x1xf32> to vector<8x8xf32>
    %46 = arith.subf %42, %45 : vector<8x8xf32>
    %47 = math.exp %46 : vector<8x8xf32>
    %cst_21 = arith.constant dense<0.000000e+00> : vector<8xf32>
    %48 = vector.multi_reduction <add>, %47, %cst_21 [1] : vector<8x8xf32> to vector<8xf32>
    %49 = vector.shape_cast %48 : vector<8xf32> to vector<8x1xf32>
    %50 = tpu.reciprocal %49 {approx = true} : vector<8x1xf32> -> vector<8x1xf32>
    %51 = vector.broadcast %50 : vector<8x1xf32> to vector<8x8xf32>
    %52 = arith.mulf %47, %51 : vector<8x8xf32>
    %53 = arith.truncf %52 : vector<8x8xf32> to vector<8x8xbf16>
    %cst_22 = arith.constant dense<0.000000e+00> : vector<8x32xf32>
    %54 = tpu.matmul %53, %39, %cst_22 {dimension_numbers = #tpu.dot_dimension_numbers<[1], [0], [0], [1], [0, 0, 1, 1], [], []>} : vector<8x8xbf16>, vector<8x32xbf16>, vector<8x32xf32> -> vector<8x32xf32>
    %55 = vector.extract_strided_slice %36 {offsets = [0, 32], sizes = [8, 32], strides = [1, 1]} : vector<24x384xbf16> to vector<8x32xbf16>
    %56 = vector.extract_strided_slice %36 {offsets = [0, 160], sizes = [8, 32], strides = [1, 1]} : vector<24x384xbf16> to vector<8x32xbf16>
    %57 = vector.extract_strided_slice %36 {offsets = [0, 288], sizes = [8, 32], strides = [1, 1]} : vector<24x384xbf16> to vector<8x32xbf16>
    %cst_23 = arith.constant dense<0.000000e+00> : vector<8x8xf32>
    %58 = tpu.matmul %55, %56, %cst_23 {dimension_numbers = #tpu.dot_dimension_numbers<[1], [1], [0], [0], [0, 0, 1, 0], [], []>} : vector<8x32xbf16>, vector<8x32xbf16>, vector<8x8xf32> -> vector<8x8xf32>
    %cst_24 = arith.constant 0.176776692 : f32
    %59 = vector.broadcast %cst_24 : f32 to vector<8x8xf32>
    %60 = arith.mulf %58, %59 : vector<8x8xf32>
    %cst_25 = arith.constant dense<0xFF800000> : vector<8xf32>
    %61 = vector.multi_reduction <maximumf>, %60, %cst_25 [1] : vector<8x8xf32> to vector<8xf32>
    %62 = vector.shape_cast %61 : vector<8xf32> to vector<8x1xf32>
    %63 = vector.broadcast %62 : vector<8x1xf32> to vector<8x8xf32>
    %64 = arith.subf %60, %63 : vector<8x8xf32>
    %65 = math.exp %64 : vector<8x8xf32>
    %cst_26 = arith.constant dense<0.000000e+00> : vector<8xf32>
    %66 = vector.multi_reduction <add>, %65, %cst_26 [1] : vector<8x8xf32> to vector<8xf32>
    %67 = vector.shape_cast %66 : vector<8xf32> to vector<8x1xf32>
    %68 = tpu.reciprocal %67 {approx = true} : vector<8x1xf32> -> vector<8x1xf32>
    %69 = vector.broadcast %68 : vector<8x1xf32> to vector<8x8xf32>
    %70 = arith.mulf %65, %69 : vector<8x8xf32>
    %71 = arith.truncf %70 : vector<8x8xf32> to vector<8x8xbf16>
    %cst_27 = arith.constant dense<0.000000e+00> : vector<8x32xf32>
    %72 = tpu.matmul %71, %57, %cst_27 {dimension_numbers = #tpu.dot_dimension_numbers<[1], [0], [0], [1], [0, 0, 1, 1], [], []>} : vector<8x8xbf16>, vector<8x32xbf16>, vector<8x32xf32> -> vector<8x32xf32>
    %73 = vector.extract_strided_slice %36 {offsets = [0, 64], sizes = [8, 32], strides = [1, 1]} : vector<24x384xbf16> to vector<8x32xbf16>
    %74 = vector.extract_strided_slice %36 {offsets = [0, 192], sizes = [8, 32], strides = [1, 1]} : vector<24x384xbf16> to vector<8x32xbf16>
    %75 = vector.extract_strided_slice %36 {offsets = [0, 320], sizes = [8, 32], strides = [1, 1]} : vector<24x384xbf16> to vector<8x32xbf16>
    %cst_28 = arith.constant dense<0.000000e+00> : vector<8x8xf32>
    %76 = tpu.matmul %73, %74, %cst_28 {dimension_numbers = #tpu.dot_dimension_numbers<[1], [1], [0], [0], [0, 0, 1, 0], [], []>} : vector<8x32xbf16>, vector<8x32xbf16>, vector<8x8xf32> -> vector<8x8xf32>
    %cst_29 = arith.constant 0.176776692 : f32
    %77 = vector.broadcast %cst_29 : f32 to vector<8x8xf32>
    %78 = arith.mulf %76, %77 : vector<8x8xf32>
    %cst_30 = arith.constant dense<0xFF800000> : vector<8xf32>
    %79 = vector.multi_reduction <maximumf>, %78, %cst_30 [1] : vector<8x8xf32> to vector<8xf32>
    %80 = vector.shape_cast %79 : vector<8xf32> to vector<8x1xf32>
    %81 = vector.broadcast %80 : vector<8x1xf32> to vector<8x8xf32>
    %82 = arith.subf %78, %81 : vector<8x8xf32>
    %83 = math.exp %82 : vector<8x8xf32>
    %cst_31 = arith.constant dense<0.000000e+00> : vector<8xf32>
    %84 = vector.multi_reduction <add>, %83, %cst_31 [1] : vector<8x8xf32> to vector<8xf32>
    %85 = vector.shape_cast %84 : vector<8xf32> to vector<8x1xf32>
    %86 = tpu.reciprocal %85 {approx = true} : vector<8x1xf32> -> vector<8x1xf32>
    %87 = vector.broadcast %86 : vector<8x1xf32> to vector<8x8xf32>
    %88 = arith.mulf %83, %87 : vector<8x8xf32>
    %89 = arith.truncf %88 : vector<8x8xf32> to vector<8x8xbf16>
    %cst_32 = arith.constant dense<0.000000e+00> : vector<8x32xf32>
    %90 = tpu.matmul %89, %75, %cst_32 {dimension_numbers = #tpu.dot_dimension_numbers<[1], [0], [0], [1], [0, 0, 1, 1], [], []>} : vector<8x8xbf16>, vector<8x32xbf16>, vector<8x32xf32> -> vector<8x32xf32>
    %91 = vector.extract_strided_slice %36 {offsets = [0, 96], sizes = [8, 32], strides = [1, 1]} : vector<24x384xbf16> to vector<8x32xbf16>
    %92 = vector.extract_strided_slice %36 {offsets = [0, 224], sizes = [8, 32], strides = [1, 1]} : vector<24x384xbf16> to vector<8x32xbf16>
    %93 = vector.extract_strided_slice %36 {offsets = [0, 352], sizes = [8, 32], strides = [1, 1]} : vector<24x384xbf16> to vector<8x32xbf16>
    %cst_33 = arith.constant dense<0.000000e+00> : vector<8x8xf32>
    %94 = tpu.matmul %91, %92, %cst_33 {dimension_numbers = #tpu.dot_dimension_numbers<[1], [1], [0], [0], [0, 0, 1, 0], [], []>} : vector<8x32xbf16>, vector<8x32xbf16>, vector<8x8xf32> -> vector<8x8xf32>
    %cst_34 = arith.constant 0.176776692 : f32
    %95 = vector.broadcast %cst_34 : f32 to vector<8x8xf32>
    %96 = arith.mulf %94, %95 : vector<8x8xf32>
    %cst_35 = arith.constant dense<0xFF800000> : vector<8xf32>
    %97 = vector.multi_reduction <maximumf>, %96, %cst_35 [1] : vector<8x8xf32> to vector<8xf32>
    %98 = vector.shape_cast %97 : vector<8xf32> to vector<8x1xf32>
    %99 = vector.broadcast %98 : vector<8x1xf32> to vector<8x8xf32>
    %100 = arith.subf %96, %99 : vector<8x8xf32>
    %101 = math.exp %100 : vector<8x8xf32>
    %cst_36 = arith.constant dense<0.000000e+00> : vector<8xf32>
    %102 = vector.multi_reduction <add>, %101, %cst_36 [1] : vector<8x8xf32> to vector<8xf32>
    %103 = vector.shape_cast %102 : vector<8xf32> to vector<8x1xf32>
    %104 = tpu.reciprocal %103 {approx = true} : vector<8x1xf32> -> vector<8x1xf32>
    %105 = vector.broadcast %104 : vector<8x1xf32> to vector<8x8xf32>
    %106 = arith.mulf %101, %105 : vector<8x8xf32>
    %107 = arith.truncf %106 : vector<8x8xf32> to vector<8x8xbf16>
    %cst_37 = arith.constant dense<0.000000e+00> : vector<8x32xf32>
    %108 = tpu.matmul %107, %93, %cst_37 {dimension_numbers = #tpu.dot_dimension_numbers<[1], [0], [0], [1], [0, 0, 1, 1], [], []>} : vector<8x8xbf16>, vector<8x32xbf16>, vector<8x32xf32> -> vector<8x32xf32>
    %109 = tpu.concatenate %54, %72, %90, %108 in 1 : vector<8x32xf32>, vector<8x32xf32>, vector<8x32xf32>, vector<8x32xf32> -> vector<8x128xf32>
    %110 = vector.extract_strided_slice %36 {offsets = [8, 0], sizes = [8, 32], strides = [1, 1]} : vector<24x384xbf16> to vector<8x32xbf16>
    %111 = vector.extract_strided_slice %36 {offsets = [8, 128], sizes = [8, 32], strides = [1, 1]} : vector<24x384xbf16> to vector<8x32xbf16>
    %112 = vector.extract_strided_slice %36 {offsets = [8, 256], sizes = [8, 32], strides = [1, 1]} : vector<24x384xbf16> to vector<8x32xbf16>
    %cst_38 = arith.constant dense<0.000000e+00> : vector<8x8xf32>
    %113 = tpu.matmul %110, %111, %cst_38 {dimension_numbers = #tpu.dot_dimension_numbers<[1], [1], [0], [0], [0, 0, 1, 0], [], []>} : vector<8x32xbf16>, vector<8x32xbf16>, vector<8x8xf32> -> vector<8x8xf32>
    %cst_39 = arith.constant 0.176776692 : f32
    %114 = vector.broadcast %cst_39 : f32 to vector<8x8xf32>
    %115 = arith.mulf %113, %114 : vector<8x8xf32>
    %cst_40 = arith.constant dense<0xFF800000> : vector<8xf32>
    %116 = vector.multi_reduction <maximumf>, %115, %cst_40 [1] : vector<8x8xf32> to vector<8xf32>
    %117 = vector.shape_cast %116 : vector<8xf32> to vector<8x1xf32>
    %118 = vector.broadcast %117 : vector<8x1xf32> to vector<8x8xf32>
    %119 = arith.subf %115, %118 : vector<8x8xf32>
    %120 = math.exp %119 : vector<8x8xf32>
    %cst_41 = arith.constant dense<0.000000e+00> : vector<8xf32>
    %121 = vector.multi_reduction <add>, %120, %cst_41 [1] : vector<8x8xf32> to vector<8xf32>
    %122 = vector.shape_cast %121 : vector<8xf32> to vector<8x1xf32>
    %123 = tpu.reciprocal %122 {approx = true} : vector<8x1xf32> -> vector<8x1xf32>
    %124 = vector.broadcast %123 : vector<8x1xf32> to vector<8x8xf32>
    %125 = arith.mulf %120, %124 : vector<8x8xf32>
    %126 = arith.truncf %125 : vector<8x8xf32> to vector<8x8xbf16>
    %cst_42 = arith.constant dense<0.000000e+00> : vector<8x32xf32>
    %127 = tpu.matmul %126, %112, %cst_42 {dimension_numbers = #tpu.dot_dimension_numbers<[1], [0], [0], [1], [0, 0, 1, 1], [], []>} : vector<8x8xbf16>, vector<8x32xbf16>, vector<8x32xf32> -> vector<8x32xf32>
    %128 = vector.extract_strided_slice %36 {offsets = [8, 32], sizes = [8, 32], strides = [1, 1]} : vector<24x384xbf16> to vector<8x32xbf16>
    %129 = vector.extract_strided_slice %36 {offsets = [8, 160], sizes = [8, 32], strides = [1, 1]} : vector<24x384xbf16> to vector<8x32xbf16>
    %130 = vector.extract_strided_slice %36 {offsets = [8, 288], sizes = [8, 32], strides = [1, 1]} : vector<24x384xbf16> to vector<8x32xbf16>
    %cst_43 = arith.constant dense<0.000000e+00> : vector<8x8xf32>
    %131 = tpu.matmul %128, %129, %cst_43 {dimension_numbers = #tpu.dot_dimension_numbers<[1], [1], [0], [0], [0, 0, 1, 0], [], []>} : vector<8x32xbf16>, vector<8x32xbf16>, vector<8x8xf32> -> vector<8x8xf32>
    %cst_44 = arith.constant 0.176776692 : f32
    %132 = vector.broadcast %cst_44 : f32 to vector<8x8xf32>
    %133 = arith.mulf %131, %132 : vector<8x8xf32>
    %cst_45 = arith.constant dense<0xFF800000> : vector<8xf32>
    %134 = vector.multi_reduction <maximumf>, %133, %cst_45 [1] : vector<8x8xf32> to vector<8xf32>
    %135 = vector.shape_cast %134 : vector<8xf32> to vector<8x1xf32>
    %136 = vector.broadcast %135 : vector<8x1xf32> to vector<8x8xf32>
    %137 = arith.subf %133, %136 : vector<8x8xf32>
    %138 = math.exp %137 : vector<8x8xf32>
    %cst_46 = arith.constant dense<0.000000e+00> : vector<8xf32>
    %139 = vector.multi_reduction <add>, %138, %cst_46 [1] : vector<8x8xf32> to vector<8xf32>
    %140 = vector.shape_cast %139 : vector<8xf32> to vector<8x1xf32>
    %141 = tpu.reciprocal %140 {approx = true} : vector<8x1xf32> -> vector<8x1xf32>
    %142 = vector.broadcast %141 : vector<8x1xf32> to vector<8x8xf32>
    %143 = arith.mulf %138, %142 : vector<8x8xf32>
    %144 = arith.truncf %143 : vector<8x8xf32> to vector<8x8xbf16>
    %cst_47 = arith.constant dense<0.000000e+00> : vector<8x32xf32>
    %145 = tpu.matmul %144, %130, %cst_47 {dimension_numbers = #tpu.dot_dimension_numbers<[1], [0], [0], [1], [0, 0, 1, 1], [], []>} : vector<8x8xbf16>, vector<8x32xbf16>, vector<8x32xf32> -> vector<8x32xf32>
    %146 = vector.extract_strided_slice %36 {offsets = [8, 64], sizes = [8, 32], strides = [1, 1]} : vector<24x384xbf16> to vector<8x32xbf16>
    %147 = vector.extract_strided_slice %36 {offsets = [8, 192], sizes = [8, 32], strides = [1, 1]} : vector<24x384xbf16> to vector<8x32xbf16>
    %148 = vector.extract_strided_slice %36 {offsets = [8, 320], sizes = [8, 32], strides = [1, 1]} : vector<24x384xbf16> to vector<8x32xbf16>
    %cst_48 = arith.constant dense<0.000000e+00> : vector<8x8xf32>
    %149 = tpu.matmul %146, %147, %cst_48 {dimension_numbers = #tpu.dot_dimension_numbers<[1], [1], [0], [0], [0, 0, 1, 0], [], []>} : vector<8x32xbf16>, vector<8x32xbf16>, vector<8x8xf32> -> vector<8x8xf32>
    %cst_49 = arith.constant 0.176776692 : f32
    %150 = vector.broadcast %cst_49 : f32 to vector<8x8xf32>
    %151 = arith.mulf %149, %150 : vector<8x8xf32>
    %cst_50 = arith.constant dense<0xFF800000> : vector<8xf32>
    %152 = vector.multi_reduction <maximumf>, %151, %cst_50 [1] : vector<8x8xf32> to vector<8xf32>
    %153 = vector.shape_cast %152 : vector<8xf32> to vector<8x1xf32>
    %154 = vector.broadcast %153 : vector<8x1xf32> to vector<8x8xf32>
    %155 = arith.subf %151, %154 : vector<8x8xf32>
    %156 = math.exp %155 : vector<8x8xf32>
    %cst_51 = arith.constant dense<0.000000e+00> : vector<8xf32>
    %157 = vector.multi_reduction <add>, %156, %cst_51 [1] : vector<8x8xf32> to vector<8xf32>
    %158 = vector.shape_cast %157 : vector<8xf32> to vector<8x1xf32>
    %159 = tpu.reciprocal %158 {approx = true} : vector<8x1xf32> -> vector<8x1xf32>
    %160 = vector.broadcast %159 : vector<8x1xf32> to vector<8x8xf32>
    %161 = arith.mulf %156, %160 : vector<8x8xf32>
    %162 = arith.truncf %161 : vector<8x8xf32> to vector<8x8xbf16>
    %cst_52 = arith.constant dense<0.000000e+00> : vector<8x32xf32>
    %163 = tpu.matmul %162, %148, %cst_52 {dimension_numbers = #tpu.dot_dimension_numbers<[1], [0], [0], [1], [0, 0, 1, 1], [], []>} : vector<8x8xbf16>, vector<8x32xbf16>, vector<8x32xf32> -> vector<8x32xf32>
    %164 = vector.extract_strided_slice %36 {offsets = [8, 96], sizes = [8, 32], strides = [1, 1]} : vector<24x384xbf16> to vector<8x32xbf16>
    %165 = vector.extract_strided_slice %36 {offsets = [8, 224], sizes = [8, 32], strides = [1, 1]} : vector<24x384xbf16> to vector<8x32xbf16>
    %166 = vector.extract_strided_slice %36 {offsets = [8, 352], sizes = [8, 32], strides = [1, 1]} : vector<24x384xbf16> to vector<8x32xbf16>
    %cst_53 = arith.constant dense<0.000000e+00> : vector<8x8xf32>
    %167 = tpu.matmul %164, %165, %cst_53 {dimension_numbers = #tpu.dot_dimension_numbers<[1], [1], [0], [0], [0, 0, 1, 0], [], []>} : vector<8x32xbf16>, vector<8x32xbf16>, vector<8x8xf32> -> vector<8x8xf32>
    %cst_54 = arith.constant 0.176776692 : f32
    %168 = vector.broadcast %cst_54 : f32 to vector<8x8xf32>
    %169 = arith.mulf %167, %168 : vector<8x8xf32>
    %cst_55 = arith.constant dense<0xFF800000> : vector<8xf32>
    %170 = vector.multi_reduction <maximumf>, %169, %cst_55 [1] : vector<8x8xf32> to vector<8xf32>
    %171 = vector.shape_cast %170 : vector<8xf32> to vector<8x1xf32>
    %172 = vector.broadcast %171 : vector<8x1xf32> to vector<8x8xf32>
    %173 = arith.subf %169, %172 : vector<8x8xf32>
    %174 = math.exp %173 : vector<8x8xf32>
    %cst_56 = arith.constant dense<0.000000e+00> : vector<8xf32>
    %175 = vector.multi_reduction <add>, %174, %cst_56 [1] : vector<8x8xf32> to vector<8xf32>
    %176 = vector.shape_cast %175 : vector<8xf32> to vector<8x1xf32>
    %177 = tpu.reciprocal %176 {approx = true} : vector<8x1xf32> -> vector<8x1xf32>
    %178 = vector.broadcast %177 : vector<8x1xf32> to vector<8x8xf32>
    %179 = arith.mulf %174, %178 : vector<8x8xf32>
    %180 = arith.truncf %179 : vector<8x8xf32> to vector<8x8xbf16>
    %cst_57 = arith.constant dense<0.000000e+00> : vector<8x32xf32>
    %181 = tpu.matmul %180, %166, %cst_57 {dimension_numbers = #tpu.dot_dimension_numbers<[1], [0], [0], [1], [0, 0, 1, 1], [], []>} : vector<8x8xbf16>, vector<8x32xbf16>, vector<8x32xf32> -> vector<8x32xf32>
    %182 = tpu.concatenate %127, %145, %163, %181 in 1 : vector<8x32xf32>, vector<8x32xf32>, vector<8x32xf32>, vector<8x32xf32> -> vector<8x128xf32>
    %183 = vector.extract_strided_slice %36 {offsets = [16, 0], sizes = [8, 32], strides = [1, 1]} : vector<24x384xbf16> to vector<8x32xbf16>
    %184 = vector.extract_strided_slice %36 {offsets = [16, 128], sizes = [8, 32], strides = [1, 1]} : vector<24x384xbf16> to vector<8x32xbf16>
    %185 = vector.extract_strided_slice %36 {offsets = [16, 256], sizes = [8, 32], strides = [1, 1]} : vector<24x384xbf16> to vector<8x32xbf16>
    %cst_58 = arith.constant dense<0.000000e+00> : vector<8x8xf32>
    %186 = tpu.matmul %183, %184, %cst_58 {dimension_numbers = #tpu.dot_dimension_numbers<[1], [1], [0], [0], [0, 0, 1, 0], [], []>} : vector<8x32xbf16>, vector<8x32xbf16>, vector<8x8xf32> -> vector<8x8xf32>
    %cst_59 = arith.constant 0.176776692 : f32
    %187 = vector.broadcast %cst_59 : f32 to vector<8x8xf32>
    %188 = arith.mulf %186, %187 : vector<8x8xf32>
    %cst_60 = arith.constant dense<0xFF800000> : vector<8xf32>
    %189 = vector.multi_reduction <maximumf>, %188, %cst_60 [1] : vector<8x8xf32> to vector<8xf32>
    %190 = vector.shape_cast %189 : vector<8xf32> to vector<8x1xf32>
    %191 = vector.broadcast %190 : vector<8x1xf32> to vector<8x8xf32>
    %192 = arith.subf %188, %191 : vector<8x8xf32>
    %193 = math.exp %192 : vector<8x8xf32>
    %cst_61 = arith.constant dense<0.000000e+00> : vector<8xf32>
    %194 = vector.multi_reduction <add>, %193, %cst_61 [1] : vector<8x8xf32> to vector<8xf32>
    %195 = vector.shape_cast %194 : vector<8xf32> to vector<8x1xf32>
    %196 = tpu.reciprocal %195 {approx = true} : vector<8x1xf32> -> vector<8x1xf32>
    %197 = vector.broadcast %196 : vector<8x1xf32> to vector<8x8xf32>
    %198 = arith.mulf %193, %197 : vector<8x8xf32>
    %199 = arith.truncf %198 : vector<8x8xf32> to vector<8x8xbf16>
    %cst_62 = arith.constant dense<0.000000e+00> : vector<8x32xf32>
    %200 = tpu.matmul %199, %185, %cst_62 {dimension_numbers = #tpu.dot_dimension_numbers<[1], [0], [0], [1], [0, 0, 1, 1], [], []>} : vector<8x8xbf16>, vector<8x32xbf16>, vector<8x32xf32> -> vector<8x32xf32>
    %201 = vector.extract_strided_slice %36 {offsets = [16, 32], sizes = [8, 32], strides = [1, 1]} : vector<24x384xbf16> to vector<8x32xbf16>
    %202 = vector.extract_strided_slice %36 {offsets = [16, 160], sizes = [8, 32], strides = [1, 1]} : vector<24x384xbf16> to vector<8x32xbf16>
    %203 = vector.extract_strided_slice %36 {offsets = [16, 288], sizes = [8, 32], strides = [1, 1]} : vector<24x384xbf16> to vector<8x32xbf16>
    %cst_63 = arith.constant dense<0.000000e+00> : vector<8x8xf32>
    %204 = tpu.matmul %201, %202, %cst_63 {dimension_numbers = #tpu.dot_dimension_numbers<[1], [1], [0], [0], [0, 0, 1, 0], [], []>} : vector<8x32xbf16>, vector<8x32xbf16>, vector<8x8xf32> -> vector<8x8xf32>
    %cst_64 = arith.constant 0.176776692 : f32
    %205 = vector.broadcast %cst_64 : f32 to vector<8x8xf32>
    %206 = arith.mulf %204, %205 : vector<8x8xf32>
    %cst_65 = arith.constant dense<0xFF800000> : vector<8xf32>
    %207 = vector.multi_reduction <maximumf>, %206, %cst_65 [1] : vector<8x8xf32> to vector<8xf32>
    %208 = vector.shape_cast %207 : vector<8xf32> to vector<8x1xf32>
    %209 = vector.broadcast %208 : vector<8x1xf32> to vector<8x8xf32>
    %210 = arith.subf %206, %209 : vector<8x8xf32>
    %211 = math.exp %210 : vector<8x8xf32>
    %cst_66 = arith.constant dense<0.000000e+00> : vector<8xf32>
    %212 = vector.multi_reduction <add>, %211, %cst_66 [1] : vector<8x8xf32> to vector<8xf32>
    %213 = vector.shape_cast %212 : vector<8xf32> to vector<8x1xf32>
    %214 = tpu.reciprocal %213 {approx = true} : vector<8x1xf32> -> vector<8x1xf32>
    %215 = vector.broadcast %214 : vector<8x1xf32> to vector<8x8xf32>
    %216 = arith.mulf %211, %215 : vector<8x8xf32>
    %217 = arith.truncf %216 : vector<8x8xf32> to vector<8x8xbf16>
    %cst_67 = arith.constant dense<0.000000e+00> : vector<8x32xf32>
    %218 = tpu.matmul %217, %203, %cst_67 {dimension_numbers = #tpu.dot_dimension_numbers<[1], [0], [0], [1], [0, 0, 1, 1], [], []>} : vector<8x8xbf16>, vector<8x32xbf16>, vector<8x32xf32> -> vector<8x32xf32>
    %219 = vector.extract_strided_slice %36 {offsets = [16, 64], sizes = [8, 32], strides = [1, 1]} : vector<24x384xbf16> to vector<8x32xbf16>
    %220 = vector.extract_strided_slice %36 {offsets = [16, 192], sizes = [8, 32], strides = [1, 1]} : vector<24x384xbf16> to vector<8x32xbf16>
    %221 = vector.extract_strided_slice %36 {offsets = [16, 320], sizes = [8, 32], strides = [1, 1]} : vector<24x384xbf16> to vector<8x32xbf16>
    %cst_68 = arith.constant dense<0.000000e+00> : vector<8x8xf32>
    %222 = tpu.matmul %219, %220, %cst_68 {dimension_numbers = #tpu.dot_dimension_numbers<[1], [1], [0], [0], [0, 0, 1, 0], [], []>} : vector<8x32xbf16>, vector<8x32xbf16>, vector<8x8xf32> -> vector<8x8xf32>
    %cst_69 = arith.constant 0.176776692 : f32
    %223 = vector.broadcast %cst_69 : f32 to vector<8x8xf32>
    %224 = arith.mulf %222, %223 : vector<8x8xf32>
    %cst_70 = arith.constant dense<0xFF800000> : vector<8xf32>
    %225 = vector.multi_reduction <maximumf>, %224, %cst_70 [1] : vector<8x8xf32> to vector<8xf32>
    %226 = vector.shape_cast %225 : vector<8xf32> to vector<8x1xf32>
    %227 = vector.broadcast %226 : vector<8x1xf32> to vector<8x8xf32>
    %228 = arith.subf %224, %227 : vector<8x8xf32>
    %229 = math.exp %228 : vector<8x8xf32>
    %cst_71 = arith.constant dense<0.000000e+00> : vector<8xf32>
    %230 = vector.multi_reduction <add>, %229, %cst_71 [1] : vector<8x8xf32> to vector<8xf32>
    %231 = vector.shape_cast %230 : vector<8xf32> to vector<8x1xf32>
    %232 = tpu.reciprocal %231 {approx = true} : vector<8x1xf32> -> vector<8x1xf32>
    %233 = vector.broadcast %232 : vector<8x1xf32> to vector<8x8xf32>
    %234 = arith.mulf %229, %233 : vector<8x8xf32>
    %235 = arith.truncf %234 : vector<8x8xf32> to vector<8x8xbf16>
    %cst_72 = arith.constant dense<0.000000e+00> : vector<8x32xf32>
    %236 = tpu.matmul %235, %221, %cst_72 {dimension_numbers = #tpu.dot_dimension_numbers<[1], [0], [0], [1], [0, 0, 1, 1], [], []>} : vector<8x8xbf16>, vector<8x32xbf16>, vector<8x32xf32> -> vector<8x32xf32>
    %237 = vector.extract_strided_slice %36 {offsets = [16, 96], sizes = [8, 32], strides = [1, 1]} : vector<24x384xbf16> to vector<8x32xbf16>
    %238 = vector.extract_strided_slice %36 {offsets = [16, 224], sizes = [8, 32], strides = [1, 1]} : vector<24x384xbf16> to vector<8x32xbf16>
    %239 = vector.extract_strided_slice %36 {offsets = [16, 352], sizes = [8, 32], strides = [1, 1]} : vector<24x384xbf16> to vector<8x32xbf16>
    %cst_73 = arith.constant dense<0.000000e+00> : vector<8x8xf32>
    %240 = tpu.matmul %237, %238, %cst_73 {dimension_numbers = #tpu.dot_dimension_numbers<[1], [1], [0], [0], [0, 0, 1, 0], [], []>} : vector<8x32xbf16>, vector<8x32xbf16>, vector<8x8xf32> -> vector<8x8xf32>
    %cst_74 = arith.constant 0.176776692 : f32
    %241 = vector.broadcast %cst_74 : f32 to vector<8x8xf32>
    %242 = arith.mulf %240, %241 : vector<8x8xf32>
    %cst_75 = arith.constant dense<0xFF800000> : vector<8xf32>
    %243 = vector.multi_reduction <maximumf>, %242, %cst_75 [1] : vector<8x8xf32> to vector<8xf32>
    %244 = vector.shape_cast %243 : vector<8xf32> to vector<8x1xf32>
    %245 = vector.broadcast %244 : vector<8x1xf32> to vector<8x8xf32>
    %246 = arith.subf %242, %245 : vector<8x8xf32>
    %247 = math.exp %246 : vector<8x8xf32>
    %cst_76 = arith.constant dense<0.000000e+00> : vector<8xf32>
    %248 = vector.multi_reduction <add>, %247, %cst_76 [1] : vector<8x8xf32> to vector<8xf32>
    %249 = vector.shape_cast %248 : vector<8xf32> to vector<8x1xf32>
    %250 = tpu.reciprocal %249 {approx = true} : vector<8x1xf32> -> vector<8x1xf32>
    %251 = vector.broadcast %250 : vector<8x1xf32> to vector<8x8xf32>
    %252 = arith.mulf %247, %251 : vector<8x8xf32>
    %253 = arith.truncf %252 : vector<8x8xf32> to vector<8x8xbf16>
    %cst_77 = arith.constant dense<0.000000e+00> : vector<8x32xf32>
    %254 = tpu.matmul %253, %239, %cst_77 {dimension_numbers = #tpu.dot_dimension_numbers<[1], [0], [0], [1], [0, 0, 1, 1], [], []>} : vector<8x8xbf16>, vector<8x32xbf16>, vector<8x32xf32> -> vector<8x32xf32>
    %255 = tpu.concatenate %200, %218, %236, %254 in 1 : vector<8x32xf32>, vector<8x32xf32>, vector<8x32xf32>, vector<8x32xf32> -> vector<8x128xf32>
    %256 = tpu.concatenate %109, %182, %255 in 0 : vector<8x128xf32>, vector<8x128xf32>, vector<8x128xf32> -> vector<24x128xf32>
    %257 = arith.truncf %256 : vector<24x128xf32> to vector<24x128xbf16>
    %c0_78 = arith.constant 0 : index
    %c0_79 = arith.constant 0 : index
    %c0_80 = arith.constant 0 : index
    %258 = vector.load %arg8[%c0_78, %c0_79, %c0_80] : memref<2x128x128xbf16, #tpu.memory_space<vmem>>, vector<1x128x128xbf16>
    %259 = vector.shape_cast %258 : vector<1x128x128xbf16> to vector<128x128xbf16>
    %cst_81 = arith.constant dense<0.000000e+00> : vector<24x128xf32>
    %260 = tpu.matmul %257, %259, %cst_81 {dimension_numbers = #tpu.dot_dimension_numbers<[1], [0], [0], [1], [0, 0, 1, 1], [], []>} : vector<24x128xbf16>, vector<128x128xbf16>, vector<24x128xf32> -> vector<24x128xf32>
    %c0_82 = arith.constant 0 : index
    %c0_83 = arith.constant 0 : index
    %c0_84 = arith.constant 0 : index
    %261 = vector.load %arg9[%c0_82, %c0_83, %c0_84] : memref<2x1x128xf32, #tpu.memory_space<vmem>>, vector<1x1x128xf32>
    %262 = vector.shape_cast %261 : vector<1x1x128xf32> to vector<1x128xf32>
    %263 = vector.broadcast %262 : vector<1x128xf32> to vector<24x128xf32>
    %264 = arith.addf %260, %263 : vector<24x128xf32>
    %265 = arith.addf %27, %264 : vector<24x128xf32>
    %c0_85 = arith.constant 0 : index
    %c0_86 = arith.constant 0 : index
    %c0_87 = arith.constant 0 : index
    %266 = vector.load %arg10[%c0_85, %c0_86, %c0_87] : memref<2x1x128xf32, #tpu.memory_space<vmem>>, vector<1x1x128xf32>
    %267 = vector.shape_cast %266 : vector<1x1x128xf32> to vector<1x128xf32>
    %c0_88 = arith.constant 0 : index
    %c0_89 = arith.constant 0 : index
    %c0_90 = arith.constant 0 : index
    %268 = vector.load %arg11[%c0_88, %c0_89, %c0_90] : memref<2x1x128xf32, #tpu.memory_space<vmem>>, vector<1x1x128xf32>
    %269 = vector.shape_cast %268 : vector<1x1x128xf32> to vector<1x128xf32>
    %cst_91 = arith.constant dense<0.000000e+00> : vector<24xf32>
    %270 = vector.multi_reduction <add>, %265, %cst_91 [1] : vector<24x128xf32> to vector<24xf32>
    %271 = vector.shape_cast %270 : vector<24xf32> to vector<24x1xf32>
    %cst_92 = arith.constant 1.280000e+02 : f32
    %272 = vector.broadcast %cst_92 : f32 to vector<24x1xf32>
    %273 = arith.divf %271, %272 : vector<24x1xf32>
    %274 = vector.broadcast %273 : vector<24x1xf32> to vector<24x128xf32>
    %275 = arith.subf %265, %274 : vector<24x128xf32>
    %276 = arith.mulf %275, %275 : vector<24x128xf32>
    %cst_93 = arith.constant dense<0.000000e+00> : vector<24xf32>
    %277 = vector.multi_reduction <add>, %276, %cst_93 [1] : vector<24x128xf32> to vector<24xf32>
    %278 = vector.shape_cast %277 : vector<24xf32> to vector<24x1xf32>
    %cst_94 = arith.constant 1.280000e+02 : f32
    %279 = vector.broadcast %cst_94 : f32 to vector<24x1xf32>
    %280 = arith.divf %278, %279 : vector<24x1xf32>
    %281 = vector.broadcast %273 : vector<24x1xf32> to vector<24x128xf32>
    %282 = arith.subf %265, %281 : vector<24x128xf32>
    %cst_95 = arith.constant 9.99999974E-6 : f32
    %283 = vector.broadcast %cst_95 : f32 to vector<24x1xf32>
    %284 = arith.addf %280, %283 : vector<24x1xf32>
    %285 = math.rsqrt %284 : vector<24x1xf32>
    %286 = vector.broadcast %285 : vector<24x1xf32> to vector<24x128xf32>
    %287 = arith.mulf %282, %286 : vector<24x128xf32>
    %288 = vector.broadcast %267 : vector<1x128xf32> to vector<24x128xf32>
    %289 = arith.mulf %287, %288 : vector<24x128xf32>
    %290 = vector.broadcast %269 : vector<1x128xf32> to vector<24x128xf32>
    %291 = arith.addf %289, %290 : vector<24x128xf32>
    %292 = arith.truncf %291 : vector<24x128xf32> to vector<24x128xbf16>
    %c0_96 = arith.constant 0 : index
    %c0_97 = arith.constant 0 : index
    %c0_98 = arith.constant 0 : index
    %293 = vector.load %arg12[%c0_96, %c0_97, %c0_98] : memref<2x128x256xbf16, #tpu.memory_space<vmem>>, vector<1x128x256xbf16>
    %294 = vector.shape_cast %293 : vector<1x128x256xbf16> to vector<128x256xbf16>
    %cst_99 = arith.constant dense<0.000000e+00> : vector<24x256xf32>
    %295 = tpu.matmul %292, %294, %cst_99 {dimension_numbers = #tpu.dot_dimension_numbers<[1], [0], [0], [1], [0, 0, 1, 1], [], []>} : vector<24x128xbf16>, vector<128x256xbf16>, vector<24x256xf32> -> vector<24x256xf32>
    %c0_100 = arith.constant 0 : index
    %c0_101 = arith.constant 0 : index
    %c0_102 = arith.constant 0 : index
    %296 = vector.load %arg13[%c0_100, %c0_101, %c0_102] : memref<2x1x256xf32, #tpu.memory_space<vmem>>, vector<1x1x256xf32>
    %297 = vector.shape_cast %296 : vector<1x1x256xf32> to vector<1x256xf32>
    %298 = vector.broadcast %297 : vector<1x256xf32> to vector<24x256xf32>
    %299 = arith.addf %295, %298 : vector<24x256xf32>
    %300 = arith.mulf %299, %299 : vector<24x256xf32>
    %301 = arith.mulf %299, %300 : vector<24x256xf32>
    %cst_103 = arith.constant 4.471500e-02 : f32
    %302 = vector.broadcast %cst_103 : f32 to vector<24x256xf32>
    %303 = arith.mulf %302, %301 : vector<24x256xf32>
    %304 = arith.addf %299, %303 : vector<24x256xf32>
    %cst_104 = arith.constant 0.797884583 : f32
    %305 = vector.broadcast %cst_104 : f32 to vector<24x256xf32>
    %306 = arith.mulf %305, %304 : vector<24x256xf32>
    %307 = math.tanh %306 : vector<24x256xf32>
    %cst_105 = arith.constant 1.000000e+00 : f32
    %308 = vector.broadcast %cst_105 : f32 to vector<24x256xf32>
    %309 = arith.addf %308, %307 : vector<24x256xf32>
    %cst_106 = arith.constant 5.000000e-01 : f32
    %310 = vector.broadcast %cst_106 : f32 to vector<24x256xf32>
    %311 = arith.mulf %310, %309 : vector<24x256xf32>
    %312 = arith.mulf %299, %311 : vector<24x256xf32>
    %313 = arith.truncf %312 : vector<24x256xf32> to vector<24x256xbf16>
    %c0_107 = arith.constant 0 : index
    %c0_108 = arith.constant 0 : index
    %c0_109 = arith.constant 0 : index
    %314 = vector.load %arg14[%c0_107, %c0_108, %c0_109] : memref<2x256x128xbf16, #tpu.memory_space<vmem>>, vector<1x256x128xbf16>
    %315 = vector.shape_cast %314 : vector<1x256x128xbf16> to vector<256x128xbf16>
    %cst_110 = arith.constant dense<0.000000e+00> : vector<24x128xf32>
    %316 = tpu.matmul %313, %315, %cst_110 {dimension_numbers = #tpu.dot_dimension_numbers<[1], [0], [0], [1], [0, 0, 1, 1], [], []>} : vector<24x256xbf16>, vector<256x128xbf16>, vector<24x128xf32> -> vector<24x128xf32>
    %c0_111 = arith.constant 0 : index
    %c0_112 = arith.constant 0 : index
    %c0_113 = arith.constant 0 : index
    %317 = vector.load %arg15[%c0_111, %c0_112, %c0_113] : memref<2x1x128xf32, #tpu.memory_space<vmem>>, vector<1x1x128xf32>
    %318 = vector.shape_cast %317 : vector<1x1x128xf32> to vector<1x128xf32>
    %319 = vector.broadcast %318 : vector<1x128xf32> to vector<24x128xf32>
    %320 = arith.addf %316, %319 : vector<24x128xf32>
    %321 = arith.addf %291, %320 : vector<24x128xf32>
    %c0_114 = arith.constant 0 : index
    %c0_115 = arith.constant 0 : index
    %c0_116 = arith.constant 0 : index
    %322 = vector.load %arg16[%c0_114, %c0_115, %c0_116] : memref<2x1x128xf32, #tpu.memory_space<vmem>>, vector<1x1x128xf32>
    %323 = vector.shape_cast %322 : vector<1x1x128xf32> to vector<1x128xf32>
    %c0_117 = arith.constant 0 : index
    %c0_118 = arith.constant 0 : index
    %c0_119 = arith.constant 0 : index
    %324 = vector.load %arg17[%c0_117, %c0_118, %c0_119] : memref<2x1x128xf32, #tpu.memory_space<vmem>>, vector<1x1x128xf32>
    %325 = vector.shape_cast %324 : vector<1x1x128xf32> to vector<1x128xf32>
    %cst_120 = arith.constant dense<0.000000e+00> : vector<24xf32>
    %326 = vector.multi_reduction <add>, %321, %cst_120 [1] : vector<24x128xf32> to vector<24xf32>
    %327 = vector.shape_cast %326 : vector<24xf32> to vector<24x1xf32>
    %cst_121 = arith.constant 1.280000e+02 : f32
    %328 = vector.broadcast %cst_121 : f32 to vector<24x1xf32>
    %329 = arith.divf %327, %328 : vector<24x1xf32>
    %330 = vector.broadcast %329 : vector<24x1xf32> to vector<24x128xf32>
    %331 = arith.subf %321, %330 : vector<24x128xf32>
    %332 = arith.mulf %331, %331 : vector<24x128xf32>
    %cst_122 = arith.constant dense<0.000000e+00> : vector<24xf32>
    %333 = vector.multi_reduction <add>, %332, %cst_122 [1] : vector<24x128xf32> to vector<24xf32>
    %334 = vector.shape_cast %333 : vector<24xf32> to vector<24x1xf32>
    %cst_123 = arith.constant 1.280000e+02 : f32
    %335 = vector.broadcast %cst_123 : f32 to vector<24x1xf32>
    %336 = arith.divf %334, %335 : vector<24x1xf32>
    %337 = vector.broadcast %329 : vector<24x1xf32> to vector<24x128xf32>
    %338 = arith.subf %321, %337 : vector<24x128xf32>
    %cst_124 = arith.constant 9.99999974E-6 : f32
    %339 = vector.broadcast %cst_124 : f32 to vector<24x1xf32>
    %340 = arith.addf %336, %339 : vector<24x1xf32>
    %341 = math.rsqrt %340 : vector<24x1xf32>
    %342 = vector.broadcast %341 : vector<24x1xf32> to vector<24x128xf32>
    %343 = arith.mulf %338, %342 : vector<24x128xf32>
    %344 = vector.broadcast %323 : vector<1x128xf32> to vector<24x128xf32>
    %345 = arith.mulf %343, %344 : vector<24x128xf32>
    %346 = vector.broadcast %325 : vector<1x128xf32> to vector<24x128xf32>
    %347 = arith.addf %345, %346 : vector<24x128xf32>
    %348 = arith.truncf %347 : vector<24x128xf32> to vector<24x128xbf16>
    %c1 = arith.constant 1 : index
    %c0_125 = arith.constant 0 : index
    %c0_126 = arith.constant 0 : index
    %349 = vector.load %arg6[%c1, %c0_125, %c0_126] : memref<2x128x384xbf16, #tpu.memory_space<vmem>>, vector<1x128x384xbf16>
    %350 = vector.shape_cast %349 : vector<1x128x384xbf16> to vector<128x384xbf16>
    %cst_127 = arith.constant dense<0.000000e+00> : vector<24x384xf32>
    %351 = tpu.matmul %348, %350, %cst_127 {dimension_numbers = #tpu.dot_dimension_numbers<[1], [0], [0], [1], [0, 0, 1, 1], [], []>} : vector<24x128xbf16>, vector<128x384xbf16>, vector<24x384xf32> -> vector<24x384xf32>
    %c1_128 = arith.constant 1 : index
    %c0_129 = arith.constant 0 : index
    %c0_130 = arith.constant 0 : index
    %352 = vector.load %arg7[%c1_128, %c0_129, %c0_130] : memref<2x1x384xf32, #tpu.memory_space<vmem>>, vector<1x1x384xf32>
    %353 = vector.shape_cast %352 : vector<1x1x384xf32> to vector<1x384xf32>
    %354 = vector.broadcast %353 : vector<1x384xf32> to vector<24x384xf32>
    %355 = arith.addf %351, %354 : vector<24x384xf32>
    %356 = arith.truncf %355 : vector<24x384xf32> to vector<24x384xbf16>
    %357 = vector.extract_strided_slice %356 {offsets = [0, 0], sizes = [8, 32], strides = [1, 1]} : vector<24x384xbf16> to vector<8x32xbf16>
    %358 = vector.extract_strided_slice %356 {offsets = [0, 128], sizes = [8, 32], strides = [1, 1]} : vector<24x384xbf16> to vector<8x32xbf16>
    %359 = vector.extract_strided_slice %356 {offsets = [0, 256], sizes = [8, 32], strides = [1, 1]} : vector<24x384xbf16> to vector<8x32xbf16>
    %cst_131 = arith.constant dense<0.000000e+00> : vector<8x8xf32>
    %360 = tpu.matmul %357, %358, %cst_131 {dimension_numbers = #tpu.dot_dimension_numbers<[1], [1], [0], [0], [0, 0, 1, 0], [], []>} : vector<8x32xbf16>, vector<8x32xbf16>, vector<8x8xf32> -> vector<8x8xf32>
    %cst_132 = arith.constant 0.176776692 : f32
    %361 = vector.broadcast %cst_132 : f32 to vector<8x8xf32>
    %362 = arith.mulf %360, %361 : vector<8x8xf32>
    %cst_133 = arith.constant dense<0xFF800000> : vector<8xf32>
    %363 = vector.multi_reduction <maximumf>, %362, %cst_133 [1] : vector<8x8xf32> to vector<8xf32>
    %364 = vector.shape_cast %363 : vector<8xf32> to vector<8x1xf32>
    %365 = vector.broadcast %364 : vector<8x1xf32> to vector<8x8xf32>
    %366 = arith.subf %362, %365 : vector<8x8xf32>
    %367 = math.exp %366 : vector<8x8xf32>
    %cst_134 = arith.constant dense<0.000000e+00> : vector<8xf32>
    %368 = vector.multi_reduction <add>, %367, %cst_134 [1] : vector<8x8xf32> to vector<8xf32>
    %369 = vector.shape_cast %368 : vector<8xf32> to vector<8x1xf32>
    %370 = tpu.reciprocal %369 {approx = true} : vector<8x1xf32> -> vector<8x1xf32>
    %371 = vector.broadcast %370 : vector<8x1xf32> to vector<8x8xf32>
    %372 = arith.mulf %367, %371 : vector<8x8xf32>
    %373 = arith.truncf %372 : vector<8x8xf32> to vector<8x8xbf16>
    %cst_135 = arith.constant dense<0.000000e+00> : vector<8x32xf32>
    %374 = tpu.matmul %373, %359, %cst_135 {dimension_numbers = #tpu.dot_dimension_numbers<[1], [0], [0], [1], [0, 0, 1, 1], [], []>} : vector<8x8xbf16>, vector<8x32xbf16>, vector<8x32xf32> -> vector<8x32xf32>
    %375 = vector.extract_strided_slice %356 {offsets = [0, 32], sizes = [8, 32], strides = [1, 1]} : vector<24x384xbf16> to vector<8x32xbf16>
    %376 = vector.extract_strided_slice %356 {offsets = [0, 160], sizes = [8, 32], strides = [1, 1]} : vector<24x384xbf16> to vector<8x32xbf16>
    %377 = vector.extract_strided_slice %356 {offsets = [0, 288], sizes = [8, 32], strides = [1, 1]} : vector<24x384xbf16> to vector<8x32xbf16>
    %cst_136 = arith.constant dense<0.000000e+00> : vector<8x8xf32>
    %378 = tpu.matmul %375, %376, %cst_136 {dimension_numbers = #tpu.dot_dimension_numbers<[1], [1], [0], [0], [0, 0, 1, 0], [], []>} : vector<8x32xbf16>, vector<8x32xbf16>, vector<8x8xf32> -> vector<8x8xf32>
    %cst_137 = arith.constant 0.176776692 : f32
    %379 = vector.broadcast %cst_137 : f32 to vector<8x8xf32>
    %380 = arith.mulf %378, %379 : vector<8x8xf32>
    %cst_138 = arith.constant dense<0xFF800000> : vector<8xf32>
    %381 = vector.multi_reduction <maximumf>, %380, %cst_138 [1] : vector<8x8xf32> to vector<8xf32>
    %382 = vector.shape_cast %381 : vector<8xf32> to vector<8x1xf32>
    %383 = vector.broadcast %382 : vector<8x1xf32> to vector<8x8xf32>
    %384 = arith.subf %380, %383 : vector<8x8xf32>
    %385 = math.exp %384 : vector<8x8xf32>
    %cst_139 = arith.constant dense<0.000000e+00> : vector<8xf32>
    %386 = vector.multi_reduction <add>, %385, %cst_139 [1] : vector<8x8xf32> to vector<8xf32>
    %387 = vector.shape_cast %386 : vector<8xf32> to vector<8x1xf32>
    %388 = tpu.reciprocal %387 {approx = true} : vector<8x1xf32> -> vector<8x1xf32>
    %389 = vector.broadcast %388 : vector<8x1xf32> to vector<8x8xf32>
    %390 = arith.mulf %385, %389 : vector<8x8xf32>
    %391 = arith.truncf %390 : vector<8x8xf32> to vector<8x8xbf16>
    %cst_140 = arith.constant dense<0.000000e+00> : vector<8x32xf32>
    %392 = tpu.matmul %391, %377, %cst_140 {dimension_numbers = #tpu.dot_dimension_numbers<[1], [0], [0], [1], [0, 0, 1, 1], [], []>} : vector<8x8xbf16>, vector<8x32xbf16>, vector<8x32xf32> -> vector<8x32xf32>
    %393 = vector.extract_strided_slice %356 {offsets = [0, 64], sizes = [8, 32], strides = [1, 1]} : vector<24x384xbf16> to vector<8x32xbf16>
    %394 = vector.extract_strided_slice %356 {offsets = [0, 192], sizes = [8, 32], strides = [1, 1]} : vector<24x384xbf16> to vector<8x32xbf16>
    %395 = vector.extract_strided_slice %356 {offsets = [0, 320], sizes = [8, 32], strides = [1, 1]} : vector<24x384xbf16> to vector<8x32xbf16>
    %cst_141 = arith.constant dense<0.000000e+00> : vector<8x8xf32>
    %396 = tpu.matmul %393, %394, %cst_141 {dimension_numbers = #tpu.dot_dimension_numbers<[1], [1], [0], [0], [0, 0, 1, 0], [], []>} : vector<8x32xbf16>, vector<8x32xbf16>, vector<8x8xf32> -> vector<8x8xf32>
    %cst_142 = arith.constant 0.176776692 : f32
    %397 = vector.broadcast %cst_142 : f32 to vector<8x8xf32>
    %398 = arith.mulf %396, %397 : vector<8x8xf32>
    %cst_143 = arith.constant dense<0xFF800000> : vector<8xf32>
    %399 = vector.multi_reduction <maximumf>, %398, %cst_143 [1] : vector<8x8xf32> to vector<8xf32>
    %400 = vector.shape_cast %399 : vector<8xf32> to vector<8x1xf32>
    %401 = vector.broadcast %400 : vector<8x1xf32> to vector<8x8xf32>
    %402 = arith.subf %398, %401 : vector<8x8xf32>
    %403 = math.exp %402 : vector<8x8xf32>
    %cst_144 = arith.constant dense<0.000000e+00> : vector<8xf32>
    %404 = vector.multi_reduction <add>, %403, %cst_144 [1] : vector<8x8xf32> to vector<8xf32>
    %405 = vector.shape_cast %404 : vector<8xf32> to vector<8x1xf32>
    %406 = tpu.reciprocal %405 {approx = true} : vector<8x1xf32> -> vector<8x1xf32>
    %407 = vector.broadcast %406 : vector<8x1xf32> to vector<8x8xf32>
    %408 = arith.mulf %403, %407 : vector<8x8xf32>
    %409 = arith.truncf %408 : vector<8x8xf32> to vector<8x8xbf16>
    %cst_145 = arith.constant dense<0.000000e+00> : vector<8x32xf32>
    %410 = tpu.matmul %409, %395, %cst_145 {dimension_numbers = #tpu.dot_dimension_numbers<[1], [0], [0], [1], [0, 0, 1, 1], [], []>} : vector<8x8xbf16>, vector<8x32xbf16>, vector<8x32xf32> -> vector<8x32xf32>
    %411 = vector.extract_strided_slice %356 {offsets = [0, 96], sizes = [8, 32], strides = [1, 1]} : vector<24x384xbf16> to vector<8x32xbf16>
    %412 = vector.extract_strided_slice %356 {offsets = [0, 224], sizes = [8, 32], strides = [1, 1]} : vector<24x384xbf16> to vector<8x32xbf16>
    %413 = vector.extract_strided_slice %356 {offsets = [0, 352], sizes = [8, 32], strides = [1, 1]} : vector<24x384xbf16> to vector<8x32xbf16>
    %cst_146 = arith.constant dense<0.000000e+00> : vector<8x8xf32>
    %414 = tpu.matmul %411, %412, %cst_146 {dimension_numbers = #tpu.dot_dimension_numbers<[1], [1], [0], [0], [0, 0, 1, 0], [], []>} : vector<8x32xbf16>, vector<8x32xbf16>, vector<8x8xf32> -> vector<8x8xf32>
    %cst_147 = arith.constant 0.176776692 : f32
    %415 = vector.broadcast %cst_147 : f32 to vector<8x8xf32>
    %416 = arith.mulf %414, %415 : vector<8x8xf32>
    %cst_148 = arith.constant dense<0xFF800000> : vector<8xf32>
    %417 = vector.multi_reduction <maximumf>, %416, %cst_148 [1] : vector<8x8xf32> to vector<8xf32>
    %418 = vector.shape_cast %417 : vector<8xf32> to vector<8x1xf32>
    %419 = vector.broadcast %418 : vector<8x1xf32> to vector<8x8xf32>
    %420 = arith.subf %416, %419 : vector<8x8xf32>
    %421 = math.exp %420 : vector<8x8xf32>
    %cst_149 = arith.constant dense<0.000000e+00> : vector<8xf32>
    %422 = vector.multi_reduction <add>, %421, %cst_149 [1] : vector<8x8xf32> to vector<8xf32>
    %423 = vector.shape_cast %422 : vector<8xf32> to vector<8x1xf32>
    %424 = tpu.reciprocal %423 {approx = true} : vector<8x1xf32> -> vector<8x1xf32>
    %425 = vector.broadcast %424 : vector<8x1xf32> to vector<8x8xf32>
    %426 = arith.mulf %421, %425 : vector<8x8xf32>
    %427 = arith.truncf %426 : vector<8x8xf32> to vector<8x8xbf16>
    %cst_150 = arith.constant dense<0.000000e+00> : vector<8x32xf32>
    %428 = tpu.matmul %427, %413, %cst_150 {dimension_numbers = #tpu.dot_dimension_numbers<[1], [0], [0], [1], [0, 0, 1, 1], [], []>} : vector<8x8xbf16>, vector<8x32xbf16>, vector<8x32xf32> -> vector<8x32xf32>
    %429 = tpu.concatenate %374, %392, %410, %428 in 1 : vector<8x32xf32>, vector<8x32xf32>, vector<8x32xf32>, vector<8x32xf32> -> vector<8x128xf32>
    %430 = vector.extract_strided_slice %356 {offsets = [8, 0], sizes = [8, 32], strides = [1, 1]} : vector<24x384xbf16> to vector<8x32xbf16>
    %431 = vector.extract_strided_slice %356 {offsets = [8, 128], sizes = [8, 32], strides = [1, 1]} : vector<24x384xbf16> to vector<8x32xbf16>
    %432 = vector.extract_strided_slice %356 {offsets = [8, 256], sizes = [8, 32], strides = [1, 1]} : vector<24x384xbf16> to vector<8x32xbf16>
    %cst_151 = arith.constant dense<0.000000e+00> : vector<8x8xf32>
    %433 = tpu.matmul %430, %431, %cst_151 {dimension_numbers = #tpu.dot_dimension_numbers<[1], [1], [0], [0], [0, 0, 1, 0], [], []>} : vector<8x32xbf16>, vector<8x32xbf16>, vector<8x8xf32> -> vector<8x8xf32>
    %cst_152 = arith.constant 0.176776692 : f32
    %434 = vector.broadcast %cst_152 : f32 to vector<8x8xf32>
    %435 = arith.mulf %433, %434 : vector<8x8xf32>
    %cst_153 = arith.constant dense<0xFF800000> : vector<8xf32>
    %436 = vector.multi_reduction <maximumf>, %435, %cst_153 [1] : vector<8x8xf32> to vector<8xf32>
    %437 = vector.shape_cast %436 : vector<8xf32> to vector<8x1xf32>
    %438 = vector.broadcast %437 : vector<8x1xf32> to vector<8x8xf32>
    %439 = arith.subf %435, %438 : vector<8x8xf32>
    %440 = math.exp %439 : vector<8x8xf32>
    %cst_154 = arith.constant dense<0.000000e+00> : vector<8xf32>
    %441 = vector.multi_reduction <add>, %440, %cst_154 [1] : vector<8x8xf32> to vector<8xf32>
    %442 = vector.shape_cast %441 : vector<8xf32> to vector<8x1xf32>
    %443 = tpu.reciprocal %442 {approx = true} : vector<8x1xf32> -> vector<8x1xf32>
    %444 = vector.broadcast %443 : vector<8x1xf32> to vector<8x8xf32>
    %445 = arith.mulf %440, %444 : vector<8x8xf32>
    %446 = arith.truncf %445 : vector<8x8xf32> to vector<8x8xbf16>
    %cst_155 = arith.constant dense<0.000000e+00> : vector<8x32xf32>
    %447 = tpu.matmul %446, %432, %cst_155 {dimension_numbers = #tpu.dot_dimension_numbers<[1], [0], [0], [1], [0, 0, 1, 1], [], []>} : vector<8x8xbf16>, vector<8x32xbf16>, vector<8x32xf32> -> vector<8x32xf32>
    %448 = vector.extract_strided_slice %356 {offsets = [8, 32], sizes = [8, 32], strides = [1, 1]} : vector<24x384xbf16> to vector<8x32xbf16>
    %449 = vector.extract_strided_slice %356 {offsets = [8, 160], sizes = [8, 32], strides = [1, 1]} : vector<24x384xbf16> to vector<8x32xbf16>
    %450 = vector.extract_strided_slice %356 {offsets = [8, 288], sizes = [8, 32], strides = [1, 1]} : vector<24x384xbf16> to vector<8x32xbf16>
    %cst_156 = arith.constant dense<0.000000e+00> : vector<8x8xf32>
    %451 = tpu.matmul %448, %449, %cst_156 {dimension_numbers = #tpu.dot_dimension_numbers<[1], [1], [0], [0], [0, 0, 1, 0], [], []>} : vector<8x32xbf16>, vector<8x32xbf16>, vector<8x8xf32> -> vector<8x8xf32>
    %cst_157 = arith.constant 0.176776692 : f32
    %452 = vector.broadcast %cst_157 : f32 to vector<8x8xf32>
    %453 = arith.mulf %451, %452 : vector<8x8xf32>
    %cst_158 = arith.constant dense<0xFF800000> : vector<8xf32>
    %454 = vector.multi_reduction <maximumf>, %453, %cst_158 [1] : vector<8x8xf32> to vector<8xf32>
    %455 = vector.shape_cast %454 : vector<8xf32> to vector<8x1xf32>
    %456 = vector.broadcast %455 : vector<8x1xf32> to vector<8x8xf32>
    %457 = arith.subf %453, %456 : vector<8x8xf32>
    %458 = math.exp %457 : vector<8x8xf32>
    %cst_159 = arith.constant dense<0.000000e+00> : vector<8xf32>
    %459 = vector.multi_reduction <add>, %458, %cst_159 [1] : vector<8x8xf32> to vector<8xf32>
    %460 = vector.shape_cast %459 : vector<8xf32> to vector<8x1xf32>
    %461 = tpu.reciprocal %460 {approx = true} : vector<8x1xf32> -> vector<8x1xf32>
    %462 = vector.broadcast %461 : vector<8x1xf32> to vector<8x8xf32>
    %463 = arith.mulf %458, %462 : vector<8x8xf32>
    %464 = arith.truncf %463 : vector<8x8xf32> to vector<8x8xbf16>
    %cst_160 = arith.constant dense<0.000000e+00> : vector<8x32xf32>
    %465 = tpu.matmul %464, %450, %cst_160 {dimension_numbers = #tpu.dot_dimension_numbers<[1], [0], [0], [1], [0, 0, 1, 1], [], []>} : vector<8x8xbf16>, vector<8x32xbf16>, vector<8x32xf32> -> vector<8x32xf32>
    %466 = vector.extract_strided_slice %356 {offsets = [8, 64], sizes = [8, 32], strides = [1, 1]} : vector<24x384xbf16> to vector<8x32xbf16>
    %467 = vector.extract_strided_slice %356 {offsets = [8, 192], sizes = [8, 32], strides = [1, 1]} : vector<24x384xbf16> to vector<8x32xbf16>
    %468 = vector.extract_strided_slice %356 {offsets = [8, 320], sizes = [8, 32], strides = [1, 1]} : vector<24x384xbf16> to vector<8x32xbf16>
    %cst_161 = arith.constant dense<0.000000e+00> : vector<8x8xf32>
    %469 = tpu.matmul %466, %467, %cst_161 {dimension_numbers = #tpu.dot_dimension_numbers<[1], [1], [0], [0], [0, 0, 1, 0], [], []>} : vector<8x32xbf16>, vector<8x32xbf16>, vector<8x8xf32> -> vector<8x8xf32>
    %cst_162 = arith.constant 0.176776692 : f32
    %470 = vector.broadcast %cst_162 : f32 to vector<8x8xf32>
    %471 = arith.mulf %469, %470 : vector<8x8xf32>
    %cst_163 = arith.constant dense<0xFF800000> : vector<8xf32>
    %472 = vector.multi_reduction <maximumf>, %471, %cst_163 [1] : vector<8x8xf32> to vector<8xf32>
    %473 = vector.shape_cast %472 : vector<8xf32> to vector<8x1xf32>
    %474 = vector.broadcast %473 : vector<8x1xf32> to vector<8x8xf32>
    %475 = arith.subf %471, %474 : vector<8x8xf32>
    %476 = math.exp %475 : vector<8x8xf32>
    %cst_164 = arith.constant dense<0.000000e+00> : vector<8xf32>
    %477 = vector.multi_reduction <add>, %476, %cst_164 [1] : vector<8x8xf32> to vector<8xf32>
    %478 = vector.shape_cast %477 : vector<8xf32> to vector<8x1xf32>
    %479 = tpu.reciprocal %478 {approx = true} : vector<8x1xf32> -> vector<8x1xf32>
    %480 = vector.broadcast %479 : vector<8x1xf32> to vector<8x8xf32>
    %481 = arith.mulf %476, %480 : vector<8x8xf32>
    %482 = arith.truncf %481 : vector<8x8xf32> to vector<8x8xbf16>
    %cst_165 = arith.constant dense<0.000000e+00> : vector<8x32xf32>
    %483 = tpu.matmul %482, %468, %cst_165 {dimension_numbers = #tpu.dot_dimension_numbers<[1], [0], [0], [1], [0, 0, 1, 1], [], []>} : vector<8x8xbf16>, vector<8x32xbf16>, vector<8x32xf32> -> vector<8x32xf32>
    %484 = vector.extract_strided_slice %356 {offsets = [8, 96], sizes = [8, 32], strides = [1, 1]} : vector<24x384xbf16> to vector<8x32xbf16>
    %485 = vector.extract_strided_slice %356 {offsets = [8, 224], sizes = [8, 32], strides = [1, 1]} : vector<24x384xbf16> to vector<8x32xbf16>
    %486 = vector.extract_strided_slice %356 {offsets = [8, 352], sizes = [8, 32], strides = [1, 1]} : vector<24x384xbf16> to vector<8x32xbf16>
    %cst_166 = arith.constant dense<0.000000e+00> : vector<8x8xf32>
    %487 = tpu.matmul %484, %485, %cst_166 {dimension_numbers = #tpu.dot_dimension_numbers<[1], [1], [0], [0], [0, 0, 1, 0], [], []>} : vector<8x32xbf16>, vector<8x32xbf16>, vector<8x8xf32> -> vector<8x8xf32>
    %cst_167 = arith.constant 0.176776692 : f32
    %488 = vector.broadcast %cst_167 : f32 to vector<8x8xf32>
    %489 = arith.mulf %487, %488 : vector<8x8xf32>
    %cst_168 = arith.constant dense<0xFF800000> : vector<8xf32>
    %490 = vector.multi_reduction <maximumf>, %489, %cst_168 [1] : vector<8x8xf32> to vector<8xf32>
    %491 = vector.shape_cast %490 : vector<8xf32> to vector<8x1xf32>
    %492 = vector.broadcast %491 : vector<8x1xf32> to vector<8x8xf32>
    %493 = arith.subf %489, %492 : vector<8x8xf32>
    %494 = math.exp %493 : vector<8x8xf32>
    %cst_169 = arith.constant dense<0.000000e+00> : vector<8xf32>
    %495 = vector.multi_reduction <add>, %494, %cst_169 [1] : vector<8x8xf32> to vector<8xf32>
    %496 = vector.shape_cast %495 : vector<8xf32> to vector<8x1xf32>
    %497 = tpu.reciprocal %496 {approx = true} : vector<8x1xf32> -> vector<8x1xf32>
    %498 = vector.broadcast %497 : vector<8x1xf32> to vector<8x8xf32>
    %499 = arith.mulf %494, %498 : vector<8x8xf32>
    %500 = arith.truncf %499 : vector<8x8xf32> to vector<8x8xbf16>
    %cst_170 = arith.constant dense<0.000000e+00> : vector<8x32xf32>
    %501 = tpu.matmul %500, %486, %cst_170 {dimension_numbers = #tpu.dot_dimension_numbers<[1], [0], [0], [1], [0, 0, 1, 1], [], []>} : vector<8x8xbf16>, vector<8x32xbf16>, vector<8x32xf32> -> vector<8x32xf32>
    %502 = tpu.concatenate %447, %465, %483, %501 in 1 : vector<8x32xf32>, vector<8x32xf32>, vector<8x32xf32>, vector<8x32xf32> -> vector<8x128xf32>
    %503 = vector.extract_strided_slice %356 {offsets = [16, 0], sizes = [8, 32], strides = [1, 1]} : vector<24x384xbf16> to vector<8x32xbf16>
    %504 = vector.extract_strided_slice %356 {offsets = [16, 128], sizes = [8, 32], strides = [1, 1]} : vector<24x384xbf16> to vector<8x32xbf16>
    %505 = vector.extract_strided_slice %356 {offsets = [16, 256], sizes = [8, 32], strides = [1, 1]} : vector<24x384xbf16> to vector<8x32xbf16>
    %cst_171 = arith.constant dense<0.000000e+00> : vector<8x8xf32>
    %506 = tpu.matmul %503, %504, %cst_171 {dimension_numbers = #tpu.dot_dimension_numbers<[1], [1], [0], [0], [0, 0, 1, 0], [], []>} : vector<8x32xbf16>, vector<8x32xbf16>, vector<8x8xf32> -> vector<8x8xf32>
    %cst_172 = arith.constant 0.176776692 : f32
    %507 = vector.broadcast %cst_172 : f32 to vector<8x8xf32>
    %508 = arith.mulf %506, %507 : vector<8x8xf32>
    %cst_173 = arith.constant dense<0xFF800000> : vector<8xf32>
    %509 = vector.multi_reduction <maximumf>, %508, %cst_173 [1] : vector<8x8xf32> to vector<8xf32>
    %510 = vector.shape_cast %509 : vector<8xf32> to vector<8x1xf32>
    %511 = vector.broadcast %510 : vector<8x1xf32> to vector<8x8xf32>
    %512 = arith.subf %508, %511 : vector<8x8xf32>
    %513 = math.exp %512 : vector<8x8xf32>
    %cst_174 = arith.constant dense<0.000000e+00> : vector<8xf32>
    %514 = vector.multi_reduction <add>, %513, %cst_174 [1] : vector<8x8xf32> to vector<8xf32>
    %515 = vector.shape_cast %514 : vector<8xf32> to vector<8x1xf32>
    %516 = tpu.reciprocal %515 {approx = true} : vector<8x1xf32> -> vector<8x1xf32>
    %517 = vector.broadcast %516 : vector<8x1xf32> to vector<8x8xf32>
    %518 = arith.mulf %513, %517 : vector<8x8xf32>
    %519 = arith.truncf %518 : vector<8x8xf32> to vector<8x8xbf16>
    %cst_175 = arith.constant dense<0.000000e+00> : vector<8x32xf32>
    %520 = tpu.matmul %519, %505, %cst_175 {dimension_numbers = #tpu.dot_dimension_numbers<[1], [0], [0], [1], [0, 0, 1, 1], [], []>} : vector<8x8xbf16>, vector<8x32xbf16>, vector<8x32xf32> -> vector<8x32xf32>
    %521 = vector.extract_strided_slice %356 {offsets = [16, 32], sizes = [8, 32], strides = [1, 1]} : vector<24x384xbf16> to vector<8x32xbf16>
    %522 = vector.extract_strided_slice %356 {offsets = [16, 160], sizes = [8, 32], strides = [1, 1]} : vector<24x384xbf16> to vector<8x32xbf16>
    %523 = vector.extract_strided_slice %356 {offsets = [16, 288], sizes = [8, 32], strides = [1, 1]} : vector<24x384xbf16> to vector<8x32xbf16>
    %cst_176 = arith.constant dense<0.000000e+00> : vector<8x8xf32>
    %524 = tpu.matmul %521, %522, %cst_176 {dimension_numbers = #tpu.dot_dimension_numbers<[1], [1], [0], [0], [0, 0, 1, 0], [], []>} : vector<8x32xbf16>, vector<8x32xbf16>, vector<8x8xf32> -> vector<8x8xf32>
    %cst_177 = arith.constant 0.176776692 : f32
    %525 = vector.broadcast %cst_177 : f32 to vector<8x8xf32>
    %526 = arith.mulf %524, %525 : vector<8x8xf32>
    %cst_178 = arith.constant dense<0xFF800000> : vector<8xf32>
    %527 = vector.multi_reduction <maximumf>, %526, %cst_178 [1] : vector<8x8xf32> to vector<8xf32>
    %528 = vector.shape_cast %527 : vector<8xf32> to vector<8x1xf32>
    %529 = vector.broadcast %528 : vector<8x1xf32> to vector<8x8xf32>
    %530 = arith.subf %526, %529 : vector<8x8xf32>
    %531 = math.exp %530 : vector<8x8xf32>
    %cst_179 = arith.constant dense<0.000000e+00> : vector<8xf32>
    %532 = vector.multi_reduction <add>, %531, %cst_179 [1] : vector<8x8xf32> to vector<8xf32>
    %533 = vector.shape_cast %532 : vector<8xf32> to vector<8x1xf32>
    %534 = tpu.reciprocal %533 {approx = true} : vector<8x1xf32> -> vector<8x1xf32>
    %535 = vector.broadcast %534 : vector<8x1xf32> to vector<8x8xf32>
    %536 = arith.mulf %531, %535 : vector<8x8xf32>
    %537 = arith.truncf %536 : vector<8x8xf32> to vector<8x8xbf16>
    %cst_180 = arith.constant dense<0.000000e+00> : vector<8x32xf32>
    %538 = tpu.matmul %537, %523, %cst_180 {dimension_numbers = #tpu.dot_dimension_numbers<[1], [0], [0], [1], [0, 0, 1, 1], [], []>} : vector<8x8xbf16>, vector<8x32xbf16>, vector<8x32xf32> -> vector<8x32xf32>
    %539 = vector.extract_strided_slice %356 {offsets = [16, 64], sizes = [8, 32], strides = [1, 1]} : vector<24x384xbf16> to vector<8x32xbf16>
    %540 = vector.extract_strided_slice %356 {offsets = [16, 192], sizes = [8, 32], strides = [1, 1]} : vector<24x384xbf16> to vector<8x32xbf16>
    %541 = vector.extract_strided_slice %356 {offsets = [16, 320], sizes = [8, 32], strides = [1, 1]} : vector<24x384xbf16> to vector<8x32xbf16>
    %cst_181 = arith.constant dense<0.000000e+00> : vector<8x8xf32>
    %542 = tpu.matmul %539, %540, %cst_181 {dimension_numbers = #tpu.dot_dimension_numbers<[1], [1], [0], [0], [0, 0, 1, 0], [], []>} : vector<8x32xbf16>, vector<8x32xbf16>, vector<8x8xf32> -> vector<8x8xf32>
    %cst_182 = arith.constant 0.176776692 : f32
    %543 = vector.broadcast %cst_182 : f32 to vector<8x8xf32>
    %544 = arith.mulf %542, %543 : vector<8x8xf32>
    %cst_183 = arith.constant dense<0xFF800000> : vector<8xf32>
    %545 = vector.multi_reduction <maximumf>, %544, %cst_183 [1] : vector<8x8xf32> to vector<8xf32>
    %546 = vector.shape_cast %545 : vector<8xf32> to vector<8x1xf32>
    %547 = vector.broadcast %546 : vector<8x1xf32> to vector<8x8xf32>
    %548 = arith.subf %544, %547 : vector<8x8xf32>
    %549 = math.exp %548 : vector<8x8xf32>
    %cst_184 = arith.constant dense<0.000000e+00> : vector<8xf32>
    %550 = vector.multi_reduction <add>, %549, %cst_184 [1] : vector<8x8xf32> to vector<8xf32>
    %551 = vector.shape_cast %550 : vector<8xf32> to vector<8x1xf32>
    %552 = tpu.reciprocal %551 {approx = true} : vector<8x1xf32> -> vector<8x1xf32>
    %553 = vector.broadcast %552 : vector<8x1xf32> to vector<8x8xf32>
    %554 = arith.mulf %549, %553 : vector<8x8xf32>
    %555 = arith.truncf %554 : vector<8x8xf32> to vector<8x8xbf16>
    %cst_185 = arith.constant dense<0.000000e+00> : vector<8x32xf32>
    %556 = tpu.matmul %555, %541, %cst_185 {dimension_numbers = #tpu.dot_dimension_numbers<[1], [0], [0], [1], [0, 0, 1, 1], [], []>} : vector<8x8xbf16>, vector<8x32xbf16>, vector<8x32xf32> -> vector<8x32xf32>
    %557 = vector.extract_strided_slice %356 {offsets = [16, 96], sizes = [8, 32], strides = [1, 1]} : vector<24x384xbf16> to vector<8x32xbf16>
    %558 = vector.extract_strided_slice %356 {offsets = [16, 224], sizes = [8, 32], strides = [1, 1]} : vector<24x384xbf16> to vector<8x32xbf16>
    %559 = vector.extract_strided_slice %356 {offsets = [16, 352], sizes = [8, 32], strides = [1, 1]} : vector<24x384xbf16> to vector<8x32xbf16>
    %cst_186 = arith.constant dense<0.000000e+00> : vector<8x8xf32>
    %560 = tpu.matmul %557, %558, %cst_186 {dimension_numbers = #tpu.dot_dimension_numbers<[1], [1], [0], [0], [0, 0, 1, 0], [], []>} : vector<8x32xbf16>, vector<8x32xbf16>, vector<8x8xf32> -> vector<8x8xf32>
    %cst_187 = arith.constant 0.176776692 : f32
    %561 = vector.broadcast %cst_187 : f32 to vector<8x8xf32>
    %562 = arith.mulf %560, %561 : vector<8x8xf32>
    %cst_188 = arith.constant dense<0xFF800000> : vector<8xf32>
    %563 = vector.multi_reduction <maximumf>, %562, %cst_188 [1] : vector<8x8xf32> to vector<8xf32>
    %564 = vector.shape_cast %563 : vector<8xf32> to vector<8x1xf32>
    %565 = vector.broadcast %564 : vector<8x1xf32> to vector<8x8xf32>
    %566 = arith.subf %562, %565 : vector<8x8xf32>
    %567 = math.exp %566 : vector<8x8xf32>
    %cst_189 = arith.constant dense<0.000000e+00> : vector<8xf32>
    %568 = vector.multi_reduction <add>, %567, %cst_189 [1] : vector<8x8xf32> to vector<8xf32>
    %569 = vector.shape_cast %568 : vector<8xf32> to vector<8x1xf32>
    %570 = tpu.reciprocal %569 {approx = true} : vector<8x1xf32> -> vector<8x1xf32>
    %571 = vector.broadcast %570 : vector<8x1xf32> to vector<8x8xf32>
    %572 = arith.mulf %567, %571 : vector<8x8xf32>
    %573 = arith.truncf %572 : vector<8x8xf32> to vector<8x8xbf16>
    %cst_190 = arith.constant dense<0.000000e+00> : vector<8x32xf32>
    %574 = tpu.matmul %573, %559, %cst_190 {dimension_numbers = #tpu.dot_dimension_numbers<[1], [0], [0], [1], [0, 0, 1, 1], [], []>} : vector<8x8xbf16>, vector<8x32xbf16>, vector<8x32xf32> -> vector<8x32xf32>
    %575 = tpu.concatenate %520, %538, %556, %574 in 1 : vector<8x32xf32>, vector<8x32xf32>, vector<8x32xf32>, vector<8x32xf32> -> vector<8x128xf32>
    %576 = tpu.concatenate %429, %502, %575 in 0 : vector<8x128xf32>, vector<8x128xf32>, vector<8x128xf32> -> vector<24x128xf32>
    %577 = arith.truncf %576 : vector<24x128xf32> to vector<24x128xbf16>
    %c1_191 = arith.constant 1 : index
    %c0_192 = arith.constant 0 : index
    %c0_193 = arith.constant 0 : index
    %578 = vector.load %arg8[%c1_191, %c0_192, %c0_193] : memref<2x128x128xbf16, #tpu.memory_space<vmem>>, vector<1x128x128xbf16>
    %579 = vector.shape_cast %578 : vector<1x128x128xbf16> to vector<128x128xbf16>
    %cst_194 = arith.constant dense<0.000000e+00> : vector<24x128xf32>
    %580 = tpu.matmul %577, %579, %cst_194 {dimension_numbers = #tpu.dot_dimension_numbers<[1], [0], [0], [1], [0, 0, 1, 1], [], []>} : vector<24x128xbf16>, vector<128x128xbf16>, vector<24x128xf32> -> vector<24x128xf32>
    %c1_195 = arith.constant 1 : index
    %c0_196 = arith.constant 0 : index
    %c0_197 = arith.constant 0 : index
    %581 = vector.load %arg9[%c1_195, %c0_196, %c0_197] : memref<2x1x128xf32, #tpu.memory_space<vmem>>, vector<1x1x128xf32>
    %582 = vector.shape_cast %581 : vector<1x1x128xf32> to vector<1x128xf32>
    %583 = vector.broadcast %582 : vector<1x128xf32> to vector<24x128xf32>
    %584 = arith.addf %580, %583 : vector<24x128xf32>
    %585 = arith.addf %347, %584 : vector<24x128xf32>
    %c1_198 = arith.constant 1 : index
    %c0_199 = arith.constant 0 : index
    %c0_200 = arith.constant 0 : index
    %586 = vector.load %arg10[%c1_198, %c0_199, %c0_200] : memref<2x1x128xf32, #tpu.memory_space<vmem>>, vector<1x1x128xf32>
    %587 = vector.shape_cast %586 : vector<1x1x128xf32> to vector<1x128xf32>
    %c1_201 = arith.constant 1 : index
    %c0_202 = arith.constant 0 : index
    %c0_203 = arith.constant 0 : index
    %588 = vector.load %arg11[%c1_201, %c0_202, %c0_203] : memref<2x1x128xf32, #tpu.memory_space<vmem>>, vector<1x1x128xf32>
    %589 = vector.shape_cast %588 : vector<1x1x128xf32> to vector<1x128xf32>
    %cst_204 = arith.constant dense<0.000000e+00> : vector<24xf32>
    %590 = vector.multi_reduction <add>, %585, %cst_204 [1] : vector<24x128xf32> to vector<24xf32>
    %591 = vector.shape_cast %590 : vector<24xf32> to vector<24x1xf32>
    %cst_205 = arith.constant 1.280000e+02 : f32
    %592 = vector.broadcast %cst_205 : f32 to vector<24x1xf32>
    %593 = arith.divf %591, %592 : vector<24x1xf32>
    %594 = vector.broadcast %593 : vector<24x1xf32> to vector<24x128xf32>
    %595 = arith.subf %585, %594 : vector<24x128xf32>
    %596 = arith.mulf %595, %595 : vector<24x128xf32>
    %cst_206 = arith.constant dense<0.000000e+00> : vector<24xf32>
    %597 = vector.multi_reduction <add>, %596, %cst_206 [1] : vector<24x128xf32> to vector<24xf32>
    %598 = vector.shape_cast %597 : vector<24xf32> to vector<24x1xf32>
    %cst_207 = arith.constant 1.280000e+02 : f32
    %599 = vector.broadcast %cst_207 : f32 to vector<24x1xf32>
    %600 = arith.divf %598, %599 : vector<24x1xf32>
    %601 = vector.broadcast %593 : vector<24x1xf32> to vector<24x128xf32>
    %602 = arith.subf %585, %601 : vector<24x128xf32>
    %cst_208 = arith.constant 9.99999974E-6 : f32
    %603 = vector.broadcast %cst_208 : f32 to vector<24x1xf32>
    %604 = arith.addf %600, %603 : vector<24x1xf32>
    %605 = math.rsqrt %604 : vector<24x1xf32>
    %606 = vector.broadcast %605 : vector<24x1xf32> to vector<24x128xf32>
    %607 = arith.mulf %602, %606 : vector<24x128xf32>
    %608 = vector.broadcast %587 : vector<1x128xf32> to vector<24x128xf32>
    %609 = arith.mulf %607, %608 : vector<24x128xf32>
    %610 = vector.broadcast %589 : vector<1x128xf32> to vector<24x128xf32>
    %611 = arith.addf %609, %610 : vector<24x128xf32>
    %612 = arith.truncf %611 : vector<24x128xf32> to vector<24x128xbf16>
    %c1_209 = arith.constant 1 : index
    %c0_210 = arith.constant 0 : index
    %c0_211 = arith.constant 0 : index
    %613 = vector.load %arg12[%c1_209, %c0_210, %c0_211] : memref<2x128x256xbf16, #tpu.memory_space<vmem>>, vector<1x128x256xbf16>
    %614 = vector.shape_cast %613 : vector<1x128x256xbf16> to vector<128x256xbf16>
    %cst_212 = arith.constant dense<0.000000e+00> : vector<24x256xf32>
    %615 = tpu.matmul %612, %614, %cst_212 {dimension_numbers = #tpu.dot_dimension_numbers<[1], [0], [0], [1], [0, 0, 1, 1], [], []>} : vector<24x128xbf16>, vector<128x256xbf16>, vector<24x256xf32> -> vector<24x256xf32>
    %c1_213 = arith.constant 1 : index
    %c0_214 = arith.constant 0 : index
    %c0_215 = arith.constant 0 : index
    %616 = vector.load %arg13[%c1_213, %c0_214, %c0_215] : memref<2x1x256xf32, #tpu.memory_space<vmem>>, vector<1x1x256xf32>
    %617 = vector.shape_cast %616 : vector<1x1x256xf32> to vector<1x256xf32>
    %618 = vector.broadcast %617 : vector<1x256xf32> to vector<24x256xf32>
    %619 = arith.addf %615, %618 : vector<24x256xf32>
    %620 = arith.mulf %619, %619 : vector<24x256xf32>
    %621 = arith.mulf %619, %620 : vector<24x256xf32>
    %cst_216 = arith.constant 4.471500e-02 : f32
    %622 = vector.broadcast %cst_216 : f32 to vector<24x256xf32>
    %623 = arith.mulf %622, %621 : vector<24x256xf32>
    %624 = arith.addf %619, %623 : vector<24x256xf32>
    %cst_217 = arith.constant 0.797884583 : f32
    %625 = vector.broadcast %cst_217 : f32 to vector<24x256xf32>
    %626 = arith.mulf %625, %624 : vector<24x256xf32>
    %627 = math.tanh %626 : vector<24x256xf32>
    %cst_218 = arith.constant 1.000000e+00 : f32
    %628 = vector.broadcast %cst_218 : f32 to vector<24x256xf32>
    %629 = arith.addf %628, %627 : vector<24x256xf32>
    %cst_219 = arith.constant 5.000000e-01 : f32
    %630 = vector.broadcast %cst_219 : f32 to vector<24x256xf32>
    %631 = arith.mulf %630, %629 : vector<24x256xf32>
    %632 = arith.mulf %619, %631 : vector<24x256xf32>
    %633 = arith.truncf %632 : vector<24x256xf32> to vector<24x256xbf16>
    %c1_220 = arith.constant 1 : index
    %c0_221 = arith.constant 0 : index
    %c0_222 = arith.constant 0 : index
    %634 = vector.load %arg14[%c1_220, %c0_221, %c0_222] : memref<2x256x128xbf16, #tpu.memory_space<vmem>>, vector<1x256x128xbf16>
    %635 = vector.shape_cast %634 : vector<1x256x128xbf16> to vector<256x128xbf16>
    %cst_223 = arith.constant dense<0.000000e+00> : vector<24x128xf32>
    %636 = tpu.matmul %633, %635, %cst_223 {dimension_numbers = #tpu.dot_dimension_numbers<[1], [0], [0], [1], [0, 0, 1, 1], [], []>} : vector<24x256xbf16>, vector<256x128xbf16>, vector<24x128xf32> -> vector<24x128xf32>
    %c1_224 = arith.constant 1 : index
    %c0_225 = arith.constant 0 : index
    %c0_226 = arith.constant 0 : index
    %637 = vector.load %arg15[%c1_224, %c0_225, %c0_226] : memref<2x1x128xf32, #tpu.memory_space<vmem>>, vector<1x1x128xf32>
    %638 = vector.shape_cast %637 : vector<1x1x128xf32> to vector<1x128xf32>
    %639 = vector.broadcast %638 : vector<1x128xf32> to vector<24x128xf32>
    %640 = arith.addf %636, %639 : vector<24x128xf32>
    %641 = arith.addf %611, %640 : vector<24x128xf32>
    %c1_227 = arith.constant 1 : index
    %c0_228 = arith.constant 0 : index
    %c0_229 = arith.constant 0 : index
    %642 = vector.load %arg16[%c1_227, %c0_228, %c0_229] : memref<2x1x128xf32, #tpu.memory_space<vmem>>, vector<1x1x128xf32>
    %643 = vector.shape_cast %642 : vector<1x1x128xf32> to vector<1x128xf32>
    %c1_230 = arith.constant 1 : index
    %c0_231 = arith.constant 0 : index
    %c0_232 = arith.constant 0 : index
    %644 = vector.load %arg17[%c1_230, %c0_231, %c0_232] : memref<2x1x128xf32, #tpu.memory_space<vmem>>, vector<1x1x128xf32>
    %645 = vector.shape_cast %644 : vector<1x1x128xf32> to vector<1x128xf32>
    %cst_233 = arith.constant dense<0.000000e+00> : vector<24xf32>
    %646 = vector.multi_reduction <add>, %641, %cst_233 [1] : vector<24x128xf32> to vector<24xf32>
    %647 = vector.shape_cast %646 : vector<24xf32> to vector<24x1xf32>
    %cst_234 = arith.constant 1.280000e+02 : f32
    %648 = vector.broadcast %cst_234 : f32 to vector<24x1xf32>
    %649 = arith.divf %647, %648 : vector<24x1xf32>
    %650 = vector.broadcast %649 : vector<24x1xf32> to vector<24x128xf32>
    %651 = arith.subf %641, %650 : vector<24x128xf32>
    %652 = arith.mulf %651, %651 : vector<24x128xf32>
    %cst_235 = arith.constant dense<0.000000e+00> : vector<24xf32>
    %653 = vector.multi_reduction <add>, %652, %cst_235 [1] : vector<24x128xf32> to vector<24xf32>
    %654 = vector.shape_cast %653 : vector<24xf32> to vector<24x1xf32>
    %cst_236 = arith.constant 1.280000e+02 : f32
    %655 = vector.broadcast %cst_236 : f32 to vector<24x1xf32>
    %656 = arith.divf %654, %655 : vector<24x1xf32>
    %657 = vector.broadcast %649 : vector<24x1xf32> to vector<24x128xf32>
    %658 = arith.subf %641, %657 : vector<24x128xf32>
    %cst_237 = arith.constant 9.99999974E-6 : f32
    %659 = vector.broadcast %cst_237 : f32 to vector<24x1xf32>
    %660 = arith.addf %656, %659 : vector<24x1xf32>
    %661 = math.rsqrt %660 : vector<24x1xf32>
    %662 = vector.broadcast %661 : vector<24x1xf32> to vector<24x128xf32>
    %663 = arith.mulf %658, %662 : vector<24x128xf32>
    %664 = vector.broadcast %643 : vector<1x128xf32> to vector<24x128xf32>
    %665 = arith.mulf %663, %664 : vector<24x128xf32>
    %666 = vector.broadcast %645 : vector<1x128xf32> to vector<24x128xf32>
    %667 = arith.addf %665, %666 : vector<24x128xf32>
    %668 = vector.extract_strided_slice %667 {offsets = [0, 0], sizes = [1, 128], strides = [1, 1]} : vector<24x128xf32> to vector<1x128xf32>
    %669 = vector.extract_strided_slice %667 {offsets = [8, 0], sizes = [1, 128], strides = [1, 1]} : vector<24x128xf32> to vector<1x128xf32>
    %670 = vector.extract_strided_slice %667 {offsets = [16, 0], sizes = [1, 128], strides = [1, 1]} : vector<24x128xf32> to vector<1x128xf32>
    %671 = tpu.concatenate %668, %669, %670 in 0 : vector<1x128xf32>, vector<1x128xf32>, vector<1x128xf32> -> vector<3x128xf32>
    %672 = arith.truncf %671 : vector<3x128xf32> to vector<3x128xbf16>
    %c0_238 = arith.constant 0 : index
    %c0_239 = arith.constant 0 : index
    %673 = vector.load %arg18[%c0_238, %c0_239] : memref<128x128xbf16, #tpu.memory_space<vmem>>, vector<128x128xbf16>
    %cst_240 = arith.constant dense<0.000000e+00> : vector<3x128xf32>
    %674 = tpu.matmul %672, %673, %cst_240 {dimension_numbers = #tpu.dot_dimension_numbers<[1], [0], [0], [1], [0, 0, 1, 1], [], []>} : vector<3x128xbf16>, vector<128x128xbf16>, vector<3x128xf32> -> vector<3x128xf32>
    %c0_241 = arith.constant 0 : index
    %c0_242 = arith.constant 0 : index
    %675 = vector.load %arg19[%c0_241, %c0_242] : memref<1x128xf32, #tpu.memory_space<vmem>>, vector<1x128xf32>
    %676 = vector.broadcast %675 : vector<1x128xf32> to vector<3x128xf32>
    %677 = arith.addf %674, %676 : vector<3x128xf32>
    %678 = math.tanh %677 : vector<3x128xf32>
    %c0_243 = arith.constant 0 : index
    %c0_244 = arith.constant 0 : index
    %679 = vector.load %arg1[%c0_243, %c0_244] : memref<2x128xf32, #tpu.memory_space<vmem>>, vector<2x128xf32>
    %680 = arith.truncf %679 : vector<2x128xf32> to vector<2x128xbf16>
    %681 = arith.truncf %678 : vector<3x128xf32> to vector<3x128xbf16>
    %cst_245 = arith.constant dense<0.000000e+00> : vector<2x3xf32>
    %682 = tpu.matmul %680, %681, %cst_245 {dimension_numbers = #tpu.dot_dimension_numbers<[1], [1], [0], [0], [0, 0, 1, 0], [], []>} : vector<2x128xbf16>, vector<3x128xbf16>, vector<2x3xf32> -> vector<2x3xf32>
    %c0_246 = arith.constant 0 : index
    %c0_247 = arith.constant 0 : index
    %683 = vector.load %arg20[%c0_246, %c0_247] : memref<2x3xf32, #tpu.memory_space<vmem>>, vector<2x3xf32>
    tpu.vector_store %arg20[%c0_246, %c0_247], %682 {strides = array<i32>} : memref<2x3xf32, #tpu.memory_space<vmem>>, vector<2x3xf32>,
    return
  }
  func.func @transform_0(%arg0: i32) -> (i32, i32) {
    %c0_i32 = arith.constant 0 : i32
    %c0_i32_0 = arith.constant 0 : i32
    %c0_i32_1 = arith.constant 0 : i32
    return %c0_i32, %c0_i32_0 : i32, i32
  }
  func.func @transform_1(%arg0: i32) -> (i32, i32) {
    %c0_i32 = arith.constant 0 : i32
    %c0_i32_0 = arith.constant 0 : i32
    %c0_i32_1 = arith.constant 0 : i32
    return %c0_i32, %c0_i32_0 : i32, i32
  }
  func.func @transform_2(%arg0: i32) -> (i32, i32) {
    %c0_i32 = arith.constant 0 : i32
    %c0_i32_0 = arith.constant 0 : i32
    %c0_i32_1 = arith.constant 0 : i32
    return %c0_i32, %c0_i32_0 : i32, i32
  }
  func.func @transform_3(%arg0: i32) -> (i32, i32) {
    %c0_i32 = arith.constant 0 : i32
    %c0_i32_0 = arith.constant 0 : i32
    %c0_i32_1 = arith.constant 0 : i32
    return %c0_i32, %c0_i32_0 : i32, i32
  }
  func.func @transform_4(%arg0: i32) -> (i32, i32) {
    %c0_i32 = arith.constant 0 : i32
    %c0_i32_0 = arith.constant 0 : i32
    %c0_i32_1 = arith.constant 0 : i32
    return %c0_i32, %c0_i32_0 : i32, i32
  }
  func.func @transform_5(%arg0: i32) -> (i32, i32, i32) {
    %c0_i32 = arith.constant 0 : i32
    %c0_i32_0 = arith.constant 0 : i32
    %c0_i32_1 = arith.constant 0 : i32
    %c0_i32_2 = arith.constant 0 : i32
    return %c0_i32, %c0_i32_0, %c0_i32_1 : i32, i32, i32
  }
  func.func @transform_6(%arg0: i32) -> (i32, i32, i32) {
    %c0_i32 = arith.constant 0 : i32
    %c0_i32_0 = arith.constant 0 : i32
    %c0_i32_1 = arith.constant 0 : i32
    %c0_i32_2 = arith.constant 0 : i32
    return %c0_i32, %c0_i32_0, %c0_i32_1 : i32, i32, i32
  }
  func.func @transform_7(%arg0: i32) -> (i32, i32, i32) {
    %c0_i32 = arith.constant 0 : i32
    %c0_i32_0 = arith.constant 0 : i32
    %c0_i32_1 = arith.constant 0 : i32
    %c0_i32_2 = arith.constant 0 : i32
    return %c0_i32, %c0_i32_0, %c0_i32_1 : i32, i32, i32
  }
  func.func @transform_8(%arg0: i32) -> (i32, i32, i32) {
    %c0_i32 = arith.constant 0 : i32
    %c0_i32_0 = arith.constant 0 : i32
    %c0_i32_1 = arith.constant 0 : i32
    %c0_i32_2 = arith.constant 0 : i32
    return %c0_i32, %c0_i32_0, %c0_i32_1 : i32, i32, i32
  }
  func.func @transform_9(%arg0: i32) -> (i32, i32, i32) {
    %c0_i32 = arith.constant 0 : i32
    %c0_i32_0 = arith.constant 0 : i32
    %c0_i32_1 = arith.constant 0 : i32
    %c0_i32_2 = arith.constant 0 : i32
    return %c0_i32, %c0_i32_0, %c0_i32_1 : i32, i32, i32
  }
  func.func @transform_10(%arg0: i32) -> (i32, i32, i32) {
    %c0_i32 = arith.constant 0 : i32
    %c0_i32_0 = arith.constant 0 : i32
    %c0_i32_1 = arith.constant 0 : i32
    %c0_i32_2 = arith.constant 0 : i32
    return %c0_i32, %c0_i32_0, %c0_i32_1 : i32, i32, i32
  }
  func.func @transform_11(%arg0: i32) -> (i32, i32, i32) {
    %c0_i32 = arith.constant 0 : i32
    %c0_i32_0 = arith.constant 0 : i32
    %c0_i32_1 = arith.constant 0 : i32
    %c0_i32_2 = arith.constant 0 : i32
    return %c0_i32, %c0_i32_0, %c0_i32_1 : i32, i32, i32
  }
  func.func @transform_12(%arg0: i32) -> (i32, i32, i32) {
    %c0_i32 = arith.constant 0 : i32
    %c0_i32_0 = arith.constant 0 : i32
    %c0_i32_1 = arith.constant 0 : i32
    %c0_i32_2 = arith.constant 0 : i32
    return %c0_i32, %c0_i32_0, %c0_i32_1 : i32, i32, i32
  }
  func.func @transform_13(%arg0: i32) -> (i32, i32, i32) {
    %c0_i32 = arith.constant 0 : i32
    %c0_i32_0 = arith.constant 0 : i32
    %c0_i32_1 = arith.constant 0 : i32
    %c0_i32_2 = arith.constant 0 : i32
    return %c0_i32, %c0_i32_0, %c0_i32_1 : i32, i32, i32
  }
  func.func @transform_14(%arg0: i32) -> (i32, i32, i32) {
    %c0_i32 = arith.constant 0 : i32
    %c0_i32_0 = arith.constant 0 : i32
    %c0_i32_1 = arith.constant 0 : i32
    %c0_i32_2 = arith.constant 0 : i32
    return %c0_i32, %c0_i32_0, %c0_i32_1 : i32, i32, i32
  }
  func.func @transform_15(%arg0: i32) -> (i32, i32, i32) {
    %c0_i32 = arith.constant 0 : i32
    %c0_i32_0 = arith.constant 0 : i32
    %c0_i32_1 = arith.constant 0 : i32
    %c0_i32_2 = arith.constant 0 : i32
    return %c0_i32, %c0_i32_0, %c0_i32_1 : i32, i32, i32
  }
  func.func @transform_16(%arg0: i32) -> (i32, i32, i32) {
    %c0_i32 = arith.constant 0 : i32
    %c0_i32_0 = arith.constant 0 : i32
    %c0_i32_1 = arith.constant 0 : i32
    %c0_i32_2 = arith.constant 0 : i32
    return %c0_i32, %c0_i32_0, %c0_i32_1 : i32, i32, i32
  }
  func.func @transform_17(%arg0: i32) -> (i32, i32) {
    %c0_i32 = arith.constant 0 : i32
    %c0_i32_0 = arith.constant 0 : i32
    %c0_i32_1 = arith.constant 0 : i32
    return %c0_i32, %c0_i32_0 : i32, i32
  }
  func.func @transform_18(%arg0: i32) -> (i32, i32) {
    %c0_i32 = arith.constant 0 : i32
    %c0_i32_0 = arith.constant 0 : i32
    %c0_i32_1 = arith.constant 0 : i32
    return %c0_i32, %c0_i32_0 : i32, i32
  }
  func.func @transform_19(%arg0: i32) -> (i32, i32) {
    %c0_i32 = arith.constant 0 : i32
    %c0_i32_0 = arith.constant 0 : i32
    %c0_i32_1 = arith.constant 0 : i32
    return %c0_i32, %c0_i32_0 : i32, i32
  }
}

</mosaic_0001>

<llo_original>
// kernel: fwd.3
$region0: #{fwd.3}
  #allocation0 [shape = 'u32[]', space=smem, size = 0x4, offset = 0x4, fixed_abs, tag = 'smem constant byte address 0x4 - core index']
  #allocation1 [shape = 'u32[72,128]{1,0:T(1,128)}', space=vmem, size = 0x9000, scoped, tag = 'internal scratch']
  %s0 = inlined_call_operand.vmem [shape: f32[2,128], index: 0, kind: input, shape index: {}]
  %s1 = inlined_call_operand.vmem [shape: f32[24,128], index: 1, kind: input, shape index: {}]
  %s2 = inlined_call_operand.vmem [shape: f32[8,128], index: 2, kind: input, shape index: {}]
  %s3 = inlined_call_operand.vmem [shape: f32[1,128], index: 3, kind: input, shape index: {}]
  %s4 = inlined_call_operand.vmem [shape: f32[1,128], index: 4, kind: input, shape index: {}]
  %s5 = inlined_call_operand.hbm [shape: bf16[2,128,384], index: 5, kind: input, shape index: {}]
  %s6 = inlined_call_operand.vmem [shape: f32[2,1,384], index: 6, kind: input, shape index: {}]
  %s7 = inlined_call_operand.hbm [shape: bf16[2,128,128], index: 7, kind: input, shape index: {}]
  %s8 = inlined_call_operand.vmem [shape: f32[2,1,128], index: 8, kind: input, shape index: {}]
  %s9 = inlined_call_operand.vmem [shape: f32[2,1,128], index: 9, kind: input, shape index: {}]
  %s10 = inlined_call_operand.vmem [shape: f32[2,1,128], index: 10, kind: input, shape index: {}]
  %s11 = inlined_call_operand.vmem [shape: bf16[2,128,256], index: 11, kind: input, shape index: {}]
  %s12 = inlined_call_operand.vmem [shape: f32[2,1,256], index: 12, kind: input, shape index: {}]
  %s13 = inlined_call_operand.hbm [shape: bf16[2,256,128], index: 13, kind: input, shape index: {}]
  %s14 = inlined_call_operand.vmem [shape: f32[2,1,128], index: 14, kind: input, shape index: {}]
  %s15 = inlined_call_operand.vmem [shape: f32[2,1,128], index: 15, kind: input, shape index: {}]
  %s16 = inlined_call_operand.vmem [shape: f32[2,1,128], index: 16, kind: input, shape index: {}]
  %s17 = inlined_call_operand.hbm [shape: bf16[128,128], index: 17, kind: input, shape index: {}]
  %s18 = inlined_call_operand.vmem [shape: f32[1,128], index: 18, kind: input, shape index: {}]
  %s19 = inlined_call_operand.hbm [shape: f32[2,3], index: 19, kind: output, shape index: {}]
  %s20 = sld [smem:[#allocation0]]
  $region102: #{fwd.3} parent=0
    _
  %s22 = ssub.s32 1, %s20
  %s23 = scalar_select 0, %s22, %s20
  $region1: #{fwd.3} parent=0
    #allocation2 [shape = 'u8[196608]{0}', space=vmem, size = 0x30000, scoped, tag = 'input window, operand 5, single buffered']
    #allocation3 [shape = 's32[1]{0}', space=sflag, size = 0x4, scoped, tag = 'scoped memory for fwd.3']
    #allocation4 [shape = 's32[1]{0}', space=sflag, size = 0x4, scoped, tag = 'scoped memory for fwd.3']
    #allocation5 [shape = 'u8[65536]{0}', space=vmem, size = 0x10000, scoped, tag = 'input window, operand 7, single buffered']
    #allocation6 [shape = 's32[1]{0}', space=sflag, size = 0x4, scoped, tag = 'scoped memory for fwd.3']
    #allocation7 [shape = 'u8[131072]{0}', space=vmem, size = 0x20000, scoped, tag = 'input window, operand 13, single buffered']
    #allocation8 [shape = 'u8[32768]{0}', space=vmem, size = 0x8000, scoped, tag = 'input window, operand 17, single buffered']
    #allocation9 [shape = 's32[1]{0}', space=sflag, size = 0x4, scoped, tag = 'scoped memory for fwd.3']
    #allocation10 [shape = 'u8[1024]{0}', space=vmem, size = 0x400, scoped, tag = 'output window, operand 0, single buffered']
    %24 = vsyncpa [#allocation3], 0
    %25 = vsyncpa [#allocation6], 0
    %26 = vsyncpa [#allocation9], 0
    %27 = vsyncpa [#allocation4], 0
    // Predicated region
    $region2: #{fwd.3} parent=1 // pred_check
      _
    $region3: #{fwd.3} parent=1 // pred_check_branch
      %29 = sbr.rel (0) target = $region5
    $region4: #{fwd.3} parent=1 // pred_region
      _
    $region5: #{fwd.3} parent=1 // pred_fallthru
      _
    // Predicated region
    $region6: #{fwd.3} parent=1 // pred_check
      _
    $region7: #{fwd.3} parent=1 // pred_check_branch
      %31 = sbr.rel (0) target = $region9
    $region8: #{fwd.3} parent=1 // pred_region
      _
    $region9: #{fwd.3} parent=1 // pred_fallthru
      _
    // Predicated region
    $region10: #{fwd.3} parent=1 // pred_check
      _
    $region11: #{fwd.3} parent=1 // pred_check_branch
      %33 = sbr.rel (0) target = $region13
    $region12: #{fwd.3} parent=1 // pred_region
      _
    $region13: #{fwd.3} parent=1 // pred_fallthru
      _
    // Predicated region
    $region14: #{fwd.3} parent=1 // pred_check
      _
    $region15: #{fwd.3} parent=1 // pred_check_branch
      %35 = sbr.rel (0) target = $region17
    $region16: #{fwd.3} parent=1 // pred_region
      _
    $region17: #{fwd.3} parent=1 // pred_fallthru
      _
    // Predicated region
    $region18: #{fwd.3} parent=1 // pred_check
      _
    $region19: #{fwd.3} parent=1 // pred_check_branch
      %37 = sbr.rel (0) target = $region21
    $region20: #{fwd.3} parent=1 // pred_region
      _
    $region21: #{fwd.3} parent=1 // pred_fallthru
      _
    // Predicated region
    $region22: #{fwd.3} parent=1 // pred_check
      _
    $region23: #{fwd.3} parent=1 // pred_check_branch
      %39 = sbr.rel (0) target = $region25
    $region24: #{fwd.3} parent=1 // pred_region
      %41 = vsyncadd [#allocation3], 0
      %s42 = sshll.u32 %s5, 4
      %s43 = int_to_ptr.hbm [resolvable:$true] %s42
      %s44 = sshll.u32 [#allocation2], 4
      %s45 = int_to_ptr.vmem [resolvable:$true] %s44
      %50 = dma.hbm_to_vmem [thread:$0]  %s43, 6144, %s45, [#allocation3], 192, 192, 12
    $region25: #{fwd.3} parent=1 // pred_fallthru
      _
    // Predicated region
    $region26: #{fwd.3} parent=1 // pred_check
      _
    $region27: #{fwd.3} parent=1 // pred_check_branch
      %52 = sbr.rel (0) target = $region29
    $region28: #{fwd.3} parent=1 // pred_region
      _
    $region29: #{fwd.3} parent=1 // pred_fallthru
      _
    // Predicated region
    $region30: #{fwd.3} parent=1 // pred_check
      _
    $region31: #{fwd.3} parent=1 // pred_check_branch
      %54 = sbr.rel (0) target = $region33
    $region32: #{fwd.3} parent=1 // pred_region
      %56 = vsyncadd [#allocation6], 0
      %s57 = sshll.u32 %s7, 4
      %s58 = int_to_ptr.hbm [resolvable:$true] %s57
      %s59 = sshll.u32 [#allocation5], 4
      %s60 = int_to_ptr.vmem [resolvable:$true] %s59
      %65 = dma.hbm_to_vmem [thread:$0]  %s58, 2048, %s60, [#allocation6], 64, 64, 4
    $region33: #{fwd.3} parent=1 // pred_fallthru
      _
    // Predicated region
    $region34: #{fwd.3} parent=1 // pred_check
      _
    $region35: #{fwd.3} parent=1 // pred_check_branch
      %67 = sbr.rel (0) target = $region37
    $region36: #{fwd.3} parent=1 // pred_region
      _
    $region37: #{fwd.3} parent=1 // pred_fallthru
      _
    // Predicated region
    $region38: #{fwd.3} parent=1 // pred_check
      _
    $region39: #{fwd.3} parent=1 // pred_check_branch
      %69 = sbr.rel (0) target = $region41
    $region40: #{fwd.3} parent=1 // pred_region
      _
    $region41: #{fwd.3} parent=1 // pred_fallthru
      _
    // Predicated region
    $region42: #{fwd.3} parent=1 // pred_check
      _
    $region43: #{fwd.3} parent=1 // pred_check_branch
      %71 = sbr.rel (0) target = $region45
    $region44: #{fwd.3} parent=1 // pred_region
      _
    $region45: #{fwd.3} parent=1 // pred_fallthru
      _
    // Predicated region
    $region46: #{fwd.3} parent=1 // pred_check
      _
    $region47: #{fwd.3} parent=1 // pred_check_branch
      %73 = sbr.rel (0) target = $region49
    $region48: #{fwd.3} parent=1 // pred_region
      _
    $region49: #{fwd.3} parent=1 // pred_fallthru
      _
    // Predicated region
    $region50: #{fwd.3} parent=1 // pred_check
      _
    $region51: #{fwd.3} parent=1 // pred_check_branch
      %75 = sbr.rel (0) target = $region53
    $region52: #{fwd.3} parent=1 // pred_region
      _
    $region53: #{fwd.3} parent=1 // pred_fallthru
      _
    // Predicated region
    $region54: #{fwd.3} parent=1 // pred_check
      _
    $region55: #{fwd.3} parent=1 // pred_check_branch
      %77 = sbr.rel (0) target = $region57
    $region56: #{fwd.3} parent=1 // pred_region
      %79 = vsyncadd [#allocation6], 0
      %s80 = sshll.u32 %s13, 4
      %s81 = int_to_ptr.hbm [resolvable:$true] %s80
      %s82 = sshll.u32 [#allocation7], 4
      %s83 = int_to_ptr.vmem [resolvable:$true] %s82
      %88 = dma.hbm_to_vmem [thread:$0]  %s81, 4096, %s83, [#allocation6], 64, 64, 4
    $region57: #{fwd.3} parent=1 // pred_fallthru
      _
    // Predicated region
    $region58: #{fwd.3} parent=1 // pred_check
      _
    $region59: #{fwd.3} parent=1 // pred_check_branch
      %90 = sbr.rel (0) target = $region61
    $region60: #{fwd.3} parent=1 // pred_region
      _
    $region61: #{fwd.3} parent=1 // pred_fallthru
      _
    // Predicated region
    $region62: #{fwd.3} parent=1 // pred_check
      _
    $region63: #{fwd.3} parent=1 // pred_check_branch
      %92 = sbr.rel (0) target = $region65
    $region64: #{fwd.3} parent=1 // pred_region
      _
    $region65: #{fwd.3} parent=1 // pred_fallthru
      _
    // Predicated region
    $region66: #{fwd.3} parent=1 // pred_check
      _
    $region67: #{fwd.3} parent=1 // pred_check_branch
      %94 = sbr.rel (0) target = $region69
    $region68: #{fwd.3} parent=1 // pred_region
      _
    $region69: #{fwd.3} parent=1 // pred_fallthru
      _
    // Predicated region
    $region70: #{fwd.3} parent=1 // pred_check
      _
    $region71: #{fwd.3} parent=1 // pred_check_branch
      %96 = sbr.rel (0) target = $region73
    $region72: #{fwd.3} parent=1 // pred_region
      %98 = vsyncadd [#allocation9], 0
      %s99 = sshll.u32 %s17, 4
      %s100 = int_to_ptr.hbm [resolvable:$true] %s99
      %s101 = sshll.u32 [#allocation8], 4
      %s102 = int_to_ptr.vmem [resolvable:$true] %s101
      %107 = dma.hbm_to_vmem [thread:$0]  %s100, 1024, %s102, [#allocation9], 64, 64, 4
    $region73: #{fwd.3} parent=1 // pred_fallthru
      _
    // Predicated region
    $region74: #{fwd.3} parent=1 // pred_check
      _
    $region75: #{fwd.3} parent=1 // pred_check_branch
      %109 = sbr.rel (0) target = $region77
    $region76: #{fwd.3} parent=1 // pred_region
      _
    $region77: #{fwd.3} parent=1 // pred_fallthru
      _
    // Predicated region
    $region78: #{fwd.3} parent=1 // pred_check
      _
    $region79: #{fwd.3} parent=1 // pred_check_branch
      %111 = sbr.rel (0) target = $region81
    $region80: #{fwd.3} parent=1 // pred_region
      %113 = dma.done [#allocation3], 6144
    $region81: #{fwd.3} parent=1 // pred_fallthru
      _
    // Predicated region
    $region82: #{fwd.3} parent=1 // pred_check
      _
    $region83: #{fwd.3} parent=1 // pred_check_branch
      %115 = sbr.rel (0) target = $region85
    $region84: #{fwd.3} parent=1 // pred_region
      %117 = dma.done [#allocation6], 2048
    $region85: #{fwd.3} parent=1 // pred_fallthru
      _
    // Predicated region
    $region86: #{fwd.3} parent=1 // pred_check
      _
    $region87: #{fwd.3} parent=1 // pred_check_branch
      %119 = sbr.rel (0) target = $region89
    $region88: #{fwd.3} parent=1 // pred_region
      %121 = dma.done [#allocation6], 4096
    $region89: #{fwd.3} parent=1 // pred_fallthru
      _
    // Predicated region
    $region90: #{fwd.3} parent=1 // pred_check
      _
    $region91: #{fwd.3} parent=1 // pred_check_branch
      %123 = sbr.rel (0) target = $region93
    $region92: #{fwd.3} parent=1 // pred_region
      %125 = dma.done [#allocation9], 1024
    $region93: #{fwd.3} parent=1 // pred_fallthru
      _
    %v127 = vld [vmem:[%s2] sm:$0xff]
    %v128 = vld [vmem:[%s1] sm:$0xff]
    %v129 = vld [vmem:[%s1 + $0x8] sm:$0xff]
    %v130 = vld [vmem:[%s1 + $0x10] sm:$0xff]
    %v131 = vadd.f32 %v128, %v127
    %v132 = vadd.f32 %v129, %v127
    %v133 = vadd.f32 %v130, %v127
    %v134 = vld [vmem:[%s3] sm:$0x1]
    %v135 = vld [vmem:[%s4] sm:$0x1]
    %136 = vadd.xlane.f32.xlu0 %v131
    %v137 = vpop.xlane.xlu0 %136
    %138 = vadd.xlane.f32.xlu0 %v132
    %v139 = vpop.xlane.xlu0 %138
    %140 = vadd.xlane.f32.xlu0 %v133
    %v141 = vpop.xlane.xlu0 %140
    %v142 = vrcp.pop 128.0
    %v143 = vmul.f32 128.0, %v142
    %v144 = vsub.f32 1.0, %v143
    %v145 = vmul.f32 %v142, %v144
    %v146 = vadd.f32 %v142, %v145
    %vm147 = vweird.f32 %v142
    %v148 = vsel %vm147, %v142, %v146
    %v149 = vmul.f32 %v137, %v148
    %v150 = vmul.f32 %v139, %v148
    %v151 = vmul.f32 %v141, %v148
    %v152 = vsub.f32 %v131, %v149
    %v153 = vsub.f32 %v132, %v150
    %v154 = vsub.f32 %v133, %v151
    %v155 = vmul.f32 %v152, %v152
    %v156 = vmul.f32 %v153, %v153
    %v157 = vmul.f32 %v154, %v154
    %158 = vadd.xlane.f32.xlu0 %v155
    %v159 = vpop.xlane.xlu0 %158
    %160 = vadd.xlane.f32.xlu0 %v156
    %v161 = vpop.xlane.xlu0 %160
    %162 = vadd.xlane.f32.xlu0 %v157
    %v163 = vpop.xlane.xlu0 %162
    %v164 = vmul.f32 %v159, %v148
    %v165 = vmul.f32 %v161, %v148
    %v166 = vmul.f32 %v163, %v148
    %v167 = vadd.f32 %v164, 1e-05
    %v168 = vadd.f32 %v165, 1e-05
    %v169 = vadd.f32 %v166, 1e-05
    %v170 = vrsqrt.pop %v167
    %v171 = vmul.f32 %v170, %v167
    %v172 = vmul.f32 %v171, %v170
    %v173 = vmul.f32 0.5, %v172
    %v174 = vsub.f32 1.5, %v173
    %v175 = vmul.f32 %v170, %v174
    %vm176 = vweird.f32 %v167
    %vm177 = vweird.f32 %v170
    %vm178 = vmor %vm176, %vm177
    %v179 = vsel %vm178, %v170, %v175
    %v180 = vrsqrt.pop %v168
    %v181 = vmul.f32 %v180, %v168
    %v182 = vmul.f32 %v181, %v180
    %v183 = vmul.f32 0.5, %v182
    %v184 = vsub.f32 1.5, %v183
    %v185 = vmul.f32 %v180, %v184
    %vm186 = vweird.f32 %v168
    %vm187 = vweird.f32 %v180
    %vm188 = vmor %vm186, %vm187
    %v189 = vsel %vm188, %v180, %v185
    %v190 = vrsqrt.pop %v169
    %v191 = vmul.f32 %v190, %v169
    %v192 = vmul.f32 %v191, %v190
    %v193 = vmul.f32 0.5, %v192
    %v194 = vsub.f32 1.5, %v193
    %v195 = vmul.f32 %v190, %v194
    %vm196 = vweird.f32 %v169
    %vm197 = vweird.f32 %v190
    %vm198 = vmor %vm196, %vm197
    %v199 = vsel %vm198, %v190, %v195
    %v200 = vmul.f32 %v152, %v179
    %v201 = vmul.f32 %v153, %v189
    %v202 = vmul.f32 %v154, %v199
    %v204 = vperm.slane %v134, 0
    %v206 = vmul.f32 %v200, %v204
    %v207 = vmul.f32 %v201, %v204
    %v208 = vmul.f32 %v202, %v204
    %v210 = vperm.slane %v135, 0
    %v212 = vadd.f32 %v206, %v210
    %v213 = vadd.f32 %v207, %v210
    %v214 = vadd.f32 %v208, %v210
    %v215 = vpack.c.bf16 %v213, %v212
    %v216 = vpack.c.bf16 %v214, %v214
    %v217 = vld [vmem:[#allocation2] sm:$0xff]
    %v218 = vld [vmem:[#allocation2 + $0x8] sm:$0xf]
    %v219 = vld [vmem:[#allocation2 + $0xc] sm:$0xff]
    %v220 = vld [vmem:[#allocation2 + $0x14] sm:$0xf]
    %v221 = vld [vmem:[#allocation2 + $0x18] sm:$0xff]
    %v222 = vld [vmem:[#allocation2 + $0x20] sm:$0xf]
    %v223 = vld [vmem:[#allocation2 + $0x24] sm:$0xff]
    %v224 = vld [vmem:[#allocation2 + $0x2c] sm:$0xf]
    %v225 = vld [vmem:[#allocation2 + $0x30] sm:$0xff]
    %v226 = vld [vmem:[#allocation2 + $0x38] sm:$0xf]
    %v227 = vld [vmem:[#allocation2 + $0x3c] sm:$0xff]
    %v228 = vld [vmem:[#allocation2 + $0x44] sm:$0xf]
    %v229 = vld [vmem:[#allocation2 + $0x48] sm:$0xff]
    %v230 = vld [vmem:[#allocation2 + $0x50] sm:$0xf]
    %v231 = vld [vmem:[#allocation2 + $0x54] sm:$0xff]
    %v232 = vld [vmem:[#allocation2 + $0x5c] sm:$0xf]
    %v233 = vld [vmem:[#allocation2 + $0x60] sm:$0xff]
    %v234 = vld [vmem:[#allocation2 + $0x68] sm:$0xf]
    %v235 = vld [vmem:[#allocation2 + $0x6c] sm:$0xff]
    %v236 = vld [vmem:[#allocation2 + $0x74] sm:$0xf]
    %v237 = vld [vmem:[#allocation2 + $0x78] sm:$0xff]
    %v238 = vld [vmem:[#allocation2 + $0x80] sm:$0xf]
    %v239 = vld [vmem:[#allocation2 + $0x84] sm:$0xff]
    %v240 = vld [vmem:[#allocation2 + $0x8c] sm:$0xf]
    %v241 = vld [vmem:[#allocation2 + $0x90] sm:$0xff]
    %v242 = vld [vmem:[#allocation2 + $0x98] sm:$0xf]
    %v243 = vld [vmem:[#allocation2 + $0x9c] sm:$0xff]
    %v244 = vld [vmem:[#allocation2 + $0xa4] sm:$0xf]
    %v245 = vld [vmem:[#allocation2 + $0xa8] sm:$0xff]
    %v246 = vld [vmem:[#allocation2 + $0xb0] sm:$0xf]
    %v247 = vld [vmem:[#allocation2 + $0xb4] sm:$0xff]
    %v248 = vld [vmem:[#allocation2 + $0xbc] sm:$0xf]
    %v249 = vld [vmem:[%s6] sm:$0x7]
    %v251 = vperm.slane %v249, 0
    %v252 = vperm.slane %v249, 1
    %v253 = vperm.slane %v249, 2
    %v289 = vunpack.c.l.b16 %v217
    %v290 = vunpack.c.h.b16 %v217
    %v291 = vunpack.c.l.b16 %v218
    %v292 = vunpack.c.l.b16 %v219
    %v293 = vunpack.c.h.b16 %v219
    %v294 = vunpack.c.l.b16 %v220
    %v295 = vunpack.c.l.b16 %v221
    %v296 = vunpack.c.h.b16 %v221
    %v297 = vunpack.c.l.b16 %v222
    %v298 = vunpack.c.l.b16 %v223
    %v299 = vunpack.c.h.b16 %v223
    %v300 = vunpack.c.l.b16 %v224
    %v301 = vunpack.c.l.b16 %v225
    %v302 = vunpack.c.h.b16 %v225
    %v303 = vunpack.c.l.b16 %v226
    %v304 = vunpack.c.l.b16 %v227
    %v305 = vunpack.c.h.b16 %v227
    %v306 = vunpack.c.l.b16 %v228
    %v307 = vunpack.c.l.b16 %v229
    %v308 = vunpack.c.h.b16 %v229
    %v309 = vunpack.c.l.b16 %v230
    %v310 = vunpack.c.l.b16 %v231
    %v311 = vunpack.c.h.b16 %v231
    %v312 = vunpack.c.l.b16 %v232
    %v313 = vunpack.c.l.b16 %v233
    %v314 = vunpack.c.h.b16 %v233
    %v315 = vunpack.c.l.b16 %v234
    %v316 = vunpack.c.l.b16 %v235
    %v317 = vunpack.c.h.b16 %v235
    %v318 = vunpack.c.l.b16 %v236
    %v319 = vunpack.c.l.b16 %v237
    %v320 = vunpack.c.h.b16 %v237
    %v321 = vunpack.c.l.b16 %v238
    %v322 = vunpack.c.l.b16 %v239
    %v323 = vunpack.c.h.b16 %v239
    %v324 = vunpack.c.l.b16 %v240
    %v325 = vunpack.c.l.b16 %v241
    %v326 = vunpack.c.h.b16 %v241
    %v327 = vunpack.c.l.b16 %v242
    %v328 = vunpack.c.l.b16 %v243
    %v329 = vunpack.c.h.b16 %v243
    %v330 = vunpack.c.l.b16 %v244
    %v331 = vunpack.c.l.b16 %v245
    %v332 = vunpack.c.h.b16 %v245
    %v333 = vunpack.c.l.b16 %v246
    %v334 = vunpack.c.l.b16 %v247
    %v335 = vunpack.c.h.b16 %v247
    %v336 = vunpack.c.l.b16 %v248
    %v337 = vpack.c.b16 %v292, %v289
    %v338 = vpack.c.b16 %v293, %v290
    %v339 = vpack.c.b16 %v294, %v291
    %v340 = vpack.c.b16 %v298, %v295
    %v341 = vpack.c.b16 %v299, %v296
    %v342 = vpack.c.b16 %v300, %v297
    %v343 = vpack.c.b16 %v304, %v301
    %v344 = vpack.c.b16 %v305, %v302
    %v345 = vpack.c.b16 %v306, %v303
    %v346 = vpack.c.b16 %v310, %v307
    %v347 = vpack.c.b16 %v311, %v308
    %v348 = vpack.c.b16 %v312, %v309
    %v349 = vpack.c.b16 %v316, %v313
    %v350 = vpack.c.b16 %v317, %v314
    %v351 = vpack.c.b16 %v318, %v315
    %v352 = vpack.c.b16 %v322, %v319
    %v353 = vpack.c.b16 %v323, %v320
    %v354 = vpack.c.b16 %v324, %v321
    %v355 = vpack.c.b16 %v328, %v325
    %v356 = vpack.c.b16 %v329, %v326
    %v357 = vpack.c.b16 %v330, %v327
    %v358 = vpack.c.b16 %v334, %v331
    %v359 = vpack.c.b16 %v335, %v332
    %v360 = vpack.c.b16 %v336, %v333
    %385 = vmatpush.bf16.msra.mxu0 %v358
    %386 = vmatpush.bf16.msra.mxu0 %v355
    %387 = vmatpush.bf16.msra.mxu0 %v352
    %388 = vmatpush.bf16.msra.mxu0 %v349
    %389 = vmatpush.bf16.msra.mxu0 %v346
    %390 = vmatpush.bf16.msra.mxu0 %v343
    %391 = vmatpush.bf16.msra.mxu0 %v340
    %392 = vmatpush.bf16.msra.mxu0 %v337
    %393 = vmatmul.bf16.gmra.mxu0 %v215
    %v394 = vpop.f32.mrf.mxu0
    %v395 = vadd.f32 %v251, %v394
    %v396 = vpop.f32.mrf.mxu0
    %v397 = vadd.f32 %v251, %v396
    %398 = vmatmul.bf16.gmra.mxu0 %v216
    %v399 = vpop.f32.mrf.mxu0
    %v400 = vadd.f32 %v251, %v399
    %v401 = vpop.f32.mrf.mxu0
    %402 = vdwg.mxu0
    %403 = vmatpush.bf16.msra.mxu0 %v359
    %404 = vmatpush.bf16.msra.mxu0 %v356
    %405 = vmatpush.bf16.msra.mxu0 %v353
    %406 = vmatpush.bf16.msra.mxu0 %v350
    %407 = vmatpush.bf16.msra.mxu0 %v347
    %408 = vmatpush.bf16.msra.mxu0 %v344
    %409 = vmatpush.bf16.msra.mxu0 %v341
    %410 = vmatpush.bf16.msra.mxu0 %v338
    %411 = vmatmul.bf16.gmra.mxu0 %v215
    %v412 = vpop.f32.mrf.mxu0
    %v413 = vadd.f32 %v252, %v412
    %v414 = vpop.f32.mrf.mxu0
    %v415 = vadd.f32 %v252, %v414
    %416 = vmatmul.bf16.gmra.mxu0 %v216
    %v417 = vpop.f32.mrf.mxu0
    %v418 = vadd.f32 %v252, %v417
    %v419 = vpop.f32.mrf.mxu0
    %420 = vdwg.mxu0
    %421 = vmatpush.bf16.msra.mxu0 %v360
    %422 = vmatpush.bf16.msra.mxu0 %v357
    %423 = vmatpush.bf16.msra.mxu0 %v354
    %424 = vmatpush.bf16.msra.mxu0 %v351
    %425 = vmatpush.bf16.msra.mxu0 %v348
    %426 = vmatpush.bf16.msra.mxu0 %v345
    %427 = vmatpush.bf16.msra.mxu0 %v342
    %428 = vmatpush.bf16.msra.mxu0 %v339
    %429 = vmatmul.bf16.gmra.mxu0 %v215
    %v430 = vpop.f32.mrf.mxu0
    %v431 = vadd.f32 %v253, %v430
    %v432 = vpop.f32.mrf.mxu0
    %v433 = vadd.f32 %v253, %v432
    %434 = vmatmul.bf16.gmra.mxu0 %v216
    %v435 = vpop.f32.mrf.mxu0
    %v436 = vadd.f32 %v253, %v435
    %v437 = vpop.f32.mrf.mxu0
    %438 = vdwg.mxu0
    %v439 = vpack.c.bf16 %v413, %v395
    %v440 = vpack.c.bf16 %v431, %v431
    %v441 = vpack.c.bf16 %v415, %v397
    %v442 = vpack.c.bf16 %v433, %v433
    %v443 = vpack.c.bf16 %v418, %v400
    %v444 = vpack.c.bf16 %v436, %v436
    %v446 = vunpack.c.h.b16 %v439
    %v447 = vpack.c.b16 %v446, %v446
    %vm448 = vcmask 261120
    %v450 = vsel %vm448, %v439, 0
    %v453 = vsel %vm448, %v447, 0
    %455 = vmatpush.bf16.xpose.msra.mxu0 0
    %456 = vmatpush.bf16.xpose.msra.mxu0 0
    %457 = vmatpush.bf16.xpose.msra.mxu0 0
    %458 = vmatpush.bf16.xpose.msra.mxu0 0
    %459 = vmatpush.bf16.xpose.msra.mxu0 0
    %460 = vmatpush.bf16.xpose.msra.mxu0 0
    %461 = vmatpush.bf16.xpose.msra.mxu0 0
    %462 = vmatpush.bf16.xpose.msra.mxu0 %v453
    %463 = vmatmul.bf16.gmra.mxu0 %v450
    %v464 = vpop.f32.mrf.mxu0
    %v465 = vadd.f32 0.0, %v464
    %v466 = vpop.f32.mrf.mxu0
    %467 = vdwg.mxu0
    %v468 = vmul.f32 %v465, 0.17677669
    %vm469 = vcmask 64512
    %v470 = vsel %vm469, %v468, -inf
    %471 = vmax.xlane.f32.xlu0 %v470
    %v472 = vpop.xlane.xlu0 %471
    %v473 = vsub.f32 %v468, %v472
    %v474 = vmul.f32 %v473, 1.442695
    %v475 = vpow.pop %v474
    %v476 = vsel %vm469, %v475, 0.0
    %477 = vadd.xlane.f32.xlu0 %v476
    %v478 = vpop.xlane.xlu0 %477
    %v479 = vrcp.pop %v478
    %v480 = vmul.f32 %v475, %v479
    %v481 = vpack.c.bf16 %v480, %v480
    %v483 = vsel %vm469, %v481, 0
    %vm485 = vcmask 1043456
    %v487 = vsel %vm485, %v440, 0
    %489 = vmatpush.bf16.msra.mxu0 0
    %490 = vmatpush.bf16.msra.mxu0 0
    %491 = vmatpush.bf16.msra.mxu0 0
    %492 = vmatpush.bf16.msra.mxu0 0
    %493 = vmatpush.bf16.msra.mxu0 0
    %494 = vmatpush.bf16.msra.mxu0 0
    %495 = vmatpush.bf16.msra.mxu0 0
    %496 = vmatpush.bf16.msra.mxu0 %v487
    %497 = vmatmul.bf16.gmra.mxu0 %v483
    %v498 = vpop.f32.mrf.mxu0
    %v499 = vadd.f32 0.0, %v498
    %v500 = vpop.f32.mrf.mxu0
    %501 = vdwg.mxu0
    %v502 = vunpack.c.l.b16 %v439
    %v503 = vpack.c.b16 %v502, %v502
    %504 = vrot.lane.b32.xlu0 %v503, 96
    %v505 = vpop.permute.xlu0 %504
    %506 = vrot.lane.b32.xlu0 %v447, 96
    %v507 = vpop.permute.xlu0 %506
    %v509 = vsel %vm448, %v505, 0
    %v512 = vsel %vm448, %v507, 0
    %514 = vmatpush.bf16.xpose.msra.mxu0 0
    %515 = vmatpush.bf16.xpose.msra.mxu0 0
    %516 = vmatpush.bf16.xpose.msra.mxu0 0
    %517 = vmatpush.bf16.xpose.msra.mxu0 0
    %518 = vmatpush.bf16.xpose.msra.mxu0 0
    %519 = vmatpush.bf16.xpose.msra.mxu0 0
    %520 = vmatpush.bf16.xpose.msra.mxu0 0
    %521 = vmatpush.bf16.xpose.msra.mxu0 %v512
    %522 = vmatmul.bf16.gmra.mxu0 %v509
    %v523 = vpop.f32.mrf.mxu0
    %v524 = vadd.f32 0.0, %v523
    %v525 = vpop.f32.mrf.mxu0
    %526 = vdwg.mxu0
    %v527 = vmul.f32 %v524, 0.17677669
    %v528 = vsel %vm469, %v527, -inf
    %529 = vmax.xlane.f32.xlu0 %v528
    %v530 = vpop.xlane.xlu0 %529
    %v531 = vsub.f32 %v527, %v530
    %v532 = vmul.f32 %v531, 1.442695
    %v533 = vpow.pop %v532
    %v534 = vsel %vm469, %v533, 0.0
    %535 = vadd.xlane.f32.xlu0 %v534
    %v536 = vpop.xlane.xlu0 %535
    %v537 = vrcp.pop %v536
    %v538 = vmul.f32 %v533, %v537
    %v539 = vpack.c.bf16 %v538, %v538
    %v541 = vunpack.c.l.b16 %v440
    %v542 = vpack.c.b16 %v541, %v541
    %543 = vrot.lane.b32.xlu0 %v542, 96
    %v544 = vpop.permute.xlu0 %543
    %v546 = vsel %vm469, %v539, 0
    %v549 = vsel %vm485, %v544, 0
    %551 = vmatpush.bf16.msra.mxu0 0
    %552 = vmatpush.bf16.msra.mxu0 0
    %553 = vmatpush.bf16.msra.mxu0 0
    %554 = vmatpush.bf16.msra.mxu0 0
    %555 = vmatpush.bf16.msra.mxu0 0
    %556 = vmatpush.bf16.msra.mxu0 0
    %557 = vmatpush.bf16.msra.mxu0 0
    %558 = vmatpush.bf16.msra.mxu0 %v549
    %559 = vmatmul.bf16.gmra.mxu0 %v546
    %v560 = vpop.f32.mrf.mxu0
    %v561 = vadd.f32 0.0, %v560
    %v562 = vpop.f32.mrf.mxu0
    %563 = vdwg.mxu0
    %564 = vrot.lane.b32.xlu0 %v503, 64
    %v565 = vpop.permute.xlu0 %564
    %566 = vrot.lane.b32.xlu0 %v447, 64
    %v567 = vpop.permute.xlu0 %566
    %v569 = vsel %vm448, %v565, 0
    %v572 = vsel %vm448, %v567, 0
    %574 = vmatpush.bf16.xpose.msra.mxu0 0
    %575 = vmatpush.bf16.xpose.msra.mxu0 0
    %576 = vmatpush.bf16.xpose.msra.mxu0 0
    %577 = vmatpush.bf16.xpose.msra.mxu0 0
    %578 = vmatpush.bf16.xpose.msra.mxu0 0
    %579 = vmatpush.bf16.xpose.msra.mxu0 0
    %580 = vmatpush.bf16.xpose.msra.mxu0 0
    %581 = vmatpush.bf16.xpose.msra.mxu0 %v572
    %582 = vmatmul.bf16.gmra.mxu0 %v569
    %v583 = vpop.f32.mrf.mxu0
    %v584 = vadd.f32 0.0, %v583
    %v585 = vpop.f32.mrf.mxu0
    %586 = vdwg.mxu0
    %v587 = vmul.f32 %v584, 0.17677669
    %v588 = vsel %vm469, %v587, -inf
    %589 = vmax.xlane.f32.xlu0 %v588
    %v590 = vpop.xlane.xlu0 %589
    %v591 = vsub.f32 %v587, %v590
    %v592 = vmul.f32 %v591, 1.442695
    %v593 = vpow.pop %v592
    %v594 = vsel %vm469, %v593, 0.0
    %595 = vadd.xlane.f32.xlu0 %v594
    %v596 = vpop.xlane.xlu0 %595
    %v597 = vrcp.pop %v596
    %v598 = vmul.f32 %v593, %v597
    %v599 = vpack.c.bf16 %v598, %v598
    %600 = vrot.lane.b32.xlu0 %v542, 64
    %v601 = vpop.permute.xlu0 %600
    %v603 = vsel %vm469, %v599, 0
    %v606 = vsel %vm485, %v601, 0
    %608 = vmatpush.bf16.msra.mxu0 0
    %609 = vmatpush.bf16.msra.mxu0 0
    %610 = vmatpush.bf16.msra.mxu0 0
    %611 = vmatpush.bf16.msra.mxu0 0
    %612 = vmatpush.bf16.msra.mxu0 0
    %613 = vmatpush.bf16.msra.mxu0 0
    %614 = vmatpush.bf16.msra.mxu0 0
    %615 = vmatpush.bf16.msra.mxu0 %v606
    %616 = vmatmul.bf16.gmra.mxu0 %v603
    %v617 = vpop.f32.mrf.mxu0
    %v618 = vadd.f32 0.0, %v617
    %v619 = vpop.f32.mrf.mxu0
    %620 = vdwg.mxu0
    %621 = vrot.lane.b32.xlu0 %v503, 32
    %v622 = vpop.permute.xlu0 %621
    %623 = vrot.lane.b32.xlu0 %v447, 32
    %v624 = vpop.permute.xlu0 %623
    %v626 = vsel %vm448, %v622, 0
    %v629 = vsel %vm448, %v624, 0
    %631 = vmatpush.bf16.xpose.msra.mxu0 0
    %632 = vmatpush.bf16.xpose.msra.mxu0 0
    %633 = vmatpush.bf16.xpose.msra.mxu0 0
    %634 = vmatpush.bf16.xpose.msra.mxu0 0
    %635 = vmatpush.bf16.xpose.msra.mxu0 0
    %636 = vmatpush.bf16.xpose.msra.mxu0 0
    %637 = vmatpush.bf16.xpose.msra.mxu0 0
    %638 = vmatpush.bf16.xpose.msra.mxu0 %v629
    %639 = vmatmul.bf16.gmra.mxu0 %v626
    %v640 = vpop.f32.mrf.mxu0
    %v641 = vadd.f32 0.0, %v640
    %v642 = vpop.f32.mrf.mxu0
    %643 = vdwg.mxu0
    %v644 = vmul.f32 %v641, 0.17677669
    %v645 = vsel %vm469, %v644, -inf
    %646 = vmax.xlane.f32.xlu0 %v645
    %v647 = vpop.xlane.xlu0 %646
    %v648 = vsub.f32 %v644, %v647
    %v649 = vmul.f32 %v648, 1.442695
    %v650 = vpow.pop %v649
    %v651 = vsel %vm469, %v650, 0.0
    %652 = vadd.xlane.f32.xlu0 %v651
    %v653 = vpop.xlane.xlu0 %652
    %v654 = vrcp.pop %v653
    %v655 = vmul.f32 %v650, %v654
    %v656 = vpack.c.bf16 %v655, %v655
    %657 = vrot.lane.b32.xlu0 %v542, 32
    %v658 = vpop.permute.xlu0 %657
    %v660 = vsel %vm469, %v656, 0
    %v663 = vsel %vm485, %v658, 0
    %665 = vmatpush.bf16.msra.mxu0 0
    %666 = vmatpush.bf16.msra.mxu0 0
    %667 = vmatpush.bf16.msra.mxu0 0
    %668 = vmatpush.bf16.msra.mxu0 0
    %669 = vmatpush.bf16.msra.mxu0 0
    %670 = vmatpush.bf16.msra.mxu0 0
    %671 = vmatpush.bf16.msra.mxu0 0
    %672 = vmatpush.bf16.msra.mxu0 %v663
    %673 = vmatmul.bf16.gmra.mxu0 %v660
    %v674 = vpop.f32.mrf.mxu0
    %v675 = vadd.f32 0.0, %v674
    %v676 = vpop.f32.mrf.mxu0
    %677 = vdwg.mxu0
    %679 = vrot.lane.b32.xlu0 %v561, 32
    %v680 = vpop.permute.xlu0 %679
    %683 = vrot.lane.b32.xlu0 %v618, 64
    %v684 = vpop.permute.xlu0 %683
    %687 = vrot.lane.b32.xlu0 %v675, 96
    %v688 = vpop.permute.xlu0 %687
    %v690 = vsel %vm448, %v499, %v680
    %vm691 = vcmask 523264
    %v692 = vsel %vm691, %v690, %v684
    %vm693 = vcmask 785408
    %v694 = vsel %vm693, %v692, %v688
    %v696 = vunpack.c.h.b16 %v441
    %v697 = vpack.c.b16 %v696, %v696
    %v699 = vsel %vm448, %v441, 0
    %v702 = vsel %vm448, %v697, 0
    %704 = vmatpush.bf16.xpose.msra.mxu0 0
    %705 = vmatpush.bf16.xpose.msra.mxu0 0
    %706 = vmatpush.bf16.xpose.msra.mxu0 0
    %707 = vmatpush.bf16.xpose.msra.mxu0 0
    %708 = vmatpush.bf16.xpose.msra.mxu0 0
    %709 = vmatpush.bf16.xpose.msra.mxu0 0
    %710 = vmatpush.bf16.xpose.msra.mxu0 0
    %711 = vmatpush.bf16.xpose.msra.mxu0 %v702
    %712 = vmatmul.bf16.gmra.mxu0 %v699
    %v713 = vpop.f32.mrf.mxu0
    %v714 = vadd.f32 0.0, %v713
    %v715 = vpop.f32.mrf.mxu0
    %716 = vdwg.mxu0
    %v717 = vmul.f32 %v714, 0.17677669
    %v718 = vsel %vm469, %v717, -inf
    %719 = vmax.xlane.f32.xlu0 %v718
    %v720 = vpop.xlane.xlu0 %719
    %v721 = vsub.f32 %v717, %v720
    %v722 = vmul.f32 %v721, 1.442695
    %v723 = vpow.pop %v722
    %v724 = vsel %vm469, %v723, 0.0
    %725 = vadd.xlane.f32.xlu0 %v724
    %v726 = vpop.xlane.xlu0 %725
    %v727 = vrcp.pop %v726
    %v728 = vmul.f32 %v723, %v727
    %v729 = vpack.c.bf16 %v728, %v728
    %v731 = vsel %vm469, %v729, 0
    %v734 = vsel %vm485, %v442, 0
    %736 = vmatpush.bf16.msra.mxu0 0
    %737 = vmatpush.bf16.msra.mxu0 0
    %738 = vmatpush.bf16.msra.mxu0 0
    %739 = vmatpush.bf16.msra.mxu0 0
    %740 = vmatpush.bf16.msra.mxu0 0
    %741 = vmatpush.bf16.msra.mxu0 0
    %742 = vmatpush.bf16.msra.mxu0 0
    %743 = vmatpush.bf16.msra.mxu0 %v734
    %744 = vmatmul.bf16.gmra.mxu0 %v731
    %v745 = vpop.f32.mrf.mxu0
    %v746 = vadd.f32 0.0, %v745
    %v747 = vpop.f32.mrf.mxu0
    %748 = vdwg.mxu0
    %v749 = vunpack.c.l.b16 %v441
    %v750 = vpack.c.b16 %v749, %v749
    %751 = vrot.lane.b32.xlu0 %v750, 96
    %v752 = vpop.permute.xlu0 %751
    %753 = vrot.lane.b32.xlu0 %v697, 96
    %v754 = vpop.permute.xlu0 %753
    %v756 = vsel %vm448, %v752, 0
    %v759 = vsel %vm448, %v754, 0
    %761 = vmatpush.bf16.xpose.msra.mxu0 0
    %762 = vmatpush.bf16.xpose.msra.mxu0 0
    %763 = vmatpush.bf16.xpose.msra.mxu0 0
    %764 = vmatpush.bf16.xpose.msra.mxu0 0
    %765 = vmatpush.bf16.xpose.msra.mxu0 0
    %766 = vmatpush.bf16.xpose.msra.mxu0 0
    %767 = vmatpush.bf16.xpose.msra.mxu0 0
    %768 = vmatpush.bf16.xpose.msra.mxu0 %v759
    %769 = vmatmul.bf16.gmra.mxu0 %v756
    %v770 = vpop.f32.mrf.mxu0
    %v771 = vadd.f32 0.0, %v770
    %v772 = vpop.f32.mrf.mxu0
    %773 = vdwg.mxu0
    %v774 = vmul.f32 %v771, 0.17677669
    %v775 = vsel %vm469, %v774, -inf
    %776 = vmax.xlane.f32.xlu0 %v775
    %v777 = vpop.xlane.xlu0 %776
    %v778 = vsub.f32 %v774, %v777
    %v779 = vmul.f32 %v778, 1.442695
    %v780 = vpow.pop %v779
    %v781 = vsel %vm469, %v780, 0.0
    %782 = vadd.xlane.f32.xlu0 %v781
    %v783 = vpop.xlane.xlu0 %782
    %v784 = vrcp.pop %v783
    %v785 = vmul.f32 %v780, %v784
    %v786 = vpack.c.bf16 %v785, %v785
    %v788 = vunpack.c.l.b16 %v442
    %v789 = vpack.c.b16 %v788, %v788
    %790 = vrot.lane.b32.xlu0 %v789, 96
    %v791 = vpop.permute.xlu0 %790
    %v793 = vsel %vm469, %v786, 0
    %v796 = vsel %vm485, %v791, 0
    %798 = vmatpush.bf16.msra.mxu0 0
    %799 = vmatpush.bf16.msra.mxu0 0
    %800 = vmatpush.bf16.msra.mxu0 0
    %801 = vmatpush.bf16.msra.mxu0 0
    %802 = vmatpush.bf16.msra.mxu0 0
    %803 = vmatpush.bf16.msra.mxu0 0
    %804 = vmatpush.bf16.msra.mxu0 0
    %805 = vmatpush.bf16.msra.mxu0 %v796
    %806 = vmatmul.bf16.gmra.mxu0 %v793
    %v807 = vpop.f32.mrf.mxu0
    %v808 = vadd.f32 0.0, %v807
    %v809 = vpop.f32.mrf.mxu0
    %810 = vdwg.mxu0
    %811 = vrot.lane.b32.xlu0 %v750, 64
    %v812 = vpop.permute.xlu0 %811
    %813 = vrot.lane.b32.xlu0 %v697, 64
    %v814 = vpop.permute.xlu0 %813
    %v816 = vsel %vm448, %v812, 0
    %v819 = vsel %vm448, %v814, 0
    %821 = vmatpush.bf16.xpose.msra.mxu0 0
    %822 = vmatpush.bf16.xpose.msra.mxu0 0
    %823 = vmatpush.bf16.xpose.msra.mxu0 0
    %824 = vmatpush.bf16.xpose.msra.mxu0 0
    %825 = vmatpush.bf16.xpose.msra.mxu0 0
    %826 = vmatpush.bf16.xpose.msra.mxu0 0
    %827 = vmatpush.bf16.xpose.msra.mxu0 0
    %828 = vmatpush.bf16.xpose.msra.mxu0 %v819
    %829 = vmatmul.bf16.gmra.mxu0 %v816
    %v830 = vpop.f32.mrf.mxu0
    %v831 = vadd.f32 0.0, %v830
    %v832 = vpop.f32.mrf.mxu0
    %833 = vdwg.mxu0
    %v834 = vmul.f32 %v831, 0.17677669
    %v835 = vsel %vm469, %v834, -inf
    %836 = vmax.xlane.f32.xlu0 %v835
    %v837 = vpop.xlane.xlu0 %836
    %v838 = vsub.f32 %v834, %v837
    %v839 = vmul.f32 %v838, 1.442695
    %v840 = vpow.pop %v839
    %v841 = vsel %vm469, %v840, 0.0
    %842 = vadd.xlane.f32.xlu0 %v841
    %v843 = vpop.xlane.xlu0 %842
    %v844 = vrcp.pop %v843
    %v845 = vmul.f32 %v840, %v844
    %v846 = vpack.c.bf16 %v845, %v845
    %847 = vrot.lane.b32.xlu0 %v789, 64
    %v848 = vpop.permute.xlu0 %847
    %v850 = vsel %vm469, %v846, 0
    %v853 = vsel %vm485, %v848, 0
    %855 = vmatpush.bf16.msra.mxu0 0
    %856 = vmatpush.bf16.msra.mxu0 0
    %857 = vmatpush.bf16.msra.mxu0 0
    %858 = vmatpush.bf16.msra.mxu0 0
    %859 = vmatpush.bf16.msra.mxu0 0
    %860 = vmatpush.bf16.msra.mxu0 0
    %861 = vmatpush.bf16.msra.mxu0 0
    %862 = vmatpush.bf16.msra.mxu0 %v853
    %863 = vmatmul.bf16.gmra.mxu0 %v850
    %v864 = vpop.f32.mrf.mxu0
    %v865 = vadd.f32 0.0, %v864
    %v866 = vpop.f32.mrf.mxu0
    %867 = vdwg.mxu0
    %868 = vrot.lane.b32.xlu0 %v750, 32
    %v869 = vpop.permute.xlu0 %868
    %870 = vrot.lane.b32.xlu0 %v697, 32
    %v871 = vpop.permute.xlu0 %870
    %v873 = vsel %vm448, %v869, 0
    %v876 = vsel %vm448, %v871, 0
    %878 = vmatpush.bf16.xpose.msra.mxu0 0
    %879 = vmatpush.bf16.xpose.msra.mxu0 0
    %880 = vmatpush.bf16.xpose.msra.mxu0 0
    %881 = vmatpush.bf16.xpose.msra.mxu0 0
    %882 = vmatpush.bf16.xpose.msra.mxu0 0
    %883 = vmatpush.bf16.xpose.msra.mxu0 0
    %884 = vmatpush.bf16.xpose.msra.mxu0 0
    %885 = vmatpush.bf16.xpose.msra.mxu0 %v876
    %886 = vmatmul.bf16.gmra.mxu0 %v873
    %v887 = vpop.f32.mrf.mxu0
    %v888 = vadd.f32 0.0, %v887
    %v889 = vpop.f32.mrf.mxu0
    %890 = vdwg.mxu0
    %v891 = vmul.f32 %v888, 0.17677669
    %v892 = vsel %vm469, %v891, -inf
    %893 = vmax.xlane.f32.xlu0 %v892
    %v894 = vpop.xlane.xlu0 %893
    %v895 = vsub.f32 %v891, %v894
    %v896 = vmul.f32 %v895, 1.442695
    %v897 = vpow.pop %v896
    %v898 = vsel %vm469, %v897, 0.0
    %899 = vadd.xlane.f32.xlu0 %v898
    %v900 = vpop.xlane.xlu0 %899
    %v901 = vrcp.pop %v900
    %v902 = vmul.f32 %v897, %v901
    %v903 = vpack.c.bf16 %v902, %v902
    %904 = vrot.lane.b32.xlu0 %v789, 32
    %v905 = vpop.permute.xlu0 %904
    %v907 = vsel %vm469, %v903, 0
    %v910 = vsel %vm485, %v905, 0
    %912 = vmatpush.bf16.msra.mxu0 0
    %913 = vmatpush.bf16.msra.mxu0 0
    %914 = vmatpush.bf16.msra.mxu0 0
    %915 = vmatpush.bf16.msra.mxu0 0
    %916 = vmatpush.bf16.msra.mxu0 0
    %917 = vmatpush.bf16.msra.mxu0 0
    %918 = vmatpush.bf16.msra.mxu0 0
    %919 = vmatpush.bf16.msra.mxu0 %v910
    %920 = vmatmul.bf16.gmra.mxu0 %v907
    %v921 = vpop.f32.mrf.mxu0
    %v922 = vadd.f32 0.0, %v921
    %v923 = vpop.f32.mrf.mxu0
    %924 = vdwg.mxu0
    %926 = vrot.lane.b32.xlu0 %v808, 32
    %v927 = vpop.permute.xlu0 %926
    %930 = vrot.lane.b32.xlu0 %v865, 64
    %v931 = vpop.permute.xlu0 %930
    %934 = vrot.lane.b32.xlu0 %v922, 96
    %v935 = vpop.permute.xlu0 %934
    %v937 = vsel %vm448, %v746, %v927
    %v938 = vsel %vm691, %v937, %v931
    %v939 = vsel %vm693, %v938, %v935
    %v941 = vunpack.c.h.b16 %v443
    %v942 = vpack.c.b16 %v941, %v941
    %v944 = vsel %vm448, %v443, 0
    %v947 = vsel %vm448, %v942, 0
    %949 = vmatpush.bf16.xpose.msra.mxu0 0
    %950 = vmatpush.bf16.xpose.msra.mxu0 0
    %951 = vmatpush.bf16.xpose.msra.mxu0 0
    %952 = vmatpush.bf16.xpose.msra.mxu0 0
    %953 = vmatpush.bf16.xpose.msra.mxu0 0
    %954 = vmatpush.bf16.xpose.msra.mxu0 0
    %955 = vmatpush.bf16.xpose.msra.mxu0 0
    %956 = vmatpush.bf16.xpose.msra.mxu0 %v947
    %957 = vmatmul.bf16.gmra.mxu0 %v944
    %v958 = vpop.f32.mrf.mxu0
    %v959 = vadd.f32 0.0, %v958
    %v960 = vpop.f32.mrf.mxu0
    %961 = vdwg.mxu0
    %v962 = vmul.f32 %v959, 0.17677669
    %v963 = vsel %vm469, %v962, -inf
    %964 = vmax.xlane.f32.xlu0 %v963
    %v965 = vpop.xlane.xlu0 %964
    %v966 = vsub.f32 %v962, %v965
    %v967 = vmul.f32 %v966, 1.442695
    %v968 = vpow.pop %v967
    %v969 = vsel %vm469, %v968, 0.0
    %970 = vadd.xlane.f32.xlu0 %v969
    %v971 = vpop.xlane.xlu0 %970
    %v972 = vrcp.pop %v971
    %v973 = vmul.f32 %v968, %v972
    %v974 = vpack.c.bf16 %v973, %v973
    %v976 = vsel %vm469, %v974, 0
    %v979 = vsel %vm485, %v444, 0
    %981 = vmatpush.bf16.msra.mxu0 0
    %982 = vmatpush.bf16.msra.mxu0 0
    %983 = vmatpush.bf16.msra.mxu0 0
    %984 = vmatpush.bf16.msra.mxu0 0
    %985 = vmatpush.bf16.msra.mxu0 0
    %986 = vmatpush.bf16.msra.mxu0 0
    %987 = vmatpush.bf16.msra.mxu0 0
    %988 = vmatpush.bf16.msra.mxu0 %v979
    %989 = vmatmul.bf16.gmra.mxu0 %v976
    %v990 = vpop.f32.mrf.mxu0
    %v991 = vadd.f32 0.0, %v990
    %v992 = vpop.f32.mrf.mxu0
    %993 = vdwg.mxu0
    %v994 = vunpack.c.l.b16 %v443
    %v995 = vpack.c.b16 %v994, %v994
    %996 = vrot.lane.b32.xlu0 %v995, 96
    %v997 = vpop.permute.xlu0 %996
    %998 = vrot.lane.b32.xlu0 %v942, 96
    %v999 = vpop.permute.xlu0 %998
    %v1001 = vsel %vm448, %v997, 0
    %v1004 = vsel %vm448, %v999, 0
    %1006 = vmatpush.bf16.xpose.msra.mxu0 0
    %1007 = vmatpush.bf16.xpose.msra.mxu0 0
    %1008 = vmatpush.bf16.xpose.msra.mxu0 0
    %1009 = vmatpush.bf16.xpose.msra.mxu0 0
    %1010 = vmatpush.bf16.xpose.msra.mxu0 0
    %1011 = vmatpush.bf16.xpose.msra.mxu0 0
    %1012 = vmatpush.bf16.xpose.msra.mxu0 0
    %1013 = vmatpush.bf16.xpose.msra.mxu0 %v1004
    %1014 = vmatmul.bf16.gmra.mxu0 %v1001
    %v1015 = vpop.f32.mrf.mxu0
    %v1016 = vadd.f32 0.0, %v1015
    %v1017 = vpop.f32.mrf.mxu0
    %1018 = vdwg.mxu0
    %v1019 = vmul.f32 %v1016, 0.17677669
    %v1020 = vsel %vm469, %v1019, -inf
    %1021 = vmax.xlane.f32.xlu0 %v1020
    %v1022 = vpop.xlane.xlu0 %1021
    %v1023 = vsub.f32 %v1019, %v1022
    %v1024 = vmul.f32 %v1023, 1.442695
    %v1025 = vpow.pop %v1024
    %v1026 = vsel %vm469, %v1025, 0.0
    %1027 = vadd.xlane.f32.xlu0 %v1026
    %v1028 = vpop.xlane.xlu0 %1027
    %v1029 = vrcp.pop %v1028
    %v1030 = vmul.f32 %v1025, %v1029
    %v1031 = vpack.c.bf16 %v1030, %v1030
    %v1033 = vunpack.c.l.b16 %v444
    %v1034 = vpack.c.b16 %v1033, %v1033
    %1035 = vrot.lane.b32.xlu0 %v1034, 96
    %v1036 = vpop.permute.xlu0 %1035
    %v1038 = vsel %vm469, %v1031, 0
    %v1041 = vsel %vm485, %v1036, 0
    %1043 = vmatpush.bf16.msra.mxu0 0
    %1044 = vmatpush.bf16.msra.mxu0 0
    %1045 = vmatpush.bf16.msra.mxu0 0
    %1046 = vmatpush.bf16.msra.mxu0 0
    %1047 = vmatpush.bf16.msra.mxu0 0
    %1048 = vmatpush.bf16.msra.mxu0 0
    %1049 = vmatpush.bf16.msra.mxu0 0
    %1050 = vmatpush.bf16.msra.mxu0 %v1041
    %1051 = vmatmul.bf16.gmra.mxu0 %v1038
    %v1052 = vpop.f32.mrf.mxu0
    %v1053 = vadd.f32 0.0, %v1052
    %v1054 = vpop.f32.mrf.mxu0
    %1055 = vdwg.mxu0
    %1056 = vrot.lane.b32.xlu0 %v995, 64
    %v1057 = vpop.permute.xlu0 %1056
    %1058 = vrot.lane.b32.xlu0 %v942, 64
    %v1059 = vpop.permute.xlu0 %1058
    %v1061 = vsel %vm448, %v1057, 0
    %v1064 = vsel %vm448, %v1059, 0
    %1066 = vmatpush.bf16.xpose.msra.mxu0 0
    %1067 = vmatpush.bf16.xpose.msra.mxu0 0
    %1068 = vmatpush.bf16.xpose.msra.mxu0 0
    %1069 = vmatpush.bf16.xpose.msra.mxu0 0
    %1070 = vmatpush.bf16.xpose.msra.mxu0 0
    %1071 = vmatpush.bf16.xpose.msra.mxu0 0
    %1072 = vmatpush.bf16.xpose.msra.mxu0 0
    %1073 = vmatpush.bf16.xpose.msra.mxu0 %v1064
    %1074 = vmatmul.bf16.gmra.mxu0 %v1061
    %v1075 = vpop.f32.mrf.mxu0
    %v1076 = vadd.f32 0.0, %v1075
    %v1077 = vpop.f32.mrf.mxu0
    %1078 = vdwg.mxu0
    %v1079 = vmul.f32 %v1076, 0.17677669
    %v1080 = vsel %vm469, %v1079, -inf
    %1081 = vmax.xlane.f32.xlu0 %v1080
    %v1082 = vpop.xlane.xlu0 %1081
    %v1083 = vsub.f32 %v1079, %v1082
    %v1084 = vmul.f32 %v1083, 1.442695
    %v1085 = vpow.pop %v1084
    %v1086 = vsel %vm469, %v1085, 0.0
    %1087 = vadd.xlane.f32.xlu0 %v1086
    %v1088 = vpop.xlane.xlu0 %1087
    %v1089 = vrcp.pop %v1088
    %v1090 = vmul.f32 %v1085, %v1089
    %v1091 = vpack.c.bf16 %v1090, %v1090
    %1092 = vrot.lane.b32.xlu0 %v1034, 64
    %v1093 = vpop.permute.xlu0 %1092
    %v1095 = vsel %vm469, %v1091, 0
    %v1098 = vsel %vm485, %v1093, 0
    %1100 = vmatpush.bf16.msra.mxu0 0
    %1101 = vmatpush.bf16.msra.mxu0 0
    %1102 = vmatpush.bf16.msra.mxu0 0
    %1103 = vmatpush.bf16.msra.mxu0 0
    %1104 = vmatpush.bf16.msra.mxu0 0
    %1105 = vmatpush.bf16.msra.mxu0 0
    %1106 = vmatpush.bf16.msra.mxu0 0
    %1107 = vmatpush.bf16.msra.mxu0 %v1098
    %1108 = vmatmul.bf16.gmra.mxu0 %v1095
    %v1109 = vpop.f32.mrf.mxu0
    %v1110 = vadd.f32 0.0, %v1109
    %v1111 = vpop.f32.mrf.mxu0
    %1112 = vdwg.mxu0
    %1113 = vrot.lane.b32.xlu0 %v995, 32
    %v1114 = vpop.permute.xlu0 %1113
    %1115 = vrot.lane.b32.xlu0 %v942, 32
    %v1116 = vpop.permute.xlu0 %1115
    %v1118 = vsel %vm448, %v1114, 0
    %v1121 = vsel %vm448, %v1116, 0
    %1123 = vmatpush.bf16.xpose.msra.mxu0 0
    %1124 = vmatpush.bf16.xpose.msra.mxu0 0
    %1125 = vmatpush.bf16.xpose.msra.mxu0 0
    %1126 = vmatpush.bf16.xpose.msra.mxu0 0
    %1127 = vmatpush.bf16.xpose.msra.mxu0 0
    %1128 = vmatpush.bf16.xpose.msra.mxu0 0
    %1129 = vmatpush.bf16.xpose.msra.mxu0 0
    %1130 = vmatpush.bf16.xpose.msra.mxu0 %v1121
    %1131 = vmatmul.bf16.gmra.mxu0 %v1118
    %v1132 = vpop.f32.mrf.mxu0
    %v1133 = vadd.f32 0.0, %v1132
    %v1134 = vpop.f32.mrf.mxu0
    %1135 = vdwg.mxu0
    %v1136 = vmul.f32 %v1133, 0.17677669
    %v1137 = vsel %vm469, %v1136, -inf
    %1138 = vmax.xlane.f32.xlu0 %v1137
    %v1139 = vpop.xlane.xlu0 %1138
    %v1140 = vsub.f32 %v1136, %v1139
    %v1141 = vmul.f32 %v1140, 1.442695
    %v1142 = vpow.pop %v1141
    %v1143 = vsel %vm469, %v1142, 0.0
    %1144 = vadd.xlane.f32.xlu0 %v1143
    %v1145 = vpop.xlane.xlu0 %1144
    %v1146 = vrcp.pop %v1145
    %v1147 = vmul.f32 %v1142, %v1146
    %v1148 = vpack.c.bf16 %v1147, %v1147
    %1149 = vrot.lane.b32.xlu0 %v1034, 32
    %v1150 = vpop.permute.xlu0 %1149
    %v1152 = vsel %vm469, %v1148, 0
    %v1155 = vsel %vm485, %v1150, 0
    %1157 = vmatpush.bf16.msra.mxu0 0
    %1158 = vmatpush.bf16.msra.mxu0 0
    %1159 = vmatpush.bf16.msra.mxu0 0
    %1160 = vmatpush.bf16.msra.mxu0 0
    %1161 = vmatpush.bf16.msra.mxu0 0
    %1162 = vmatpush.bf16.msra.mxu0 0
    %1163 = vmatpush.bf16.msra.mxu0 0
    %1164 = vmatpush.bf16.msra.mxu0 %v1155
    %1165 = vmatmul.bf16.gmra.mxu0 %v1152
    %v1166 = vpop.f32.mrf.mxu0
    %v1167 = vadd.f32 0.0, %v1166
    %v1168 = vpop.f32.mrf.mxu0
    %1169 = vdwg.mxu0
    %1171 = vrot.lane.b32.xlu0 %v1053, 32
    %v1172 = vpop.permute.xlu0 %1171
    %1175 = vrot.lane.b32.xlu0 %v1110, 64
    %v1176 = vpop.permute.xlu0 %1175
    %1179 = vrot.lane.b32.xlu0 %v1167, 96
    %v1180 = vpop.permute.xlu0 %1179
    %v1182 = vsel %vm448, %v991, %v1172
    %v1183 = vsel %vm691, %v1182, %v1176
    %v1184 = vsel %vm693, %v1183, %v1180
    %v1185 = vpack.c.bf16 %v939, %v694
    %v1186 = vpack.c.bf16 %v1184, %v1184
    %v1187 = vld [vmem:[#allocation5] sm:$0xf]
    %v1188 = vld [vmem:[#allocation5 + $0x4] sm:$0xf]
    %v1189 = vld [vmem:[#allocation5 + $0x8] sm:$0xf]
    %v1190 = vld [vmem:[#allocation5 + $0xc] sm:$0xf]
    %v1191 = vld [vmem:[#allocation5 + $0x10] sm:$0xf]
    %v1192 = vld [vmem:[#allocation5 + $0x14] sm:$0xf]
    %v1193 = vld [vmem:[#allocation5 + $0x18] sm:$0xf]
    %v1194 = vld [vmem:[#allocation5 + $0x1c] sm:$0xf]
    %v1195 = vld [vmem:[#allocation5 + $0x20] sm:$0xf]
    %v1196 = vld [vmem:[#allocation5 + $0x24] sm:$0xf]
    %v1197 = vld [vmem:[#allocation5 + $0x28] sm:$0xf]
    %v1198 = vld [vmem:[#allocation5 + $0x2c] sm:$0xf]
    %v1199 = vld [vmem:[#allocation5 + $0x30] sm:$0xf]
    %v1200 = vld [vmem:[#allocation5 + $0x34] sm:$0xf]
    %v1201 = vld [vmem:[#allocation5 + $0x38] sm:$0xf]
    %v1202 = vld [vmem:[#allocation5 + $0x3c] sm:$0xf]
    %v1203 = vld [vmem:[%s8] sm:$0x1]
    %v1205 = vperm.slane %v1203, 0
    %v1223 = vunpack.c.l.b16 %v1187
    %v1224 = vunpack.c.l.b16 %v1188
    %v1225 = vunpack.c.l.b16 %v1189
    %v1226 = vunpack.c.l.b16 %v1190
    %v1227 = vunpack.c.l.b16 %v1191
    %v1228 = vunpack.c.l.b16 %v1192
    %v1229 = vunpack.c.l.b16 %v1193
    %v1230 = vunpack.c.l.b16 %v1194
    %v1231 = vunpack.c.l.b16 %v1195
    %v1232 = vunpack.c.l.b16 %v1196
    %v1233 = vunpack.c.l.b16 %v1197
    %v1234 = vunpack.c.l.b16 %v1198
    %v1235 = vunpack.c.l.b16 %v1199
    %v1236 = vunpack.c.l.b16 %v1200
    %v1237 = vunpack.c.l.b16 %v1201
    %v1238 = vunpack.c.l.b16 %v1202
    %v1239 = vpack.c.b16 %v1224, %v1223
    %v1240 = vpack.c.b16 %v1226, %v1225
    %v1241 = vpack.c.b16 %v1228, %v1227
    %v1242 = vpack.c.b16 %v1230, %v1229
    %v1243 = vpack.c.b16 %v1232, %v1231
    %v1244 = vpack.c.b16 %v1234, %v1233
    %v1245 = vpack.c.b16 %v1236, %v1235
    %v1246 = vpack.c.b16 %v1238, %v1237
    %1255 = vmatpush.bf16.msra.mxu0 %v1246
    %1256 = vmatpush.bf16.msra.mxu0 %v1245
    %1257 = vmatpush.bf16.msra.mxu0 %v1244
    %1258 = vmatpush.bf16.msra.mxu0 %v1243
    %1259 = vmatpush.bf16.msra.mxu0 %v1242
    %1260 = vmatpush.bf16.msra.mxu0 %v1241
    %1261 = vmatpush.bf16.msra.mxu0 %v1240
    %1262 = vmatpush.bf16.msra.mxu0 %v1239
    %1263 = vmatmul.bf16.gmra.mxu0 %v1185
    %v1264 = vpop.f32.mrf.mxu0
    %v1265 = vadd.f32 %v1205, %v1264
    %v1266 = vpop.f32.mrf.mxu0
    %v1267 = vadd.f32 %v1205, %v1266
    %1268 = vmatmul.bf16.gmra.mxu0 %v1186
    %v1269 = vpop.f32.mrf.mxu0
    %v1270 = vadd.f32 %v1205, %v1269
    %v1271 = vpop.f32.mrf.mxu0
    %1272 = vdwg.mxu0
    %v1273 = vadd.f32 %v212, %v1265
    %v1274 = vadd.f32 %v213, %v1267
    %v1275 = vadd.f32 %v214, %v1270
    %v1276 = vld [vmem:[%s9] sm:$0x1]
    %v1277 = vld [vmem:[%s10] sm:$0x1]
    %1278 = vadd.xlane.f32.xlu0 %v1273
    %v1279 = vpop.xlane.xlu0 %1278
    %1280 = vadd.xlane.f32.xlu0 %v1274
    %v1281 = vpop.xlane.xlu0 %1280
    %1282 = vadd.xlane.f32.xlu0 %v1275
    %v1283 = vpop.xlane.xlu0 %1282
    %v1284 = vmul.f32 %v1279, %v148
    %v1285 = vmul.f32 %v1281, %v148
    %v1286 = vmul.f32 %v1283, %v148
    %v1287 = vsub.f32 %v1273, %v1284
    %v1288 = vsub.f32 %v1274, %v1285
    %v1289 = vsub.f32 %v1275, %v1286
    %v1290 = vmul.f32 %v1287, %v1287
    %v1291 = vmul.f32 %v1288, %v1288
    %v1292 = vmul.f32 %v1289, %v1289
    %1293 = vadd.xlane.f32.xlu0 %v1290
    %v1294 = vpop.xlane.xlu0 %1293
    %1295 = vadd.xlane.f32.xlu0 %v1291
    %v1296 = vpop.xlane.xlu0 %1295
    %1297 = vadd.xlane.f32.xlu0 %v1292
    %v1298 = vpop.xlane.xlu0 %1297
    %v1299 = vmul.f32 %v1294, %v148
    %v1300 = vmul.f32 %v1296, %v148
    %v1301 = vmul.f32 %v1298, %v148
    %v1302 = vadd.f32 %v1299, 1e-05
    %v1303 = vadd.f32 %v1300, 1e-05
    %v1304 = vadd.f32 %v1301, 1e-05
    %v1305 = vrsqrt.pop %v1302
    %v1306 = vmul.f32 %v1305, %v1302
    %v1307 = vmul.f32 %v1306, %v1305
    %v1308 = vmul.f32 0.5, %v1307
    %v1309 = vsub.f32 1.5, %v1308
    %v1310 = vmul.f32 %v1305, %v1309
    %vm1311 = vweird.f32 %v1302
    %vm1312 = vweird.f32 %v1305
    %vm1313 = vmor %vm1311, %vm1312
    %v1314 = vsel %vm1313, %v1305, %v1310
    %v1315 = vrsqrt.pop %v1303
    %v1316 = vmul.f32 %v1315, %v1303
    %v1317 = vmul.f32 %v1316, %v1315
    %v1318 = vmul.f32 0.5, %v1317
    %v1319 = vsub.f32 1.5, %v1318
    %v1320 = vmul.f32 %v1315, %v1319
    %vm1321 = vweird.f32 %v1303
    %vm1322 = vweird.f32 %v1315
    %vm1323 = vmor %vm1321, %vm1322
    %v1324 = vsel %vm1323, %v1315, %v1320
    %v1325 = vrsqrt.pop %v1304
    %v1326 = vmul.f32 %v1325, %v1304
    %v1327 = vmul.f32 %v1326, %v1325
    %v1328 = vmul.f32 0.5, %v1327
    %v1329 = vsub.f32 1.5, %v1328
    %v1330 = vmul.f32 %v1325, %v1329
    %vm1331 = vweird.f32 %v1304
    %vm1332 = vweird.f32 %v1325
    %vm1333 = vmor %vm1331, %vm1332
    %v1334 = vsel %vm1333, %v1325, %v1330
    %v1335 = vmul.f32 %v1287, %v1314
    %v1336 = vmul.f32 %v1288, %v1324
    %v1337 = vmul.f32 %v1289, %v1334
    %v1339 = vperm.slane %v1276, 0
    %v1341 = vmul.f32 %v1335, %v1339
    %v1342 = vmul.f32 %v1336, %v1339
    %v1343 = vmul.f32 %v1337, %v1339
    %v1345 = vperm.slane %v1277, 0
    %v1347 = vadd.f32 %v1341, %v1345
    %v1348 = vadd.f32 %v1342, %v1345
    %v1349 = vadd.f32 %v1343, %v1345
    %v1350 = vpack.c.bf16 %v1348, %v1347
    %v1351 = vpack.c.bf16 %v1349, %v1349
    %v1352 = vld [vmem:[%s11] sm:$0xff]
    %v1353 = vld [vmem:[%s11 + $0x8] sm:$0xff]
    %v1354 = vld [vmem:[%s11 + $0x10] sm:$0xff]
    %v1355 = vld [vmem:[%s11 + $0x18] sm:$0xff]
    %v1356 = vld [vmem:[%s11 + $0x20] sm:$0xff]
    %v1357 = vld [vmem:[%s11 + $0x28] sm:$0xff]
    %v1358 = vld [vmem:[%s11 + $0x30] sm:$0xff]
    %v1359 = vld [vmem:[%s11 + $0x38] sm:$0xff]
    %v1360 = vld [vmem:[%s11 + $0x40] sm:$0xff]
    %v1361 = vld [vmem:[%s11 + $0x48] sm:$0xff]
    %v1362 = vld [vmem:[%s11 + $0x50] sm:$0xff]
    %v1363 = vld [vmem:[%s11 + $0x58] sm:$0xff]
    %v1364 = vld [vmem:[%s11 + $0x60] sm:$0xff]
    %v1365 = vld [vmem:[%s11 + $0x68] sm:$0xff]
    %v1366 = vld [vmem:[%s11 + $0x70] sm:$0xff]
    %v1367 = vld [vmem:[%s11 + $0x78] sm:$0xff]
    %v1368 = vld [vmem:[%s12] sm:$0x3]
    %v1370 = vperm.slane %v1368, 0
    %v1371 = vperm.slane %v1368, 1
    %v1390 = vunpack.c.l.b16 %v1352
    %v1391 = vunpack.c.h.b16 %v1352
    %v1392 = vunpack.c.l.b16 %v1353
    %v1393 = vunpack.c.h.b16 %v1353
    %v1394 = vunpack.c.l.b16 %v1354
    %v1395 = vunpack.c.h.b16 %v1354
    %v1396 = vunpack.c.l.b16 %v1355
    %v1397 = vunpack.c.h.b16 %v1355
    %v1398 = vunpack.c.l.b16 %v1356
    %v1399 = vunpack.c.h.b16 %v1356
    %v1400 = vunpack.c.l.b16 %v1357
    %v1401 = vunpack.c.h.b16 %v1357
    %v1402 = vunpack.c.l.b16 %v1358
    %v1403 = vunpack.c.h.b16 %v1358
    %v1404 = vunpack.c.l.b16 %v1359
    %v1405 = vunpack.c.h.b16 %v1359
    %v1406 = vunpack.c.l.b16 %v1360
    %v1407 = vunpack.c.h.b16 %v1360
    %v1408 = vunpack.c.l.b16 %v1361
    %v1409 = vunpack.c.h.b16 %v1361
    %v1410 = vunpack.c.l.b16 %v1362
    %v1411 = vunpack.c.h.b16 %v1362
    %v1412 = vunpack.c.l.b16 %v1363
    %v1413 = vunpack.c.h.b16 %v1363
    %v1414 = vunpack.c.l.b16 %v1364
    %v1415 = vunpack.c.h.b16 %v1364
    %v1416 = vunpack.c.l.b16 %v1365
    %v1417 = vunpack.c.h.b16 %v1365
    %v1418 = vunpack.c.l.b16 %v1366
    %v1419 = vunpack.c.h.b16 %v1366
    %v1420 = vunpack.c.l.b16 %v1367
    %v1421 = vunpack.c.h.b16 %v1367
    %v1422 = vpack.c.b16 %v1392, %v1390
    %v1423 = vpack.c.b16 %v1393, %v1391
    %v1424 = vpack.c.b16 %v1396, %v1394
    %v1425 = vpack.c.b16 %v1397, %v1395
    %v1426 = vpack.c.b16 %v1400, %v1398
    %v1427 = vpack.c.b16 %v1401, %v1399
    %v1428 = vpack.c.b16 %v1404, %v1402
    %v1429 = vpack.c.b16 %v1405, %v1403
    %v1430 = vpack.c.b16 %v1408, %v1406
    %v1431 = vpack.c.b16 %v1409, %v1407
    %v1432 = vpack.c.b16 %v1412, %v1410
    %v1433 = vpack.c.b16 %v1413, %v1411
    %v1434 = vpack.c.b16 %v1416, %v1414
    %v1435 = vpack.c.b16 %v1417, %v1415
    %v1436 = vpack.c.b16 %v1420, %v1418
    %v1437 = vpack.c.b16 %v1421, %v1419
    %1454 = vmatpush.bf16.msra.mxu0 %v1436
    %1455 = vmatpush.bf16.msra.mxu0 %v1434
    %1456 = vmatpush.bf16.msra.mxu0 %v1432
    %1457 = vmatpush.bf16.msra.mxu0 %v1430
    %1458 = vmatpush.bf16.msra.mxu0 %v1428
    %1459 = vmatpush.bf16.msra.mxu0 %v1426
    %1460 = vmatpush.bf16.msra.mxu0 %v1424
    %1461 = vmatpush.bf16.msra.mxu0 %v1422
    %1462 = vmatmul.bf16.gmra.mxu0 %v1350
    %v1463 = vpop.f32.mrf.mxu0
    %v1464 = vadd.f32 %v1370, %v1463
    %v1465 = vpop.f32.mrf.mxu0
    %v1466 = vadd.f32 %v1370, %v1465
    %1467 = vmatmul.bf16.gmra.mxu0 %v1351
    %v1468 = vpop.f32.mrf.mxu0
    %v1469 = vadd.f32 %v1370, %v1468
    %v1470 = vpop.f32.mrf.mxu0
    %1471 = vdwg.mxu0
    %1472 = vmatpush.bf16.msra.mxu0 %v1437
    %1473 = vmatpush.bf16.msra.mxu0 %v1435
    %1474 = vmatpush.bf16.msra.mxu0 %v1433
    %1475 = vmatpush.bf16.msra.mxu0 %v1431
    %1476 = vmatpush.bf16.msra.mxu0 %v1429
    %1477 = vmatpush.bf16.msra.mxu0 %v1427
    %1478 = vmatpush.bf16.msra.mxu0 %v1425
    %1479 = vmatpush.bf16.msra.mxu0 %v1423
    %1480 = vmatmul.bf16.gmra.mxu0 %v1350
    %v1481 = vpop.f32.mrf.mxu0
    %v1482 = vadd.f32 %v1371, %v1481
    %v1483 = vpop.f32.mrf.mxu0
    %v1484 = vadd.f32 %v1371, %v1483
    %1485 = vmatmul.bf16.gmra.mxu0 %v1351
    %v1486 = vpop.f32.mrf.mxu0
    %v1487 = vadd.f32 %v1371, %v1486
    %v1488 = vpop.f32.mrf.mxu0
    %1489 = vdwg.mxu0
    %v1490 = vmul.f32 %v1464, %v1464
    %v1491 = vmul.f32 %v1482, %v1482
    %v1492 = vmul.f32 %v1466, %v1466
    %v1493 = vmul.f32 %v1484, %v1484
    %v1494 = vmul.f32 %v1469, %v1469
    %v1495 = vmul.f32 %v1487, %v1487
    %v1496 = vmul.f32 %v1464, %v1490
    %v1497 = vmul.f32 %v1482, %v1491
    %v1498 = vmul.f32 %v1466, %v1492
    %v1499 = vmul.f32 %v1484, %v1493
    %v1500 = vmul.f32 %v1469, %v1494
    %v1501 = vmul.f32 %v1487, %v1495
    %v1502 = vmul.f32 %v1496, 0.044715
    %v1503 = vmul.f32 %v1497, 0.044715
    %v1504 = vmul.f32 %v1498, 0.044715
    %v1505 = vmul.f32 %v1499, 0.044715
    %v1506 = vmul.f32 %v1500, 0.044715
    %v1507 = vmul.f32 %v1501, 0.044715
    %v1508 = vadd.f32 %v1464, %v1502
    %v1509 = vadd.f32 %v1482, %v1503
    %v1510 = vadd.f32 %v1466, %v1504
    %v1511 = vadd.f32 %v1484, %v1505
    %v1512 = vadd.f32 %v1469, %v1506
    %v1513 = vadd.f32 %v1487, %v1507
    %v1514 = vmul.f32 %v1508, 0.7978846
    %v1515 = vmul.f32 %v1509, 0.7978846
    %v1516 = vmul.f32 %v1510, 0.7978846
    %v1517 = vmul.f32 %v1511, 0.7978846
    %v1518 = vmul.f32 %v1512, 0.7978846
    %v1519 = vmul.f32 %v1513, 0.7978846
    %v1520 = vtanh.pop %v1514
    %v1521 = vtanh.pop %v1515
    %v1522 = vtanh.pop %v1516
    %v1523 = vtanh.pop %v1517
    %v1524 = vtanh.pop %v1518
    %v1525 = vtanh.pop %v1519
    %v1526 = vadd.f32 %v1520, 1.0
    %v1527 = vadd.f32 %v1521, 1.0
    %v1528 = vadd.f32 %v1522, 1.0
    %v1529 = vadd.f32 %v1523, 1.0
    %v1530 = vadd.f32 %v1524, 1.0
    %v1531 = vadd.f32 %v1525, 1.0
    %v1532 = vmul.f32 %v1526, 0.5
    %v1533 = vmul.f32 %v1527, 0.5
    %v1534 = vmul.f32 %v1528, 0.5
    %v1535 = vmul.f32 %v1529, 0.5
    %v1536 = vmul.f32 %v1530, 0.5
    %v1537 = vmul.f32 %v1531, 0.5
    %v1538 = vmul.f32 %v1464, %v1532
    %v1539 = vmul.f32 %v1482, %v1533
    %v1540 = vmul.f32 %v1466, %v1534
    %v1541 = vmul.f32 %v1484, %v1535
    %v1542 = vmul.f32 %v1469, %v1536
    %v1543 = vmul.f32 %v1487, %v1537
    %v1544 = vpack.c.bf16 %v1540, %v1538
    %v1545 = vpack.c.bf16 %v1541, %v1539
    %v1546 = vpack.c.bf16 %v1542, %v1542
    %v1547 = vpack.c.bf16 %v1543, %v1543
    %v1548 = vld [vmem:[#allocation7] sm:$0xf]
    %v1549 = vld [vmem:[#allocation7 + $0x4] sm:$0xf]
    %v1550 = vld [vmem:[#allocation7 + $0x8] sm:$0xf]
    %v1551 = vld [vmem:[#allocation7 + $0xc] sm:$0xf]
    %v1552 = vld [vmem:[#allocation7 + $0x10] sm:$0xf]
    %v1553 = vld [vmem:[#allocation7 + $0x14] sm:$0xf]
    %v1554 = vld [vmem:[#allocation7 + $0x18] sm:$0xf]
    %v1555 = vld [vmem:[#allocation7 + $0x1c] sm:$0xf]
    %v1556 = vld [vmem:[#allocation7 + $0x20] sm:$0xf]
    %v1557 = vld [vmem:[#allocation7 + $0x24] sm:$0xf]
    %v1558 = vld [vmem:[#allocation7 + $0x28] sm:$0xf]
    %v1559 = vld [vmem:[#allocation7 + $0x2c] sm:$0xf]
    %v1560 = vld [vmem:[#allocation7 + $0x30] sm:$0xf]
    %v1561 = vld [vmem:[#allocation7 + $0x34] sm:$0xf]
    %v1562 = vld [vmem:[#allocation7 + $0x38] sm:$0xf]
    %v1563 = vld [vmem:[#allocation7 + $0x3c] sm:$0xf]
    %v1564 = vld [vmem:[#allocation7 + $0x40] sm:$0xf]
    %v1565 = vld [vmem:[#allocation7 + $0x44] sm:$0xf]
    %v1566 = vld [vmem:[#allocation7 + $0x48] sm:$0xf]
    %v1567 = vld [vmem:[#allocation7 + $0x4c] sm:$0xf]
    %v1568 = vld [vmem:[#allocation7 + $0x50] sm:$0xf]
    %v1569 = vld [vmem:[#allocation7 + $0x54] sm:$0xf]
    %v1570 = vld [vmem:[#allocation7 + $0x58] sm:$0xf]
    %v1571 = vld [vmem:[#allocation7 + $0x5c] sm:$0xf]
    %v1572 = vld [vmem:[#allocation7 + $0x60] sm:$0xf]
    %v1573 = vld [vmem:[#allocation7 + $0x64] sm:$0xf]
    %v1574 = vld [vmem:[#allocation7 + $0x68] sm:$0xf]
    %v1575 = vld [vmem:[#allocation7 + $0x6c] sm:$0xf]
    %v1576 = vld [vmem:[#allocation7 + $0x70] sm:$0xf]
    %v1577 = vld [vmem:[#allocation7 + $0x74] sm:$0xf]
    %v1578 = vld [vmem:[#allocation7 + $0x78] sm:$0xf]
    %v1579 = vld [vmem:[#allocation7 + $0x7c] sm:$0xf]
    %v1580 = vld [vmem:[%s14] sm:$0x1]
    %v1582 = vperm.slane %v1580, 0
    %v1616 = vunpack.c.l.b16 %v1548
    %v1617 = vunpack.c.l.b16 %v1549
    %v1618 = vunpack.c.l.b16 %v1550
    %v1619 = vunpack.c.l.b16 %v1551
    %v1620 = vunpack.c.l.b16 %v1552
    %v1621 = vunpack.c.l.b16 %v1553
    %v1622 = vunpack.c.l.b16 %v1554
    %v1623 = vunpack.c.l.b16 %v1555
    %v1624 = vunpack.c.l.b16 %v1556
    %v1625 = vunpack.c.l.b16 %v1557
    %v1626 = vunpack.c.l.b16 %v1558
    %v1627 = vunpack.c.l.b16 %v1559
    %v1628 = vunpack.c.l.b16 %v1560
    %v1629 = vunpack.c.l.b16 %v1561
    %v1630 = vunpack.c.l.b16 %v1562
    %v1631 = vunpack.c.l.b16 %v1563
    %v1632 = vunpack.c.l.b16 %v1564
    %v1633 = vunpack.c.l.b16 %v1565
    %v1634 = vunpack.c.l.b16 %v1566
    %v1635 = vunpack.c.l.b16 %v1567
    %v1636 = vunpack.c.l.b16 %v1568
    %v1637 = vunpack.c.l.b16 %v1569
    %v1638 = vunpack.c.l.b16 %v1570
    %v1639 = vunpack.c.l.b16 %v1571
    %v1640 = vunpack.c.l.b16 %v1572
    %v1641 = vunpack.c.l.b16 %v1573
    %v1642 = vunpack.c.l.b16 %v1574
    %v1643 = vunpack.c.l.b16 %v1575
    %v1644 = vunpack.c.l.b16 %v1576
    %v1645 = vunpack.c.l.b16 %v1577
    %v1646 = vunpack.c.l.b16 %v1578
    %v1647 = vunpack.c.l.b16 %v1579
    %v1648 = vpack.c.b16 %v1617, %v1616
    %v1649 = vpack.c.b16 %v1619, %v1618
    %v1650 = vpack.c.b16 %v1621, %v1620
    %v1651 = vpack.c.b16 %v1623, %v1622
    %v1652 = vpack.c.b16 %v1625, %v1624
    %v1653 = vpack.c.b16 %v1627, %v1626
    %v1654 = vpack.c.b16 %v1629, %v1628
    %v1655 = vpack.c.b16 %v1631, %v1630
    %v1656 = vpack.c.b16 %v1633, %v1632
    %v1657 = vpack.c.b16 %v1635, %v1634
    %v1658 = vpack.c.b16 %v1637, %v1636
    %v1659 = vpack.c.b16 %v1639, %v1638
    %v1660 = vpack.c.b16 %v1641, %v1640
    %v1661 = vpack.c.b16 %v1643, %v1642
    %v1662 = vpack.c.b16 %v1645, %v1644
    %v1663 = vpack.c.b16 %v1647, %v1646
    %1680 = vmatpush.bf16.msra.mxu0 %v1655
    %1681 = vmatpush.bf16.msra.mxu0 %v1654
    %1682 = vmatpush.bf16.msra.mxu0 %v1653
    %1683 = vmatpush.bf16.msra.mxu0 %v1652
    %1684 = vmatpush.bf16.msra.mxu0 %v1651
    %1685 = vmatpush.bf16.msra.mxu0 %v1650
    %1686 = vmatpush.bf16.msra.mxu0 %v1649
    %1687 = vmatpush.bf16.msra.mxu0 %v1648
    %1688 = vmatmul.bf16.gmra.mxu0 %v1544
    %v1689 = vpop.f32.mrf.mxu0
    %v1690 = vadd.f32 %v1582, %v1689
    %v1691 = vpop.f32.mrf.mxu0
    %v1692 = vadd.f32 %v1582, %v1691
    %1693 = vmatmul.bf16.gmra.mxu0 %v1546
    %v1694 = vpop.f32.mrf.mxu0
    %v1695 = vadd.f32 %v1582, %v1694
    %v1696 = vpop.f32.mrf.mxu0
    %1697 = vdwg.mxu0
    %1698 = vmatpush.bf16.msra.mxu0 %v1663
    %1699 = vmatpush.bf16.msra.mxu0 %v1662
    %1700 = vmatpush.bf16.msra.mxu0 %v1661
    %1701 = vmatpush.bf16.msra.mxu0 %v1660
    %1702 = vmatpush.bf16.msra.mxu0 %v1659
    %1703 = vmatpush.bf16.msra.mxu0 %v1658
    %1704 = vmatpush.bf16.msra.mxu0 %v1657
    %1705 = vmatpush.bf16.msra.mxu0 %v1656
    %1706 = vmatmul.bf16.gmra.mxu0 %v1545
    %v1707 = vpop.f32.mrf.mxu0
    %v1708 = vadd.f32 %v1690, %v1707
    %v1709 = vpop.f32.mrf.mxu0
    %v1710 = vadd.f32 %v1692, %v1709
    %1711 = vmatmul.bf16.gmra.mxu0 %v1547
    %v1712 = vpop.f32.mrf.mxu0
    %v1713 = vadd.f32 %v1695, %v1712
    %v1714 = vpop.f32.mrf.mxu0
    %1715 = vdwg.mxu0
    %v1716 = vadd.f32 %v1347, %v1708
    %v1717 = vadd.f32 %v1348, %v1710
    %v1718 = vadd.f32 %v1349, %v1713
    %v1719 = vld [vmem:[%s15] sm:$0x1]
    %v1720 = vld [vmem:[%s16] sm:$0x1]
    %1721 = vadd.xlane.f32.xlu0 %v1716
    %v1722 = vpop.xlane.xlu0 %1721
    %1723 = vadd.xlane.f32.xlu0 %v1717
    %v1724 = vpop.xlane.xlu0 %1723
    %1725 = vadd.xlane.f32.xlu0 %v1718
    %v1726 = vpop.xlane.xlu0 %1725
    %v1727 = vmul.f32 %v1722, %v148
    %v1728 = vmul.f32 %v1724, %v148
    %v1729 = vmul.f32 %v1726, %v148
    %v1730 = vsub.f32 %v1716, %v1727
    %v1731 = vsub.f32 %v1717, %v1728
    %v1732 = vsub.f32 %v1718, %v1729
    %v1733 = vmul.f32 %v1730, %v1730
    %v1734 = vmul.f32 %v1731, %v1731
    %v1735 = vmul.f32 %v1732, %v1732
    %1736 = vadd.xlane.f32.xlu0 %v1733
    %v1737 = vpop.xlane.xlu0 %1736
    %1738 = vadd.xlane.f32.xlu0 %v1734
    %v1739 = vpop.xlane.xlu0 %1738
    %1740 = vadd.xlane.f32.xlu0 %v1735
    %v1741 = vpop.xlane.xlu0 %1740
    %v1742 = vmul.f32 %v1737, %v148
    %v1743 = vmul.f32 %v1739, %v148
    %v1744 = vmul.f32 %v1741, %v148
    %v1745 = vadd.f32 %v1742, 1e-05
    %v1746 = vadd.f32 %v1743, 1e-05
    %v1747 = vadd.f32 %v1744, 1e-05
    %v1748 = vrsqrt.pop %v1745
    %v1749 = vmul.f32 %v1748, %v1745
    %v1750 = vmul.f32 %v1749, %v1748
    %v1751 = vmul.f32 0.5, %v1750
    %v1752 = vsub.f32 1.5, %v1751
    %v1753 = vmul.f32 %v1748, %v1752
    %vm1754 = vweird.f32 %v1745
    %vm1755 = vweird.f32 %v1748
    %vm1756 = vmor %vm1754, %vm1755
    %v1757 = vsel %vm1756, %v1748, %v1753
    %v1758 = vrsqrt.pop %v1746
    %v1759 = vmul.f32 %v1758, %v1746
    %v1760 = vmul.f32 %v1759, %v1758
    %v1761 = vmul.f32 0.5, %v1760
    %v1762 = vsub.f32 1.5, %v1761
    %v1763 = vmul.f32 %v1758, %v1762
    %vm1764 = vweird.f32 %v1746
    %vm1765 = vweird.f32 %v1758
    %vm1766 = vmor %vm1764, %vm1765
    %v1767 = vsel %vm1766, %v1758, %v1763
    %v1768 = vrsqrt.pop %v1747
    %v1769 = vmul.f32 %v1768, %v1747
    %v1770 = vmul.f32 %v1769, %v1768
    %v1771 = vmul.f32 0.5, %v1770
    %v1772 = vsub.f32 1.5, %v1771
    %v1773 = vmul.f32 %v1768, %v1772
    %vm1774 = vweird.f32 %v1747
    %vm1775 = vweird.f32 %v1768
    %vm1776 = vmor %vm1774, %vm1775
    %v1777 = vsel %vm1776, %v1768, %v1773
    %v1778 = vmul.f32 %v1730, %v1757
    %v1779 = vmul.f32 %v1731, %v1767
    %v1780 = vmul.f32 %v1732, %v1777
    %v1782 = vperm.slane %v1719, 0
    %v1784 = vmul.f32 %v1778, %v1782
    %v1785 = vmul.f32 %v1779, %v1782
    %v1786 = vmul.f32 %v1780, %v1782
    %v1788 = vperm.slane %v1720, 0
    %v1790 = vadd.f32 %v1784, %v1788
    %v1791 = vadd.f32 %v1785, %v1788
    %v1792 = vadd.f32 %v1786, %v1788
    %v1793 = vpack.c.bf16 %v1791, %v1790
    %v1794 = vpack.c.bf16 %v1792, %v1792
    %s1795 = scalar_lea.vmem [#allocation2], 192
    %v1796 = vld [vmem:[%s1795] sm:$0xff]
    %v1797 = vld [vmem:[%s1795 + $0x8] sm:$0xf]
    %v1798 = vld [vmem:[%s1795 + $0xc] sm:$0xff]
    %v1799 = vld [vmem:[%s1795 + $0x14] sm:$0xf]
    %v1800 = vld [vmem:[%s1795 + $0x18] sm:$0xff]
    %v1801 = vld [vmem:[%s1795 + $0x20] sm:$0xf]
    %v1802 = vld [vmem:[%s1795 + $0x24] sm:$0xff]
    %v1803 = vld [vmem:[%s1795 + $0x2c] sm:$0xf]
    %v1804 = vld [vmem:[%s1795 + $0x30] sm:$0xff]
    %v1805 = vld [vmem:[%s1795 + $0x38] sm:$0xf]
    %v1806 = vld [vmem:[%s1795 + $0x3c] sm:$0xff]
    %v1807 = vld [vmem:[%s1795 + $0x44] sm:$0xf]
    %v1808 = vld [vmem:[%s1795 + $0x48] sm:$0xff]
    %v1809 = vld [vmem:[%s1795 + $0x50] sm:$0xf]
    %v1810 = vld [vmem:[%s1795 + $0x54] sm:$0xff]
    %v1811 = vld [vmem:[%s1795 + $0x5c] sm:$0xf]
    %v1812 = vld [vmem:[%s1795 + $0x60] sm:$0xff]
    %v1813 = vld [vmem:[%s1795 + $0x68] sm:$0xf]
    %v1814 = vld [vmem:[%s1795 + $0x6c] sm:$0xff]
    %v1815 = vld [vmem:[%s1795 + $0x74] sm:$0xf]
    %v1816 = vld [vmem:[%s1795 + $0x78] sm:$0xff]
    %v1817 = vld [vmem:[%s1795 + $0x80] sm:$0xf]
    %v1818 = vld [vmem:[%s1795 + $0x84] sm:$0xff]
    %v1819 = vld [vmem:[%s1795 + $0x8c] sm:$0xf]
    %v1820 = vld [vmem:[%s1795 + $0x90] sm:$0xff]
    %v1821 = vld [vmem:[%s1795 + $0x98] sm:$0xf]
    %v1822 = vld [vmem:[%s1795 + $0x9c] sm:$0xff]
    %v1823 = vld [vmem:[%s1795 + $0xa4] sm:$0xf]
    %v1824 = vld [vmem:[%s1795 + $0xa8] sm:$0xff]
    %v1825 = vld [vmem:[%s1795 + $0xb0] sm:$0xf]
    %v1826 = vld [vmem:[%s1795 + $0xb4] sm:$0xff]
    %v1827 = vld [vmem:[%s1795 + $0xbc] sm:$0xf]
    %s1828 = scalar_lea.vmem %s6, 3
    %v1829 = vld [vmem:[%s1828] sm:$0x7]
    %v1831 = vperm.slane %v1829, 0
    %v1832 = vperm.slane %v1829, 1
    %v1833 = vperm.slane %v1829, 2
    %v1869 = vunpack.c.l.b16 %v1796
    %v1870 = vunpack.c.h.b16 %v1796
    %v1871 = vunpack.c.l.b16 %v1797
    %v1872 = vunpack.c.l.b16 %v1798
    %v1873 = vunpack.c.h.b16 %v1798
    %v1874 = vunpack.c.l.b16 %v1799
    %v1875 = vunpack.c.l.b16 %v1800
    %v1876 = vunpack.c.h.b16 %v1800
    %v1877 = vunpack.c.l.b16 %v1801
    %v1878 = vunpack.c.l.b16 %v1802
    %v1879 = vunpack.c.h.b16 %v1802
    %v1880 = vunpack.c.l.b16 %v1803
    %v1881 = vunpack.c.l.b16 %v1804
    %v1882 = vunpack.c.h.b16 %v1804
    %v1883 = vunpack.c.l.b16 %v1805
    %v1884 = vunpack.c.l.b16 %v1806
    %v1885 = vunpack.c.h.b16 %v1806
    %v1886 = vunpack.c.l.b16 %v1807
    %v1887 = vunpack.c.l.b16 %v1808
    %v1888 = vunpack.c.h.b16 %v1808
    %v1889 = vunpack.c.l.b16 %v1809
    %v1890 = vunpack.c.l.b16 %v1810
    %v1891 = vunpack.c.h.b16 %v1810
    %v1892 = vunpack.c.l.b16 %v1811
    %v1893 = vunpack.c.l.b16 %v1812
    %v1894 = vunpack.c.h.b16 %v1812
    %v1895 = vunpack.c.l.b16 %v1813
    %v1896 = vunpack.c.l.b16 %v1814
    %v1897 = vunpack.c.h.b16 %v1814
    %v1898 = vunpack.c.l.b16 %v1815
    %v1899 = vunpack.c.l.b16 %v1816
    %v1900 = vunpack.c.h.b16 %v1816
    %v1901 = vunpack.c.l.b16 %v1817
    %v1902 = vunpack.c.l.b16 %v1818
    %v1903 = vunpack.c.h.b16 %v1818
    %v1904 = vunpack.c.l.b16 %v1819
    %v1905 = vunpack.c.l.b16 %v1820
    %v1906 = vunpack.c.h.b16 %v1820
    %v1907 = vunpack.c.l.b16 %v1821
    %v1908 = vunpack.c.l.b16 %v1822
    %v1909 = vunpack.c.h.b16 %v1822
    %v1910 = vunpack.c.l.b16 %v1823
    %v1911 = vunpack.c.l.b16 %v1824
    %v1912 = vunpack.c.h.b16 %v1824
    %v1913 = vunpack.c.l.b16 %v1825
    %v1914 = vunpack.c.l.b16 %v1826
    %v1915 = vunpack.c.h.b16 %v1826
    %v1916 = vunpack.c.l.b16 %v1827
    %v1917 = vpack.c.b16 %v1872, %v1869
    %v1918 = vpack.c.b16 %v1873, %v1870
    %v1919 = vpack.c.b16 %v1874, %v1871
    %v1920 = vpack.c.b16 %v1878, %v1875
    %v1921 = vpack.c.b16 %v1879, %v1876
    %v1922 = vpack.c.b16 %v1880, %v1877
    %v1923 = vpack.c.b16 %v1884, %v1881
    %v1924 = vpack.c.b16 %v1885, %v1882
    %v1925 = vpack.c.b16 %v1886, %v1883
    %v1926 = vpack.c.b16 %v1890, %v1887
    %v1927 = vpack.c.b16 %v1891, %v1888
    %v1928 = vpack.c.b16 %v1892, %v1889
    %v1929 = vpack.c.b16 %v1896, %v1893
    %v1930 = vpack.c.b16 %v1897, %v1894
    %v1931 = vpack.c.b16 %v1898, %v1895
    %v1932 = vpack.c.b16 %v1902, %v1899
    %v1933 = vpack.c.b16 %v1903, %v1900
    %v1934 = vpack.c.b16 %v1904, %v1901
    %v1935 = vpack.c.b16 %v1908, %v1905
    %v1936 = vpack.c.b16 %v1909, %v1906
    %v1937 = vpack.c.b16 %v1910, %v1907
    %v1938 = vpack.c.b16 %v1914, %v1911
    %v1939 = vpack.c.b16 %v1915, %v1912
    %v1940 = vpack.c.b16 %v1916, %v1913
    %1965 = vmatpush.bf16.msra.mxu0 %v1938
    %1966 = vmatpush.bf16.msra.mxu0 %v1935
    %1967 = vmatpush.bf16.msra.mxu0 %v1932
    %1968 = vmatpush.bf16.msra.mxu0 %v1929
    %1969 = vmatpush.bf16.msra.mxu0 %v1926
    %1970 = vmatpush.bf16.msra.mxu0 %v1923
    %1971 = vmatpush.bf16.msra.mxu0 %v1920
    %1972 = vmatpush.bf16.msra.mxu0 %v1917
    %1973 = vmatmul.bf16.gmra.mxu0 %v1793
    %v1974 = vpop.f32.mrf.mxu0
    %v1975 = vadd.f32 %v1831, %v1974
    %v1976 = vpop.f32.mrf.mxu0
    %v1977 = vadd.f32 %v1831, %v1976
    %1978 = vmatmul.bf16.gmra.mxu0 %v1794
    %v1979 = vpop.f32.mrf.mxu0
    %v1980 = vadd.f32 %v1831, %v1979
    %v1981 = vpop.f32.mrf.mxu0
    %1982 = vdwg.mxu0
    %1983 = vmatpush.bf16.msra.mxu0 %v1939
    %1984 = vmatpush.bf16.msra.mxu0 %v1936
    %1985 = vmatpush.bf16.msra.mxu0 %v1933
    %1986 = vmatpush.bf16.msra.mxu0 %v1930
    %1987 = vmatpush.bf16.msra.mxu0 %v1927
    %1988 = vmatpush.bf16.msra.mxu0 %v1924
    %1989 = vmatpush.bf16.msra.mxu0 %v1921
    %1990 = vmatpush.bf16.msra.mxu0 %v1918
    %1991 = vmatmul.bf16.gmra.mxu0 %v1793
    %v1992 = vpop.f32.mrf.mxu0
    %v1993 = vadd.f32 %v1832, %v1992
    %v1994 = vpop.f32.mrf.mxu0
    %v1995 = vadd.f32 %v1832, %v1994
    %1996 = vmatmul.bf16.gmra.mxu0 %v1794
    %v1997 = vpop.f32.mrf.mxu0
    %v1998 = vadd.f32 %v1832, %v1997
    %v1999 = vpop.f32.mrf.mxu0
    %2000 = vdwg.mxu0
    %2001 = vmatpush.bf16.msra.mxu0 %v1940
    %2002 = vmatpush.bf16.msra.mxu0 %v1937
    %2003 = vmatpush.bf16.msra.mxu0 %v1934
    %2004 = vmatpush.bf16.msra.mxu0 %v1931
    %2005 = vmatpush.bf16.msra.mxu0 %v1928
    %2006 = vmatpush.bf16.msra.mxu0 %v1925
    %2007 = vmatpush.bf16.msra.mxu0 %v1922
    %2008 = vmatpush.bf16.msra.mxu0 %v1919
    %2009 = vmatmul.bf16.gmra.mxu0 %v1793
    %v2010 = vpop.f32.mrf.mxu0
    %v2011 = vadd.f32 %v1833, %v2010
    %v2012 = vpop.f32.mrf.mxu0
    %v2013 = vadd.f32 %v1833, %v2012
    %2014 = vmatmul.bf16.gmra.mxu0 %v1794
    %v2015 = vpop.f32.mrf.mxu0
    %v2016 = vadd.f32 %v1833, %v2015
    %v2017 = vpop.f32.mrf.mxu0
    %2018 = vdwg.mxu0
    %v2019 = vpack.c.bf16 %v1993, %v1975
    %v2020 = vpack.c.bf16 %v2011, %v2011
    %v2021 = vpack.c.bf16 %v1995, %v1977
    %v2022 = vpack.c.bf16 %v2013, %v2013
    %v2023 = vpack.c.bf16 %v1998, %v1980
    %v2024 = vpack.c.bf16 %v2016, %v2016
    %v2026 = vunpack.c.h.b16 %v2019
    %v2027 = vpack.c.b16 %v2026, %v2026
    %v2029 = vsel %vm448, %v2019, 0
    %v2032 = vsel %vm448, %v2027, 0
    %2034 = vmatpush.bf16.xpose.msra.mxu0 0
    %2035 = vmatpush.bf16.xpose.msra.mxu0 0
    %2036 = vmatpush.bf16.xpose.msra.mxu0 0
    %2037 = vmatpush.bf16.xpose.msra.mxu0 0
    %2038 = vmatpush.bf16.xpose.msra.mxu0 0
    %2039 = vmatpush.bf16.xpose.msra.mxu0 0
    %2040 = vmatpush.bf16.xpose.msra.mxu0 0
    %2041 = vmatpush.bf16.xpose.msra.mxu0 %v2032
    %2042 = vmatmul.bf16.gmra.mxu0 %v2029
    %v2043 = vpop.f32.mrf.mxu0
    %v2044 = vadd.f32 0.0, %v2043
    %v2045 = vpop.f32.mrf.mxu0
    %2046 = vdwg.mxu0
    %v2047 = vmul.f32 %v2044, 0.17677669
    %v2048 = vsel %vm469, %v2047, -inf
    %2049 = vmax.xlane.f32.xlu0 %v2048
    %v2050 = vpop.xlane.xlu0 %2049
    %v2051 = vsub.f32 %v2047, %v2050
    %v2052 = vmul.f32 %v2051, 1.442695
    %v2053 = vpow.pop %v2052
    %v2054 = vsel %vm469, %v2053, 0.0
    %2055 = vadd.xlane.f32.xlu0 %v2054
    %v2056 = vpop.xlane.xlu0 %2055
    %v2057 = vrcp.pop %v2056
    %v2058 = vmul.f32 %v2053, %v2057
    %v2059 = vpack.c.bf16 %v2058, %v2058
    %v2061 = vsel %vm469, %v2059, 0
    %v2064 = vsel %vm485, %v2020, 0
    %2066 = vmatpush.bf16.msra.mxu0 0
    %2067 = vmatpush.bf16.msra.mxu0 0
    %2068 = vmatpush.bf16.msra.mxu0 0
    %2069 = vmatpush.bf16.msra.mxu0 0
    %2070 = vmatpush.bf16.msra.mxu0 0
    %2071 = vmatpush.bf16.msra.mxu0 0
    %2072 = vmatpush.bf16.msra.mxu0 0
    %2073 = vmatpush.bf16.msra.mxu0 %v2064
    %2074 = vmatmul.bf16.gmra.mxu0 %v2061
    %v2075 = vpop.f32.mrf.mxu0
    %v2076 = vadd.f32 0.0, %v2075
    %v2077 = vpop.f32.mrf.mxu0
    %2078 = vdwg.mxu0
    %v2079 = vunpack.c.l.b16 %v2019
    %v2080 = vpack.c.b16 %v2079, %v2079
    %2081 = vrot.lane.b32.xlu0 %v2080, 96
    %v2082 = vpop.permute.xlu0 %2081
    %2083 = vrot.lane.b32.xlu0 %v2027, 96
    %v2084 = vpop.permute.xlu0 %2083
    %v2086 = vsel %vm448, %v2082, 0
    %v2089 = vsel %vm448, %v2084, 0
    %2091 = vmatpush.bf16.xpose.msra.mxu0 0
    %2092 = vmatpush.bf16.xpose.msra.mxu0 0
    %2093 = vmatpush.bf16.xpose.msra.mxu0 0
    %2094 = vmatpush.bf16.xpose.msra.mxu0 0
    %2095 = vmatpush.bf16.xpose.msra.mxu0 0
    %2096 = vmatpush.bf16.xpose.msra.mxu0 0
    %2097 = vmatpush.bf16.xpose.msra.mxu0 0
    %2098 = vmatpush.bf16.xpose.msra.mxu0 %v2089
    %2099 = vmatmul.bf16.gmra.mxu0 %v2086
    %v2100 = vpop.f32.mrf.mxu0
    %v2101 = vadd.f32 0.0, %v2100
    %v2102 = vpop.f32.mrf.mxu0
    %2103 = vdwg.mxu0
    %v2104 = vmul.f32 %v2101, 0.17677669
    %v2105 = vsel %vm469, %v2104, -inf
    %2106 = vmax.xlane.f32.xlu0 %v2105
    %v2107 = vpop.xlane.xlu0 %2106
    %v2108 = vsub.f32 %v2104, %v2107
    %v2109 = vmul.f32 %v2108, 1.442695
    %v2110 = vpow.pop %v2109
    %v2111 = vsel %vm469, %v2110, 0.0
    %2112 = vadd.xlane.f32.xlu0 %v2111
    %v2113 = vpop.xlane.xlu0 %2112
    %v2114 = vrcp.pop %v2113
    %v2115 = vmul.f32 %v2110, %v2114
    %v2116 = vpack.c.bf16 %v2115, %v2115
    %v2118 = vunpack.c.l.b16 %v2020
    %v2119 = vpack.c.b16 %v2118, %v2118
    %2120 = vrot.lane.b32.xlu0 %v2119, 96
    %v2121 = vpop.permute.xlu0 %2120
    %v2123 = vsel %vm469, %v2116, 0
    %v2126 = vsel %vm485, %v2121, 0
    %2128 = vmatpush.bf16.msra.mxu0 0
    %2129 = vmatpush.bf16.msra.mxu0 0
    %2130 = vmatpush.bf16.msra.mxu0 0
    %2131 = vmatpush.bf16.msra.mxu0 0
    %2132 = vmatpush.bf16.msra.mxu0 0
    %2133 = vmatpush.bf16.msra.mxu0 0
    %2134 = vmatpush.bf16.msra.mxu0 0
    %2135 = vmatpush.bf16.msra.mxu0 %v2126
    %2136 = vmatmul.bf16.gmra.mxu0 %v2123
    %v2137 = vpop.f32.mrf.mxu0
    %v2138 = vadd.f32 0.0, %v2137
    %v2139 = vpop.f32.mrf.mxu0
    %2140 = vdwg.mxu0
    %2141 = vrot.lane.b32.xlu0 %v2080, 64
    %v2142 = vpop.permute.xlu0 %2141
    %2143 = vrot.lane.b32.xlu0 %v2027, 64
    %v2144 = vpop.permute.xlu0 %2143
    %v2146 = vsel %vm448, %v2142, 0
    %v2149 = vsel %vm448, %v2144, 0
    %2151 = vmatpush.bf16.xpose.msra.mxu0 0
    %2152 = vmatpush.bf16.xpose.msra.mxu0 0
    %2153 = vmatpush.bf16.xpose.msra.mxu0 0
    %2154 = vmatpush.bf16.xpose.msra.mxu0 0
    %2155 = vmatpush.bf16.xpose.msra.mxu0 0
    %2156 = vmatpush.bf16.xpose.msra.mxu0 0
    %2157 = vmatpush.bf16.xpose.msra.mxu0 0
    %2158 = vmatpush.bf16.xpose.msra.mxu0 %v2149
    %2159 = vmatmul.bf16.gmra.mxu0 %v2146
    %v2160 = vpop.f32.mrf.mxu0
    %v2161 = vadd.f32 0.0, %v2160
    %v2162 = vpop.f32.mrf.mxu0
    %2163 = vdwg.mxu0
    %v2164 = vmul.f32 %v2161, 0.17677669
    %v2165 = vsel %vm469, %v2164, -inf
    %2166 = vmax.xlane.f32.xlu0 %v2165
    %v2167 = vpop.xlane.xlu0 %2166
    %v2168 = vsub.f32 %v2164, %v2167
    %v2169 = vmul.f32 %v2168, 1.442695
    %v2170 = vpow.pop %v2169
    %v2171 = vsel %vm469, %v2170, 0.0
    %2172 = vadd.xlane.f32.xlu0 %v2171
    %v2173 = vpop.xlane.xlu0 %2172
    %v2174 = vrcp.pop %v2173
    %v2175 = vmul.f32 %v2170, %v2174
    %v2176 = vpack.c.bf16 %v2175, %v2175
    %2177 = vrot.lane.b32.xlu0 %v2119, 64
    %v2178 = vpop.permute.xlu0 %2177
    %v2180 = vsel %vm469, %v2176, 0
    %v2183 = vsel %vm485, %v2178, 0
    %2185 = vmatpush.bf16.msra.mxu0 0
    %2186 = vmatpush.bf16.msra.mxu0 0
    %2187 = vmatpush.bf16.msra.mxu0 0
    %2188 = vmatpush.bf16.msra.mxu0 0
    %2189 = vmatpush.bf16.msra.mxu0 0
    %2190 = vmatpush.bf16.msra.mxu0 0
    %2191 = vmatpush.bf16.msra.mxu0 0
    %2192 = vmatpush.bf16.msra.mxu0 %v2183
    %2193 = vmatmul.bf16.gmra.mxu0 %v2180
    %v2194 = vpop.f32.mrf.mxu0
    %v2195 = vadd.f32 0.0, %v2194
    %v2196 = vpop.f32.mrf.mxu0
    %2197 = vdwg.mxu0
    %2198 = vrot.lane.b32.xlu0 %v2080, 32
    %v2199 = vpop.permute.xlu0 %2198
    %2200 = vrot.lane.b32.xlu0 %v2027, 32
    %v2201 = vpop.permute.xlu0 %2200
    %v2203 = vsel %vm448, %v2199, 0
    %v2206 = vsel %vm448, %v2201, 0
    %2208 = vmatpush.bf16.xpose.msra.mxu0 0
    %2209 = vmatpush.bf16.xpose.msra.mxu0 0
    %2210 = vmatpush.bf16.xpose.msra.mxu0 0
    %2211 = vmatpush.bf16.xpose.msra.mxu0 0
    %2212 = vmatpush.bf16.xpose.msra.mxu0 0
    %2213 = vmatpush.bf16.xpose.msra.mxu0 0
    %2214 = vmatpush.bf16.xpose.msra.mxu0 0
    %2215 = vmatpush.bf16.xpose.msra.mxu0 %v2206
    %2216 = vmatmul.bf16.gmra.mxu0 %v2203
    %v2217 = vpop.f32.mrf.mxu0
    %v2218 = vadd.f32 0.0, %v2217
    %v2219 = vpop.f32.mrf.mxu0
    %2220 = vdwg.mxu0
    %v2221 = vmul.f32 %v2218, 0.17677669
    %v2222 = vsel %vm469, %v2221, -inf
    %2223 = vmax.xlane.f32.xlu0 %v2222
    %v2224 = vpop.xlane.xlu0 %2223
    %v2225 = vsub.f32 %v2221, %v2224
    %v2226 = vmul.f32 %v2225, 1.442695
    %v2227 = vpow.pop %v2226
    %v2228 = vsel %vm469, %v2227, 0.0
    %2229 = vadd.xlane.f32.xlu0 %v2228
    %v2230 = vpop.xlane.xlu0 %2229
    %v2231 = vrcp.pop %v2230
    %v2232 = vmul.f32 %v2227, %v2231
    %v2233 = vpack.c.bf16 %v2232, %v2232
    %2234 = vrot.lane.b32.xlu0 %v2119, 32
    %v2235 = vpop.permute.xlu0 %2234
    %v2237 = vsel %vm469, %v2233, 0
    %v2240 = vsel %vm485, %v2235, 0
    %2242 = vmatpush.bf16.msra.mxu0 0
    %2243 = vmatpush.bf16.msra.mxu0 0
    %2244 = vmatpush.bf16.msra.mxu0 0
    %2245 = vmatpush.bf16.msra.mxu0 0
    %2246 = vmatpush.bf16.msra.mxu0 0
    %2247 = vmatpush.bf16.msra.mxu0 0
    %2248 = vmatpush.bf16.msra.mxu0 0
    %2249 = vmatpush.bf16.msra.mxu0 %v2240
    %2250 = vmatmul.bf16.gmra.mxu0 %v2237
    %v2251 = vpop.f32.mrf.mxu0
    %v2252 = vadd.f32 0.0, %v2251
    %v2253 = vpop.f32.mrf.mxu0
    %2254 = vdwg.mxu0
    %2256 = vrot.lane.b32.xlu0 %v2138, 32
    %v2257 = vpop.permute.xlu0 %2256
    %2260 = vrot.lane.b32.xlu0 %v2195, 64
    %v2261 = vpop.permute.xlu0 %2260
    %2264 = vrot.lane.b32.xlu0 %v2252, 96
    %v2265 = vpop.permute.xlu0 %2264
    %v2267 = vsel %vm448, %v2076, %v2257
    %v2268 = vsel %vm691, %v2267, %v2261
    %v2269 = vsel %vm693, %v2268, %v2265
    %v2271 = vunpack.c.h.b16 %v2021
    %v2272 = vpack.c.b16 %v2271, %v2271
    %v2274 = vsel %vm448, %v2021, 0
    %v2277 = vsel %vm448, %v2272, 0
    %2279 = vmatpush.bf16.xpose.msra.mxu0 0
    %2280 = vmatpush.bf16.xpose.msra.mxu0 0
    %2281 = vmatpush.bf16.xpose.msra.mxu0 0
    %2282 = vmatpush.bf16.xpose.msra.mxu0 0
    %2283 = vmatpush.bf16.xpose.msra.mxu0 0
    %2284 = vmatpush.bf16.xpose.msra.mxu0 0
    %2285 = vmatpush.bf16.xpose.msra.mxu0 0
    %2286 = vmatpush.bf16.xpose.msra.mxu0 %v2277
    %2287 = vmatmul.bf16.gmra.mxu0 %v2274
    %v2288 = vpop.f32.mrf.mxu0
    %v2289 = vadd.f32 0.0, %v2288
    %v2290 = vpop.f32.mrf.mxu0
    %2291 = vdwg.mxu0
    %v2292 = vmul.f32 %v2289, 0.17677669
    %v2293 = vsel %vm469, %v2292, -inf
    %2294 = vmax.xlane.f32.xlu0 %v2293
    %v2295 = vpop.xlane.xlu0 %2294
    %v2296 = vsub.f32 %v2292, %v2295
    %v2297 = vmul.f32 %v2296, 1.442695
    %v2298 = vpow.pop %v2297
    %v2299 = vsel %vm469, %v2298, 0.0
    %2300 = vadd.xlane.f32.xlu0 %v2299
    %v2301 = vpop.xlane.xlu0 %2300
    %v2302 = vrcp.pop %v2301
    %v2303 = vmul.f32 %v2298, %v2302
    %v2304 = vpack.c.bf16 %v2303, %v2303
    %v2306 = vsel %vm469, %v2304, 0
    %v2309 = vsel %vm485, %v2022, 0
    %2311 = vmatpush.bf16.msra.mxu0 0
    %2312 = vmatpush.bf16.msra.mxu0 0
    %2313 = vmatpush.bf16.msra.mxu0 0
    %2314 = vmatpush.bf16.msra.mxu0 0
    %2315 = vmatpush.bf16.msra.mxu0 0
    %2316 = vmatpush.bf16.msra.mxu0 0
    %2317 = vmatpush.bf16.msra.mxu0 0
    %2318 = vmatpush.bf16.msra.mxu0 %v2309
    %2319 = vmatmul.bf16.gmra.mxu0 %v2306
    %v2320 = vpop.f32.mrf.mxu0
    %v2321 = vadd.f32 0.0, %v2320
    %v2322 = vpop.f32.mrf.mxu0
    %2323 = vdwg.mxu0
    %v2324 = vunpack.c.l.b16 %v2021
    %v2325 = vpack.c.b16 %v2324, %v2324
    %2326 = vrot.lane.b32.xlu0 %v2325, 96
    %v2327 = vpop.permute.xlu0 %2326
    %2328 = vrot.lane.b32.xlu0 %v2272, 96
    %v2329 = vpop.permute.xlu0 %2328
    %v2331 = vsel %vm448, %v2327, 0
    %v2334 = vsel %vm448, %v2329, 0
    %2336 = vmatpush.bf16.xpose.msra.mxu0 0
    %2337 = vmatpush.bf16.xpose.msra.mxu0 0
    %2338 = vmatpush.bf16.xpose.msra.mxu0 0
    %2339 = vmatpush.bf16.xpose.msra.mxu0 0
    %2340 = vmatpush.bf16.xpose.msra.mxu0 0
    %2341 = vmatpush.bf16.xpose.msra.mxu0 0
    %2342 = vmatpush.bf16.xpose.msra.mxu0 0
    %2343 = vmatpush.bf16.xpose.msra.mxu0 %v2334
    %2344 = vmatmul.bf16.gmra.mxu0 %v2331
    %v2345 = vpop.f32.mrf.mxu0
    %v2346 = vadd.f32 0.0, %v2345
    %v2347 = vpop.f32.mrf.mxu0
    %2348 = vdwg.mxu0
    %v2349 = vmul.f32 %v2346, 0.17677669
    %v2350 = vsel %vm469, %v2349, -inf
    %2351 = vmax.xlane.f32.xlu0 %v2350
    %v2352 = vpop.xlane.xlu0 %2351
    %v2353 = vsub.f32 %v2349, %v2352
    %v2354 = vmul.f32 %v2353, 1.442695
    %v2355 = vpow.pop %v2354
    %v2356 = vsel %vm469, %v2355, 0.0
    %2357 = vadd.xlane.f32.xlu0 %v2356
    %v2358 = vpop.xlane.xlu0 %2357
    %v2359 = vrcp.pop %v2358
    %v2360 = vmul.f32 %v2355, %v2359
    %v2361 = vpack.c.bf16 %v2360, %v2360
    %v2363 = vunpack.c.l.b16 %v2022
    %v2364 = vpack.c.b16 %v2363, %v2363
    %2365 = vrot.lane.b32.xlu0 %v2364, 96
    %v2366 = vpop.permute.xlu0 %2365
    %v2368 = vsel %vm469, %v2361, 0
    %v2371 = vsel %vm485, %v2366, 0
    %2373 = vmatpush.bf16.msra.mxu0 0
    %2374 = vmatpush.bf16.msra.mxu0 0
    %2375 = vmatpush.bf16.msra.mxu0 0
    %2376 = vmatpush.bf16.msra.mxu0 0
    %2377 = vmatpush.bf16.msra.mxu0 0
    %2378 = vmatpush.bf16.msra.mxu0 0
    %2379 = vmatpush.bf16.msra.mxu0 0
    %2380 = vmatpush.bf16.msra.mxu0 %v2371
    %2381 = vmatmul.bf16.gmra.mxu0 %v2368
    %v2382 = vpop.f32.mrf.mxu0
    %v2383 = vadd.f32 0.0, %v2382
    %v2384 = vpop.f32.mrf.mxu0
    %2385 = vdwg.mxu0
    %2386 = vrot.lane.b32.xlu0 %v2325, 64
    %v2387 = vpop.permute.xlu0 %2386
    %2388 = vrot.lane.b32.xlu0 %v2272, 64
    %v2389 = vpop.permute.xlu0 %2388
    %v2391 = vsel %vm448, %v2387, 0
    %v2394 = vsel %vm448, %v2389, 0
    %2396 = vmatpush.bf16.xpose.msra.mxu0 0
    %2397 = vmatpush.bf16.xpose.msra.mxu0 0
    %2398 = vmatpush.bf16.xpose.msra.mxu0 0
    %2399 = vmatpush.bf16.xpose.msra.mxu0 0
    %2400 = vmatpush.bf16.xpose.msra.mxu0 0
    %2401 = vmatpush.bf16.xpose.msra.mxu0 0
    %2402 = vmatpush.bf16.xpose.msra.mxu0 0
    %2403 = vmatpush.bf16.xpose.msra.mxu0 %v2394
    %2404 = vmatmul.bf16.gmra.mxu0 %v2391
    %v2405 = vpop.f32.mrf.mxu0
    %v2406 = vadd.f32 0.0, %v2405
    %v2407 = vpop.f32.mrf.mxu0
    %2408 = vdwg.mxu0
    %v2409 = vmul.f32 %v2406, 0.17677669
    %v2410 = vsel %vm469, %v2409, -inf
    %2411 = vmax.xlane.f32.xlu0 %v2410
    %v2412 = vpop.xlane.xlu0 %2411
    %v2413 = vsub.f32 %v2409, %v2412
    %v2414 = vmul.f32 %v2413, 1.442695
    %v2415 = vpow.pop %v2414
    %v2416 = vsel %vm469, %v2415, 0.0
    %2417 = vadd.xlane.f32.xlu0 %v2416
    %v2418 = vpop.xlane.xlu0 %2417
    %v2419 = vrcp.pop %v2418
    %v2420 = vmul.f32 %v2415, %v2419
    %v2421 = vpack.c.bf16 %v2420, %v2420
    %2422 = vrot.lane.b32.xlu0 %v2364, 64
    %v2423 = vpop.permute.xlu0 %2422
    %v2425 = vsel %vm469, %v2421, 0
    %v2428 = vsel %vm485, %v2423, 0
    %2430 = vmatpush.bf16.msra.mxu0 0
    %2431 = vmatpush.bf16.msra.mxu0 0
    %2432 = vmatpush.bf16.msra.mxu0 0
    %2433 = vmatpush.bf16.msra.mxu0 0
    %2434 = vmatpush.bf16.msra.mxu0 0
    %2435 = vmatpush.bf16.msra.mxu0 0
    %2436 = vmatpush.bf16.msra.mxu0 0
    %2437 = vmatpush.bf16.msra.mxu0 %v2428
    %2438 = vmatmul.bf16.gmra.mxu0 %v2425
    %v2439 = vpop.f32.mrf.mxu0
    %v2440 = vadd.f32 0.0, %v2439
    %v2441 = vpop.f32.mrf.mxu0
    %2442 = vdwg.mxu0
    %2443 = vrot.lane.b32.xlu0 %v2325, 32
    %v2444 = vpop.permute.xlu0 %2443
    %2445 = vrot.lane.b32.xlu0 %v2272, 32
    %v2446 = vpop.permute.xlu0 %2445
    %v2448 = vsel %vm448, %v2444, 0
    %v2451 = vsel %vm448, %v2446, 0
    %2453 = vmatpush.bf16.xpose.msra.mxu0 0
    %2454 = vmatpush.bf16.xpose.msra.mxu0 0
    %2455 = vmatpush.bf16.xpose.msra.mxu0 0
    %2456 = vmatpush.bf16.xpose.msra.mxu0 0
    %2457 = vmatpush.bf16.xpose.msra.mxu0 0
    %2458 = vmatpush.bf16.xpose.msra.mxu0 0
    %2459 = vmatpush.bf16.xpose.msra.mxu0 0
    %2460 = vmatpush.bf16.xpose.msra.mxu0 %v2451
    %2461 = vmatmul.bf16.gmra.mxu0 %v2448
    %v2462 = vpop.f32.mrf.mxu0
    %v2463 = vadd.f32 0.0, %v2462
    %v2464 = vpop.f32.mrf.mxu0
    %2465 = vdwg.mxu0
    %v2466 = vmul.f32 %v2463, 0.17677669
    %v2467 = vsel %vm469, %v2466, -inf
    %2468 = vmax.xlane.f32.xlu0 %v2467
    %v2469 = vpop.xlane.xlu0 %2468
    %v2470 = vsub.f32 %v2466, %v2469
    %v2471 = vmul.f32 %v2470, 1.442695
    %v2472 = vpow.pop %v2471
    %v2473 = vsel %vm469, %v2472, 0.0
    %2474 = vadd.xlane.f32.xlu0 %v2473
    %v2475 = vpop.xlane.xlu0 %2474
    %v2476 = vrcp.pop %v2475
    %v2477 = vmul.f32 %v2472, %v2476
    %v2478 = vpack.c.bf16 %v2477, %v2477
    %2479 = vrot.lane.b32.xlu0 %v2364, 32
    %v2480 = vpop.permute.xlu0 %2479
    %v2482 = vsel %vm469, %v2478, 0
    %v2485 = vsel %vm485, %v2480, 0
    %2487 = vmatpush.bf16.msra.mxu0 0
    %2488 = vmatpush.bf16.msra.mxu0 0
    %2489 = vmatpush.bf16.msra.mxu0 0
    %2490 = vmatpush.bf16.msra.mxu0 0
    %2491 = vmatpush.bf16.msra.mxu0 0
    %2492 = vmatpush.bf16.msra.mxu0 0
    %2493 = vmatpush.bf16.msra.mxu0 0
    %2494 = vmatpush.bf16.msra.mxu0 %v2485
    %2495 = vmatmul.bf16.gmra.mxu0 %v2482
    %v2496 = vpop.f32.mrf.mxu0
    %v2497 = vadd.f32 0.0, %v2496
    %v2498 = vpop.f32.mrf.mxu0
    %2499 = vdwg.mxu0
    %2501 = vrot.lane.b32.xlu0 %v2383, 32
    %v2502 = vpop.permute.xlu0 %2501
    %2505 = vrot.lane.b32.xlu0 %v2440, 64
    %v2506 = vpop.permute.xlu0 %2505
    %2509 = vrot.lane.b32.xlu0 %v2497, 96
    %v2510 = vpop.permute.xlu0 %2509
    %v2512 = vsel %vm448, %v2321, %v2502
    %v2513 = vsel %vm691, %v2512, %v2506
    %v2514 = vsel %vm693, %v2513, %v2510
    %v2516 = vunpack.c.h.b16 %v2023
    %v2517 = vpack.c.b16 %v2516, %v2516
    %v2519 = vsel %vm448, %v2023, 0
    %v2522 = vsel %vm448, %v2517, 0
    %2524 = vmatpush.bf16.xpose.msra.mxu0 0
    %2525 = vmatpush.bf16.xpose.msra.mxu0 0
    %2526 = vmatpush.bf16.xpose.msra.mxu0 0
    %2527 = vmatpush.bf16.xpose.msra.mxu0 0
    %2528 = vmatpush.bf16.xpose.msra.mxu0 0
    %2529 = vmatpush.bf16.xpose.msra.mxu0 0
    %2530 = vmatpush.bf16.xpose.msra.mxu0 0
    %2531 = vmatpush.bf16.xpose.msra.mxu0 %v2522
    %2532 = vmatmul.bf16.gmra.mxu0 %v2519
    %v2533 = vpop.f32.mrf.mxu0
    %v2534 = vadd.f32 0.0, %v2533
    %v2535 = vpop.f32.mrf.mxu0
    %2536 = vdwg.mxu0
    %v2537 = vmul.f32 %v2534, 0.17677669
    %v2538 = vsel %vm469, %v2537, -inf
    %2539 = vmax.xlane.f32.xlu0 %v2538
    %v2540 = vpop.xlane.xlu0 %2539
    %v2541 = vsub.f32 %v2537, %v2540
    %v2542 = vmul.f32 %v2541, 1.442695
    %v2543 = vpow.pop %v2542
    %v2544 = vsel %vm469, %v2543, 0.0
    %2545 = vadd.xlane.f32.xlu0 %v2544
    %v2546 = vpop.xlane.xlu0 %2545
    %v2547 = vrcp.pop %v2546
    %v2548 = vmul.f32 %v2543, %v2547
    %v2549 = vpack.c.bf16 %v2548, %v2548
    %v2551 = vsel %vm469, %v2549, 0
    %v2554 = vsel %vm485, %v2024, 0
    %2556 = vmatpush.bf16.msra.mxu0 0
    %2557 = vmatpush.bf16.msra.mxu0 0
    %2558 = vmatpush.bf16.msra.mxu0 0
    %2559 = vmatpush.bf16.msra.mxu0 0
    %2560 = vmatpush.bf16.msra.mxu0 0
    %2561 = vmatpush.bf16.msra.mxu0 0
    %2562 = vmatpush.bf16.msra.mxu0 0
    %2563 = vmatpush.bf16.msra.mxu0 %v2554
    %2564 = vmatmul.bf16.gmra.mxu0 %v2551
    %v2565 = vpop.f32.mrf.mxu0
    %v2566 = vadd.f32 0.0, %v2565
    %v2567 = vpop.f32.mrf.mxu0
    %2568 = vdwg.mxu0
    %v2569 = vunpack.c.l.b16 %v2023
    %v2570 = vpack.c.b16 %v2569, %v2569
    %2571 = vrot.lane.b32.xlu0 %v2570, 96
    %v2572 = vpop.permute.xlu0 %2571
    %2573 = vrot.lane.b32.xlu0 %v2517, 96
    %v2574 = vpop.permute.xlu0 %2573
    %v2576 = vsel %vm448, %v2572, 0
    %v2579 = vsel %vm448, %v2574, 0
    %2581 = vmatpush.bf16.xpose.msra.mxu0 0
    %2582 = vmatpush.bf16.xpose.msra.mxu0 0
    %2583 = vmatpush.bf16.xpose.msra.mxu0 0
    %2584 = vmatpush.bf16.xpose.msra.mxu0 0
    %2585 = vmatpush.bf16.xpose.msra.mxu0 0
    %2586 = vmatpush.bf16.xpose.msra.mxu0 0
    %2587 = vmatpush.bf16.xpose.msra.mxu0 0
    %2588 = vmatpush.bf16.xpose.msra.mxu0 %v2579
    %2589 = vmatmul.bf16.gmra.mxu0 %v2576
    %v2590 = vpop.f32.mrf.mxu0
    %v2591 = vadd.f32 0.0, %v2590
    %v2592 = vpop.f32.mrf.mxu0
    %2593 = vdwg.mxu0
    %v2594 = vmul.f32 %v2591, 0.17677669
    %v2595 = vsel %vm469, %v2594, -inf
    %2596 = vmax.xlane.f32.xlu0 %v2595
    %v2597 = vpop.xlane.xlu0 %2596
    %v2598 = vsub.f32 %v2594, %v2597
    %v2599 = vmul.f32 %v2598, 1.442695
    %v2600 = vpow.pop %v2599
    %v2601 = vsel %vm469, %v2600, 0.0
    %2602 = vadd.xlane.f32.xlu0 %v2601
    %v2603 = vpop.xlane.xlu0 %2602
    %v2604 = vrcp.pop %v2603
    %v2605 = vmul.f32 %v2600, %v2604
    %v2606 = vpack.c.bf16 %v2605, %v2605
    %v2608 = vunpack.c.l.b16 %v2024
    %v2609 = vpack.c.b16 %v2608, %v2608
    %2610 = vrot.lane.b32.xlu0 %v2609, 96
    %v2611 = vpop.permute.xlu0 %2610
    %v2613 = vsel %vm469, %v2606, 0
    %v2616 = vsel %vm485, %v2611, 0
    %2618 = vmatpush.bf16.msra.mxu0 0
    %2619 = vmatpush.bf16.msra.mxu0 0
    %2620 = vmatpush.bf16.msra.mxu0 0
    %2621 = vmatpush.bf16.msra.mxu0 0
    %2622 = vmatpush.bf16.msra.mxu0 0
    %2623 = vmatpush.bf16.msra.mxu0 0
    %2624 = vmatpush.bf16.msra.mxu0 0
    %2625 = vmatpush.bf16.msra.mxu0 %v2616
    %2626 = vmatmul.bf16.gmra.mxu0 %v2613
    %v2627 = vpop.f32.mrf.mxu0
    %v2628 = vadd.f32 0.0, %v2627
    %v2629 = vpop.f32.mrf.mxu0
    %2630 = vdwg.mxu0
    %2631 = vrot.lane.b32.xlu0 %v2570, 64
    %v2632 = vpop.permute.xlu0 %2631
    %2633 = vrot.lane.b32.xlu0 %v2517, 64
    %v2634 = vpop.permute.xlu0 %2633
    %v2636 = vsel %vm448, %v2632, 0
    %v2639 = vsel %vm448, %v2634, 0
    %2641 = vmatpush.bf16.xpose.msra.mxu0 0
    %2642 = vmatpush.bf16.xpose.msra.mxu0 0
    %2643 = vmatpush.bf16.xpose.msra.mxu0 0
    %2644 = vmatpush.bf16.xpose.msra.mxu0 0
    %2645 = vmatpush.bf16.xpose.msra.mxu0 0
    %2646 = vmatpush.bf16.xpose.msra.mxu0 0
    %2647 = vmatpush.bf16.xpose.msra.mxu0 0
    %2648 = vmatpush.bf16.xpose.msra.mxu0 %v2639
    %2649 = vmatmul.bf16.gmra.mxu0 %v2636
    %v2650 = vpop.f32.mrf.mxu0
    %v2651 = vadd.f32 0.0, %v2650
    %v2652 = vpop.f32.mrf.mxu0
    %2653 = vdwg.mxu0
    %v2654 = vmul.f32 %v2651, 0.17677669
    %v2655 = vsel %vm469, %v2654, -inf
    %2656 = vmax.xlane.f32.xlu0 %v2655
    %v2657 = vpop.xlane.xlu0 %2656
    %v2658 = vsub.f32 %v2654, %v2657
    %v2659 = vmul.f32 %v2658, 1.442695
    %v2660 = vpow.pop %v2659
    %v2661 = vsel %vm469, %v2660, 0.0
    %2662 = vadd.xlane.f32.xlu0 %v2661
    %v2663 = vpop.xlane.xlu0 %2662
    %v2664 = vrcp.pop %v2663
    %v2665 = vmul.f32 %v2660, %v2664
    %v2666 = vpack.c.bf16 %v2665, %v2665
    %2667 = vrot.lane.b32.xlu0 %v2609, 64
    %v2668 = vpop.permute.xlu0 %2667
    %v2670 = vsel %vm469, %v2666, 0
    %v2673 = vsel %vm485, %v2668, 0
    %2675 = vmatpush.bf16.msra.mxu0 0
    %2676 = vmatpush.bf16.msra.mxu0 0
    %2677 = vmatpush.bf16.msra.mxu0 0
    %2678 = vmatpush.bf16.msra.mxu0 0
    %2679 = vmatpush.bf16.msra.mxu0 0
    %2680 = vmatpush.bf16.msra.mxu0 0
    %2681 = vmatpush.bf16.msra.mxu0 0
    %2682 = vmatpush.bf16.msra.mxu0 %v2673
    %2683 = vmatmul.bf16.gmra.mxu0 %v2670
    %v2684 = vpop.f32.mrf.mxu0
    %v2685 = vadd.f32 0.0, %v2684
    %v2686 = vpop.f32.mrf.mxu0
    %2687 = vdwg.mxu0
    %2688 = vrot.lane.b32.xlu0 %v2570, 32
    %v2689 = vpop.permute.xlu0 %2688
    %2690 = vrot.lane.b32.xlu0 %v2517, 32
    %v2691 = vpop.permute.xlu0 %2690
    %v2693 = vsel %vm448, %v2689, 0
    %v2696 = vsel %vm448, %v2691, 0
    %2698 = vmatpush.bf16.xpose.msra.mxu0 0
    %2699 = vmatpush.bf16.xpose.msra.mxu0 0
    %2700 = vmatpush.bf16.xpose.msra.mxu0 0
    %2701 = vmatpush.bf16.xpose.msra.mxu0 0
    %2702 = vmatpush.bf16.xpose.msra.mxu0 0
    %2703 = vmatpush.bf16.xpose.msra.mxu0 0
    %2704 = vmatpush.bf16.xpose.msra.mxu0 0
    %2705 = vmatpush.bf16.xpose.msra.mxu0 %v2696
    %2706 = vmatmul.bf16.gmra.mxu0 %v2693
    %v2707 = vpop.f32.mrf.mxu0
    %v2708 = vadd.f32 0.0, %v2707
    %v2709 = vpop.f32.mrf.mxu0
    %2710 = vdwg.mxu0
    %v2711 = vmul.f32 %v2708, 0.17677669
    %v2712 = vsel %vm469, %v2711, -inf
    %2713 = vmax.xlane.f32.xlu0 %v2712
    %v2714 = vpop.xlane.xlu0 %2713
    %v2715 = vsub.f32 %v2711, %v2714
    %v2716 = vmul.f32 %v2715, 1.442695
    %v2717 = vpow.pop %v2716
    %v2718 = vsel %vm469, %v2717, 0.0
    %2719 = vadd.xlane.f32.xlu0 %v2718
    %v2720 = vpop.xlane.xlu0 %2719
    %v2721 = vrcp.pop %v2720
    %v2722 = vmul.f32 %v2717, %v2721
    %v2723 = vpack.c.bf16 %v2722, %v2722
    %2724 = vrot.lane.b32.xlu0 %v2609, 32
    %v2725 = vpop.permute.xlu0 %2724
    %v2727 = vsel %vm469, %v2723, 0
    %v2730 = vsel %vm485, %v2725, 0
    %2732 = vmatpush.bf16.msra.mxu0 0
    %2733 = vmatpush.bf16.msra.mxu0 0
    %2734 = vmatpush.bf16.msra.mxu0 0
    %2735 = vmatpush.bf16.msra.mxu0 0
    %2736 = vmatpush.bf16.msra.mxu0 0
    %2737 = vmatpush.bf16.msra.mxu0 0
    %2738 = vmatpush.bf16.msra.mxu0 0
    %2739 = vmatpush.bf16.msra.mxu0 %v2730
    %2740 = vmatmul.bf16.gmra.mxu0 %v2727
    %v2741 = vpop.f32.mrf.mxu0
    %v2742 = vadd.f32 0.0, %v2741
    %v2743 = vpop.f32.mrf.mxu0
    %2744 = vdwg.mxu0
    %2746 = vrot.lane.b32.xlu0 %v2628, 32
    %v2747 = vpop.permute.xlu0 %2746
    %2750 = vrot.lane.b32.xlu0 %v2685, 64
    %v2751 = vpop.permute.xlu0 %2750
    %2754 = vrot.lane.b32.xlu0 %v2742, 96
    %v2755 = vpop.permute.xlu0 %2754
    %v2757 = vsel %vm448, %v2566, %v2747
    %v2758 = vsel %vm691, %v2757, %v2751
    %v2759 = vsel %vm693, %v2758, %v2755
    %v2760 = vpack.c.bf16 %v2514, %v2269
    %v2761 = vpack.c.bf16 %v2759, %v2759
    %s2762 = scalar_lea.vmem [#allocation5], 64
    %v2763 = vld [vmem:[%s2762] sm:$0xf]
    %v2764 = vld [vmem:[%s2762 + $0x4] sm:$0xf]
    %v2765 = vld [vmem:[%s2762 + $0x8] sm:$0xf]
    %v2766 = vld [vmem:[%s2762 + $0xc] sm:$0xf]
    %v2767 = vld [vmem:[%s2762 + $0x10] sm:$0xf]
    %v2768 = vld [vmem:[%s2762 + $0x14] sm:$0xf]
    %v2769 = vld [vmem:[%s2762 + $0x18] sm:$0xf]
    %v2770 = vld [vmem:[%s2762 + $0x1c] sm:$0xf]
    %v2771 = vld [vmem:[%s2762 + $0x20] sm:$0xf]
    %v2772 = vld [vmem:[%s2762 + $0x24] sm:$0xf]
    %v2773 = vld [vmem:[%s2762 + $0x28] sm:$0xf]
    %v2774 = vld [vmem:[%s2762 + $0x2c] sm:$0xf]
    %v2775 = vld [vmem:[%s2762 + $0x30] sm:$0xf]
    %v2776 = vld [vmem:[%s2762 + $0x34] sm:$0xf]
    %v2777 = vld [vmem:[%s2762 + $0x38] sm:$0xf]
    %v2778 = vld [vmem:[%s2762 + $0x3c] sm:$0xf]
    %s2779 = scalar_lea.vmem %s8, 1
    %v2780 = vld [vmem:[%s2779] sm:$0x1]
    %v2782 = vperm.slane %v2780, 0
    %v2800 = vunpack.c.l.b16 %v2763
    %v2801 = vunpack.c.l.b16 %v2764
    %v2802 = vunpack.c.l.b16 %v2765
    %v2803 = vunpack.c.l.b16 %v2766
    %v2804 = vunpack.c.l.b16 %v2767
    %v2805 = vunpack.c.l.b16 %v2768
    %v2806 = vunpack.c.l.b16 %v2769
    %v2807 = vunpack.c.l.b16 %v2770
    %v2808 = vunpack.c.l.b16 %v2771
    %v2809 = vunpack.c.l.b16 %v2772
    %v2810 = vunpack.c.l.b16 %v2773
    %v2811 = vunpack.c.l.b16 %v2774
    %v2812 = vunpack.c.l.b16 %v2775
    %v2813 = vunpack.c.l.b16 %v2776
    %v2814 = vunpack.c.l.b16 %v2777
    %v2815 = vunpack.c.l.b16 %v2778
    %v2816 = vpack.c.b16 %v2801, %v2800
    %v2817 = vpack.c.b16 %v2803, %v2802
    %v2818 = vpack.c.b16 %v2805, %v2804
    %v2819 = vpack.c.b16 %v2807, %v2806
    %v2820 = vpack.c.b16 %v2809, %v2808
    %v2821 = vpack.c.b16 %v2811, %v2810
    %v2822 = vpack.c.b16 %v2813, %v2812
    %v2823 = vpack.c.b16 %v2815, %v2814
    %2832 = vmatpush.bf16.msra.mxu0 %v2823
    %2833 = vmatpush.bf16.msra.mxu0 %v2822
    %2834 = vmatpush.bf16.msra.mxu0 %v2821
    %2835 = vmatpush.bf16.msra.mxu0 %v2820
    %2836 = vmatpush.bf16.msra.mxu0 %v2819
    %2837 = vmatpush.bf16.msra.mxu0 %v2818
    %2838 = vmatpush.bf16.msra.mxu0 %v2817
    %2839 = vmatpush.bf16.msra.mxu0 %v2816
    %2840 = vmatmul.bf16.gmra.mxu0 %v2760
    %v2841 = vpop.f32.mrf.mxu0
    %v2842 = vadd.f32 %v2782, %v2841
    %v2843 = vpop.f32.mrf.mxu0
    %v2844 = vadd.f32 %v2782, %v2843
    %2845 = vmatmul.bf16.gmra.mxu0 %v2761
    %v2846 = vpop.f32.mrf.mxu0
    %v2847 = vadd.f32 %v2782, %v2846
    %v2848 = vpop.f32.mrf.mxu0
    %2849 = vdwg.mxu0
    %v2850 = vadd.f32 %v1790, %v2842
    %v2851 = vadd.f32 %v1791, %v2844
    %v2852 = vadd.f32 %v1792, %v2847
    %s2853 = scalar_lea.vmem %s9, 1
    %v2854 = vld [vmem:[%s2853] sm:$0x1]
    %s2855 = scalar_lea.vmem %s10, 1
    %v2856 = vld [vmem:[%s2855] sm:$0x1]
    %2857 = vadd.xlane.f32.xlu0 %v2850
    %v2858 = vpop.xlane.xlu0 %2857
    %2859 = vadd.xlane.f32.xlu0 %v2851
    %v2860 = vpop.xlane.xlu0 %2859
    %2861 = vadd.xlane.f32.xlu0 %v2852
    %v2862 = vpop.xlane.xlu0 %2861
    %v2863 = vmul.f32 %v2858, %v148
    %v2864 = vmul.f32 %v2860, %v148
    %v2865 = vmul.f32 %v2862, %v148
    %v2866 = vsub.f32 %v2850, %v2863
    %v2867 = vsub.f32 %v2851, %v2864
    %v2868 = vsub.f32 %v2852, %v2865
    %v2869 = vmul.f32 %v2866, %v2866
    %v2870 = vmul.f32 %v2867, %v2867
    %v2871 = vmul.f32 %v2868, %v2868
    %2872 = vadd.xlane.f32.xlu0 %v2869
    %v2873 = vpop.xlane.xlu0 %2872
    %2874 = vadd.xlane.f32.xlu0 %v2870
    %v2875 = vpop.xlane.xlu0 %2874
    %2876 = vadd.xlane.f32.xlu0 %v2871
    %v2877 = vpop.xlane.xlu0 %2876
    %v2878 = vmul.f32 %v2873, %v148
    %v2879 = vmul.f32 %v2875, %v148
    %v2880 = vmul.f32 %v2877, %v148
    %v2881 = vadd.f32 %v2878, 1e-05
    %v2882 = vadd.f32 %v2879, 1e-05
    %v2883 = vadd.f32 %v2880, 1e-05
    %v2884 = vrsqrt.pop %v2881
    %v2885 = vmul.f32 %v2884, %v2881
    %v2886 = vmul.f32 %v2885, %v2884
    %v2887 = vmul.f32 0.5, %v2886
    %v2888 = vsub.f32 1.5, %v2887
    %v2889 = vmul.f32 %v2884, %v2888
    %vm2890 = vweird.f32 %v2881
    %vm2891 = vweird.f32 %v2884
    %vm2892 = vmor %vm2890, %vm2891
    %v2893 = vsel %vm2892, %v2884, %v2889
    %v2894 = vrsqrt.pop %v2882
    %v2895 = vmul.f32 %v2894, %v2882
    %v2896 = vmul.f32 %v2895, %v2894
    %v2897 = vmul.f32 0.5, %v2896
    %v2898 = vsub.f32 1.5, %v2897
    %v2899 = vmul.f32 %v2894, %v2898
    %vm2900 = vweird.f32 %v2882
    %vm2901 = vweird.f32 %v2894
    %vm2902 = vmor %vm2900, %vm2901
    %v2903 = vsel %vm2902, %v2894, %v2899
    %v2904 = vrsqrt.pop %v2883
    %v2905 = vmul.f32 %v2904, %v2883
    %v2906 = vmul.f32 %v2905, %v2904
    %v2907 = vmul.f32 0.5, %v2906
    %v2908 = vsub.f32 1.5, %v2907
    %v2909 = vmul.f32 %v2904, %v2908
    %vm2910 = vweird.f32 %v2883
    %vm2911 = vweird.f32 %v2904
    %vm2912 = vmor %vm2910, %vm2911
    %v2913 = vsel %vm2912, %v2904, %v2909
    %v2914 = vmul.f32 %v2866, %v2893
    %v2915 = vmul.f32 %v2867, %v2903
    %v2916 = vmul.f32 %v2868, %v2913
    %v2918 = vperm.slane %v2854, 0
    %v2920 = vmul.f32 %v2914, %v2918
    %v2921 = vmul.f32 %v2915, %v2918
    %v2922 = vmul.f32 %v2916, %v2918
    %v2924 = vperm.slane %v2856, 0
    %v2926 = vadd.f32 %v2920, %v2924
    %v2927 = vadd.f32 %v2921, %v2924
    %v2928 = vadd.f32 %v2922, %v2924
    %v2929 = vpack.c.bf16 %v2927, %v2926
    %v2930 = vpack.c.bf16 %v2928, %v2928
    %s2931 = scalar_lea.vmem %s11, 128
    %v2932 = vld [vmem:[%s2931] sm:$0xff]
    %v2933 = vld [vmem:[%s2931 + $0x8] sm:$0xff]
    %v2934 = vld [vmem:[%s2931 + $0x10] sm:$0xff]
    %v2935 = vld [vmem:[%s2931 + $0x18] sm:$0xff]
    %v2936 = vld [vmem:[%s2931 + $0x20] sm:$0xff]
    %v2937 = vld [vmem:[%s2931 + $0x28] sm:$0xff]
    %v2938 = vld [vmem:[%s2931 + $0x30] sm:$0xff]
    %v2939 = vld [vmem:[%s2931 + $0x38] sm:$0xff]
    %v2940 = vld [vmem:[%s2931 + $0x40] sm:$0xff]
    %v2941 = vld [vmem:[%s2931 + $0x48] sm:$0xff]
    %v2942 = vld [vmem:[%s2931 + $0x50] sm:$0xff]
    %v2943 = vld [vmem:[%s2931 + $0x58] sm:$0xff]
    %v2944 = vld [vmem:[%s2931 + $0x60] sm:$0xff]
    %v2945 = vld [vmem:[%s2931 + $0x68] sm:$0xff]
    %v2946 = vld [vmem:[%s2931 + $0x70] sm:$0xff]
    %v2947 = vld [vmem:[%s2931 + $0x78] sm:$0xff]
    %s2948 = scalar_lea.vmem %s12, 2
    %v2949 = vld [vmem:[%s2948] sm:$0x3]
    %v2951 = vperm.slane %v2949, 0
    %v2952 = vperm.slane %v2949, 1
    %v2971 = vunpack.c.l.b16 %v2932
    %v2972 = vunpack.c.h.b16 %v2932
    %v2973 = vunpack.c.l.b16 %v2933
    %v2974 = vunpack.c.h.b16 %v2933
    %v2975 = vunpack.c.l.b16 %v2934
    %v2976 = vunpack.c.h.b16 %v2934
    %v2977 = vunpack.c.l.b16 %v2935
    %v2978 = vunpack.c.h.b16 %v2935
    %v2979 = vunpack.c.l.b16 %v2936
    %v2980 = vunpack.c.h.b16 %v2936
    %v2981 = vunpack.c.l.b16 %v2937
    %v2982 = vunpack.c.h.b16 %v2937
    %v2983 = vunpack.c.l.b16 %v2938
    %v2984 = vunpack.c.h.b16 %v2938
    %v2985 = vunpack.c.l.b16 %v2939
    %v2986 = vunpack.c.h.b16 %v2939
    %v2987 = vunpack.c.l.b16 %v2940
    %v2988 = vunpack.c.h.b16 %v2940
    %v2989 = vunpack.c.l.b16 %v2941
    %v2990 = vunpack.c.h.b16 %v2941
    %v2991 = vunpack.c.l.b16 %v2942
    %v2992 = vunpack.c.h.b16 %v2942
    %v2993 = vunpack.c.l.b16 %v2943
    %v2994 = vunpack.c.h.b16 %v2943
    %v2995 = vunpack.c.l.b16 %v2944
    %v2996 = vunpack.c.h.b16 %v2944
    %v2997 = vunpack.c.l.b16 %v2945
    %v2998 = vunpack.c.h.b16 %v2945
    %v2999 = vunpack.c.l.b16 %v2946
    %v3000 = vunpack.c.h.b16 %v2946
    %v3001 = vunpack.c.l.b16 %v2947
    %v3002 = vunpack.c.h.b16 %v2947
    %v3003 = vpack.c.b16 %v2973, %v2971
    %v3004 = vpack.c.b16 %v2974, %v2972
    %v3005 = vpack.c.b16 %v2977, %v2975
    %v3006 = vpack.c.b16 %v2978, %v2976
    %v3007 = vpack.c.b16 %v2981, %v2979
    %v3008 = vpack.c.b16 %v2982, %v2980
    %v3009 = vpack.c.b16 %v2985, %v2983
    %v3010 = vpack.c.b16 %v2986, %v2984
    %v3011 = vpack.c.b16 %v2989, %v2987
    %v3012 = vpack.c.b16 %v2990, %v2988
    %v3013 = vpack.c.b16 %v2993, %v2991
    %v3014 = vpack.c.b16 %v2994, %v2992
    %v3015 = vpack.c.b16 %v2997, %v2995
    %v3016 = vpack.c.b16 %v2998, %v2996
    %v3017 = vpack.c.b16 %v3001, %v2999
    %v3018 = vpack.c.b16 %v3002, %v3000
    %3035 = vmatpush.bf16.msra.mxu0 %v3017
    %3036 = vmatpush.bf16.msra.mxu0 %v3015
    %3037 = vmatpush.bf16.msra.mxu0 %v3013
    %3038 = vmatpush.bf16.msra.mxu0 %v3011
    %3039 = vmatpush.bf16.msra.mxu0 %v3009
    %3040 = vmatpush.bf16.msra.mxu0 %v3007
    %3041 = vmatpush.bf16.msra.mxu0 %v3005
    %3042 = vmatpush.bf16.msra.mxu0 %v3003
    %3043 = vmatmul.bf16.gmra.mxu0 %v2929
    %v3044 = vpop.f32.mrf.mxu0
    %v3045 = vadd.f32 %v2951, %v3044
    %v3046 = vpop.f32.mrf.mxu0
    %v3047 = vadd.f32 %v2951, %v3046
    %3048 = vmatmul.bf16.gmra.mxu0 %v2930
    %v3049 = vpop.f32.mrf.mxu0
    %v3050 = vadd.f32 %v2951, %v3049
    %v3051 = vpop.f32.mrf.mxu0
    %3052 = vdwg.mxu0
    %3053 = vmatpush.bf16.msra.mxu0 %v3018
    %3054 = vmatpush.bf16.msra.mxu0 %v3016
    %3055 = vmatpush.bf16.msra.mxu0 %v3014
    %3056 = vmatpush.bf16.msra.mxu0 %v3012
    %3057 = vmatpush.bf16.msra.mxu0 %v3010
    %3058 = vmatpush.bf16.msra.mxu0 %v3008
    %3059 = vmatpush.bf16.msra.mxu0 %v3006
    %3060 = vmatpush.bf16.msra.mxu0 %v3004
    %3061 = vmatmul.bf16.gmra.mxu0 %v2929
    %v3062 = vpop.f32.mrf.mxu0
    %v3063 = vadd.f32 %v2952, %v3062
    %v3064 = vpop.f32.mrf.mxu0
    %v3065 = vadd.f32 %v2952, %v3064
    %3066 = vmatmul.bf16.gmra.mxu0 %v2930
    %v3067 = vpop.f32.mrf.mxu0
    %v3068 = vadd.f32 %v2952, %v3067
    %v3069 = vpop.f32.mrf.mxu0
    %3070 = vdwg.mxu0
    %v3071 = vmul.f32 %v3045, %v3045
    %v3072 = vmul.f32 %v3063, %v3063
    %v3073 = vmul.f32 %v3047, %v3047
    %v3074 = vmul.f32 %v3065, %v3065
    %v3075 = vmul.f32 %v3050, %v3050
    %v3076 = vmul.f32 %v3068, %v3068
    %v3077 = vmul.f32 %v3045, %v3071
    %v3078 = vmul.f32 %v3063, %v3072
    %v3079 = vmul.f32 %v3047, %v3073
    %v3080 = vmul.f32 %v3065, %v3074
    %v3081 = vmul.f32 %v3050, %v3075
    %v3082 = vmul.f32 %v3068, %v3076
    %v3083 = vmul.f32 %v3077, 0.044715
    %v3084 = vmul.f32 %v3078, 0.044715
    %v3085 = vmul.f32 %v3079, 0.044715
    %v3086 = vmul.f32 %v3080, 0.044715
    %v3087 = vmul.f32 %v3081, 0.044715
    %v3088 = vmul.f32 %v3082, 0.044715
    %v3089 = vadd.f32 %v3045, %v3083
    %v3090 = vadd.f32 %v3063, %v3084
    %v3091 = vadd.f32 %v3047, %v3085
    %v3092 = vadd.f32 %v3065, %v3086
    %v3093 = vadd.f32 %v3050, %v3087
    %v3094 = vadd.f32 %v3068, %v3088
    %v3095 = vmul.f32 %v3089, 0.7978846
    %v3096 = vmul.f32 %v3090, 0.7978846
    %v3097 = vmul.f32 %v3091, 0.7978846
    %v3098 = vmul.f32 %v3092, 0.7978846
    %v3099 = vmul.f32 %v3093, 0.7978846
    %v3100 = vmul.f32 %v3094, 0.7978846
    %v3101 = vtanh.pop %v3095
    %v3102 = vtanh.pop %v3096
    %v3103 = vtanh.pop %v3097
    %v3104 = vtanh.pop %v3098
    %v3105 = vtanh.pop %v3099
    %v3106 = vtanh.pop %v3100
    %v3107 = vadd.f32 %v3101, 1.0
    %v3108 = vadd.f32 %v3102, 1.0
    %v3109 = vadd.f32 %v3103, 1.0
    %v3110 = vadd.f32 %v3104, 1.0
    %v3111 = vadd.f32 %v3105, 1.0
    %v3112 = vadd.f32 %v3106, 1.0
    %v3113 = vmul.f32 %v3107, 0.5
    %v3114 = vmul.f32 %v3108, 0.5
    %v3115 = vmul.f32 %v3109, 0.5
    %v3116 = vmul.f32 %v3110, 0.5
    %v3117 = vmul.f32 %v3111, 0.5
    %v3118 = vmul.f32 %v3112, 0.5
    %v3119 = vmul.f32 %v3045, %v3113
    %v3120 = vmul.f32 %v3063, %v3114
    %v3121 = vmul.f32 %v3047, %v3115
    %v3122 = vmul.f32 %v3065, %v3116
    %v3123 = vmul.f32 %v3050, %v3117
    %v3124 = vmul.f32 %v3068, %v3118
    %v3125 = vpack.c.bf16 %v3121, %v3119
    %v3126 = vpack.c.bf16 %v3122, %v3120
    %v3127 = vpack.c.bf16 %v3123, %v3123
    %v3128 = vpack.c.bf16 %v3124, %v3124
    %s3129 = scalar_lea.vmem [#allocation7], 128
    %v3130 = vld [vmem:[%s3129] sm:$0xf]
    %v3131 = vld [vmem:[%s3129 + $0x4] sm:$0xf]
    %v3132 = vld [vmem:[%s3129 + $0x8] sm:$0xf]
    %v3133 = vld [vmem:[%s3129 + $0xc] sm:$0xf]
    %v3134 = vld [vmem:[%s3129 + $0x10] sm:$0xf]
    %v3135 = vld [vmem:[%s3129 + $0x14] sm:$0xf]
    %v3136 = vld [vmem:[%s3129 + $0x18] sm:$0xf]
    %v3137 = vld [vmem:[%s3129 + $0x1c] sm:$0xf]
    %v3138 = vld [vmem:[%s3129 + $0x20] sm:$0xf]
    %v3139 = vld [vmem:[%s3129 + $0x24] sm:$0xf]
    %v3140 = vld [vmem:[%s3129 + $0x28] sm:$0xf]
    %v3141 = vld [vmem:[%s3129 + $0x2c] sm:$0xf]
    %v3142 = vld [vmem:[%s3129 + $0x30] sm:$0xf]
    %v3143 = vld [vmem:[%s3129 + $0x34] sm:$0xf]
    %v3144 = vld [vmem:[%s3129 + $0x38] sm:$0xf]
    %v3145 = vld [vmem:[%s3129 + $0x3c] sm:$0xf]
    %v3146 = vld [vmem:[%s3129 + $0x40] sm:$0xf]
    %v3147 = vld [vmem:[%s3129 + $0x44] sm:$0xf]
    %v3148 = vld [vmem:[%s3129 + $0x48] sm:$0xf]
    %v3149 = vld [vmem:[%s3129 + $0x4c] sm:$0xf]
    %v3150 = vld [vmem:[%s3129 + $0x50] sm:$0xf]
    %v3151 = vld [vmem:[%s3129 + $0x54] sm:$0xf]
    %v3152 = vld [vmem:[%s3129 + $0x58] sm:$0xf]
    %v3153 = vld [vmem:[%s3129 + $0x5c] sm:$0xf]
    %v3154 = vld [vmem:[%s3129 + $0x60] sm:$0xf]
    %v3155 = vld [vmem:[%s3129 + $0x64] sm:$0xf]
    %v3156 = vld [vmem:[%s3129 + $0x68] sm:$0xf]
    %v3157 = vld [vmem:[%s3129 + $0x6c] sm:$0xf]
    %v3158 = vld [vmem:[%s3129 + $0x70] sm:$0xf]
    %v3159 = vld [vmem:[%s3129 + $0x74] sm:$0xf]
    %v3160 = vld [vmem:[%s3129 + $0x78] sm:$0xf]
    %v3161 = vld [vmem:[%s3129 + $0x7c] sm:$0xf]
    %s3162 = scalar_lea.vmem %s14, 1
    %v3163 = vld [vmem:[%s3162] sm:$0x1]
    %v3165 = vperm.slane %v3163, 0
    %v3199 = vunpack.c.l.b16 %v3130
    %v3200 = vunpack.c.l.b16 %v3131
    %v3201 = vunpack.c.l.b16 %v3132
    %v3202 = vunpack.c.l.b16 %v3133
    %v3203 = vunpack.c.l.b16 %v3134
    %v3204 = vunpack.c.l.b16 %v3135
    %v3205 = vunpack.c.l.b16 %v3136
    %v3206 = vunpack.c.l.b16 %v3137
    %v3207 = vunpack.c.l.b16 %v3138
    %v3208 = vunpack.c.l.b16 %v3139
    %v3209 = vunpack.c.l.b16 %v3140
    %v3210 = vunpack.c.l.b16 %v3141
    %v3211 = vunpack.c.l.b16 %v3142
    %v3212 = vunpack.c.l.b16 %v3143
    %v3213 = vunpack.c.l.b16 %v3144
    %v3214 = vunpack.c.l.b16 %v3145
    %v3215 = vunpack.c.l.b16 %v3146
    %v3216 = vunpack.c.l.b16 %v3147
    %v3217 = vunpack.c.l.b16 %v3148
    %v3218 = vunpack.c.l.b16 %v3149
    %v3219 = vunpack.c.l.b16 %v3150
    %v3220 = vunpack.c.l.b16 %v3151
    %v3221 = vunpack.c.l.b16 %v3152
    %v3222 = vunpack.c.l.b16 %v3153
    %v3223 = vunpack.c.l.b16 %v3154
    %v3224 = vunpack.c.l.b16 %v3155
    %v3225 = vunpack.c.l.b16 %v3156
    %v3226 = vunpack.c.l.b16 %v3157
    %v3227 = vunpack.c.l.b16 %v3158
    %v3228 = vunpack.c.l.b16 %v3159
    %v3229 = vunpack.c.l.b16 %v3160
    %v3230 = vunpack.c.l.b16 %v3161
    %v3231 = vpack.c.b16 %v3200, %v3199
    %v3232 = vpack.c.b16 %v3202, %v3201
    %v3233 = vpack.c.b16 %v3204, %v3203
    %v3234 = vpack.c.b16 %v3206, %v3205
    %v3235 = vpack.c.b16 %v3208, %v3207
    %v3236 = vpack.c.b16 %v3210, %v3209
    %v3237 = vpack.c.b16 %v3212, %v3211
    %v3238 = vpack.c.b16 %v3214, %v3213
    %v3239 = vpack.c.b16 %v3216, %v3215
    %v3240 = vpack.c.b16 %v3218, %v3217
    %v3241 = vpack.c.b16 %v3220, %v3219
    %v3242 = vpack.c.b16 %v3222, %v3221
    %v3243 = vpack.c.b16 %v3224, %v3223
    %v3244 = vpack.c.b16 %v3226, %v3225
    %v3245 = vpack.c.b16 %v3228, %v3227
    %v3246 = vpack.c.b16 %v3230, %v3229
    %3263 = vmatpush.bf16.msra.mxu0 %v3238
    %3264 = vmatpush.bf16.msra.mxu0 %v3237
    %3265 = vmatpush.bf16.msra.mxu0 %v3236
    %3266 = vmatpush.bf16.msra.mxu0 %v3235
    %3267 = vmatpush.bf16.msra.mxu0 %v3234
    %3268 = vmatpush.bf16.msra.mxu0 %v3233
    %3269 = vmatpush.bf16.msra.mxu0 %v3232
    %3270 = vmatpush.bf16.msra.mxu0 %v3231
    %3271 = vmatmul.bf16.gmra.mxu0 %v3125
    %v3272 = vpop.f32.mrf.mxu0
    %v3273 = vadd.f32 %v3165, %v3272
    %v3274 = vpop.f32.mrf.mxu0
    %v3275 = vadd.f32 %v3165, %v3274
    %3276 = vmatmul.bf16.gmra.mxu0 %v3127
    %v3277 = vpop.f32.mrf.mxu0
    %v3278 = vadd.f32 %v3165, %v3277
    %v3279 = vpop.f32.mrf.mxu0
    %3280 = vdwg.mxu0
    %3281 = vmatpush.bf16.msra.mxu0 %v3246
    %3282 = vmatpush.bf16.msra.mxu0 %v3245
    %3283 = vmatpush.bf16.msra.mxu0 %v3244
    %3284 = vmatpush.bf16.msra.mxu0 %v3243
    %3285 = vmatpush.bf16.msra.mxu0 %v3242
    %3286 = vmatpush.bf16.msra.mxu0 %v3241
    %3287 = vmatpush.bf16.msra.mxu0 %v3240
    %3288 = vmatpush.bf16.msra.mxu0 %v3239
    %3289 = vmatmul.bf16.gmra.mxu0 %v3126
    %v3290 = vpop.f32.mrf.mxu0
    %v3291 = vadd.f32 %v3273, %v3290
    %v3292 = vpop.f32.mrf.mxu0
    %v3293 = vadd.f32 %v3275, %v3292
    %3294 = vmatmul.bf16.gmra.mxu0 %v3128
    %v3295 = vpop.f32.mrf.mxu0
    %v3296 = vadd.f32 %v3278, %v3295
    %v3297 = vpop.f32.mrf.mxu0
    %3298 = vdwg.mxu0
    %v3299 = vadd.f32 %v2926, %v3291
    %v3300 = vadd.f32 %v2927, %v3293
    %v3301 = vadd.f32 %v2928, %v3296
    %s3302 = scalar_lea.vmem %s15, 1
    %v3303 = vld [vmem:[%s3302] sm:$0x1]
    %s3304 = scalar_lea.vmem %s16, 1
    %v3305 = vld [vmem:[%s3304] sm:$0x1]
    %3306 = vadd.xlane.f32.xlu0 %v3299
    %v3307 = vpop.xlane.xlu0 %3306
    %3308 = vadd.xlane.f32.xlu0 %v3300
    %v3309 = vpop.xlane.xlu0 %3308
    %3310 = vadd.xlane.f32.xlu0 %v3301
    %v3311 = vpop.xlane.xlu0 %3310
    %v3312 = vmul.f32 %v3307, %v148
    %v3313 = vmul.f32 %v3309, %v148
    %v3314 = vmul.f32 %v3311, %v148
    %v3315 = vsub.f32 %v3299, %v3312
    %v3316 = vsub.f32 %v3300, %v3313
    %v3317 = vsub.f32 %v3301, %v3314
    %v3318 = vmul.f32 %v3315, %v3315
    %v3319 = vmul.f32 %v3316, %v3316
    %v3320 = vmul.f32 %v3317, %v3317
    %3321 = vadd.xlane.f32.xlu0 %v3318
    %v3322 = vpop.xlane.xlu0 %3321
    %3323 = vadd.xlane.f32.xlu0 %v3319
    %v3324 = vpop.xlane.xlu0 %3323
    %3325 = vadd.xlane.f32.xlu0 %v3320
    %v3326 = vpop.xlane.xlu0 %3325
    %v3327 = vmul.f32 %v3322, %v148
    %v3328 = vmul.f32 %v3324, %v148
    %v3329 = vmul.f32 %v3326, %v148
    %v3330 = vadd.f32 %v3327, 1e-05
    %v3331 = vadd.f32 %v3328, 1e-05
    %v3332 = vadd.f32 %v3329, 1e-05
    %v3333 = vrsqrt.pop %v3330
    %v3334 = vmul.f32 %v3333, %v3330
    %v3335 = vmul.f32 %v3334, %v3333
    %v3336 = vmul.f32 0.5, %v3335
    %v3337 = vsub.f32 1.5, %v3336
    %v3338 = vmul.f32 %v3333, %v3337
    %vm3339 = vweird.f32 %v3330
    %vm3340 = vweird.f32 %v3333
    %vm3341 = vmor %vm3339, %vm3340
    %v3342 = vsel %vm3341, %v3333, %v3338
    %v3343 = vrsqrt.pop %v3331
    %v3344 = vmul.f32 %v3343, %v3331
    %v3345 = vmul.f32 %v3344, %v3343
    %v3346 = vmul.f32 0.5, %v3345
    %v3347 = vsub.f32 1.5, %v3346
    %v3348 = vmul.f32 %v3343, %v3347
    %vm3349 = vweird.f32 %v3331
    %vm3350 = vweird.f32 %v3343
    %vm3351 = vmor %vm3349, %vm3350
    %v3352 = vsel %vm3351, %v3343, %v3348
    %v3353 = vrsqrt.pop %v3332
    %v3354 = vmul.f32 %v3353, %v3332
    %v3355 = vmul.f32 %v3354, %v3353
    %v3356 = vmul.f32 0.5, %v3355
    %v3357 = vsub.f32 1.5, %v3356
    %v3358 = vmul.f32 %v3353, %v3357
    %vm3359 = vweird.f32 %v3332
    %vm3360 = vweird.f32 %v3353
    %vm3361 = vmor %vm3359, %vm3360
    %v3362 = vsel %vm3361, %v3353, %v3358
    %v3363 = vmul.f32 %v3315, %v3342
    %v3364 = vmul.f32 %v3316, %v3352
    %v3365 = vmul.f32 %v3317, %v3362
    %v3367 = vperm.slane %v3303, 0
    %v3369 = vmul.f32 %v3363, %v3367
    %v3370 = vmul.f32 %v3364, %v3367
    %v3371 = vmul.f32 %v3365, %v3367
    %v3373 = vperm.slane %v3305, 0
    %v3375 = vadd.f32 %v3369, %v3373
    %v3376 = vadd.f32 %v3370, %v3373
    %v3377 = vadd.f32 %v3371, %v3373
    %v3379 = vrot.slane %v3376, 7
    %v3382 = vrot.slane %v3377, 6
    %vm3384 = vcmask 1040384
    %v3385 = vsel %vm3384, %v3375, %v3379
    %vm3386 = vcmask 1041408
    %v3387 = vsel %vm3386, %v3385, %v3382
    %v3388 = vpack.c.bf16 %v3387, %v3387
    %v3389 = vld [vmem:[#allocation8] sm:$0xf]
    %v3390 = vld [vmem:[#allocation8 + $0x4] sm:$0xf]
    %v3391 = vld [vmem:[#allocation8 + $0x8] sm:$0xf]
    %v3392 = vld [vmem:[#allocation8 + $0xc] sm:$0xf]
    %v3393 = vld [vmem:[#allocation8 + $0x10] sm:$0xf]
    %v3394 = vld [vmem:[#allocation8 + $0x14] sm:$0xf]
    %v3395 = vld [vmem:[#allocation8 + $0x18] sm:$0xf]
    %v3396 = vld [vmem:[#allocation8 + $0x1c] sm:$0xf]
    %v3397 = vld [vmem:[#allocation8 + $0x20] sm:$0xf]
    %v3398 = vld [vmem:[#allocation8 + $0x24] sm:$0xf]
    %v3399 = vld [vmem:[#allocation8 + $0x28] sm:$0xf]
    %v3400 = vld [vmem:[#allocation8 + $0x2c] sm:$0xf]
    %v3401 = vld [vmem:[#allocation8 + $0x30] sm:$0xf]
    %v3402 = vld [vmem:[#allocation8 + $0x34] sm:$0xf]
    %v3403 = vld [vmem:[#allocation8 + $0x38] sm:$0xf]
    %v3404 = vld [vmem:[#allocation8 + $0x3c] sm:$0xf]
    %v3405 = vld [vmem:[%s18] sm:$0x1]
    %v3407 = vperm.slane %v3405, 0
    %v3425 = vunpack.c.l.b16 %v3389
    %v3426 = vunpack.c.l.b16 %v3390
    %v3427 = vunpack.c.l.b16 %v3391
    %v3428 = vunpack.c.l.b16 %v3392
    %v3429 = vunpack.c.l.b16 %v3393
    %v3430 = vunpack.c.l.b16 %v3394
    %v3431 = vunpack.c.l.b16 %v3395
    %v3432 = vunpack.c.l.b16 %v3396
    %v3433 = vunpack.c.l.b16 %v3397
    %v3434 = vunpack.c.l.b16 %v3398
    %v3435 = vunpack.c.l.b16 %v3399
    %v3436 = vunpack.c.l.b16 %v3400
    %v3437 = vunpack.c.l.b16 %v3401
    %v3438 = vunpack.c.l.b16 %v3402
    %v3439 = vunpack.c.l.b16 %v3403
    %v3440 = vunpack.c.l.b16 %v3404
    %v3441 = vpack.c.b16 %v3426, %v3425
    %v3442 = vpack.c.b16 %v3428, %v3427
    %v3443 = vpack.c.b16 %v3430, %v3429
    %v3444 = vpack.c.b16 %v3432, %v3431
    %v3445 = vpack.c.b16 %v3434, %v3433
    %v3446 = vpack.c.b16 %v3436, %v3435
    %v3447 = vpack.c.b16 %v3438, %v3437
    %v3448 = vpack.c.b16 %v3440, %v3439
    %3457 = vmatpush.bf16.msra.mxu0 %v3448
    %3458 = vmatpush.bf16.msra.mxu0 %v3447
    %3459 = vmatpush.bf16.msra.mxu0 %v3446
    %3460 = vmatpush.bf16.msra.mxu0 %v3445
    %3461 = vmatpush.bf16.msra.mxu0 %v3444
    %3462 = vmatpush.bf16.msra.mxu0 %v3443
    %3463 = vmatpush.bf16.msra.mxu0 %v3442
    %3464 = vmatpush.bf16.msra.mxu0 %v3441
    %3465 = vmatmul.bf16.gmra.mxu0 %v3388
    %v3466 = vpop.f32.mrf.mxu0
    %v3467 = vadd.f32 %v3407, %v3466
    %v3468 = vpop.f32.mrf.mxu0
    %3469 = vdwg.mxu0
    %v3470 = vtanh.pop %v3467
    %v3471 = vld [vmem:[%s0] sm:$0x3]
    %v3472 = vpack.c.bf16 %v3471, %v3471
    %v3473 = vpack.c.bf16 %v3470, %v3470
    %3474 = vmatpush.bf16.xpose.msra.mxu0 0
    %3475 = vmatpush.bf16.xpose.msra.mxu0 0
    %3476 = vmatpush.bf16.xpose.msra.mxu0 0
    %3477 = vmatpush.bf16.xpose.msra.mxu0 0
    %3478 = vmatpush.bf16.xpose.msra.mxu0 0
    %3479 = vmatpush.bf16.xpose.msra.mxu0 0
    %3480 = vmatpush.bf16.xpose.msra.mxu0 0
    %3481 = vmatpush.bf16.xpose.msra.mxu0 %v3473
    %3482 = vmatmul.bf16.gmra.mxu0 %v3472
    %v3483 = vpop.f32.mrf.mxu0
    %v3484 = vadd.f32 0.0, %v3483
    %v3485 = vpop.f32.mrf.mxu0
    %3486 = vdwg.mxu0
    %vm3487 = vcmask 17408
    %3488 = vst.msk [vmem:[#allocation10] sm:$0x3] %vm3487, %v3484
    // Predicated region
    $region94: #{fwd.3} parent=1 // pred_check
      _
    $region95: #{fwd.3} parent=1 // pred_check_branch
      %3490 = sbr.rel (0) target = $region97
    $region96: #{fwd.3} parent=1 // pred_region
      %3492 = vsyncadd [#allocation4], 0
      %s3494 = sshll.u32 [#allocation10], 4
      %s3495 = int_to_ptr.vmem [resolvable:$true] %s3494
      %s3496 = sshll.u32 %s19, 4
      %s3497 = int_to_ptr.hbm [resolvable:$true] %s3496
      %3499 = dma.vmem_to_hbm [thread:$0]  %s3495, 32, %s3497, [#allocation4]
    $region97: #{fwd.3} parent=1 // pred_fallthru
      _
    // Predicated region
    $region98: #{fwd.3} parent=1 // pred_check
      _
    $region99: #{fwd.3} parent=1 // pred_check_branch
      %3501 = sbr.rel (0) target = $region101
    $region100: #{fwd.3} parent=1 // pred_region
      %3503 = dma.done [#allocation4], 32
    $region101: #{fwd.3} parent=1 // pred_fallthru
      _
    %3504 = vsyncpa [#allocation3], 1
    %3505 = vsyncpa [#allocation6], 1
    %3506 = vsyncpa [#allocation9], 1
    %3507 = vsyncpa [#allocation4], 1

// kernel: fwd.2
$region0: #{fwd.2}
  #allocation0 [shape = 'u32[]', space=smem, size = 0x4, offset = 0x4, fixed_abs, tag = 'smem constant byte address 0x4 - core index']
  #allocation1 [shape = 'u32[72,128]{1,0:T(1,128)}', space=vmem, size = 0x9000, scoped, tag = 'internal scratch']
  %s0 = inlined_call_operand.vmem [shape: f32[16,128], index: 0, kind: input, shape index: {}]
  %s1 = inlined_call_operand.vmem [shape: f32[8,128], index: 1, kind: input, shape index: {}]
  %s2 = inlined_call_operand.vmem [shape: f32[1,128], index: 2, kind: input, shape index: {}]
  %s3 = inlined_call_operand.vmem [shape: f32[1,128], index: 3, kind: input, shape index: {}]
  %s4 = inlined_call_operand.hbm [shape: bf16[2,128,384], index: 4, kind: input, shape index: {}]
  %s5 = inlined_call_operand.vmem [shape: f32[2,1,384], index: 5, kind: input, shape index: {}]
  %s6 = inlined_call_operand.vmem [shape: bf16[2,128,128], index: 6, kind: input, shape index: {}]
  %s7 = inlined_call_operand.vmem [shape: f32[2,1,128], index: 7, kind: input, shape index: {}]
  %s8 = inlined_call_operand.vmem [shape: f32[2,1,128], index: 8, kind: input, shape index: {}]
  %s9 = inlined_call_operand.vmem [shape: f32[2,1,128], index: 9, kind: input, shape index: {}]
  %s10 = inlined_call_operand.hbm [shape: bf16[2,128,256], index: 10, kind: input, shape index: {}]
  %s11 = inlined_call_operand.vmem [shape: f32[2,1,256], index: 11, kind: input, shape index: {}]
  %s12 = inlined_call_operand.hbm [shape: bf16[2,256,128], index: 12, kind: input, shape index: {}]
  %s13 = inlined_call_operand.vmem [shape: f32[2,1,128], index: 13, kind: input, shape index: {}]
  %s14 = inlined_call_operand.vmem [shape: f32[2,1,128], index: 14, kind: input, shape index: {}]
  %s15 = inlined_call_operand.vmem [shape: f32[2,1,128], index: 15, kind: input, shape index: {}]
  %s16 = inlined_call_operand.vmem [shape: bf16[128,128], index: 16, kind: input, shape index: {}]
  %s17 = inlined_call_operand.hbm [shape: f32[1,128], index: 17, kind: input, shape index: {}]
  %s18 = inlined_call_operand.vmem [shape: f32[2,128], index: 18, kind: output, shape index: {}]
  %s19 = sld [smem:[#allocation0]]
  $region98: #{fwd.2} parent=0
    _
  %s21 = ssub.s32 1, %s19
  %s22 = scalar_select 0, %s21, %s19
  $region1: #{fwd.2} parent=0
    #allocation2 [shape = 'u8[196608]{0}', space=vmem, size = 0x30000, scoped, tag = 'input window, operand 4, single buffered']
    #allocation3 [shape = 's32[1]{0}', space=sflag, size = 0x4, scoped, tag = 'scoped memory for fwd.2']
    #allocation4 [shape = 'u8[131072]{0}', space=vmem, size = 0x20000, scoped, tag = 'input window, operand 10, single buffered']
    #allocation5 [shape = 's32[1]{0}', space=sflag, size = 0x4, scoped, tag = 'scoped memory for fwd.2']
    #allocation6 [shape = 'u8[131072]{0}', space=vmem, size = 0x20000, scoped, tag = 'input window, operand 12, single buffered']
    #allocation7 [shape = 'u8[512]{0}', space=vmem, size = 0x400, scoped, tag = 'input window, operand 17, single buffered']
    #allocation8 [shape = 's32[1]{0}', space=sflag, size = 0x4, scoped, tag = 'scoped memory for fwd.2']
    %23 = vsyncpa [#allocation3], 0
    %24 = vsyncpa [#allocation5], 0
    %25 = vsyncpa [#allocation8], 0
    // Predicated region
    $region2: #{fwd.2} parent=1 // pred_check
      _
    $region3: #{fwd.2} parent=1 // pred_check_branch
      %27 = sbr.rel (0) target = $region5
    $region4: #{fwd.2} parent=1 // pred_region
      _
    $region5: #{fwd.2} parent=1 // pred_fallthru
      _
    // Predicated region
    $region6: #{fwd.2} parent=1 // pred_check
      _
    $region7: #{fwd.2} parent=1 // pred_check_branch
      %29 = sbr.rel (0) target = $region9
    $region8: #{fwd.2} parent=1 // pred_region
      _
    $region9: #{fwd.2} parent=1 // pred_fallthru
      _
    // Predicated region
    $region10: #{fwd.2} parent=1 // pred_check
      _
    $region11: #{fwd.2} parent=1 // pred_check_branch
      %31 = sbr.rel (0) target = $region13
    $region12: #{fwd.2} parent=1 // pred_region
      _
    $region13: #{fwd.2} parent=1 // pred_fallthru
      _
    // Predicated region
    $region14: #{fwd.2} parent=1 // pred_check
      _
    $region15: #{fwd.2} parent=1 // pred_check_branch
      %33 = sbr.rel (0) target = $region17
    $region16: #{fwd.2} parent=1 // pred_region
      _
    $region17: #{fwd.2} parent=1 // pred_fallthru
      _
    // Predicated region
    $region18: #{fwd.2} parent=1 // pred_check
      _
    $region19: #{fwd.2} parent=1 // pred_check_branch
      %35 = sbr.rel (0) target = $region21
    $region20: #{fwd.2} parent=1 // pred_region
      %37 = vsyncadd [#allocation3], 0
      %s38 = sshll.u32 %s4, 4
      %s39 = int_to_ptr.hbm [resolvable:$true] %s38
      %s40 = sshll.u32 [#allocation2], 4
      %s41 = int_to_ptr.vmem [resolvable:$true] %s40
      %46 = dma.hbm_to_vmem [thread:$0]  %s39, 6144, %s41, [#allocation3], 192, 192, 12
    $region21: #{fwd.2} parent=1 // pred_fallthru
      _
    // Predicated region
    $region22: #{fwd.2} parent=1 // pred_check
      _
    $region23: #{fwd.2} parent=1 // pred_check_branch
      %48 = sbr.rel (0) target = $region25
    $region24: #{fwd.2} parent=1 // pred_region
      _
    $region25: #{fwd.2} parent=1 // pred_fallthru
      _
    // Predicated region
    $region26: #{fwd.2} parent=1 // pred_check
      _
    $region27: #{fwd.2} parent=1 // pred_check_branch
      %50 = sbr.rel (0) target = $region29
    $region28: #{fwd.2} parent=1 // pred_region
      _
    $region29: #{fwd.2} parent=1 // pred_fallthru
      _
    // Predicated region
    $region30: #{fwd.2} parent=1 // pred_check
      _
    $region31: #{fwd.2} parent=1 // pred_check_branch
      %52 = sbr.rel (0) target = $region33
    $region32: #{fwd.2} parent=1 // pred_region
      _
    $region33: #{fwd.2} parent=1 // pred_fallthru
      _
    // Predicated region
    $region34: #{fwd.2} parent=1 // pred_check
      _
    $region35: #{fwd.2} parent=1 // pred_check_branch
      %54 = sbr.rel (0) target = $region37
    $region36: #{fwd.2} parent=1 // pred_region
      _
    $region37: #{fwd.2} parent=1 // pred_fallthru
      _
    // Predicated region
    $region38: #{fwd.2} parent=1 // pred_check
      _
    $region39: #{fwd.2} parent=1 // pred_check_branch
      %56 = sbr.rel (0) target = $region41
    $region40: #{fwd.2} parent=1 // pred_region
      _
    $region41: #{fwd.2} parent=1 // pred_fallthru
      _
    // Predicated region
    $region42: #{fwd.2} parent=1 // pred_check
      _
    $region43: #{fwd.2} parent=1 // pred_check_branch
      %58 = sbr.rel (0) target = $region45
    $region44: #{fwd.2} parent=1 // pred_region
      %60 = vsyncadd [#allocation5], 0
      %s61 = sshll.u32 %s10, 4
      %s62 = int_to_ptr.hbm [resolvable:$true] %s61
      %s63 = sshll.u32 [#allocation4], 4
      %s64 = int_to_ptr.vmem [resolvable:$true] %s63
      %69 = dma.hbm_to_vmem [thread:$0]  %s62, 4096, %s64, [#allocation5], 128, 128, 8
    $region45: #{fwd.2} parent=1 // pred_fallthru
      _
    // Predicated region
    $region46: #{fwd.2} parent=1 // pred_check
      _
    $region47: #{fwd.2} parent=1 // pred_check_branch
      %71 = sbr.rel (0) target = $region49
    $region48: #{fwd.2} parent=1 // pred_region
      _
    $region49: #{fwd.2} parent=1 // pred_fallthru
      _
    // Predicated region
    $region50: #{fwd.2} parent=1 // pred_check
      _
    $region51: #{fwd.2} parent=1 // pred_check_branch
      %73 = sbr.rel (0) target = $region53
    $region52: #{fwd.2} parent=1 // pred_region
      %75 = vsyncadd [#allocation5], 0
      %s76 = sshll.u32 %s12, 4
      %s77 = int_to_ptr.hbm [resolvable:$true] %s76
      %s78 = sshll.u32 [#allocation6], 4
      %s79 = int_to_ptr.vmem [resolvable:$true] %s78
      %84 = dma.hbm_to_vmem [thread:$0]  %s77, 4096, %s79, [#allocation5], 64, 64, 4
    $region53: #{fwd.2} parent=1 // pred_fallthru
      _
    // Predicated region
    $region54: #{fwd.2} parent=1 // pred_check
      _
    $region55: #{fwd.2} parent=1 // pred_check_branch
      %86 = sbr.rel (0) target = $region57
    $region56: #{fwd.2} parent=1 // pred_region
      _
    $region57: #{fwd.2} parent=1 // pred_fallthru
      _
    // Predicated region
    $region58: #{fwd.2} parent=1 // pred_check
      _
    $region59: #{fwd.2} parent=1 // pred_check_branch
      %88 = sbr.rel (0) target = $region61
    $region60: #{fwd.2} parent=1 // pred_region
      _
    $region61: #{fwd.2} parent=1 // pred_fallthru
      _
    // Predicated region
    $region62: #{fwd.2} parent=1 // pred_check
      _
    $region63: #{fwd.2} parent=1 // pred_check_branch
      %90 = sbr.rel (0) target = $region65
    $region64: #{fwd.2} parent=1 // pred_region
      _
    $region65: #{fwd.2} parent=1 // pred_fallthru
      _
    // Predicated region
    $region66: #{fwd.2} parent=1 // pred_check
      _
    $region67: #{fwd.2} parent=1 // pred_check_branch
      %92 = sbr.rel (0) target = $region69
    $region68: #{fwd.2} parent=1 // pred_region
      _
    $region69: #{fwd.2} parent=1 // pred_fallthru
      _
    // Predicated region
    $region70: #{fwd.2} parent=1 // pred_check
      _
    $region71: #{fwd.2} parent=1 // pred_check_branch
      %94 = sbr.rel (0) target = $region73
    $region72: #{fwd.2} parent=1 // pred_region
      %96 = vsyncadd [#allocation8], 0
      %s98 = sshll.u32 %s17, 4
      %s99 = int_to_ptr.hbm [resolvable:$true] %s98
      %s100 = sshll.u32 [#allocation7], 4
      %s101 = int_to_ptr.vmem [resolvable:$true] %s100
      %103 = dma.hbm_to_vmem [thread:$0]  %s99, 16, %s101, [#allocation8]
    $region73: #{fwd.2} parent=1 // pred_fallthru
      _
    // Predicated region
    $region74: #{fwd.2} parent=1 // pred_check
      _
    $region75: #{fwd.2} parent=1 // pred_check_branch
      %105 = sbr.rel (0) target = $region77
    $region76: #{fwd.2} parent=1 // pred_region
      %107 = dma.done [#allocation3], 6144
    $region77: #{fwd.2} parent=1 // pred_fallthru
      _
    // Predicated region
    $region78: #{fwd.2} parent=1 // pred_check
      _
    $region79: #{fwd.2} parent=1 // pred_check_branch
      %109 = sbr.rel (0) target = $region81
    $region80: #{fwd.2} parent=1 // pred_region
      %111 = dma.done [#allocation5], 4096
    $region81: #{fwd.2} parent=1 // pred_fallthru
      _
    // Predicated region
    $region82: #{fwd.2} parent=1 // pred_check
      _
    $region83: #{fwd.2} parent=1 // pred_check_branch
      %113 = sbr.rel (0) target = $region85
    $region84: #{fwd.2} parent=1 // pred_region
      %115 = dma.done [#allocation5], 4096
    $region85: #{fwd.2} parent=1 // pred_fallthru
      _
    // Predicated region
    $region86: #{fwd.2} parent=1 // pred_check
      _
    $region87: #{fwd.2} parent=1 // pred_check_branch
      %117 = sbr.rel (0) target = $region89
    $region88: #{fwd.2} parent=1 // pred_region
      %119 = dma.done [#allocation8], 16
    $region89: #{fwd.2} parent=1 // pred_fallthru
      _
    %v121 = vld [vmem:[%s1] sm:$0xff]
    %v122 = vld [vmem:[%s0] sm:$0xff]
    %v123 = vld [vmem:[%s0 + $0x8] sm:$0xff]
    %v124 = vadd.f32 %v122, %v121
    %v125 = vadd.f32 %v123, %v121
    %v126 = vld [vmem:[%s2] sm:$0x1]
    %v127 = vld [vmem:[%s3] sm:$0x1]
    %128 = vadd.xlane.f32.xlu0 %v124
    %v129 = vpop.xlane.xlu0 %128
    %130 = vadd.xlane.f32.xlu0 %v125
    %v131 = vpop.xlane.xlu0 %130
    %v132 = vrcp.pop 128.0
    %v133 = vmul.f32 128.0, %v132
    %v134 = vsub.f32 1.0, %v133
    %v135 = vmul.f32 %v132, %v134
    %v136 = vadd.f32 %v132, %v135
    %vm137 = vweird.f32 %v132
    %v138 = vsel %vm137, %v132, %v136
    %v139 = vmul.f32 %v129, %v138
    %v140 = vmul.f32 %v131, %v138
    %v141 = vsub.f32 %v124, %v139
    %v142 = vsub.f32 %v125, %v140
    %v143 = vmul.f32 %v141, %v141
    %v144 = vmul.f32 %v142, %v142
    %145 = vadd.xlane.f32.xlu0 %v143
    %v146 = vpop.xlane.xlu0 %145
    %147 = vadd.xlane.f32.xlu0 %v144
    %v148 = vpop.xlane.xlu0 %147
    %v149 = vmul.f32 %v146, %v138
    %v150 = vmul.f32 %v148, %v138
    %v151 = vadd.f32 %v149, 1e-05
    %v152 = vadd.f32 %v150, 1e-05
    %v153 = vrsqrt.pop %v151
    %v154 = vmul.f32 %v153, %v151
    %v155 = vmul.f32 %v154, %v153
    %v156 = vmul.f32 0.5, %v155
    %v157 = vsub.f32 1.5, %v156
    %v158 = vmul.f32 %v153, %v157
    %vm159 = vweird.f32 %v151
    %vm160 = vweird.f32 %v153
    %vm161 = vmor %vm159, %vm160
    %v162 = vsel %vm161, %v153, %v158
    %v163 = vrsqrt.pop %v152
    %v164 = vmul.f32 %v163, %v152
    %v165 = vmul.f32 %v164, %v163
    %v166 = vmul.f32 0.5, %v165
    %v167 = vsub.f32 1.5, %v166
    %v168 = vmul.f32 %v163, %v167
    %vm169 = vweird.f32 %v152
    %vm170 = vweird.f32 %v163
    %vm171 = vmor %vm169, %vm170
    %v172 = vsel %vm171, %v163, %v168
    %v173 = vmul.f32 %v141, %v162
    %v174 = vmul.f32 %v142, %v172
    %v176 = vperm.slane %v126, 0
    %v178 = vmul.f32 %v173, %v176
    %v179 = vmul.f32 %v174, %v176
    %v181 = vperm.slane %v127, 0
    %v183 = vadd.f32 %v178, %v181
    %v184 = vadd.f32 %v179, %v181
    %v185 = vpack.c.bf16 %v184, %v183
    %v186 = vld [vmem:[#allocation2] sm:$0xff]
    %v187 = vld [vmem:[#allocation2 + $0x8] sm:$0xf]
    %v188 = vld [vmem:[#allocation2 + $0xc] sm:$0xff]
    %v189 = vld [vmem:[#allocation2 + $0x14] sm:$0xf]
    %v190 = vld [vmem:[#allocation2 + $0x18] sm:$0xff]
    %v191 = vld [vmem:[#allocation2 + $0x20] sm:$0xf]
    %v192 = vld [vmem:[#allocation2 + $0x24] sm:$0xff]
    %v193 = vld [vmem:[#allocation2 + $0x2c] sm:$0xf]
    %v194 = vld [vmem:[#allocation2 + $0x30] sm:$0xff]
    %v195 = vld [vmem:[#allocation2 + $0x38] sm:$0xf]
    %v196 = vld [vmem:[#allocation2 + $0x3c] sm:$0xff]
    %v197 = vld [vmem:[#allocation2 + $0x44] sm:$0xf]
    %v198 = vld [vmem:[#allocation2 + $0x48] sm:$0xff]
    %v199 = vld [vmem:[#allocation2 + $0x50] sm:$0xf]
    %v200 = vld [vmem:[#allocation2 + $0x54] sm:$0xff]
    %v201 = vld [vmem:[#allocation2 + $0x5c] sm:$0xf]
    %v202 = vld [vmem:[#allocation2 + $0x60] sm:$0xff]
    %v203 = vld [vmem:[#allocation2 + $0x68] sm:$0xf]
    %v204 = vld [vmem:[#allocation2 + $0x6c] sm:$0xff]
    %v205 = vld [vmem:[#allocation2 + $0x74] sm:$0xf]
    %v206 = vld [vmem:[#allocation2 + $0x78] sm:$0xff]
    %v207 = vld [vmem:[#allocation2 + $0x80] sm:$0xf]
    %v208 = vld [vmem:[#allocation2 + $0x84] sm:$0xff]
    %v209 = vld [vmem:[#allocation2 + $0x8c] sm:$0xf]
    %v210 = vld [vmem:[#allocation2 + $0x90] sm:$0xff]
    %v211 = vld [vmem:[#allocation2 + $0x98] sm:$0xf]
    %v212 = vld [vmem:[#allocation2 + $0x9c] sm:$0xff]
    %v213 = vld [vmem:[#allocation2 + $0xa4] sm:$0xf]
    %v214 = vld [vmem:[#allocation2 + $0xa8] sm:$0xff]
    %v215 = vld [vmem:[#allocation2 + $0xb0] sm:$0xf]
    %v216 = vld [vmem:[#allocation2 + $0xb4] sm:$0xff]
    %v217 = vld [vmem:[#allocation2 + $0xbc] sm:$0xf]
    %v218 = vld [vmem:[%s5] sm:$0x7]
    %v220 = vperm.slane %v218, 0
    %v221 = vperm.slane %v218, 1
    %v222 = vperm.slane %v218, 2
    %v258 = vunpack.c.l.b16 %v186
    %v259 = vunpack.c.h.b16 %v186
    %v260 = vunpack.c.l.b16 %v187
    %v261 = vunpack.c.l.b16 %v188
    %v262 = vunpack.c.h.b16 %v188
    %v263 = vunpack.c.l.b16 %v189
    %v264 = vunpack.c.l.b16 %v190
    %v265 = vunpack.c.h.b16 %v190
    %v266 = vunpack.c.l.b16 %v191
    %v267 = vunpack.c.l.b16 %v192
    %v268 = vunpack.c.h.b16 %v192
    %v269 = vunpack.c.l.b16 %v193
    %v270 = vunpack.c.l.b16 %v194
    %v271 = vunpack.c.h.b16 %v194
    %v272 = vunpack.c.l.b16 %v195
    %v273 = vunpack.c.l.b16 %v196
    %v274 = vunpack.c.h.b16 %v196
    %v275 = vunpack.c.l.b16 %v197
    %v276 = vunpack.c.l.b16 %v198
    %v277 = vunpack.c.h.b16 %v198
    %v278 = vunpack.c.l.b16 %v199
    %v279 = vunpack.c.l.b16 %v200
    %v280 = vunpack.c.h.b16 %v200
    %v281 = vunpack.c.l.b16 %v201
    %v282 = vunpack.c.l.b16 %v202
    %v283 = vunpack.c.h.b16 %v202
    %v284 = vunpack.c.l.b16 %v203
    %v285 = vunpack.c.l.b16 %v204
    %v286 = vunpack.c.h.b16 %v204
    %v287 = vunpack.c.l.b16 %v205
    %v288 = vunpack.c.l.b16 %v206
    %v289 = vunpack.c.h.b16 %v206
    %v290 = vunpack.c.l.b16 %v207
    %v291 = vunpack.c.l.b16 %v208
    %v292 = vunpack.c.h.b16 %v208
    %v293 = vunpack.c.l.b16 %v209
    %v294 = vunpack.c.l.b16 %v210
    %v295 = vunpack.c.h.b16 %v210
    %v296 = vunpack.c.l.b16 %v211
    %v297 = vunpack.c.l.b16 %v212
    %v298 = vunpack.c.h.b16 %v212
    %v299 = vunpack.c.l.b16 %v213
    %v300 = vunpack.c.l.b16 %v214
    %v301 = vunpack.c.h.b16 %v214
    %v302 = vunpack.c.l.b16 %v215
    %v303 = vunpack.c.l.b16 %v216
    %v304 = vunpack.c.h.b16 %v216
    %v305 = vunpack.c.l.b16 %v217
    %v306 = vpack.c.b16 %v261, %v258
    %v307 = vpack.c.b16 %v262, %v259
    %v308 = vpack.c.b16 %v263, %v260
    %v309 = vpack.c.b16 %v267, %v264
    %v310 = vpack.c.b16 %v268, %v265
    %v311 = vpack.c.b16 %v269, %v266
    %v312 = vpack.c.b16 %v273, %v270
    %v313 = vpack.c.b16 %v274, %v271
    %v314 = vpack.c.b16 %v275, %v272
    %v315 = vpack.c.b16 %v279, %v276
    %v316 = vpack.c.b16 %v280, %v277
    %v317 = vpack.c.b16 %v281, %v278
    %v318 = vpack.c.b16 %v285, %v282
    %v319 = vpack.c.b16 %v286, %v283
    %v320 = vpack.c.b16 %v287, %v284
    %v321 = vpack.c.b16 %v291, %v288
    %v322 = vpack.c.b16 %v292, %v289
    %v323 = vpack.c.b16 %v293, %v290
    %v324 = vpack.c.b16 %v297, %v294
    %v325 = vpack.c.b16 %v298, %v295
    %v326 = vpack.c.b16 %v299, %v296
    %v327 = vpack.c.b16 %v303, %v300
    %v328 = vpack.c.b16 %v304, %v301
    %v329 = vpack.c.b16 %v305, %v302
    %354 = vmatpush.bf16.msra.mxu0 %v327
    %355 = vmatpush.bf16.msra.mxu0 %v324
    %356 = vmatpush.bf16.msra.mxu0 %v321
    %357 = vmatpush.bf16.msra.mxu0 %v318
    %358 = vmatpush.bf16.msra.mxu0 %v315
    %359 = vmatpush.bf16.msra.mxu0 %v312
    %360 = vmatpush.bf16.msra.mxu0 %v309
    %361 = vmatpush.bf16.msra.mxu0 %v306
    %362 = vmatmul.bf16.gmra.mxu0 %v185
    %v363 = vpop.f32.mrf.mxu0
    %v364 = vadd.f32 %v220, %v363
    %v365 = vpop.f32.mrf.mxu0
    %v366 = vadd.f32 %v220, %v365
    %367 = vdwg.mxu0
    %368 = vmatpush.bf16.msra.mxu0 %v328
    %369 = vmatpush.bf16.msra.mxu0 %v325
    %370 = vmatpush.bf16.msra.mxu0 %v322
    %371 = vmatpush.bf16.msra.mxu0 %v319
    %372 = vmatpush.bf16.msra.mxu0 %v316
    %373 = vmatpush.bf16.msra.mxu0 %v313
    %374 = vmatpush.bf16.msra.mxu0 %v310
    %375 = vmatpush.bf16.msra.mxu0 %v307
    %376 = vmatmul.bf16.gmra.mxu0 %v185
    %v377 = vpop.f32.mrf.mxu0
    %v378 = vadd.f32 %v221, %v377
    %v379 = vpop.f32.mrf.mxu0
    %v380 = vadd.f32 %v221, %v379
    %381 = vdwg.mxu0
    %382 = vmatpush.bf16.msra.mxu0 %v329
    %383 = vmatpush.bf16.msra.mxu0 %v326
    %384 = vmatpush.bf16.msra.mxu0 %v323
    %385 = vmatpush.bf16.msra.mxu0 %v320
    %386 = vmatpush.bf16.msra.mxu0 %v317
    %387 = vmatpush.bf16.msra.mxu0 %v314
    %388 = vmatpush.bf16.msra.mxu0 %v311
    %389 = vmatpush.bf16.msra.mxu0 %v308
    %390 = vmatmul.bf16.gmra.mxu0 %v185
    %v391 = vpop.f32.mrf.mxu0
    %v392 = vadd.f32 %v222, %v391
    %v393 = vpop.f32.mrf.mxu0
    %v394 = vadd.f32 %v222, %v393
    %395 = vdwg.mxu0
    %v396 = vpack.c.bf16 %v378, %v364
    %v397 = vpack.c.bf16 %v392, %v392
    %v398 = vpack.c.bf16 %v380, %v366
    %v399 = vpack.c.bf16 %v394, %v394
    %v401 = vunpack.c.h.b16 %v396
    %v402 = vpack.c.b16 %v401, %v401
    %vm403 = vcmask 261120
    %v405 = vsel %vm403, %v396, 0
    %v408 = vsel %vm403, %v402, 0
    %410 = vmatpush.bf16.xpose.msra.mxu0 0
    %411 = vmatpush.bf16.xpose.msra.mxu0 0
    %412 = vmatpush.bf16.xpose.msra.mxu0 0
    %413 = vmatpush.bf16.xpose.msra.mxu0 0
    %414 = vmatpush.bf16.xpose.msra.mxu0 0
    %415 = vmatpush.bf16.xpose.msra.mxu0 0
    %416 = vmatpush.bf16.xpose.msra.mxu0 0
    %417 = vmatpush.bf16.xpose.msra.mxu0 %v408
    %418 = vmatmul.bf16.gmra.mxu0 %v405
    %v419 = vpop.f32.mrf.mxu0
    %v420 = vadd.f32 0.0, %v419
    %v421 = vpop.f32.mrf.mxu0
    %422 = vdwg.mxu0
    %v423 = vmul.f32 %v420, 0.17677669
    %vm424 = vcmask 64512
    %v425 = vsel %vm424, %v423, -inf
    %426 = vmax.xlane.f32.xlu0 %v425
    %v427 = vpop.xlane.xlu0 %426
    %v428 = vsub.f32 %v423, %v427
    %v429 = vmul.f32 %v428, 1.442695
    %v430 = vpow.pop %v429
    %v431 = vsel %vm424, %v430, 0.0
    %432 = vadd.xlane.f32.xlu0 %v431
    %v433 = vpop.xlane.xlu0 %432
    %v434 = vrcp.pop %v433
    %v435 = vmul.f32 %v430, %v434
    %v436 = vpack.c.bf16 %v435, %v435
    %v438 = vsel %vm424, %v436, 0
    %vm440 = vcmask 1043456
    %v442 = vsel %vm440, %v397, 0
    %444 = vmatpush.bf16.msra.mxu0 0
    %445 = vmatpush.bf16.msra.mxu0 0
    %446 = vmatpush.bf16.msra.mxu0 0
    %447 = vmatpush.bf16.msra.mxu0 0
    %448 = vmatpush.bf16.msra.mxu0 0
    %449 = vmatpush.bf16.msra.mxu0 0
    %450 = vmatpush.bf16.msra.mxu0 0
    %451 = vmatpush.bf16.msra.mxu0 %v442
    %452 = vmatmul.bf16.gmra.mxu0 %v438
    %v453 = vpop.f32.mrf.mxu0
    %v454 = vadd.f32 0.0, %v453
    %v455 = vpop.f32.mrf.mxu0
    %456 = vdwg.mxu0
    %v457 = vunpack.c.l.b16 %v396
    %v458 = vpack.c.b16 %v457, %v457
    %459 = vrot.lane.b32.xlu0 %v458, 96
    %v460 = vpop.permute.xlu0 %459
    %461 = vrot.lane.b32.xlu0 %v402, 96
    %v462 = vpop.permute.xlu0 %461
    %v464 = vsel %vm403, %v460, 0
    %v467 = vsel %vm403, %v462, 0
    %469 = vmatpush.bf16.xpose.msra.mxu0 0
    %470 = vmatpush.bf16.xpose.msra.mxu0 0
    %471 = vmatpush.bf16.xpose.msra.mxu0 0
    %472 = vmatpush.bf16.xpose.msra.mxu0 0
    %473 = vmatpush.bf16.xpose.msra.mxu0 0
    %474 = vmatpush.bf16.xpose.msra.mxu0 0
    %475 = vmatpush.bf16.xpose.msra.mxu0 0
    %476 = vmatpush.bf16.xpose.msra.mxu0 %v467
    %477 = vmatmul.bf16.gmra.mxu0 %v464
    %v478 = vpop.f32.mrf.mxu0
    %v479 = vadd.f32 0.0, %v478
    %v480 = vpop.f32.mrf.mxu0
    %481 = vdwg.mxu0
    %v482 = vmul.f32 %v479, 0.17677669
    %v483 = vsel %vm424, %v482, -inf
    %484 = vmax.xlane.f32.xlu0 %v483
    %v485 = vpop.xlane.xlu0 %484
    %v486 = vsub.f32 %v482, %v485
    %v487 = vmul.f32 %v486, 1.442695
    %v488 = vpow.pop %v487
    %v489 = vsel %vm424, %v488, 0.0
    %490 = vadd.xlane.f32.xlu0 %v489
    %v491 = vpop.xlane.xlu0 %490
    %v492 = vrcp.pop %v491
    %v493 = vmul.f32 %v488, %v492
    %v494 = vpack.c.bf16 %v493, %v493
    %v496 = vunpack.c.l.b16 %v397
    %v497 = vpack.c.b16 %v496, %v496
    %498 = vrot.lane.b32.xlu0 %v497, 96
    %v499 = vpop.permute.xlu0 %498
    %v501 = vsel %vm424, %v494, 0
    %v504 = vsel %vm440, %v499, 0
    %506 = vmatpush.bf16.msra.mxu0 0
    %507 = vmatpush.bf16.msra.mxu0 0
    %508 = vmatpush.bf16.msra.mxu0 0
    %509 = vmatpush.bf16.msra.mxu0 0
    %510 = vmatpush.bf16.msra.mxu0 0
    %511 = vmatpush.bf16.msra.mxu0 0
    %512 = vmatpush.bf16.msra.mxu0 0
    %513 = vmatpush.bf16.msra.mxu0 %v504
    %514 = vmatmul.bf16.gmra.mxu0 %v501
    %v515 = vpop.f32.mrf.mxu0
    %v516 = vadd.f32 0.0, %v515
    %v517 = vpop.f32.mrf.mxu0
    %518 = vdwg.mxu0
    %519 = vrot.lane.b32.xlu0 %v458, 64
    %v520 = vpop.permute.xlu0 %519
    %521 = vrot.lane.b32.xlu0 %v402, 64
    %v522 = vpop.permute.xlu0 %521
    %v524 = vsel %vm403, %v520, 0
    %v527 = vsel %vm403, %v522, 0
    %529 = vmatpush.bf16.xpose.msra.mxu0 0
    %530 = vmatpush.bf16.xpose.msra.mxu0 0
    %531 = vmatpush.bf16.xpose.msra.mxu0 0
    %532 = vmatpush.bf16.xpose.msra.mxu0 0
    %533 = vmatpush.bf16.xpose.msra.mxu0 0
    %534 = vmatpush.bf16.xpose.msra.mxu0 0
    %535 = vmatpush.bf16.xpose.msra.mxu0 0
    %536 = vmatpush.bf16.xpose.msra.mxu0 %v527
    %537 = vmatmul.bf16.gmra.mxu0 %v524
    %v538 = vpop.f32.mrf.mxu0
    %v539 = vadd.f32 0.0, %v538
    %v540 = vpop.f32.mrf.mxu0
    %541 = vdwg.mxu0
    %v542 = vmul.f32 %v539, 0.17677669
    %v543 = vsel %vm424, %v542, -inf
    %544 = vmax.xlane.f32.xlu0 %v543
    %v545 = vpop.xlane.xlu0 %544
    %v546 = vsub.f32 %v542, %v545
    %v547 = vmul.f32 %v546, 1.442695
    %v548 = vpow.pop %v547
    %v549 = vsel %vm424, %v548, 0.0
    %550 = vadd.xlane.f32.xlu0 %v549
    %v551 = vpop.xlane.xlu0 %550
    %v552 = vrcp.pop %v551
    %v553 = vmul.f32 %v548, %v552
    %v554 = vpack.c.bf16 %v553, %v553
    %555 = vrot.lane.b32.xlu0 %v497, 64
    %v556 = vpop.permute.xlu0 %555
    %v558 = vsel %vm424, %v554, 0
    %v561 = vsel %vm440, %v556, 0
    %563 = vmatpush.bf16.msra.mxu0 0
    %564 = vmatpush.bf16.msra.mxu0 0
    %565 = vmatpush.bf16.msra.mxu0 0
    %566 = vmatpush.bf16.msra.mxu0 0
    %567 = vmatpush.bf16.msra.mxu0 0
    %568 = vmatpush.bf16.msra.mxu0 0
    %569 = vmatpush.bf16.msra.mxu0 0
    %570 = vmatpush.bf16.msra.mxu0 %v561
    %571 = vmatmul.bf16.gmra.mxu0 %v558
    %v572 = vpop.f32.mrf.mxu0
    %v573 = vadd.f32 0.0, %v572
    %v574 = vpop.f32.mrf.mxu0
    %575 = vdwg.mxu0
    %576 = vrot.lane.b32.xlu0 %v458, 32
    %v577 = vpop.permute.xlu0 %576
    %578 = vrot.lane.b32.xlu0 %v402, 32
    %v579 = vpop.permute.xlu0 %578
    %v581 = vsel %vm403, %v577, 0
    %v584 = vsel %vm403, %v579, 0
    %586 = vmatpush.bf16.xpose.msra.mxu0 0
    %587 = vmatpush.bf16.xpose.msra.mxu0 0
    %588 = vmatpush.bf16.xpose.msra.mxu0 0
    %589 = vmatpush.bf16.xpose.msra.mxu0 0
    %590 = vmatpush.bf16.xpose.msra.mxu0 0
    %591 = vmatpush.bf16.xpose.msra.mxu0 0
    %592 = vmatpush.bf16.xpose.msra.mxu0 0
    %593 = vmatpush.bf16.xpose.msra.mxu0 %v584
    %594 = vmatmul.bf16.gmra.mxu0 %v581
    %v595 = vpop.f32.mrf.mxu0
    %v596 = vadd.f32 0.0, %v595
    %v597 = vpop.f32.mrf.mxu0
    %598 = vdwg.mxu0
    %v599 = vmul.f32 %v596, 0.17677669
    %v600 = vsel %vm424, %v599, -inf
    %601 = vmax.xlane.f32.xlu0 %v600
    %v602 = vpop.xlane.xlu0 %601
    %v603 = vsub.f32 %v599, %v602
    %v604 = vmul.f32 %v603, 1.442695
    %v605 = vpow.pop %v604
    %v606 = vsel %vm424, %v605, 0.0
    %607 = vadd.xlane.f32.xlu0 %v606
    %v608 = vpop.xlane.xlu0 %607
    %v609 = vrcp.pop %v608
    %v610 = vmul.f32 %v605, %v609
    %v611 = vpack.c.bf16 %v610, %v610
    %612 = vrot.lane.b32.xlu0 %v497, 32
    %v613 = vpop.permute.xlu0 %612
    %v615 = vsel %vm424, %v611, 0
    %v618 = vsel %vm440, %v613, 0
    %620 = vmatpush.bf16.msra.mxu0 0
    %621 = vmatpush.bf16.msra.mxu0 0
    %622 = vmatpush.bf16.msra.mxu0 0
    %623 = vmatpush.bf16.msra.mxu0 0
    %624 = vmatpush.bf16.msra.mxu0 0
    %625 = vmatpush.bf16.msra.mxu0 0
    %626 = vmatpush.bf16.msra.mxu0 0
    %627 = vmatpush.bf16.msra.mxu0 %v618
    %628 = vmatmul.bf16.gmra.mxu0 %v615
    %v629 = vpop.f32.mrf.mxu0
    %v630 = vadd.f32 0.0, %v629
    %v631 = vpop.f32.mrf.mxu0
    %632 = vdwg.mxu0
    %634 = vrot.lane.b32.xlu0 %v516, 32
    %v635 = vpop.permute.xlu0 %634
    %638 = vrot.lane.b32.xlu0 %v573, 64
    %v639 = vpop.permute.xlu0 %638
    %642 = vrot.lane.b32.xlu0 %v630, 96
    %v643 = vpop.permute.xlu0 %642
    %v645 = vsel %vm403, %v454, %v635
    %vm646 = vcmask 523264
    %v647 = vsel %vm646, %v645, %v639
    %vm648 = vcmask 785408
    %v649 = vsel %vm648, %v647, %v643
    %v651 = vunpack.c.h.b16 %v398
    %v652 = vpack.c.b16 %v651, %v651
    %v654 = vsel %vm403, %v398, 0
    %v657 = vsel %vm403, %v652, 0
    %659 = vmatpush.bf16.xpose.msra.mxu0 0
    %660 = vmatpush.bf16.xpose.msra.mxu0 0
    %661 = vmatpush.bf16.xpose.msra.mxu0 0
    %662 = vmatpush.bf16.xpose.msra.mxu0 0
    %663 = vmatpush.bf16.xpose.msra.mxu0 0
    %664 = vmatpush.bf16.xpose.msra.mxu0 0
    %665 = vmatpush.bf16.xpose.msra.mxu0 0
    %666 = vmatpush.bf16.xpose.msra.mxu0 %v657
    %667 = vmatmul.bf16.gmra.mxu0 %v654
    %v668 = vpop.f32.mrf.mxu0
    %v669 = vadd.f32 0.0, %v668
    %v670 = vpop.f32.mrf.mxu0
    %671 = vdwg.mxu0
    %v672 = vmul.f32 %v669, 0.17677669
    %v673 = vsel %vm424, %v672, -inf
    %674 = vmax.xlane.f32.xlu0 %v673
    %v675 = vpop.xlane.xlu0 %674
    %v676 = vsub.f32 %v672, %v675
    %v677 = vmul.f32 %v676, 1.442695
    %v678 = vpow.pop %v677
    %v679 = vsel %vm424, %v678, 0.0
    %680 = vadd.xlane.f32.xlu0 %v679
    %v681 = vpop.xlane.xlu0 %680
    %v682 = vrcp.pop %v681
    %v683 = vmul.f32 %v678, %v682
    %v684 = vpack.c.bf16 %v683, %v683
    %v686 = vsel %vm424, %v684, 0
    %v689 = vsel %vm440, %v399, 0
    %691 = vmatpush.bf16.msra.mxu0 0
    %692 = vmatpush.bf16.msra.mxu0 0
    %693 = vmatpush.bf16.msra.mxu0 0
    %694 = vmatpush.bf16.msra.mxu0 0
    %695 = vmatpush.bf16.msra.mxu0 0
    %696 = vmatpush.bf16.msra.mxu0 0
    %697 = vmatpush.bf16.msra.mxu0 0
    %698 = vmatpush.bf16.msra.mxu0 %v689
    %699 = vmatmul.bf16.gmra.mxu0 %v686
    %v700 = vpop.f32.mrf.mxu0
    %v701 = vadd.f32 0.0, %v700
    %v702 = vpop.f32.mrf.mxu0
    %703 = vdwg.mxu0
    %v704 = vunpack.c.l.b16 %v398
    %v705 = vpack.c.b16 %v704, %v704
    %706 = vrot.lane.b32.xlu0 %v705, 96
    %v707 = vpop.permute.xlu0 %706
    %708 = vrot.lane.b32.xlu0 %v652, 96
    %v709 = vpop.permute.xlu0 %708
    %v711 = vsel %vm403, %v707, 0
    %v714 = vsel %vm403, %v709, 0
    %716 = vmatpush.bf16.xpose.msra.mxu0 0
    %717 = vmatpush.bf16.xpose.msra.mxu0 0
    %718 = vmatpush.bf16.xpose.msra.mxu0 0
    %719 = vmatpush.bf16.xpose.msra.mxu0 0
    %720 = vmatpush.bf16.xpose.msra.mxu0 0
    %721 = vmatpush.bf16.xpose.msra.mxu0 0
    %722 = vmatpush.bf16.xpose.msra.mxu0 0
    %723 = vmatpush.bf16.xpose.msra.mxu0 %v714
    %724 = vmatmul.bf16.gmra.mxu0 %v711
    %v725 = vpop.f32.mrf.mxu0
    %v726 = vadd.f32 0.0, %v725
    %v727 = vpop.f32.mrf.mxu0
    %728 = vdwg.mxu0
    %v729 = vmul.f32 %v726, 0.17677669
    %v730 = vsel %vm424, %v729, -inf
    %731 = vmax.xlane.f32.xlu0 %v730
    %v732 = vpop.xlane.xlu0 %731
    %v733 = vsub.f32 %v729, %v732
    %v734 = vmul.f32 %v733, 1.442695
    %v735 = vpow.pop %v734
    %v736 = vsel %vm424, %v735, 0.0
    %737 = vadd.xlane.f32.xlu0 %v736
    %v738 = vpop.xlane.xlu0 %737
    %v739 = vrcp.pop %v738
    %v740 = vmul.f32 %v735, %v739
    %v741 = vpack.c.bf16 %v740, %v740
    %v743 = vunpack.c.l.b16 %v399
    %v744 = vpack.c.b16 %v743, %v743
    %745 = vrot.lane.b32.xlu0 %v744, 96
    %v746 = vpop.permute.xlu0 %745
    %v748 = vsel %vm424, %v741, 0
    %v751 = vsel %vm440, %v746, 0
    %753 = vmatpush.bf16.msra.mxu0 0
    %754 = vmatpush.bf16.msra.mxu0 0
    %755 = vmatpush.bf16.msra.mxu0 0
    %756 = vmatpush.bf16.msra.mxu0 0
    %757 = vmatpush.bf16.msra.mxu0 0
    %758 = vmatpush.bf16.msra.mxu0 0
    %759 = vmatpush.bf16.msra.mxu0 0
    %760 = vmatpush.bf16.msra.mxu0 %v751
    %761 = vmatmul.bf16.gmra.mxu0 %v748
    %v762 = vpop.f32.mrf.mxu0
    %v763 = vadd.f32 0.0, %v762
    %v764 = vpop.f32.mrf.mxu0
    %765 = vdwg.mxu0
    %766 = vrot.lane.b32.xlu0 %v705, 64
    %v767 = vpop.permute.xlu0 %766
    %768 = vrot.lane.b32.xlu0 %v652, 64
    %v769 = vpop.permute.xlu0 %768
    %v771 = vsel %vm403, %v767, 0
    %v774 = vsel %vm403, %v769, 0
    %776 = vmatpush.bf16.xpose.msra.mxu0 0
    %777 = vmatpush.bf16.xpose.msra.mxu0 0
    %778 = vmatpush.bf16.xpose.msra.mxu0 0
    %779 = vmatpush.bf16.xpose.msra.mxu0 0
    %780 = vmatpush.bf16.xpose.msra.mxu0 0
    %781 = vmatpush.bf16.xpose.msra.mxu0 0
    %782 = vmatpush.bf16.xpose.msra.mxu0 0
    %783 = vmatpush.bf16.xpose.msra.mxu0 %v774
    %784 = vmatmul.bf16.gmra.mxu0 %v771
    %v785 = vpop.f32.mrf.mxu0
    %v786 = vadd.f32 0.0, %v785
    %v787 = vpop.f32.mrf.mxu0
    %788 = vdwg.mxu0
    %v789 = vmul.f32 %v786, 0.17677669
    %v790 = vsel %vm424, %v789, -inf
    %791 = vmax.xlane.f32.xlu0 %v790
    %v792 = vpop.xlane.xlu0 %791
    %v793 = vsub.f32 %v789, %v792
    %v794 = vmul.f32 %v793, 1.442695
    %v795 = vpow.pop %v794
    %v796 = vsel %vm424, %v795, 0.0
    %797 = vadd.xlane.f32.xlu0 %v796
    %v798 = vpop.xlane.xlu0 %797
    %v799 = vrcp.pop %v798
    %v800 = vmul.f32 %v795, %v799
    %v801 = vpack.c.bf16 %v800, %v800
    %802 = vrot.lane.b32.xlu0 %v744, 64
    %v803 = vpop.permute.xlu0 %802
    %v805 = vsel %vm424, %v801, 0
    %v808 = vsel %vm440, %v803, 0
    %810 = vmatpush.bf16.msra.mxu0 0
    %811 = vmatpush.bf16.msra.mxu0 0
    %812 = vmatpush.bf16.msra.mxu0 0
    %813 = vmatpush.bf16.msra.mxu0 0
    %814 = vmatpush.bf16.msra.mxu0 0
    %815 = vmatpush.bf16.msra.mxu0 0
    %816 = vmatpush.bf16.msra.mxu0 0
    %817 = vmatpush.bf16.msra.mxu0 %v808
    %818 = vmatmul.bf16.gmra.mxu0 %v805
    %v819 = vpop.f32.mrf.mxu0
    %v820 = vadd.f32 0.0, %v819
    %v821 = vpop.f32.mrf.mxu0
    %822 = vdwg.mxu0
    %823 = vrot.lane.b32.xlu0 %v705, 32
    %v824 = vpop.permute.xlu0 %823
    %825 = vrot.lane.b32.xlu0 %v652, 32
    %v826 = vpop.permute.xlu0 %825
    %v828 = vsel %vm403, %v824, 0
    %v831 = vsel %vm403, %v826, 0
    %833 = vmatpush.bf16.xpose.msra.mxu0 0
    %834 = vmatpush.bf16.xpose.msra.mxu0 0
    %835 = vmatpush.bf16.xpose.msra.mxu0 0
    %836 = vmatpush.bf16.xpose.msra.mxu0 0
    %837 = vmatpush.bf16.xpose.msra.mxu0 0
    %838 = vmatpush.bf16.xpose.msra.mxu0 0
    %839 = vmatpush.bf16.xpose.msra.mxu0 0
    %840 = vmatpush.bf16.xpose.msra.mxu0 %v831
    %841 = vmatmul.bf16.gmra.mxu0 %v828
    %v842 = vpop.f32.mrf.mxu0
    %v843 = vadd.f32 0.0, %v842
    %v844 = vpop.f32.mrf.mxu0
    %845 = vdwg.mxu0
    %v846 = vmul.f32 %v843, 0.17677669
    %v847 = vsel %vm424, %v846, -inf
    %848 = vmax.xlane.f32.xlu0 %v847
    %v849 = vpop.xlane.xlu0 %848
    %v850 = vsub.f32 %v846, %v849
    %v851 = vmul.f32 %v850, 1.442695
    %v852 = vpow.pop %v851
    %v853 = vsel %vm424, %v852, 0.0
    %854 = vadd.xlane.f32.xlu0 %v853
    %v855 = vpop.xlane.xlu0 %854
    %v856 = vrcp.pop %v855
    %v857 = vmul.f32 %v852, %v856
    %v858 = vpack.c.bf16 %v857, %v857
    %859 = vrot.lane.b32.xlu0 %v744, 32
    %v860 = vpop.permute.xlu0 %859
    %v862 = vsel %vm424, %v858, 0
    %v865 = vsel %vm440, %v860, 0
    %867 = vmatpush.bf16.msra.mxu0 0
    %868 = vmatpush.bf16.msra.mxu0 0
    %869 = vmatpush.bf16.msra.mxu0 0
    %870 = vmatpush.bf16.msra.mxu0 0
    %871 = vmatpush.bf16.msra.mxu0 0
    %872 = vmatpush.bf16.msra.mxu0 0
    %873 = vmatpush.bf16.msra.mxu0 0
    %874 = vmatpush.bf16.msra.mxu0 %v865
    %875 = vmatmul.bf16.gmra.mxu0 %v862
    %v876 = vpop.f32.mrf.mxu0
    %v877 = vadd.f32 0.0, %v876
    %v878 = vpop.f32.mrf.mxu0
    %879 = vdwg.mxu0
    %881 = vrot.lane.b32.xlu0 %v763, 32
    %v882 = vpop.permute.xlu0 %881
    %885 = vrot.lane.b32.xlu0 %v820, 64
    %v886 = vpop.permute.xlu0 %885
    %889 = vrot.lane.b32.xlu0 %v877, 96
    %v890 = vpop.permute.xlu0 %889
    %v892 = vsel %vm403, %v701, %v882
    %v893 = vsel %vm646, %v892, %v886
    %v894 = vsel %vm648, %v893, %v890
    %v895 = vpack.c.bf16 %v894, %v649
    %v896 = vld [vmem:[%s6] sm:$0xf]
    %v897 = vld [vmem:[%s6 + $0x4] sm:$0xf]
    %v898 = vld [vmem:[%s6 + $0x8] sm:$0xf]
    %v899 = vld [vmem:[%s6 + $0xc] sm:$0xf]
    %v900 = vld [vmem:[%s6 + $0x10] sm:$0xf]
    %v901 = vld [vmem:[%s6 + $0x14] sm:$0xf]
    %v902 = vld [vmem:[%s6 + $0x18] sm:$0xf]
    %v903 = vld [vmem:[%s6 + $0x1c] sm:$0xf]
    %v904 = vld [vmem:[%s6 + $0x20] sm:$0xf]
    %v905 = vld [vmem:[%s6 + $0x24] sm:$0xf]
    %v906 = vld [vmem:[%s6 + $0x28] sm:$0xf]
    %v907 = vld [vmem:[%s6 + $0x2c] sm:$0xf]
    %v908 = vld [vmem:[%s6 + $0x30] sm:$0xf]
    %v909 = vld [vmem:[%s6 + $0x34] sm:$0xf]
    %v910 = vld [vmem:[%s6 + $0x38] sm:$0xf]
    %v911 = vld [vmem:[%s6 + $0x3c] sm:$0xf]
    %v912 = vld [vmem:[%s7] sm:$0x1]
    %v914 = vperm.slane %v912, 0
    %v932 = vunpack.c.l.b16 %v896
    %v933 = vunpack.c.l.b16 %v897
    %v934 = vunpack.c.l.b16 %v898
    %v935 = vunpack.c.l.b16 %v899
    %v936 = vunpack.c.l.b16 %v900
    %v937 = vunpack.c.l.b16 %v901
    %v938 = vunpack.c.l.b16 %v902
    %v939 = vunpack.c.l.b16 %v903
    %v940 = vunpack.c.l.b16 %v904
    %v941 = vunpack.c.l.b16 %v905
    %v942 = vunpack.c.l.b16 %v906
    %v943 = vunpack.c.l.b16 %v907
    %v944 = vunpack.c.l.b16 %v908
    %v945 = vunpack.c.l.b16 %v909
    %v946 = vunpack.c.l.b16 %v910
    %v947 = vunpack.c.l.b16 %v911
    %v948 = vpack.c.b16 %v933, %v932
    %v949 = vpack.c.b16 %v935, %v934
    %v950 = vpack.c.b16 %v937, %v936
    %v951 = vpack.c.b16 %v939, %v938
    %v952 = vpack.c.b16 %v941, %v940
    %v953 = vpack.c.b16 %v943, %v942
    %v954 = vpack.c.b16 %v945, %v944
    %v955 = vpack.c.b16 %v947, %v946
    %964 = vmatpush.bf16.msra.mxu0 %v955
    %965 = vmatpush.bf16.msra.mxu0 %v954
    %966 = vmatpush.bf16.msra.mxu0 %v953
    %967 = vmatpush.bf16.msra.mxu0 %v952
    %968 = vmatpush.bf16.msra.mxu0 %v951
    %969 = vmatpush.bf16.msra.mxu0 %v950
    %970 = vmatpush.bf16.msra.mxu0 %v949
    %971 = vmatpush.bf16.msra.mxu0 %v948
    %972 = vmatmul.bf16.gmra.mxu0 %v895
    %v973 = vpop.f32.mrf.mxu0
    %v974 = vadd.f32 %v914, %v973
    %v975 = vpop.f32.mrf.mxu0
    %v976 = vadd.f32 %v914, %v975
    %977 = vdwg.mxu0
    %v978 = vadd.f32 %v183, %v974
    %v979 = vadd.f32 %v184, %v976
    %v980 = vld [vmem:[%s8] sm:$0x1]
    %v981 = vld [vmem:[%s9] sm:$0x1]
    %982 = vadd.xlane.f32.xlu0 %v978
    %v983 = vpop.xlane.xlu0 %982
    %984 = vadd.xlane.f32.xlu0 %v979
    %v985 = vpop.xlane.xlu0 %984
    %v986 = vmul.f32 %v983, %v138
    %v987 = vmul.f32 %v985, %v138
    %v988 = vsub.f32 %v978, %v986
    %v989 = vsub.f32 %v979, %v987
    %v990 = vmul.f32 %v988, %v988
    %v991 = vmul.f32 %v989, %v989
    %992 = vadd.xlane.f32.xlu0 %v990
    %v993 = vpop.xlane.xlu0 %992
    %994 = vadd.xlane.f32.xlu0 %v991
    %v995 = vpop.xlane.xlu0 %994
    %v996 = vmul.f32 %v993, %v138
    %v997 = vmul.f32 %v995, %v138
    %v998 = vadd.f32 %v996, 1e-05
    %v999 = vadd.f32 %v997, 1e-05
    %v1000 = vrsqrt.pop %v998
    %v1001 = vmul.f32 %v1000, %v998
    %v1002 = vmul.f32 %v1001, %v1000
    %v1003 = vmul.f32 0.5, %v1002
    %v1004 = vsub.f32 1.5, %v1003
    %v1005 = vmul.f32 %v1000, %v1004
    %vm1006 = vweird.f32 %v998
    %vm1007 = vweird.f32 %v1000
    %vm1008 = vmor %vm1006, %vm1007
    %v1009 = vsel %vm1008, %v1000, %v1005
    %v1010 = vrsqrt.pop %v999
    %v1011 = vmul.f32 %v1010, %v999
    %v1012 = vmul.f32 %v1011, %v1010
    %v1013 = vmul.f32 0.5, %v1012
    %v1014 = vsub.f32 1.5, %v1013
    %v1015 = vmul.f32 %v1010, %v1014
    %vm1016 = vweird.f32 %v999
    %vm1017 = vweird.f32 %v1010
    %vm1018 = vmor %vm1016, %vm1017
    %v1019 = vsel %vm1018, %v1010, %v1015
    %v1020 = vmul.f32 %v988, %v1009
    %v1021 = vmul.f32 %v989, %v1019
    %v1023 = vperm.slane %v980, 0
    %v1025 = vmul.f32 %v1020, %v1023
    %v1026 = vmul.f32 %v1021, %v1023
    %v1028 = vperm.slane %v981, 0
    %v1030 = vadd.f32 %v1025, %v1028
    %v1031 = vadd.f32 %v1026, %v1028
    %v1032 = vpack.c.bf16 %v1031, %v1030
    %v1033 = vld [vmem:[#allocation4] sm:$0xff]
    %v1034 = vld [vmem:[#allocation4 + $0x8] sm:$0xff]
    %v1035 = vld [vmem:[#allocation4 + $0x10] sm:$0xff]
    %v1036 = vld [vmem:[#allocation4 + $0x18] sm:$0xff]
    %v1037 = vld [vmem:[#allocation4 + $0x20] sm:$0xff]
    %v1038 = vld [vmem:[#allocation4 + $0x28] sm:$0xff]
    %v1039 = vld [vmem:[#allocation4 + $0x30] sm:$0xff]
    %v1040 = vld [vmem:[#allocation4 + $0x38] sm:$0xff]
    %v1041 = vld [vmem:[#allocation4 + $0x40] sm:$0xff]
    %v1042 = vld [vmem:[#allocation4 + $0x48] sm:$0xff]
    %v1043 = vld [vmem:[#allocation4 + $0x50] sm:$0xff]
    %v1044 = vld [vmem:[#allocation4 + $0x58] sm:$0xff]
    %v1045 = vld [vmem:[#allocation4 + $0x60] sm:$0xff]
    %v1046 = vld [vmem:[#allocation4 + $0x68] sm:$0xff]
    %v1047 = vld [vmem:[#allocation4 + $0x70] sm:$0xff]
    %v1048 = vld [vmem:[#allocation4 + $0x78] sm:$0xff]
    %v1049 = vld [vmem:[%s11] sm:$0x3]
    %v1051 = vperm.slane %v1049, 0
    %v1052 = vperm.slane %v1049, 1
    %v1071 = vunpack.c.l.b16 %v1033
    %v1072 = vunpack.c.h.b16 %v1033
    %v1073 = vunpack.c.l.b16 %v1034
    %v1074 = vunpack.c.h.b16 %v1034
    %v1075 = vunpack.c.l.b16 %v1035
    %v1076 = vunpack.c.h.b16 %v1035
    %v1077 = vunpack.c.l.b16 %v1036
    %v1078 = vunpack.c.h.b16 %v1036
    %v1079 = vunpack.c.l.b16 %v1037
    %v1080 = vunpack.c.h.b16 %v1037
    %v1081 = vunpack.c.l.b16 %v1038
    %v1082 = vunpack.c.h.b16 %v1038
    %v1083 = vunpack.c.l.b16 %v1039
    %v1084 = vunpack.c.h.b16 %v1039
    %v1085 = vunpack.c.l.b16 %v1040
    %v1086 = vunpack.c.h.b16 %v1040
    %v1087 = vunpack.c.l.b16 %v1041
    %v1088 = vunpack.c.h.b16 %v1041
    %v1089 = vunpack.c.l.b16 %v1042
    %v1090 = vunpack.c.h.b16 %v1042
    %v1091 = vunpack.c.l.b16 %v1043
    %v1092 = vunpack.c.h.b16 %v1043
    %v1093 = vunpack.c.l.b16 %v1044
    %v1094 = vunpack.c.h.b16 %v1044
    %v1095 = vunpack.c.l.b16 %v1045
    %v1096 = vunpack.c.h.b16 %v1045
    %v1097 = vunpack.c.l.b16 %v1046
    %v1098 = vunpack.c.h.b16 %v1046
    %v1099 = vunpack.c.l.b16 %v1047
    %v1100 = vunpack.c.h.b16 %v1047
    %v1101 = vunpack.c.l.b16 %v1048
    %v1102 = vunpack.c.h.b16 %v1048
    %v1103 = vpack.c.b16 %v1073, %v1071
    %v1104 = vpack.c.b16 %v1074, %v1072
    %v1105 = vpack.c.b16 %v1077, %v1075
    %v1106 = vpack.c.b16 %v1078, %v1076
    %v1107 = vpack.c.b16 %v1081, %v1079
    %v1108 = vpack.c.b16 %v1082, %v1080
    %v1109 = vpack.c.b16 %v1085, %v1083
    %v1110 = vpack.c.b16 %v1086, %v1084
    %v1111 = vpack.c.b16 %v1089, %v1087
    %v1112 = vpack.c.b16 %v1090, %v1088
    %v1113 = vpack.c.b16 %v1093, %v1091
    %v1114 = vpack.c.b16 %v1094, %v1092
    %v1115 = vpack.c.b16 %v1097, %v1095
    %v1116 = vpack.c.b16 %v1098, %v1096
    %v1117 = vpack.c.b16 %v1101, %v1099
    %v1118 = vpack.c.b16 %v1102, %v1100
    %1135 = vmatpush.bf16.msra.mxu0 %v1117
    %1136 = vmatpush.bf16.msra.mxu0 %v1115
    %1137 = vmatpush.bf16.msra.mxu0 %v1113
    %1138 = vmatpush.bf16.msra.mxu0 %v1111
    %1139 = vmatpush.bf16.msra.mxu0 %v1109
    %1140 = vmatpush.bf16.msra.mxu0 %v1107
    %1141 = vmatpush.bf16.msra.mxu0 %v1105
    %1142 = vmatpush.bf16.msra.mxu0 %v1103
    %1143 = vmatmul.bf16.gmra.mxu0 %v1032
    %v1144 = vpop.f32.mrf.mxu0
    %v1145 = vadd.f32 %v1051, %v1144
    %v1146 = vpop.f32.mrf.mxu0
    %v1147 = vadd.f32 %v1051, %v1146
    %1148 = vdwg.mxu0
    %1149 = vmatpush.bf16.msra.mxu0 %v1118
    %1150 = vmatpush.bf16.msra.mxu0 %v1116
    %1151 = vmatpush.bf16.msra.mxu0 %v1114
    %1152 = vmatpush.bf16.msra.mxu0 %v1112
    %1153 = vmatpush.bf16.msra.mxu0 %v1110
    %1154 = vmatpush.bf16.msra.mxu0 %v1108
    %1155 = vmatpush.bf16.msra.mxu0 %v1106
    %1156 = vmatpush.bf16.msra.mxu0 %v1104
    %1157 = vmatmul.bf16.gmra.mxu0 %v1032
    %v1158 = vpop.f32.mrf.mxu0
    %v1159 = vadd.f32 %v1052, %v1158
    %v1160 = vpop.f32.mrf.mxu0
    %v1161 = vadd.f32 %v1052, %v1160
    %1162 = vdwg.mxu0
    %v1163 = vmul.f32 %v1145, %v1145
    %v1164 = vmul.f32 %v1159, %v1159
    %v1165 = vmul.f32 %v1147, %v1147
    %v1166 = vmul.f32 %v1161, %v1161
    %v1167 = vmul.f32 %v1145, %v1163
    %v1168 = vmul.f32 %v1159, %v1164
    %v1169 = vmul.f32 %v1147, %v1165
    %v1170 = vmul.f32 %v1161, %v1166
    %v1171 = vmul.f32 %v1167, 0.044715
    %v1172 = vmul.f32 %v1168, 0.044715
    %v1173 = vmul.f32 %v1169, 0.044715
    %v1174 = vmul.f32 %v1170, 0.044715
    %v1175 = vadd.f32 %v1145, %v1171
    %v1176 = vadd.f32 %v1159, %v1172
    %v1177 = vadd.f32 %v1147, %v1173
    %v1178 = vadd.f32 %v1161, %v1174
    %v1179 = vmul.f32 %v1175, 0.7978846
    %v1180 = vmul.f32 %v1176, 0.7978846
    %v1181 = vmul.f32 %v1177, 0.7978846
    %v1182 = vmul.f32 %v1178, 0.7978846
    %v1183 = vtanh.pop %v1179
    %v1184 = vtanh.pop %v1180
    %v1185 = vtanh.pop %v1181
    %v1186 = vtanh.pop %v1182
    %v1187 = vadd.f32 %v1183, 1.0
    %v1188 = vadd.f32 %v1184, 1.0
    %v1189 = vadd.f32 %v1185, 1.0
    %v1190 = vadd.f32 %v1186, 1.0
    %v1191 = vmul.f32 %v1187, 0.5
    %v1192 = vmul.f32 %v1188, 0.5
    %v1193 = vmul.f32 %v1189, 0.5
    %v1194 = vmul.f32 %v1190, 0.5
    %v1195 = vmul.f32 %v1145, %v1191
    %v1196 = vmul.f32 %v1159, %v1192
    %v1197 = vmul.f32 %v1147, %v1193
    %v1198 = vmul.f32 %v1161, %v1194
    %v1199 = vpack.c.bf16 %v1197, %v1195
    %v1200 = vpack.c.bf16 %v1198, %v1196
    %v1201 = vld [vmem:[#allocation6] sm:$0xf]
    %v1202 = vld [vmem:[#allocation6 + $0x4] sm:$0xf]
    %v1203 = vld [vmem:[#allocation6 + $0x8] sm:$0xf]
    %v1204 = vld [vmem:[#allocation6 + $0xc] sm:$0xf]
    %v1205 = vld [vmem:[#allocation6 + $0x10] sm:$0xf]
    %v1206 = vld [vmem:[#allocation6 + $0x14] sm:$0xf]
    %v1207 = vld [vmem:[#allocation6 + $0x18] sm:$0xf]
    %v1208 = vld [vmem:[#allocation6 + $0x1c] sm:$0xf]
    %v1209 = vld [vmem:[#allocation6 + $0x20] sm:$0xf]
    %v1210 = vld [vmem:[#allocation6 + $0x24] sm:$0xf]
    %v1211 = vld [vmem:[#allocation6 + $0x28] sm:$0xf]
    %v1212 = vld [vmem:[#allocation6 + $0x2c] sm:$0xf]
    %v1213 = vld [vmem:[#allocation6 + $0x30] sm:$0xf]
    %v1214 = vld [vmem:[#allocation6 + $0x34] sm:$0xf]
    %v1215 = vld [vmem:[#allocation6 + $0x38] sm:$0xf]
    %v1216 = vld [vmem:[#allocation6 + $0x3c] sm:$0xf]
    %v1217 = vld [vmem:[#allocation6 + $0x40] sm:$0xf]
    %v1218 = vld [vmem:[#allocation6 + $0x44] sm:$0xf]
    %v1219 = vld [vmem:[#allocation6 + $0x48] sm:$0xf]
    %v1220 = vld [vmem:[#allocation6 + $0x4c] sm:$0xf]
    %v1221 = vld [vmem:[#allocation6 + $0x50] sm:$0xf]
    %v1222 = vld [vmem:[#allocation6 + $0x54] sm:$0xf]
    %v1223 = vld [vmem:[#allocation6 + $0x58] sm:$0xf]
    %v1224 = vld [vmem:[#allocation6 + $0x5c] sm:$0xf]
    %v1225 = vld [vmem:[#allocation6 + $0x60] sm:$0xf]
    %v1226 = vld [vmem:[#allocation6 + $0x64] sm:$0xf]
    %v1227 = vld [vmem:[#allocation6 + $0x68] sm:$0xf]
    %v1228 = vld [vmem:[#allocation6 + $0x6c] sm:$0xf]
    %v1229 = vld [vmem:[#allocation6 + $0x70] sm:$0xf]
    %v1230 = vld [vmem:[#allocation6 + $0x74] sm:$0xf]
    %v1231 = vld [vmem:[#allocation6 + $0x78] sm:$0xf]
    %v1232 = vld [vmem:[#allocation6 + $0x7c] sm:$0xf]
    %v1233 = vld [vmem:[%s13] sm:$0x1]
    %v1235 = vperm.slane %v1233, 0
    %v1269 = vunpack.c.l.b16 %v1201
    %v1270 = vunpack.c.l.b16 %v1202
    %v1271 = vunpack.c.l.b16 %v1203
    %v1272 = vunpack.c.l.b16 %v1204
    %v1273 = vunpack.c.l.b16 %v1205
    %v1274 = vunpack.c.l.b16 %v1206
    %v1275 = vunpack.c.l.b16 %v1207
    %v1276 = vunpack.c.l.b16 %v1208
    %v1277 = vunpack.c.l.b16 %v1209
    %v1278 = vunpack.c.l.b16 %v1210
    %v1279 = vunpack.c.l.b16 %v1211
    %v1280 = vunpack.c.l.b16 %v1212
    %v1281 = vunpack.c.l.b16 %v1213
    %v1282 = vunpack.c.l.b16 %v1214
    %v1283 = vunpack.c.l.b16 %v1215
    %v1284 = vunpack.c.l.b16 %v1216
    %v1285 = vunpack.c.l.b16 %v1217
    %v1286 = vunpack.c.l.b16 %v1218
    %v1287 = vunpack.c.l.b16 %v1219
    %v1288 = vunpack.c.l.b16 %v1220
    %v1289 = vunpack.c.l.b16 %v1221
    %v1290 = vunpack.c.l.b16 %v1222
    %v1291 = vunpack.c.l.b16 %v1223
    %v1292 = vunpack.c.l.b16 %v1224
    %v1293 = vunpack.c.l.b16 %v1225
    %v1294 = vunpack.c.l.b16 %v1226
    %v1295 = vunpack.c.l.b16 %v1227
    %v1296 = vunpack.c.l.b16 %v1228
    %v1297 = vunpack.c.l.b16 %v1229
    %v1298 = vunpack.c.l.b16 %v1230
    %v1299 = vunpack.c.l.b16 %v1231
    %v1300 = vunpack.c.l.b16 %v1232
    %v1301 = vpack.c.b16 %v1270, %v1269
    %v1302 = vpack.c.b16 %v1272, %v1271
    %v1303 = vpack.c.b16 %v1274, %v1273
    %v1304 = vpack.c.b16 %v1276, %v1275
    %v1305 = vpack.c.b16 %v1278, %v1277
    %v1306 = vpack.c.b16 %v1280, %v1279
    %v1307 = vpack.c.b16 %v1282, %v1281
    %v1308 = vpack.c.b16 %v1284, %v1283
    %v1309 = vpack.c.b16 %v1286, %v1285
    %v1310 = vpack.c.b16 %v1288, %v1287
    %v1311 = vpack.c.b16 %v1290, %v1289
    %v1312 = vpack.c.b16 %v1292, %v1291
    %v1313 = vpack.c.b16 %v1294, %v1293
    %v1314 = vpack.c.b16 %v1296, %v1295
    %v1315 = vpack.c.b16 %v1298, %v1297
    %v1316 = vpack.c.b16 %v1300, %v1299
    %1333 = vmatpush.bf16.msra.mxu0 %v1308
    %1334 = vmatpush.bf16.msra.mxu0 %v1307
    %1335 = vmatpush.bf16.msra.mxu0 %v1306
    %1336 = vmatpush.bf16.msra.mxu0 %v1305
    %1337 = vmatpush.bf16.msra.mxu0 %v1304
    %1338 = vmatpush.bf16.msra.mxu0 %v1303
    %1339 = vmatpush.bf16.msra.mxu0 %v1302
    %1340 = vmatpush.bf16.msra.mxu0 %v1301
    %1341 = vmatmul.bf16.gmra.mxu0 %v1199
    %v1342 = vpop.f32.mrf.mxu0
    %v1343 = vadd.f32 %v1235, %v1342
    %v1344 = vpop.f32.mrf.mxu0
    %v1345 = vadd.f32 %v1235, %v1344
    %1346 = vdwg.mxu0
    %1347 = vmatpush.bf16.msra.mxu0 %v1316
    %1348 = vmatpush.bf16.msra.mxu0 %v1315
    %1349 = vmatpush.bf16.msra.mxu0 %v1314
    %1350 = vmatpush.bf16.msra.mxu0 %v1313
    %1351 = vmatpush.bf16.msra.mxu0 %v1312
    %1352 = vmatpush.bf16.msra.mxu0 %v1311
    %1353 = vmatpush.bf16.msra.mxu0 %v1310
    %1354 = vmatpush.bf16.msra.mxu0 %v1309
    %1355 = vmatmul.bf16.gmra.mxu0 %v1200
    %v1356 = vpop.f32.mrf.mxu0
    %v1357 = vadd.f32 %v1343, %v1356
    %v1358 = vpop.f32.mrf.mxu0
    %v1359 = vadd.f32 %v1345, %v1358
    %1360 = vdwg.mxu0
    %v1361 = vadd.f32 %v1030, %v1357
    %v1362 = vadd.f32 %v1031, %v1359
    %v1363 = vld [vmem:[%s14] sm:$0x1]
    %v1364 = vld [vmem:[%s15] sm:$0x1]
    %1365 = vadd.xlane.f32.xlu0 %v1361
    %v1366 = vpop.xlane.xlu0 %1365
    %1367 = vadd.xlane.f32.xlu0 %v1362
    %v1368 = vpop.xlane.xlu0 %1367
    %v1369 = vmul.f32 %v1366, %v138
    %v1370 = vmul.f32 %v1368, %v138
    %v1371 = vsub.f32 %v1361, %v1369
    %v1372 = vsub.f32 %v1362, %v1370
    %v1373 = vmul.f32 %v1371, %v1371
    %v1374 = vmul.f32 %v1372, %v1372
    %1375 = vadd.xlane.f32.xlu0 %v1373
    %v1376 = vpop.xlane.xlu0 %1375
    %1377 = vadd.xlane.f32.xlu0 %v1374
    %v1378 = vpop.xlane.xlu0 %1377
    %v1379 = vmul.f32 %v1376, %v138
    %v1380 = vmul.f32 %v1378, %v138
    %v1381 = vadd.f32 %v1379, 1e-05
    %v1382 = vadd.f32 %v1380, 1e-05
    %v1383 = vrsqrt.pop %v1381
    %v1384 = vmul.f32 %v1383, %v1381
    %v1385 = vmul.f32 %v1384, %v1383
    %v1386 = vmul.f32 0.5, %v1385
    %v1387 = vsub.f32 1.5, %v1386
    %v1388 = vmul.f32 %v1383, %v1387
    %vm1389 = vweird.f32 %v1381
    %vm1390 = vweird.f32 %v1383
    %vm1391 = vmor %vm1389, %vm1390
    %v1392 = vsel %vm1391, %v1383, %v1388
    %v1393 = vrsqrt.pop %v1382
    %v1394 = vmul.f32 %v1393, %v1382
    %v1395 = vmul.f32 %v1394, %v1393
    %v1396 = vmul.f32 0.5, %v1395
    %v1397 = vsub.f32 1.5, %v1396
    %v1398 = vmul.f32 %v1393, %v1397
    %vm1399 = vweird.f32 %v1382
    %vm1400 = vweird.f32 %v1393
    %vm1401 = vmor %vm1399, %vm1400
    %v1402 = vsel %vm1401, %v1393, %v1398
    %v1403 = vmul.f32 %v1371, %v1392
    %v1404 = vmul.f32 %v1372, %v1402
    %v1406 = vperm.slane %v1363, 0
    %v1408 = vmul.f32 %v1403, %v1406
    %v1409 = vmul.f32 %v1404, %v1406
    %v1411 = vperm.slane %v1364, 0
    %v1413 = vadd.f32 %v1408, %v1411
    %v1414 = vadd.f32 %v1409, %v1411
    %v1415 = vpack.c.bf16 %v1414, %v1413
    %s1416 = scalar_lea.vmem [#allocation2], 192
    %v1417 = vld [vmem:[%s1416] sm:$0xff]
    %v1418 = vld [vmem:[%s1416 + $0x8] sm:$0xf]
    %v1419 = vld [vmem:[%s1416 + $0xc] sm:$0xff]
    %v1420 = vld [vmem:[%s1416 + $0x14] sm:$0xf]
    %v1421 = vld [vmem:[%s1416 + $0x18] sm:$0xff]
    %v1422 = vld [vmem:[%s1416 + $0x20] sm:$0xf]
    %v1423 = vld [vmem:[%s1416 + $0x24] sm:$0xff]
    %v1424 = vld [vmem:[%s1416 + $0x2c] sm:$0xf]
    %v1425 = vld [vmem:[%s1416 + $0x30] sm:$0xff]
    %v1426 = vld [vmem:[%s1416 + $0x38] sm:$0xf]
    %v1427 = vld [vmem:[%s1416 + $0x3c] sm:$0xff]
    %v1428 = vld [vmem:[%s1416 + $0x44] sm:$0xf]
    %v1429 = vld [vmem:[%s1416 + $0x48] sm:$0xff]
    %v1430 = vld [vmem:[%s1416 + $0x50] sm:$0xf]
    %v1431 = vld [vmem:[%s1416 + $0x54] sm:$0xff]
    %v1432 = vld [vmem:[%s1416 + $0x5c] sm:$0xf]
    %v1433 = vld [vmem:[%s1416 + $0x60] sm:$0xff]
    %v1434 = vld [vmem:[%s1416 + $0x68] sm:$0xf]
    %v1435 = vld [vmem:[%s1416 + $0x6c] sm:$0xff]
    %v1436 = vld [vmem:[%s1416 + $0x74] sm:$0xf]
    %v1437 = vld [vmem:[%s1416 + $0x78] sm:$0xff]
    %v1438 = vld [vmem:[%s1416 + $0x80] sm:$0xf]
    %v1439 = vld [vmem:[%s1416 + $0x84] sm:$0xff]
    %v1440 = vld [vmem:[%s1416 + $0x8c] sm:$0xf]
    %v1441 = vld [vmem:[%s1416 + $0x90] sm:$0xff]
    %v1442 = vld [vmem:[%s1416 + $0x98] sm:$0xf]
    %v1443 = vld [vmem:[%s1416 + $0x9c] sm:$0xff]
    %v1444 = vld [vmem:[%s1416 + $0xa4] sm:$0xf]
    %v1445 = vld [vmem:[%s1416 + $0xa8] sm:$0xff]
    %v1446 = vld [vmem:[%s1416 + $0xb0] sm:$0xf]
    %v1447 = vld [vmem:[%s1416 + $0xb4] sm:$0xff]
    %v1448 = vld [vmem:[%s1416 + $0xbc] sm:$0xf]
    %s1449 = scalar_lea.vmem %s5, 3
    %v1450 = vld [vmem:[%s1449] sm:$0x7]
    %v1452 = vperm.slane %v1450, 0
    %v1453 = vperm.slane %v1450, 1
    %v1454 = vperm.slane %v1450, 2
    %v1490 = vunpack.c.l.b16 %v1417
    %v1491 = vunpack.c.h.b16 %v1417
    %v1492 = vunpack.c.l.b16 %v1418
    %v1493 = vunpack.c.l.b16 %v1419
    %v1494 = vunpack.c.h.b16 %v1419
    %v1495 = vunpack.c.l.b16 %v1420
    %v1496 = vunpack.c.l.b16 %v1421
    %v1497 = vunpack.c.h.b16 %v1421
    %v1498 = vunpack.c.l.b16 %v1422
    %v1499 = vunpack.c.l.b16 %v1423
    %v1500 = vunpack.c.h.b16 %v1423
    %v1501 = vunpack.c.l.b16 %v1424
    %v1502 = vunpack.c.l.b16 %v1425
    %v1503 = vunpack.c.h.b16 %v1425
    %v1504 = vunpack.c.l.b16 %v1426
    %v1505 = vunpack.c.l.b16 %v1427
    %v1506 = vunpack.c.h.b16 %v1427
    %v1507 = vunpack.c.l.b16 %v1428
    %v1508 = vunpack.c.l.b16 %v1429
    %v1509 = vunpack.c.h.b16 %v1429
    %v1510 = vunpack.c.l.b16 %v1430
    %v1511 = vunpack.c.l.b16 %v1431
    %v1512 = vunpack.c.h.b16 %v1431
    %v1513 = vunpack.c.l.b16 %v1432
    %v1514 = vunpack.c.l.b16 %v1433
    %v1515 = vunpack.c.h.b16 %v1433
    %v1516 = vunpack.c.l.b16 %v1434
    %v1517 = vunpack.c.l.b16 %v1435
    %v1518 = vunpack.c.h.b16 %v1435
    %v1519 = vunpack.c.l.b16 %v1436
    %v1520 = vunpack.c.l.b16 %v1437
    %v1521 = vunpack.c.h.b16 %v1437
    %v1522 = vunpack.c.l.b16 %v1438
    %v1523 = vunpack.c.l.b16 %v1439
    %v1524 = vunpack.c.h.b16 %v1439
    %v1525 = vunpack.c.l.b16 %v1440
    %v1526 = vunpack.c.l.b16 %v1441
    %v1527 = vunpack.c.h.b16 %v1441
    %v1528 = vunpack.c.l.b16 %v1442
    %v1529 = vunpack.c.l.b16 %v1443
    %v1530 = vunpack.c.h.b16 %v1443
    %v1531 = vunpack.c.l.b16 %v1444
    %v1532 = vunpack.c.l.b16 %v1445
    %v1533 = vunpack.c.h.b16 %v1445
    %v1534 = vunpack.c.l.b16 %v1446
    %v1535 = vunpack.c.l.b16 %v1447
    %v1536 = vunpack.c.h.b16 %v1447
    %v1537 = vunpack.c.l.b16 %v1448
    %v1538 = vpack.c.b16 %v1493, %v1490
    %v1539 = vpack.c.b16 %v1494, %v1491
    %v1540 = vpack.c.b16 %v1495, %v1492
    %v1541 = vpack.c.b16 %v1499, %v1496
    %v1542 = vpack.c.b16 %v1500, %v1497
    %v1543 = vpack.c.b16 %v1501, %v1498
    %v1544 = vpack.c.b16 %v1505, %v1502
    %v1545 = vpack.c.b16 %v1506, %v1503
    %v1546 = vpack.c.b16 %v1507, %v1504
    %v1547 = vpack.c.b16 %v1511, %v1508
    %v1548 = vpack.c.b16 %v1512, %v1509
    %v1549 = vpack.c.b16 %v1513, %v1510
    %v1550 = vpack.c.b16 %v1517, %v1514
    %v1551 = vpack.c.b16 %v1518, %v1515
    %v1552 = vpack.c.b16 %v1519, %v1516
    %v1553 = vpack.c.b16 %v1523, %v1520
    %v1554 = vpack.c.b16 %v1524, %v1521
    %v1555 = vpack.c.b16 %v1525, %v1522
    %v1556 = vpack.c.b16 %v1529, %v1526
    %v1557 = vpack.c.b16 %v1530, %v1527
    %v1558 = vpack.c.b16 %v1531, %v1528
    %v1559 = vpack.c.b16 %v1535, %v1532
    %v1560 = vpack.c.b16 %v1536, %v1533
    %v1561 = vpack.c.b16 %v1537, %v1534
    %1586 = vmatpush.bf16.msra.mxu0 %v1559
    %1587 = vmatpush.bf16.msra.mxu0 %v1556
    %1588 = vmatpush.bf16.msra.mxu0 %v1553
    %1589 = vmatpush.bf16.msra.mxu0 %v1550
    %1590 = vmatpush.bf16.msra.mxu0 %v1547
    %1591 = vmatpush.bf16.msra.mxu0 %v1544
    %1592 = vmatpush.bf16.msra.mxu0 %v1541
    %1593 = vmatpush.bf16.msra.mxu0 %v1538
    %1594 = vmatmul.bf16.gmra.mxu0 %v1415
    %v1595 = vpop.f32.mrf.mxu0
    %v1596 = vadd.f32 %v1452, %v1595
    %v1597 = vpop.f32.mrf.mxu0
    %v1598 = vadd.f32 %v1452, %v1597
    %1599 = vdwg.mxu0
    %1600 = vmatpush.bf16.msra.mxu0 %v1560
    %1601 = vmatpush.bf16.msra.mxu0 %v1557
    %1602 = vmatpush.bf16.msra.mxu0 %v1554
    %1603 = vmatpush.bf16.msra.mxu0 %v1551
    %1604 = vmatpush.bf16.msra.mxu0 %v1548
    %1605 = vmatpush.bf16.msra.mxu0 %v1545
    %1606 = vmatpush.bf16.msra.mxu0 %v1542
    %1607 = vmatpush.bf16.msra.mxu0 %v1539
    %1608 = vmatmul.bf16.gmra.mxu0 %v1415
    %v1609 = vpop.f32.mrf.mxu0
    %v1610 = vadd.f32 %v1453, %v1609
    %v1611 = vpop.f32.mrf.mxu0
    %v1612 = vadd.f32 %v1453, %v1611
    %1613 = vdwg.mxu0
    %1614 = vmatpush.bf16.msra.mxu0 %v1561
    %1615 = vmatpush.bf16.msra.mxu0 %v1558
    %1616 = vmatpush.bf16.msra.mxu0 %v1555
    %1617 = vmatpush.bf16.msra.mxu0 %v1552
    %1618 = vmatpush.bf16.msra.mxu0 %v1549
    %1619 = vmatpush.bf16.msra.mxu0 %v1546
    %1620 = vmatpush.bf16.msra.mxu0 %v1543
    %1621 = vmatpush.bf16.msra.mxu0 %v1540
    %1622 = vmatmul.bf16.gmra.mxu0 %v1415
    %v1623 = vpop.f32.mrf.mxu0
    %v1624 = vadd.f32 %v1454, %v1623
    %v1625 = vpop.f32.mrf.mxu0
    %v1626 = vadd.f32 %v1454, %v1625
    %1627 = vdwg.mxu0
    %v1628 = vpack.c.bf16 %v1610, %v1596
    %v1629 = vpack.c.bf16 %v1624, %v1624
    %v1630 = vpack.c.bf16 %v1612, %v1598
    %v1631 = vpack.c.bf16 %v1626, %v1626
    %v1633 = vunpack.c.h.b16 %v1628
    %v1634 = vpack.c.b16 %v1633, %v1633
    %v1636 = vsel %vm403, %v1628, 0
    %v1639 = vsel %vm403, %v1634, 0
    %1641 = vmatpush.bf16.xpose.msra.mxu0 0
    %1642 = vmatpush.bf16.xpose.msra.mxu0 0
    %1643 = vmatpush.bf16.xpose.msra.mxu0 0
    %1644 = vmatpush.bf16.xpose.msra.mxu0 0
    %1645 = vmatpush.bf16.xpose.msra.mxu0 0
    %1646 = vmatpush.bf16.xpose.msra.mxu0 0
    %1647 = vmatpush.bf16.xpose.msra.mxu0 0
    %1648 = vmatpush.bf16.xpose.msra.mxu0 %v1639
    %1649 = vmatmul.bf16.gmra.mxu0 %v1636
    %v1650 = vpop.f32.mrf.mxu0
    %v1651 = vadd.f32 0.0, %v1650
    %v1652 = vpop.f32.mrf.mxu0
    %1653 = vdwg.mxu0
    %v1654 = vmul.f32 %v1651, 0.17677669
    %v1655 = vsel %vm424, %v1654, -inf
    %1656 = vmax.xlane.f32.xlu0 %v1655
    %v1657 = vpop.xlane.xlu0 %1656
    %v1658 = vsub.f32 %v1654, %v1657
    %v1659 = vmul.f32 %v1658, 1.442695
    %v1660 = vpow.pop %v1659
    %v1661 = vsel %vm424, %v1660, 0.0
    %1662 = vadd.xlane.f32.xlu0 %v1661
    %v1663 = vpop.xlane.xlu0 %1662
    %v1664 = vrcp.pop %v1663
    %v1665 = vmul.f32 %v1660, %v1664
    %v1666 = vpack.c.bf16 %v1665, %v1665
    %v1668 = vsel %vm424, %v1666, 0
    %v1671 = vsel %vm440, %v1629, 0
    %1673 = vmatpush.bf16.msra.mxu0 0
    %1674 = vmatpush.bf16.msra.mxu0 0
    %1675 = vmatpush.bf16.msra.mxu0 0
    %1676 = vmatpush.bf16.msra.mxu0 0
    %1677 = vmatpush.bf16.msra.mxu0 0
    %1678 = vmatpush.bf16.msra.mxu0 0
    %1679 = vmatpush.bf16.msra.mxu0 0
    %1680 = vmatpush.bf16.msra.mxu0 %v1671
    %1681 = vmatmul.bf16.gmra.mxu0 %v1668
    %v1682 = vpop.f32.mrf.mxu0
    %v1683 = vadd.f32 0.0, %v1682
    %v1684 = vpop.f32.mrf.mxu0
    %1685 = vdwg.mxu0
    %v1686 = vunpack.c.l.b16 %v1628
    %v1687 = vpack.c.b16 %v1686, %v1686
    %1688 = vrot.lane.b32.xlu0 %v1687, 96
    %v1689 = vpop.permute.xlu0 %1688
    %1690 = vrot.lane.b32.xlu0 %v1634, 96
    %v1691 = vpop.permute.xlu0 %1690
    %v1693 = vsel %vm403, %v1689, 0
    %v1696 = vsel %vm403, %v1691, 0
    %1698 = vmatpush.bf16.xpose.msra.mxu0 0
    %1699 = vmatpush.bf16.xpose.msra.mxu0 0
    %1700 = vmatpush.bf16.xpose.msra.mxu0 0
    %1701 = vmatpush.bf16.xpose.msra.mxu0 0
    %1702 = vmatpush.bf16.xpose.msra.mxu0 0
    %1703 = vmatpush.bf16.xpose.msra.mxu0 0
    %1704 = vmatpush.bf16.xpose.msra.mxu0 0
    %1705 = vmatpush.bf16.xpose.msra.mxu0 %v1696
    %1706 = vmatmul.bf16.gmra.mxu0 %v1693
    %v1707 = vpop.f32.mrf.mxu0
    %v1708 = vadd.f32 0.0, %v1707
    %v1709 = vpop.f32.mrf.mxu0
    %1710 = vdwg.mxu0
    %v1711 = vmul.f32 %v1708, 0.17677669
    %v1712 = vsel %vm424, %v1711, -inf
    %1713 = vmax.xlane.f32.xlu0 %v1712
    %v1714 = vpop.xlane.xlu0 %1713
    %v1715 = vsub.f32 %v1711, %v1714
    %v1716 = vmul.f32 %v1715, 1.442695
    %v1717 = vpow.pop %v1716
    %v1718 = vsel %vm424, %v1717, 0.0
    %1719 = vadd.xlane.f32.xlu0 %v1718
    %v1720 = vpop.xlane.xlu0 %1719
    %v1721 = vrcp.pop %v1720
    %v1722 = vmul.f32 %v1717, %v1721
    %v1723 = vpack.c.bf16 %v1722, %v1722
    %v1725 = vunpack.c.l.b16 %v1629
    %v1726 = vpack.c.b16 %v1725, %v1725
    %1727 = vrot.lane.b32.xlu0 %v1726, 96
    %v1728 = vpop.permute.xlu0 %1727
    %v1730 = vsel %vm424, %v1723, 0
    %v1733 = vsel %vm440, %v1728, 0
    %1735 = vmatpush.bf16.msra.mxu0 0
    %1736 = vmatpush.bf16.msra.mxu0 0
    %1737 = vmatpush.bf16.msra.mxu0 0
    %1738 = vmatpush.bf16.msra.mxu0 0
    %1739 = vmatpush.bf16.msra.mxu0 0
    %1740 = vmatpush.bf16.msra.mxu0 0
    %1741 = vmatpush.bf16.msra.mxu0 0
    %1742 = vmatpush.bf16.msra.mxu0 %v1733
    %1743 = vmatmul.bf16.gmra.mxu0 %v1730
    %v1744 = vpop.f32.mrf.mxu0
    %v1745 = vadd.f32 0.0, %v1744
    %v1746 = vpop.f32.mrf.mxu0
    %1747 = vdwg.mxu0
    %1748 = vrot.lane.b32.xlu0 %v1687, 64
    %v1749 = vpop.permute.xlu0 %1748
    %1750 = vrot.lane.b32.xlu0 %v1634, 64
    %v1751 = vpop.permute.xlu0 %1750
    %v1753 = vsel %vm403, %v1749, 0
    %v1756 = vsel %vm403, %v1751, 0
    %1758 = vmatpush.bf16.xpose.msra.mxu0 0
    %1759 = vmatpush.bf16.xpose.msra.mxu0 0
    %1760 = vmatpush.bf16.xpose.msra.mxu0 0
    %1761 = vmatpush.bf16.xpose.msra.mxu0 0
    %1762 = vmatpush.bf16.xpose.msra.mxu0 0
    %1763 = vmatpush.bf16.xpose.msra.mxu0 0
    %1764 = vmatpush.bf16.xpose.msra.mxu0 0
    %1765 = vmatpush.bf16.xpose.msra.mxu0 %v1756
    %1766 = vmatmul.bf16.gmra.mxu0 %v1753
    %v1767 = vpop.f32.mrf.mxu0
    %v1768 = vadd.f32 0.0, %v1767
    %v1769 = vpop.f32.mrf.mxu0
    %1770 = vdwg.mxu0
    %v1771 = vmul.f32 %v1768, 0.17677669
    %v1772 = vsel %vm424, %v1771, -inf
    %1773 = vmax.xlane.f32.xlu0 %v1772
    %v1774 = vpop.xlane.xlu0 %1773
    %v1775 = vsub.f32 %v1771, %v1774
    %v1776 = vmul.f32 %v1775, 1.442695
    %v1777 = vpow.pop %v1776
    %v1778 = vsel %vm424, %v1777, 0.0
    %1779 = vadd.xlane.f32.xlu0 %v1778
    %v1780 = vpop.xlane.xlu0 %1779
    %v1781 = vrcp.pop %v1780
    %v1782 = vmul.f32 %v1777, %v1781
    %v1783 = vpack.c.bf16 %v1782, %v1782
    %1784 = vrot.lane.b32.xlu0 %v1726, 64
    %v1785 = vpop.permute.xlu0 %1784
    %v1787 = vsel %vm424, %v1783, 0
    %v1790 = vsel %vm440, %v1785, 0
    %1792 = vmatpush.bf16.msra.mxu0 0
    %1793 = vmatpush.bf16.msra.mxu0 0
    %1794 = vmatpush.bf16.msra.mxu0 0
    %1795 = vmatpush.bf16.msra.mxu0 0
    %1796 = vmatpush.bf16.msra.mxu0 0
    %1797 = vmatpush.bf16.msra.mxu0 0
    %1798 = vmatpush.bf16.msra.mxu0 0
    %1799 = vmatpush.bf16.msra.mxu0 %v1790
    %1800 = vmatmul.bf16.gmra.mxu0 %v1787
    %v1801 = vpop.f32.mrf.mxu0
    %v1802 = vadd.f32 0.0, %v1801
    %v1803 = vpop.f32.mrf.mxu0
    %1804 = vdwg.mxu0
    %1805 = vrot.lane.b32.xlu0 %v1687, 32
    %v1806 = vpop.permute.xlu0 %1805
    %1807 = vrot.lane.b32.xlu0 %v1634, 32
    %v1808 = vpop.permute.xlu0 %1807
    %v1810 = vsel %vm403, %v1806, 0
    %v1813 = vsel %vm403, %v1808, 0
    %1815 = vmatpush.bf16.xpose.msra.mxu0 0
    %1816 = vmatpush.bf16.xpose.msra.mxu0 0
    %1817 = vmatpush.bf16.xpose.msra.mxu0 0
    %1818 = vmatpush.bf16.xpose.msra.mxu0 0
    %1819 = vmatpush.bf16.xpose.msra.mxu0 0
    %1820 = vmatpush.bf16.xpose.msra.mxu0 0
    %1821 = vmatpush.bf16.xpose.msra.mxu0 0
    %1822 = vmatpush.bf16.xpose.msra.mxu0 %v1813
    %1823 = vmatmul.bf16.gmra.mxu0 %v1810
    %v1824 = vpop.f32.mrf.mxu0
    %v1825 = vadd.f32 0.0, %v1824
    %v1826 = vpop.f32.mrf.mxu0
    %1827 = vdwg.mxu0
    %v1828 = vmul.f32 %v1825, 0.17677669
    %v1829 = vsel %vm424, %v1828, -inf
    %1830 = vmax.xlane.f32.xlu0 %v1829
    %v1831 = vpop.xlane.xlu0 %1830
    %v1832 = vsub.f32 %v1828, %v1831
    %v1833 = vmul.f32 %v1832, 1.442695
    %v1834 = vpow.pop %v1833
    %v1835 = vsel %vm424, %v1834, 0.0
    %1836 = vadd.xlane.f32.xlu0 %v1835
    %v1837 = vpop.xlane.xlu0 %1836
    %v1838 = vrcp.pop %v1837
    %v1839 = vmul.f32 %v1834, %v1838
    %v1840 = vpack.c.bf16 %v1839, %v1839
    %1841 = vrot.lane.b32.xlu0 %v1726, 32
    %v1842 = vpop.permute.xlu0 %1841
    %v1844 = vsel %vm424, %v1840, 0
    %v1847 = vsel %vm440, %v1842, 0
    %1849 = vmatpush.bf16.msra.mxu0 0
    %1850 = vmatpush.bf16.msra.mxu0 0
    %1851 = vmatpush.bf16.msra.mxu0 0
    %1852 = vmatpush.bf16.msra.mxu0 0
    %1853 = vmatpush.bf16.msra.mxu0 0
    %1854 = vmatpush.bf16.msra.mxu0 0
    %1855 = vmatpush.bf16.msra.mxu0 0
    %1856 = vmatpush.bf16.msra.mxu0 %v1847
    %1857 = vmatmul.bf16.gmra.mxu0 %v1844
    %v1858 = vpop.f32.mrf.mxu0
    %v1859 = vadd.f32 0.0, %v1858
    %v1860 = vpop.f32.mrf.mxu0
    %1861 = vdwg.mxu0
    %1863 = vrot.lane.b32.xlu0 %v1745, 32
    %v1864 = vpop.permute.xlu0 %1863
    %1867 = vrot.lane.b32.xlu0 %v1802, 64
    %v1868 = vpop.permute.xlu0 %1867
    %1871 = vrot.lane.b32.xlu0 %v1859, 96
    %v1872 = vpop.permute.xlu0 %1871
    %v1874 = vsel %vm403, %v1683, %v1864
    %v1875 = vsel %vm646, %v1874, %v1868
    %v1876 = vsel %vm648, %v1875, %v1872
    %v1878 = vunpack.c.h.b16 %v1630
    %v1879 = vpack.c.b16 %v1878, %v1878
    %v1881 = vsel %vm403, %v1630, 0
    %v1884 = vsel %vm403, %v1879, 0
    %1886 = vmatpush.bf16.xpose.msra.mxu0 0
    %1887 = vmatpush.bf16.xpose.msra.mxu0 0
    %1888 = vmatpush.bf16.xpose.msra.mxu0 0
    %1889 = vmatpush.bf16.xpose.msra.mxu0 0
    %1890 = vmatpush.bf16.xpose.msra.mxu0 0
    %1891 = vmatpush.bf16.xpose.msra.mxu0 0
    %1892 = vmatpush.bf16.xpose.msra.mxu0 0
    %1893 = vmatpush.bf16.xpose.msra.mxu0 %v1884
    %1894 = vmatmul.bf16.gmra.mxu0 %v1881
    %v1895 = vpop.f32.mrf.mxu0
    %v1896 = vadd.f32 0.0, %v1895
    %v1897 = vpop.f32.mrf.mxu0
    %1898 = vdwg.mxu0
    %v1899 = vmul.f32 %v1896, 0.17677669
    %v1900 = vsel %vm424, %v1899, -inf
    %1901 = vmax.xlane.f32.xlu0 %v1900
    %v1902 = vpop.xlane.xlu0 %1901
    %v1903 = vsub.f32 %v1899, %v1902
    %v1904 = vmul.f32 %v1903, 1.442695
    %v1905 = vpow.pop %v1904
    %v1906 = vsel %vm424, %v1905, 0.0
    %1907 = vadd.xlane.f32.xlu0 %v1906
    %v1908 = vpop.xlane.xlu0 %1907
    %v1909 = vrcp.pop %v1908
    %v1910 = vmul.f32 %v1905, %v1909
    %v1911 = vpack.c.bf16 %v1910, %v1910
    %v1913 = vsel %vm424, %v1911, 0
    %v1916 = vsel %vm440, %v1631, 0
    %1918 = vmatpush.bf16.msra.mxu0 0
    %1919 = vmatpush.bf16.msra.mxu0 0
    %1920 = vmatpush.bf16.msra.mxu0 0
    %1921 = vmatpush.bf16.msra.mxu0 0
    %1922 = vmatpush.bf16.msra.mxu0 0
    %1923 = vmatpush.bf16.msra.mxu0 0
    %1924 = vmatpush.bf16.msra.mxu0 0
    %1925 = vmatpush.bf16.msra.mxu0 %v1916
    %1926 = vmatmul.bf16.gmra.mxu0 %v1913
    %v1927 = vpop.f32.mrf.mxu0
    %v1928 = vadd.f32 0.0, %v1927
    %v1929 = vpop.f32.mrf.mxu0
    %1930 = vdwg.mxu0
    %v1931 = vunpack.c.l.b16 %v1630
    %v1932 = vpack.c.b16 %v1931, %v1931
    %1933 = vrot.lane.b32.xlu0 %v1932, 96
    %v1934 = vpop.permute.xlu0 %1933
    %1935 = vrot.lane.b32.xlu0 %v1879, 96
    %v1936 = vpop.permute.xlu0 %1935
    %v1938 = vsel %vm403, %v1934, 0
    %v1941 = vsel %vm403, %v1936, 0
    %1943 = vmatpush.bf16.xpose.msra.mxu0 0
    %1944 = vmatpush.bf16.xpose.msra.mxu0 0
    %1945 = vmatpush.bf16.xpose.msra.mxu0 0
    %1946 = vmatpush.bf16.xpose.msra.mxu0 0
    %1947 = vmatpush.bf16.xpose.msra.mxu0 0
    %1948 = vmatpush.bf16.xpose.msra.mxu0 0
    %1949 = vmatpush.bf16.xpose.msra.mxu0 0
    %1950 = vmatpush.bf16.xpose.msra.mxu0 %v1941
    %1951 = vmatmul.bf16.gmra.mxu0 %v1938
    %v1952 = vpop.f32.mrf.mxu0
    %v1953 = vadd.f32 0.0, %v1952
    %v1954 = vpop.f32.mrf.mxu0
    %1955 = vdwg.mxu0
    %v1956 = vmul.f32 %v1953, 0.17677669
    %v1957 = vsel %vm424, %v1956, -inf
    %1958 = vmax.xlane.f32.xlu0 %v1957
    %v1959 = vpop.xlane.xlu0 %1958
    %v1960 = vsub.f32 %v1956, %v1959
    %v1961 = vmul.f32 %v1960, 1.442695
    %v1962 = vpow.pop %v1961
    %v1963 = vsel %vm424, %v1962, 0.0
    %1964 = vadd.xlane.f32.xlu0 %v1963
    %v1965 = vpop.xlane.xlu0 %1964
    %v1966 = vrcp.pop %v1965
    %v1967 = vmul.f32 %v1962, %v1966
    %v1968 = vpack.c.bf16 %v1967, %v1967
    %v1970 = vunpack.c.l.b16 %v1631
    %v1971 = vpack.c.b16 %v1970, %v1970
    %1972 = vrot.lane.b32.xlu0 %v1971, 96
    %v1973 = vpop.permute.xlu0 %1972
    %v1975 = vsel %vm424, %v1968, 0
    %v1978 = vsel %vm440, %v1973, 0
    %1980 = vmatpush.bf16.msra.mxu0 0
    %1981 = vmatpush.bf16.msra.mxu0 0
    %1982 = vmatpush.bf16.msra.mxu0 0
    %1983 = vmatpush.bf16.msra.mxu0 0
    %1984 = vmatpush.bf16.msra.mxu0 0
    %1985 = vmatpush.bf16.msra.mxu0 0
    %1986 = vmatpush.bf16.msra.mxu0 0
    %1987 = vmatpush.bf16.msra.mxu0 %v1978
    %1988 = vmatmul.bf16.gmra.mxu0 %v1975
    %v1989 = vpop.f32.mrf.mxu0
    %v1990 = vadd.f32 0.0, %v1989
    %v1991 = vpop.f32.mrf.mxu0
    %1992 = vdwg.mxu0
    %1993 = vrot.lane.b32.xlu0 %v1932, 64
    %v1994 = vpop.permute.xlu0 %1993
    %1995 = vrot.lane.b32.xlu0 %v1879, 64
    %v1996 = vpop.permute.xlu0 %1995
    %v1998 = vsel %vm403, %v1994, 0
    %v2001 = vsel %vm403, %v1996, 0
    %2003 = vmatpush.bf16.xpose.msra.mxu0 0
    %2004 = vmatpush.bf16.xpose.msra.mxu0 0
    %2005 = vmatpush.bf16.xpose.msra.mxu0 0
    %2006 = vmatpush.bf16.xpose.msra.mxu0 0
    %2007 = vmatpush.bf16.xpose.msra.mxu0 0
    %2008 = vmatpush.bf16.xpose.msra.mxu0 0
    %2009 = vmatpush.bf16.xpose.msra.mxu0 0
    %2010 = vmatpush.bf16.xpose.msra.mxu0 %v2001
    %2011 = vmatmul.bf16.gmra.mxu0 %v1998
    %v2012 = vpop.f32.mrf.mxu0
    %v2013 = vadd.f32 0.0, %v2012
    %v2014 = vpop.f32.mrf.mxu0
    %2015 = vdwg.mxu0
    %v2016 = vmul.f32 %v2013, 0.17677669
    %v2017 = vsel %vm424, %v2016, -inf
    %2018 = vmax.xlane.f32.xlu0 %v2017
    %v2019 = vpop.xlane.xlu0 %2018
    %v2020 = vsub.f32 %v2016, %v2019
    %v2021 = vmul.f32 %v2020, 1.442695
    %v2022 = vpow.pop %v2021
    %v2023 = vsel %vm424, %v2022, 0.0
    %2024 = vadd.xlane.f32.xlu0 %v2023
    %v2025 = vpop.xlane.xlu0 %2024
    %v2026 = vrcp.pop %v2025
    %v2027 = vmul.f32 %v2022, %v2026
    %v2028 = vpack.c.bf16 %v2027, %v2027
    %2029 = vrot.lane.b32.xlu0 %v1971, 64
    %v2030 = vpop.permute.xlu0 %2029
    %v2032 = vsel %vm424, %v2028, 0
    %v2035 = vsel %vm440, %v2030, 0
    %2037 = vmatpush.bf16.msra.mxu0 0
    %2038 = vmatpush.bf16.msra.mxu0 0
    %2039 = vmatpush.bf16.msra.mxu0 0
    %2040 = vmatpush.bf16.msra.mxu0 0
    %2041 = vmatpush.bf16.msra.mxu0 0
    %2042 = vmatpush.bf16.msra.mxu0 0
    %2043 = vmatpush.bf16.msra.mxu0 0
    %2044 = vmatpush.bf16.msra.mxu0 %v2035
    %2045 = vmatmul.bf16.gmra.mxu0 %v2032
    %v2046 = vpop.f32.mrf.mxu0
    %v2047 = vadd.f32 0.0, %v2046
    %v2048 = vpop.f32.mrf.mxu0
    %2049 = vdwg.mxu0
    %2050 = vrot.lane.b32.xlu0 %v1932, 32
    %v2051 = vpop.permute.xlu0 %2050
    %2052 = vrot.lane.b32.xlu0 %v1879, 32
    %v2053 = vpop.permute.xlu0 %2052
    %v2055 = vsel %vm403, %v2051, 0
    %v2058 = vsel %vm403, %v2053, 0
    %2060 = vmatpush.bf16.xpose.msra.mxu0 0
    %2061 = vmatpush.bf16.xpose.msra.mxu0 0
    %2062 = vmatpush.bf16.xpose.msra.mxu0 0
    %2063 = vmatpush.bf16.xpose.msra.mxu0 0
    %2064 = vmatpush.bf16.xpose.msra.mxu0 0
    %2065 = vmatpush.bf16.xpose.msra.mxu0 0
    %2066 = vmatpush.bf16.xpose.msra.mxu0 0
    %2067 = vmatpush.bf16.xpose.msra.mxu0 %v2058
    %2068 = vmatmul.bf16.gmra.mxu0 %v2055
    %v2069 = vpop.f32.mrf.mxu0
    %v2070 = vadd.f32 0.0, %v2069
    %v2071 = vpop.f32.mrf.mxu0
    %2072 = vdwg.mxu0
    %v2073 = vmul.f32 %v2070, 0.17677669
    %v2074 = vsel %vm424, %v2073, -inf
    %2075 = vmax.xlane.f32.xlu0 %v2074
    %v2076 = vpop.xlane.xlu0 %2075
    %v2077 = vsub.f32 %v2073, %v2076
    %v2078 = vmul.f32 %v2077, 1.442695
    %v2079 = vpow.pop %v2078
    %v2080 = vsel %vm424, %v2079, 0.0
    %2081 = vadd.xlane.f32.xlu0 %v2080
    %v2082 = vpop.xlane.xlu0 %2081
    %v2083 = vrcp.pop %v2082
    %v2084 = vmul.f32 %v2079, %v2083
    %v2085 = vpack.c.bf16 %v2084, %v2084
    %2086 = vrot.lane.b32.xlu0 %v1971, 32
    %v2087 = vpop.permute.xlu0 %2086
    %v2089 = vsel %vm424, %v2085, 0
    %v2092 = vsel %vm440, %v2087, 0
    %2094 = vmatpush.bf16.msra.mxu0 0
    %2095 = vmatpush.bf16.msra.mxu0 0
    %2096 = vmatpush.bf16.msra.mxu0 0
    %2097 = vmatpush.bf16.msra.mxu0 0
    %2098 = vmatpush.bf16.msra.mxu0 0
    %2099 = vmatpush.bf16.msra.mxu0 0
    %2100 = vmatpush.bf16.msra.mxu0 0
    %2101 = vmatpush.bf16.msra.mxu0 %v2092
    %2102 = vmatmul.bf16.gmra.mxu0 %v2089
    %v2103 = vpop.f32.mrf.mxu0
    %v2104 = vadd.f32 0.0, %v2103
    %v2105 = vpop.f32.mrf.mxu0
    %2106 = vdwg.mxu0
    %2108 = vrot.lane.b32.xlu0 %v1990, 32
    %v2109 = vpop.permute.xlu0 %2108
    %2112 = vrot.lane.b32.xlu0 %v2047, 64
    %v2113 = vpop.permute.xlu0 %2112
    %2116 = vrot.lane.b32.xlu0 %v2104, 96
    %v2117 = vpop.permute.xlu0 %2116
    %v2119 = vsel %vm403, %v1928, %v2109
    %v2120 = vsel %vm646, %v2119, %v2113
    %v2121 = vsel %vm648, %v2120, %v2117
    %v2122 = vpack.c.bf16 %v2121, %v1876
    %s2123 = scalar_lea.vmem %s6, 64
    %v2124 = vld [vmem:[%s2123] sm:$0xf]
    %v2125 = vld [vmem:[%s2123 + $0x4] sm:$0xf]
    %v2126 = vld [vmem:[%s2123 + $0x8] sm:$0xf]
    %v2127 = vld [vmem:[%s2123 + $0xc] sm:$0xf]
    %v2128 = vld [vmem:[%s2123 + $0x10] sm:$0xf]
    %v2129 = vld [vmem:[%s2123 + $0x14] sm:$0xf]
    %v2130 = vld [vmem:[%s2123 + $0x18] sm:$0xf]
    %v2131 = vld [vmem:[%s2123 + $0x1c] sm:$0xf]
    %v2132 = vld [vmem:[%s2123 + $0x20] sm:$0xf]
    %v2133 = vld [vmem:[%s2123 + $0x24] sm:$0xf]
    %v2134 = vld [vmem:[%s2123 + $0x28] sm:$0xf]
    %v2135 = vld [vmem:[%s2123 + $0x2c] sm:$0xf]
    %v2136 = vld [vmem:[%s2123 + $0x30] sm:$0xf]
    %v2137 = vld [vmem:[%s2123 + $0x34] sm:$0xf]
    %v2138 = vld [vmem:[%s2123 + $0x38] sm:$0xf]
    %v2139 = vld [vmem:[%s2123 + $0x3c] sm:$0xf]
    %s2140 = scalar_lea.vmem %s7, 1
    %v2141 = vld [vmem:[%s2140] sm:$0x1]
    %v2143 = vperm.slane %v2141, 0
    %v2161 = vunpack.c.l.b16 %v2124
    %v2162 = vunpack.c.l.b16 %v2125
    %v2163 = vunpack.c.l.b16 %v2126
    %v2164 = vunpack.c.l.b16 %v2127
    %v2165 = vunpack.c.l.b16 %v2128
    %v2166 = vunpack.c.l.b16 %v2129
    %v2167 = vunpack.c.l.b16 %v2130
    %v2168 = vunpack.c.l.b16 %v2131
    %v2169 = vunpack.c.l.b16 %v2132
    %v2170 = vunpack.c.l.b16 %v2133
    %v2171 = vunpack.c.l.b16 %v2134
    %v2172 = vunpack.c.l.b16 %v2135
    %v2173 = vunpack.c.l.b16 %v2136
    %v2174 = vunpack.c.l.b16 %v2137
    %v2175 = vunpack.c.l.b16 %v2138
    %v2176 = vunpack.c.l.b16 %v2139
    %v2177 = vpack.c.b16 %v2162, %v2161
    %v2178 = vpack.c.b16 %v2164, %v2163
    %v2179 = vpack.c.b16 %v2166, %v2165
    %v2180 = vpack.c.b16 %v2168, %v2167
    %v2181 = vpack.c.b16 %v2170, %v2169
    %v2182 = vpack.c.b16 %v2172, %v2171
    %v2183 = vpack.c.b16 %v2174, %v2173
    %v2184 = vpack.c.b16 %v2176, %v2175
    %2193 = vmatpush.bf16.msra.mxu0 %v2184
    %2194 = vmatpush.bf16.msra.mxu0 %v2183
    %2195 = vmatpush.bf16.msra.mxu0 %v2182
    %2196 = vmatpush.bf16.msra.mxu0 %v2181
    %2197 = vmatpush.bf16.msra.mxu0 %v2180
    %2198 = vmatpush.bf16.msra.mxu0 %v2179
    %2199 = vmatpush.bf16.msra.mxu0 %v2178
    %2200 = vmatpush.bf16.msra.mxu0 %v2177
    %2201 = vmatmul.bf16.gmra.mxu0 %v2122
    %v2202 = vpop.f32.mrf.mxu0
    %v2203 = vadd.f32 %v2143, %v2202
    %v2204 = vpop.f32.mrf.mxu0
    %v2205 = vadd.f32 %v2143, %v2204
    %2206 = vdwg.mxu0
    %v2207 = vadd.f32 %v1413, %v2203
    %v2208 = vadd.f32 %v1414, %v2205
    %s2209 = scalar_lea.vmem %s8, 1
    %v2210 = vld [vmem:[%s2209] sm:$0x1]
    %s2211 = scalar_lea.vmem %s9, 1
    %v2212 = vld [vmem:[%s2211] sm:$0x1]
    %2213 = vadd.xlane.f32.xlu0 %v2207
    %v2214 = vpop.xlane.xlu0 %2213
    %2215 = vadd.xlane.f32.xlu0 %v2208
    %v2216 = vpop.xlane.xlu0 %2215
    %v2217 = vmul.f32 %v2214, %v138
    %v2218 = vmul.f32 %v2216, %v138
    %v2219 = vsub.f32 %v2207, %v2217
    %v2220 = vsub.f32 %v2208, %v2218
    %v2221 = vmul.f32 %v2219, %v2219
    %v2222 = vmul.f32 %v2220, %v2220
    %2223 = vadd.xlane.f32.xlu0 %v2221
    %v2224 = vpop.xlane.xlu0 %2223
    %2225 = vadd.xlane.f32.xlu0 %v2222
    %v2226 = vpop.xlane.xlu0 %2225
    %v2227 = vmul.f32 %v2224, %v138
    %v2228 = vmul.f32 %v2226, %v138
    %v2229 = vadd.f32 %v2227, 1e-05
    %v2230 = vadd.f32 %v2228, 1e-05
    %v2231 = vrsqrt.pop %v2229
    %v2232 = vmul.f32 %v2231, %v2229
    %v2233 = vmul.f32 %v2232, %v2231
    %v2234 = vmul.f32 0.5, %v2233
    %v2235 = vsub.f32 1.5, %v2234
    %v2236 = vmul.f32 %v2231, %v2235
    %vm2237 = vweird.f32 %v2229
    %vm2238 = vweird.f32 %v2231
    %vm2239 = vmor %vm2237, %vm2238
    %v2240 = vsel %vm2239, %v2231, %v2236
    %v2241 = vrsqrt.pop %v2230
    %v2242 = vmul.f32 %v2241, %v2230
    %v2243 = vmul.f32 %v2242, %v2241
    %v2244 = vmul.f32 0.5, %v2243
    %v2245 = vsub.f32 1.5, %v2244
    %v2246 = vmul.f32 %v2241, %v2245
    %vm2247 = vweird.f32 %v2230
    %vm2248 = vweird.f32 %v2241
    %vm2249 = vmor %vm2247, %vm2248
    %v2250 = vsel %vm2249, %v2241, %v2246
    %v2251 = vmul.f32 %v2219, %v2240
    %v2252 = vmul.f32 %v2220, %v2250
    %v2254 = vperm.slane %v2210, 0
    %v2256 = vmul.f32 %v2251, %v2254
    %v2257 = vmul.f32 %v2252, %v2254
    %v2259 = vperm.slane %v2212, 0
    %v2261 = vadd.f32 %v2256, %v2259
    %v2262 = vadd.f32 %v2257, %v2259
    %v2263 = vpack.c.bf16 %v2262, %v2261
    %s2264 = scalar_lea.vmem [#allocation4], 128
    %v2265 = vld [vmem:[%s2264] sm:$0xff]
    %v2266 = vld [vmem:[%s2264 + $0x8] sm:$0xff]
    %v2267 = vld [vmem:[%s2264 + $0x10] sm:$0xff]
    %v2268 = vld [vmem:[%s2264 + $0x18] sm:$0xff]
    %v2269 = vld [vmem:[%s2264 + $0x20] sm:$0xff]
    %v2270 = vld [vmem:[%s2264 + $0x28] sm:$0xff]
    %v2271 = vld [vmem:[%s2264 + $0x30] sm:$0xff]
    %v2272 = vld [vmem:[%s2264 + $0x38] sm:$0xff]
    %v2273 = vld [vmem:[%s2264 + $0x40] sm:$0xff]
    %v2274 = vld [vmem:[%s2264 + $0x48] sm:$0xff]
    %v2275 = vld [vmem:[%s2264 + $0x50] sm:$0xff]
    %v2276 = vld [vmem:[%s2264 + $0x58] sm:$0xff]
    %v2277 = vld [vmem:[%s2264 + $0x60] sm:$0xff]
    %v2278 = vld [vmem:[%s2264 + $0x68] sm:$0xff]
    %v2279 = vld [vmem:[%s2264 + $0x70] sm:$0xff]
    %v2280 = vld [vmem:[%s2264 + $0x78] sm:$0xff]
    %s2281 = scalar_lea.vmem %s11, 2
    %v2282 = vld [vmem:[%s2281] sm:$0x3]
    %v2284 = vperm.slane %v2282, 0
    %v2285 = vperm.slane %v2282, 1
    %v2304 = vunpack.c.l.b16 %v2265
    %v2305 = vunpack.c.h.b16 %v2265
    %v2306 = vunpack.c.l.b16 %v2266
    %v2307 = vunpack.c.h.b16 %v2266
    %v2308 = vunpack.c.l.b16 %v2267
    %v2309 = vunpack.c.h.b16 %v2267
    %v2310 = vunpack.c.l.b16 %v2268
    %v2311 = vunpack.c.h.b16 %v2268
    %v2312 = vunpack.c.l.b16 %v2269
    %v2313 = vunpack.c.h.b16 %v2269
    %v2314 = vunpack.c.l.b16 %v2270
    %v2315 = vunpack.c.h.b16 %v2270
    %v2316 = vunpack.c.l.b16 %v2271
    %v2317 = vunpack.c.h.b16 %v2271
    %v2318 = vunpack.c.l.b16 %v2272
    %v2319 = vunpack.c.h.b16 %v2272
    %v2320 = vunpack.c.l.b16 %v2273
    %v2321 = vunpack.c.h.b16 %v2273
    %v2322 = vunpack.c.l.b16 %v2274
    %v2323 = vunpack.c.h.b16 %v2274
    %v2324 = vunpack.c.l.b16 %v2275
    %v2325 = vunpack.c.h.b16 %v2275
    %v2326 = vunpack.c.l.b16 %v2276
    %v2327 = vunpack.c.h.b16 %v2276
    %v2328 = vunpack.c.l.b16 %v2277
    %v2329 = vunpack.c.h.b16 %v2277
    %v2330 = vunpack.c.l.b16 %v2278
    %v2331 = vunpack.c.h.b16 %v2278
    %v2332 = vunpack.c.l.b16 %v2279
    %v2333 = vunpack.c.h.b16 %v2279
    %v2334 = vunpack.c.l.b16 %v2280
    %v2335 = vunpack.c.h.b16 %v2280
    %v2336 = vpack.c.b16 %v2306, %v2304
    %v2337 = vpack.c.b16 %v2307, %v2305
    %v2338 = vpack.c.b16 %v2310, %v2308
    %v2339 = vpack.c.b16 %v2311, %v2309
    %v2340 = vpack.c.b16 %v2314, %v2312
    %v2341 = vpack.c.b16 %v2315, %v2313
    %v2342 = vpack.c.b16 %v2318, %v2316
    %v2343 = vpack.c.b16 %v2319, %v2317
    %v2344 = vpack.c.b16 %v2322, %v2320
    %v2345 = vpack.c.b16 %v2323, %v2321
    %v2346 = vpack.c.b16 %v2326, %v2324
    %v2347 = vpack.c.b16 %v2327, %v2325
    %v2348 = vpack.c.b16 %v2330, %v2328
    %v2349 = vpack.c.b16 %v2331, %v2329
    %v2350 = vpack.c.b16 %v2334, %v2332
    %v2351 = vpack.c.b16 %v2335, %v2333
    %2368 = vmatpush.bf16.msra.mxu0 %v2350
    %2369 = vmatpush.bf16.msra.mxu0 %v2348
    %2370 = vmatpush.bf16.msra.mxu0 %v2346
    %2371 = vmatpush.bf16.msra.mxu0 %v2344
    %2372 = vmatpush.bf16.msra.mxu0 %v2342
    %2373 = vmatpush.bf16.msra.mxu0 %v2340
    %2374 = vmatpush.bf16.msra.mxu0 %v2338
    %2375 = vmatpush.bf16.msra.mxu0 %v2336
    %2376 = vmatmul.bf16.gmra.mxu0 %v2263
    %v2377 = vpop.f32.mrf.mxu0
    %v2378 = vadd.f32 %v2284, %v2377
    %v2379 = vpop.f32.mrf.mxu0
    %v2380 = vadd.f32 %v2284, %v2379
    %2381 = vdwg.mxu0
    %2382 = vmatpush.bf16.msra.mxu0 %v2351
    %2383 = vmatpush.bf16.msra.mxu0 %v2349
    %2384 = vmatpush.bf16.msra.mxu0 %v2347
    %2385 = vmatpush.bf16.msra.mxu0 %v2345
    %2386 = vmatpush.bf16.msra.mxu0 %v2343
    %2387 = vmatpush.bf16.msra.mxu0 %v2341
    %2388 = vmatpush.bf16.msra.mxu0 %v2339
    %2389 = vmatpush.bf16.msra.mxu0 %v2337
    %2390 = vmatmul.bf16.gmra.mxu0 %v2263
    %v2391 = vpop.f32.mrf.mxu0
    %v2392 = vadd.f32 %v2285, %v2391
    %v2393 = vpop.f32.mrf.mxu0
    %v2394 = vadd.f32 %v2285, %v2393
    %2395 = vdwg.mxu0
    %v2396 = vmul.f32 %v2378, %v2378
    %v2397 = vmul.f32 %v2392, %v2392
    %v2398 = vmul.f32 %v2380, %v2380
    %v2399 = vmul.f32 %v2394, %v2394
    %v2400 = vmul.f32 %v2378, %v2396
    %v2401 = vmul.f32 %v2392, %v2397
    %v2402 = vmul.f32 %v2380, %v2398
    %v2403 = vmul.f32 %v2394, %v2399
    %v2404 = vmul.f32 %v2400, 0.044715
    %v2405 = vmul.f32 %v2401, 0.044715
    %v2406 = vmul.f32 %v2402, 0.044715
    %v2407 = vmul.f32 %v2403, 0.044715
    %v2408 = vadd.f32 %v2378, %v2404
    %v2409 = vadd.f32 %v2392, %v2405
    %v2410 = vadd.f32 %v2380, %v2406
    %v2411 = vadd.f32 %v2394, %v2407
    %v2412 = vmul.f32 %v2408, 0.7978846
    %v2413 = vmul.f32 %v2409, 0.7978846
    %v2414 = vmul.f32 %v2410, 0.7978846
    %v2415 = vmul.f32 %v2411, 0.7978846
    %v2416 = vtanh.pop %v2412
    %v2417 = vtanh.pop %v2413
    %v2418 = vtanh.pop %v2414
    %v2419 = vtanh.pop %v2415
    %v2420 = vadd.f32 %v2416, 1.0
    %v2421 = vadd.f32 %v2417, 1.0
    %v2422 = vadd.f32 %v2418, 1.0
    %v2423 = vadd.f32 %v2419, 1.0
    %v2424 = vmul.f32 %v2420, 0.5
    %v2425 = vmul.f32 %v2421, 0.5
    %v2426 = vmul.f32 %v2422, 0.5
    %v2427 = vmul.f32 %v2423, 0.5
    %v2428 = vmul.f32 %v2378, %v2424
    %v2429 = vmul.f32 %v2392, %v2425
    %v2430 = vmul.f32 %v2380, %v2426
    %v2431 = vmul.f32 %v2394, %v2427
    %v2432 = vpack.c.bf16 %v2430, %v2428
    %v2433 = vpack.c.bf16 %v2431, %v2429
    %s2434 = scalar_lea.vmem [#allocation6], 128
    %v2435 = vld [vmem:[%s2434] sm:$0xf]
    %v2436 = vld [vmem:[%s2434 + $0x4] sm:$0xf]
    %v2437 = vld [vmem:[%s2434 + $0x8] sm:$0xf]
    %v2438 = vld [vmem:[%s2434 + $0xc] sm:$0xf]
    %v2439 = vld [vmem:[%s2434 + $0x10] sm:$0xf]
    %v2440 = vld [vmem:[%s2434 + $0x14] sm:$0xf]
    %v2441 = vld [vmem:[%s2434 + $0x18] sm:$0xf]
    %v2442 = vld [vmem:[%s2434 + $0x1c] sm:$0xf]
    %v2443 = vld [vmem:[%s2434 + $0x20] sm:$0xf]
    %v2444 = vld [vmem:[%s2434 + $0x24] sm:$0xf]
    %v2445 = vld [vmem:[%s2434 + $0x28] sm:$0xf]
    %v2446 = vld [vmem:[%s2434 + $0x2c] sm:$0xf]
    %v2447 = vld [vmem:[%s2434 + $0x30] sm:$0xf]
    %v2448 = vld [vmem:[%s2434 + $0x34] sm:$0xf]
    %v2449 = vld [vmem:[%s2434 + $0x38] sm:$0xf]
    %v2450 = vld [vmem:[%s2434 + $0x3c] sm:$0xf]
    %v2451 = vld [vmem:[%s2434 + $0x40] sm:$0xf]
    %v2452 = vld [vmem:[%s2434 + $0x44] sm:$0xf]
    %v2453 = vld [vmem:[%s2434 + $0x48] sm:$0xf]
    %v2454 = vld [vmem:[%s2434 + $0x4c] sm:$0xf]
    %v2455 = vld [vmem:[%s2434 + $0x50] sm:$0xf]
    %v2456 = vld [vmem:[%s2434 + $0x54] sm:$0xf]
    %v2457 = vld [vmem:[%s2434 + $0x58] sm:$0xf]
    %v2458 = vld [vmem:[%s2434 + $0x5c] sm:$0xf]
    %v2459 = vld [vmem:[%s2434 + $0x60] sm:$0xf]
    %v2460 = vld [vmem:[%s2434 + $0x64] sm:$0xf]
    %v2461 = vld [vmem:[%s2434 + $0x68] sm:$0xf]
    %v2462 = vld [vmem:[%s2434 + $0x6c] sm:$0xf]
    %v2463 = vld [vmem:[%s2434 + $0x70] sm:$0xf]
    %v2464 = vld [vmem:[%s2434 + $0x74] sm:$0xf]
    %v2465 = vld [vmem:[%s2434 + $0x78] sm:$0xf]
    %v2466 = vld [vmem:[%s2434 + $0x7c] sm:$0xf]
    %s2467 = scalar_lea.vmem %s13, 1
    %v2468 = vld [vmem:[%s2467] sm:$0x1]
    %v2470 = vperm.slane %v2468, 0
    %v2504 = vunpack.c.l.b16 %v2435
    %v2505 = vunpack.c.l.b16 %v2436
    %v2506 = vunpack.c.l.b16 %v2437
    %v2507 = vunpack.c.l.b16 %v2438
    %v2508 = vunpack.c.l.b16 %v2439
    %v2509 = vunpack.c.l.b16 %v2440
    %v2510 = vunpack.c.l.b16 %v2441
    %v2511 = vunpack.c.l.b16 %v2442
    %v2512 = vunpack.c.l.b16 %v2443
    %v2513 = vunpack.c.l.b16 %v2444
    %v2514 = vunpack.c.l.b16 %v2445
    %v2515 = vunpack.c.l.b16 %v2446
    %v2516 = vunpack.c.l.b16 %v2447
    %v2517 = vunpack.c.l.b16 %v2448
    %v2518 = vunpack.c.l.b16 %v2449
    %v2519 = vunpack.c.l.b16 %v2450
    %v2520 = vunpack.c.l.b16 %v2451
    %v2521 = vunpack.c.l.b16 %v2452
    %v2522 = vunpack.c.l.b16 %v2453
    %v2523 = vunpack.c.l.b16 %v2454
    %v2524 = vunpack.c.l.b16 %v2455
    %v2525 = vunpack.c.l.b16 %v2456
    %v2526 = vunpack.c.l.b16 %v2457
    %v2527 = vunpack.c.l.b16 %v2458
    %v2528 = vunpack.c.l.b16 %v2459
    %v2529 = vunpack.c.l.b16 %v2460
    %v2530 = vunpack.c.l.b16 %v2461
    %v2531 = vunpack.c.l.b16 %v2462
    %v2532 = vunpack.c.l.b16 %v2463
    %v2533 = vunpack.c.l.b16 %v2464
    %v2534 = vunpack.c.l.b16 %v2465
    %v2535 = vunpack.c.l.b16 %v2466
    %v2536 = vpack.c.b16 %v2505, %v2504
    %v2537 = vpack.c.b16 %v2507, %v2506
    %v2538 = vpack.c.b16 %v2509, %v2508
    %v2539 = vpack.c.b16 %v2511, %v2510
    %v2540 = vpack.c.b16 %v2513, %v2512
    %v2541 = vpack.c.b16 %v2515, %v2514
    %v2542 = vpack.c.b16 %v2517, %v2516
    %v2543 = vpack.c.b16 %v2519, %v2518
    %v2544 = vpack.c.b16 %v2521, %v2520
    %v2545 = vpack.c.b16 %v2523, %v2522
    %v2546 = vpack.c.b16 %v2525, %v2524
    %v2547 = vpack.c.b16 %v2527, %v2526
    %v2548 = vpack.c.b16 %v2529, %v2528
    %v2549 = vpack.c.b16 %v2531, %v2530
    %v2550 = vpack.c.b16 %v2533, %v2532
    %v2551 = vpack.c.b16 %v2535, %v2534
    %2568 = vmatpush.bf16.msra.mxu0 %v2543
    %2569 = vmatpush.bf16.msra.mxu0 %v2542
    %2570 = vmatpush.bf16.msra.mxu0 %v2541
    %2571 = vmatpush.bf16.msra.mxu0 %v2540
    %2572 = vmatpush.bf16.msra.mxu0 %v2539
    %2573 = vmatpush.bf16.msra.mxu0 %v2538
    %2574 = vmatpush.bf16.msra.mxu0 %v2537
    %2575 = vmatpush.bf16.msra.mxu0 %v2536
    %2576 = vmatmul.bf16.gmra.mxu0 %v2432
    %v2577 = vpop.f32.mrf.mxu0
    %v2578 = vadd.f32 %v2470, %v2577
    %v2579 = vpop.f32.mrf.mxu0
    %v2580 = vadd.f32 %v2470, %v2579
    %2581 = vdwg.mxu0
    %2582 = vmatpush.bf16.msra.mxu0 %v2551
    %2583 = vmatpush.bf16.msra.mxu0 %v2550
    %2584 = vmatpush.bf16.msra.mxu0 %v2549
    %2585 = vmatpush.bf16.msra.mxu0 %v2548
    %2586 = vmatpush.bf16.msra.mxu0 %v2547
    %2587 = vmatpush.bf16.msra.mxu0 %v2546
    %2588 = vmatpush.bf16.msra.mxu0 %v2545
    %2589 = vmatpush.bf16.msra.mxu0 %v2544
    %2590 = vmatmul.bf16.gmra.mxu0 %v2433
    %v2591 = vpop.f32.mrf.mxu0
    %v2592 = vadd.f32 %v2578, %v2591
    %v2593 = vpop.f32.mrf.mxu0
    %v2594 = vadd.f32 %v2580, %v2593
    %2595 = vdwg.mxu0
    %v2596 = vadd.f32 %v2261, %v2592
    %v2597 = vadd.f32 %v2262, %v2594
    %s2598 = scalar_lea.vmem %s14, 1
    %v2599 = vld [vmem:[%s2598] sm:$0x1]
    %s2600 = scalar_lea.vmem %s15, 1
    %v2601 = vld [vmem:[%s2600] sm:$0x1]
    %2602 = vadd.xlane.f32.xlu0 %v2596
    %v2603 = vpop.xlane.xlu0 %2602
    %2604 = vadd.xlane.f32.xlu0 %v2597
    %v2605 = vpop.xlane.xlu0 %2604
    %v2606 = vmul.f32 %v2603, %v138
    %v2607 = vmul.f32 %v2605, %v138
    %v2608 = vsub.f32 %v2596, %v2606
    %v2609 = vsub.f32 %v2597, %v2607
    %v2610 = vmul.f32 %v2608, %v2608
    %v2611 = vmul.f32 %v2609, %v2609
    %2612 = vadd.xlane.f32.xlu0 %v2610
    %v2613 = vpop.xlane.xlu0 %2612
    %2614 = vadd.xlane.f32.xlu0 %v2611
    %v2615 = vpop.xlane.xlu0 %2614
    %v2616 = vmul.f32 %v2613, %v138
    %v2617 = vmul.f32 %v2615, %v138
    %v2618 = vadd.f32 %v2616, 1e-05
    %v2619 = vadd.f32 %v2617, 1e-05
    %v2620 = vrsqrt.pop %v2618
    %v2621 = vmul.f32 %v2620, %v2618
    %v2622 = vmul.f32 %v2621, %v2620
    %v2623 = vmul.f32 0.5, %v2622
    %v2624 = vsub.f32 1.5, %v2623
    %v2625 = vmul.f32 %v2620, %v2624
    %vm2626 = vweird.f32 %v2618
    %vm2627 = vweird.f32 %v2620
    %vm2628 = vmor %vm2626, %vm2627
    %v2629 = vsel %vm2628, %v2620, %v2625
    %v2630 = vrsqrt.pop %v2619
    %v2631 = vmul.f32 %v2630, %v2619
    %v2632 = vmul.f32 %v2631, %v2630
    %v2633 = vmul.f32 0.5, %v2632
    %v2634 = vsub.f32 1.5, %v2633
    %v2635 = vmul.f32 %v2630, %v2634
    %vm2636 = vweird.f32 %v2619
    %vm2637 = vweird.f32 %v2630
    %vm2638 = vmor %vm2636, %vm2637
    %v2639 = vsel %vm2638, %v2630, %v2635
    %v2640 = vmul.f32 %v2608, %v2629
    %v2641 = vmul.f32 %v2609, %v2639
    %v2643 = vperm.slane %v2599, 0
    %v2645 = vmul.f32 %v2640, %v2643
    %v2646 = vmul.f32 %v2641, %v2643
    %v2648 = vperm.slane %v2601, 0
    %v2650 = vadd.f32 %v2645, %v2648
    %v2651 = vadd.f32 %v2646, %v2648
    %v2653 = vrot.slane %v2651, 7
    %vm2655 = vcmask 1040384
    %v2656 = vsel %vm2655, %v2650, %v2653
    %v2657 = vpack.c.bf16 %v2656, %v2656
    %v2658 = vld [vmem:[%s16] sm:$0xf]
    %v2659 = vld [vmem:[%s16 + $0x4] sm:$0xf]
    %v2660 = vld [vmem:[%s16 + $0x8] sm:$0xf]
    %v2661 = vld [vmem:[%s16 + $0xc] sm:$0xf]
    %v2662 = vld [vmem:[%s16 + $0x10] sm:$0xf]
    %v2663 = vld [vmem:[%s16 + $0x14] sm:$0xf]
    %v2664 = vld [vmem:[%s16 + $0x18] sm:$0xf]
    %v2665 = vld [vmem:[%s16 + $0x1c] sm:$0xf]
    %v2666 = vld [vmem:[%s16 + $0x20] sm:$0xf]
    %v2667 = vld [vmem:[%s16 + $0x24] sm:$0xf]
    %v2668 = vld [vmem:[%s16 + $0x28] sm:$0xf]
    %v2669 = vld [vmem:[%s16 + $0x2c] sm:$0xf]
    %v2670 = vld [vmem:[%s16 + $0x30] sm:$0xf]
    %v2671 = vld [vmem:[%s16 + $0x34] sm:$0xf]
    %v2672 = vld [vmem:[%s16 + $0x38] sm:$0xf]
    %v2673 = vld [vmem:[%s16 + $0x3c] sm:$0xf]
    %v2674 = vld [vmem:[#allocation7] sm:$0x1]
    %v2676 = vperm.slane %v2674, 0
    %v2694 = vunpack.c.l.b16 %v2658
    %v2695 = vunpack.c.l.b16 %v2659
    %v2696 = vunpack.c.l.b16 %v2660
    %v2697 = vunpack.c.l.b16 %v2661
    %v2698 = vunpack.c.l.b16 %v2662
    %v2699 = vunpack.c.l.b16 %v2663
    %v2700 = vunpack.c.l.b16 %v2664
    %v2701 = vunpack.c.l.b16 %v2665
    %v2702 = vunpack.c.l.b16 %v2666
    %v2703 = vunpack.c.l.b16 %v2667
    %v2704 = vunpack.c.l.b16 %v2668
    %v2705 = vunpack.c.l.b16 %v2669
    %v2706 = vunpack.c.l.b16 %v2670
    %v2707 = vunpack.c.l.b16 %v2671
    %v2708 = vunpack.c.l.b16 %v2672
    %v2709 = vunpack.c.l.b16 %v2673
    %v2710 = vpack.c.b16 %v2695, %v2694
    %v2711 = vpack.c.b16 %v2697, %v2696
    %v2712 = vpack.c.b16 %v2699, %v2698
    %v2713 = vpack.c.b16 %v2701, %v2700
    %v2714 = vpack.c.b16 %v2703, %v2702
    %v2715 = vpack.c.b16 %v2705, %v2704
    %v2716 = vpack.c.b16 %v2707, %v2706
    %v2717 = vpack.c.b16 %v2709, %v2708
    %2726 = vmatpush.bf16.msra.mxu0 %v2717
    %2727 = vmatpush.bf16.msra.mxu0 %v2716
    %2728 = vmatpush.bf16.msra.mxu0 %v2715
    %2729 = vmatpush.bf16.msra.mxu0 %v2714
    %2730 = vmatpush.bf16.msra.mxu0 %v2713
    %2731 = vmatpush.bf16.msra.mxu0 %v2712
    %2732 = vmatpush.bf16.msra.mxu0 %v2711
    %2733 = vmatpush.bf16.msra.mxu0 %v2710
    %2734 = vmatmul.bf16.gmra.mxu0 %v2657
    %v2735 = vpop.f32.mrf.mxu0
    %v2736 = vadd.f32 %v2676, %v2735
    %v2737 = vpop.f32.mrf.mxu0
    %2738 = vdwg.mxu0
    %v2739 = vtanh.pop %v2736
    %2740 = vst [vmem:[%s18] sm:$0x3] %v2739
    // Predicated region
    $region90: #{fwd.2} parent=1 // pred_check
      _
    $region91: #{fwd.2} parent=1 // pred_check_branch
      %2742 = sbr.rel (0) target = $region93
    $region92: #{fwd.2} parent=1 // pred_region
      _
    $region93: #{fwd.2} parent=1 // pred_fallthru
      _
    // Predicated region
    $region94: #{fwd.2} parent=1 // pred_check
      _
    $region95: #{fwd.2} parent=1 // pred_check_branch
      %2744 = sbr.rel (0) target = $region97
    $region96: #{fwd.2} parent=1 // pred_region
      _
    $region97: #{fwd.2} parent=1 // pred_fallthru
      _
    %2745 = vsyncpa [#allocation3], 1
    %2746 = vsyncpa [#allocation5], 1
    %2747 = vsyncpa [#allocation8], 1

</llo_original>
